<compile_context>
chip_gen: v6e
topology: v6e:2x2x1
jax: 0.10.0
libtpu: 0.0.40
codegen_flags: <defaults>
</compile_context>

<pallas_src>
import jax
import jax.numpy as jnp
from jax.experimental import pallas as pl
from jax.experimental.pallas import tpu as pltpu


def residual_block_kernel(x_ref, w1_ref, b1_ref, w2_ref, b2_ref,
                          a1t_ref, a2t_ref, se1_ref, se2_ref, id_ref, out_ref):
    # x_ref  : (1, H+4, (W+2)*C) f32  input, H padded by 2, W padded by 1
    # w1_ref : (3, (W+2)*C, (W+2)*C) bf16  banded conv1 weights (BN1 folded)
    # b1_ref : (1, (W+2)*C) f32            conv1+BN1 bias, zero in the W-halo
    # w2_ref : (3, (W+2)*C, W*C) bf16      banded conv2 weights (BN2 folded)
    # b2_ref : (1, W*C) f32
    # a1t_ref: (1, (W+2)*C) f32  PReLU slope tiled per W position (padded)
    # a2t_ref: (1, W*C) f32      PReLU slope tiled per W position
    # se1_ref: (W*C, Cr) bf16    SE fc1 with avg-pool matrix + 1/(H*W) folded
    # se2_ref: (Cr, W*C) bf16    SE fc2 with channel-replication folded in
    # id_ref : (1, H, W*C) f32   residual identity (lane-dense slab)
    # out_ref: (1, H, W*C) f32
    H = out_ref.shape[1]
    WC = out_ref.shape[2]
    WpC = x_ref.shape[2]
    Hp2 = H + 2

    x2 = x_ref[0]                                       # (H+4, WpC) f32

    # ---- conv1 + folded BN1: 3 lane-dense bf16 matmuls, f32 accumulation ----
    # Computed over H+2 rows; rows 0 and H+1 become conv2's H-halo (masked 0).
    y1 = jnp.zeros((Hp2, WpC), jnp.float32)
    for ky in range(3):
        y1 = y1 + jnp.dot(x2[ky:ky + Hp2, :].astype(jnp.bfloat16), w1_ref[ky],
                          preferred_element_type=jnp.float32)
    a1 = y1 + b1_ref[...]
    a1 = jnp.where(a1 > 0, a1, a1t_ref[...] * a1)                 # PReLU
    row = jax.lax.broadcasted_iota(jnp.int32, (Hp2, 1), 0)
    a1 = jnp.where((row >= 1) & (row <= H), a1, 0.0)              # H-halo = 0
    # (W-halo columns are already exactly zero: zero weight columns + zero bias)

    # ---- conv2 + folded BN2 ----
    y2 = jnp.zeros((H, WC), jnp.float32)
    for ky in range(3):
        y2 = y2 + jnp.dot(a1[ky:ky + H, :].astype(jnp.bfloat16), w2_ref[ky],
                          preferred_element_type=jnp.float32)
    y2 = y2 + b2_ref[...]

    # ---- Squeeze-and-Excitation: pool + gate broadcast as MXU matmuls ----
    ones_h = jnp.ones((1, H), jnp.float32)
    rowsum = jnp.dot(ones_h, y2, preferred_element_type=jnp.float32)   # (1, WC)
    mid = jnp.maximum(
        jnp.dot(rowsum.astype(jnp.bfloat16), se1_ref[...],
                preferred_element_type=jnp.float32), 0.0)              # (1, Cr)
    gate = jax.nn.sigmoid(
        jnp.dot(mid.astype(jnp.bfloat16), se2_ref[...],
                preferred_element_type=jnp.float32))                   # (1, WC)

    # ---- channel gate + residual + PReLU, lane-dense full-lane store ----
    out = y2 * gate + id_ref[0]
    out = jnp.where(out > 0, out, a2t_ref[...] * out)
    out_ref[...] = out.reshape(1, H, WC)


def residual_block(x_nchw, params, eps=1e-5):
    """Wrapper: NCHW in / NCHW out, one grid step per batch element."""
    x = jnp.transpose(x_nchw, (0, 2, 3, 1)).astype(jnp.float32)     # NHWC
    B, H, W, C = x.shape
    Cr = params["se_w1"].shape[1]
    Wp = W + 2

    # ---- fold BN (eval mode, running stats) into conv weights / biases ----
    def fold(w, b, g, be, m, v):
        s = g / jnp.sqrt(v + eps)
        return w * s[None, None, None, :], b * s + (be - m * s)

    w1f, b1f = fold(params["conv1_w"], params["conv1_b"],
                    params["bn1_gamma"], params["bn1_beta"],
                    params["bn1_mean"], params["bn1_var"])
    w2f, b2f = fold(params["conv2_w"], params["conv2_b"],
                    params["bn2_gamma"], params["bn2_beta"],
                    params["bn2_mean"], params["bn2_var"])

    # ---- block-banded weights: fold the 3 kx taps + Cin into one K axis ----
    def banded(wf, out_padded):
        wout = Wp if out_padded else W
        col0 = 1 if out_padded else 0
        bands = []
        for ky in range(3):
            acc = jnp.zeros((Wp * C, wout * C), jnp.float32)
            for kx in range(3):
                sel = jnp.zeros((Wp, wout), jnp.float32)
                sel = sel.at[jnp.arange(W) + kx, jnp.arange(W) + col0].set(1.0)
                acc = acc + jnp.kron(sel, wf[ky, kx])
            bands.append(acc)
        return jnp.stack(bands, 0)

    w1b = banded(w1f, out_padded=True).astype(jnp.bfloat16)    # (3, WpC, WpC)
    w2b = banded(w2f, out_padded=False).astype(jnp.bfloat16)   # (3, WpC, WC)

    interior = jnp.zeros((Wp,), jnp.float32).at[1:W + 1].set(1.0)
    b1t = jnp.kron(interior, b1f)[None, :]                     # (1, WpC)
    b2t = jnp.tile(b2f, W)[None, :]                            # (1, WC)
    a1t = jnp.tile(params["prelu_alpha"], Wp)[None, :]
    a2t = jnp.tile(params["prelu_alpha"], W)[None, :]

    # ---- SE weights with pooling / channel-broadcast matrices folded in ----
    eye = jnp.eye(C, dtype=jnp.float32)
    se1 = (jnp.tile(eye, (W, 1)) @ params["se_w1"] / (H * W)).astype(jnp.bfloat16)
    se2 = (params["se_w2"] @ jnp.tile(eye, (1, W))).astype(jnp.bfloat16)

    # ---- lane-dense input slabs ----
    x_pad = jnp.pad(x, ((0, 0), (2, 2), (1, 1), (0, 0)))
    x_slab = x_pad.reshape(B, H + 4, Wp * C)                   # conv input
    x_id = x.reshape(B, H, W * C)                              # residual path

    out_slab = pl.pallas_call(
        residual_block_kernel,
        out_shape=jax.ShapeDtypeStruct((B, H, W * C), jnp.float32),
        grid_spec=pltpu.PrefetchScalarGridSpec(
            num_scalar_prefetch=0,
            grid=(B,),
            in_specs=[
                pl.BlockSpec((1, H + 4, Wp * C), lambda b: (b, 0, 0)),
                pl.BlockSpec((3, Wp * C, Wp * C), lambda b: (0, 0, 0)),
                pl.BlockSpec((1, Wp * C), lambda b: (0, 0)),
                pl.BlockSpec((3, Wp * C, W * C), lambda b: (0, 0, 0)),
                pl.BlockSpec((1, W * C), lambda b: (0, 0)),
                pl.BlockSpec((1, Wp * C), lambda b: (0, 0)),
                pl.BlockSpec((1, W * C), lambda b: (0, 0)),
                pl.BlockSpec((W * C, Cr), lambda b: (0, 0)),
                pl.BlockSpec((Cr, W * C), lambda b: (0, 0)),
                pl.BlockSpec((1, H, W * C), lambda b: (b, 0, 0)),
            ],
            out_specs=pl.BlockSpec((1, H, W * C), lambda b: (b, 0, 0)),
        ),
        compiler_params=pltpu.CompilerParams(
            dimension_semantics=("parallel",)),
    )(x_slab, w1b, b1t, w2b, b2t, a1t, a2t, se1, se2, x_id)

    out = out_slab.reshape(B, H, W, C)
    return jnp.transpose(out, (0, 3, 1, 2))                    # back to NCHW


def reference(x_nchw, params):
    """Pure-JAX reference of the same (eval-mode BN) forward, in f32."""
    eps = 1e-5
    hp = jax.lax.Precision.HIGHEST

    def conv(x, w_hwio, b):
        y = jax.lax.conv_general_dilated(
            x, w_hwio, (1, 1), "SAME",
            dimension_numbers=("NCHW", "HWIO", "NCHW"), precision=hp)
        return y + b[None, :, None, None]

    def bn(x, g, be, m, v):
        return ((x - m[None, :, None, None])
                / jnp.sqrt(v[None, :, None, None] + eps)
                * g[None, :, None, None] + be[None, :, None, None])

    def prelu(x, a):
        return jnp.where(x > 0, x, a[None, :, None, None] * x)

    identity = x_nchw
    y = prelu(bn(conv(x_nchw, params["conv1_w"], params["conv1_b"]),
                 params["bn1_gamma"], params["bn1_beta"],
                 params["bn1_mean"], params["bn1_var"]),
              params["prelu_alpha"])
    y = bn(conv(y, params["conv2_w"], params["conv2_b"]),
           params["bn2_gamma"], params["bn2_beta"],
           params["bn2_mean"], params["bn2_var"])
    pooled = jnp.mean(y, axis=(2, 3))                             # (B, C)
    s = jax.nn.sigmoid(
        jnp.maximum(pooled @ params["se_w1"], 0.0) @ params["se_w2"])
    y = y * s[:, :, None, None]
    return prelu(y + identity, params["prelu_alpha"])


def make_params(key, C, reduction=16):
    ks = jax.random.split(key, 10)
    fan_out = 3 * 3 * C  # kaiming_normal_ fan_out, relu gain sqrt(2)
    std = jnp.sqrt(2.0 / fan_out)
    Cr = max(C // reduction, 1)
    return {
        "conv1_w": std * jax.random.normal(ks[0], (3, 3, C, C), jnp.float32),
        "conv1_b": 0.1 * jax.random.normal(ks[1], (C,), jnp.float32),
        "conv2_w": std * jax.random.normal(ks[2], (3, 3, C, C), jnp.float32),
        "conv2_b": 0.1 * jax.random.normal(ks[3], (C,), jnp.float32),
        "bn1_gamma": 1.0 + 0.1 * jax.random.normal(ks[4], (C,), jnp.float32),
        "bn1_beta": 0.1 * jax.random.normal(ks[5], (C,), jnp.float32),
        "bn1_mean": 0.1 * jax.random.normal(ks[6], (C,), jnp.float32),
        "bn1_var": jnp.abs(jax.random.normal(ks[7], (C,), jnp.float32)) + 0.5,
        "bn2_gamma": 1.0 + 0.1 * jax.random.normal(ks[8], (C,), jnp.float32),
        "bn2_beta": 0.1 * jax.random.normal(ks[9], (C,), jnp.float32),
        "bn2_mean": 0.1 * jax.random.normal(ks[4], (C,), jnp.float32),
        "bn2_var": jnp.abs(jax.random.normal(ks[5], (C,), jnp.float32)) + 0.5,
        "prelu_alpha": jnp.full((C,), 0.25, jnp.float32),
        "se_w1": (1.0 / jnp.sqrt(C)) *
                 jax.random.normal(ks[6], (C, Cr), jnp.float32),
        "se_w2": (1.0 / jnp.sqrt(Cr)) *
                 jax.random.normal(ks[7], (Cr, C), jnp.float32),
    }


if __name__ == "__main__":
    B, C, H, W = 2, 32, 16, 16          # channels=32 so SE reduction 32//16=2
    key = jax.random.PRNGKey(0)
    kx, kp = jax.random.split(key)
    x = jax.random.normal(kx, (B, C, H, W), jnp.float32)
    params = make_params(kp, C)

    out = jax.block_until_ready(residual_block(x, params))
    ref = jax.block_until_ready(reference(x, params))

    assert out.shape == (B, C, H, W)
    # Tolerance reflects bf16 MXU operands (per perf review) with f32
    # accumulation, through two chained 3x3 convs; the f32 reference stays
    # bit-accurate to the module's semantics.
    assert jnp.allclose(out, ref, atol=5e-2, rtol=5e-2), (
        float(jnp.max(jnp.abs(out - ref))))
    print("KERNEL_OK")
</pallas_src>

<mosaic_0001>
module attributes {stable_mosaic.version = 11 : i64} {
  func.func @residual_block_kernel(%arg0: i32, %arg1: memref<1x20x576xf32, #tpu.memory_space<vmem>>, %arg2: memref<3x576x576xbf16, #tpu.memory_space<vmem>>, %arg3: memref<1x576xf32, #tpu.memory_space<vmem>>, %arg4: memref<3x576x512xbf16, #tpu.memory_space<vmem>>, %arg5: memref<1x512xf32, #tpu.memory_space<vmem>>, %arg6: memref<1x576xf32, #tpu.memory_space<vmem>>, %arg7: memref<1x512xf32, #tpu.memory_space<vmem>>, %arg8: memref<512x2xbf16, #tpu.memory_space<vmem>>, %arg9: memref<2x512xbf16, #tpu.memory_space<vmem>>, %arg10: memref<1x16x512xf32, #tpu.memory_space<vmem>>, %arg11: memref<1x16x512xf32, #tpu.memory_space<vmem>>) attributes {dimension_semantics = [#tpu.dimension_semantics<parallel>], iteration_bounds = array<i64: 2>, scalar_prefetch = 0 : i64, scratch_operands = 0 : i64, tpu.core_type = #tpu.core_type<tc>, window_params = [{transform_indices = @transform_0, window_bounds = array<i64: 1, 20, 576>}, {pipeline_mode = #tpu.pipeline_mode<synchronous>, transform_indices = @transform_1, window_bounds = array<i64: 3, 576, 576>}, {pipeline_mode = #tpu.pipeline_mode<synchronous>, transform_indices = @transform_2, window_bounds = array<i64: 1, 576>}, {pipeline_mode = #tpu.pipeline_mode<synchronous>, transform_indices = @transform_3, window_bounds = array<i64: 3, 576, 512>}, {pipeline_mode = #tpu.pipeline_mode<synchronous>, transform_indices = @transform_4, window_bounds = array<i64: 1, 512>}, {pipeline_mode = #tpu.pipeline_mode<synchronous>, transform_indices = @transform_5, window_bounds = array<i64: 1, 576>}, {pipeline_mode = #tpu.pipeline_mode<synchronous>, transform_indices = @transform_6, window_bounds = array<i64: 1, 512>}, {pipeline_mode = #tpu.pipeline_mode<synchronous>, transform_indices = @transform_7, window_bounds = array<i64: 512, 2>}, {pipeline_mode = #tpu.pipeline_mode<synchronous>, transform_indices = @transform_8, window_bounds = array<i64: 2, 512>}, {transform_indices = @transform_9, window_bounds = array<i64: 1, 16, 512>}, {transform_indices = @transform_10, window_bounds = array<i64: 1, 16, 512>}]} {
    %c0 = arith.constant 0 : index
    %c0_0 = arith.constant 0 : index
    %c0_1 = arith.constant 0 : index
    %0 = vector.load %arg1[%c0, %c0_0, %c0_1] : memref<1x20x576xf32, #tpu.memory_space<vmem>>, vector<1x20x576xf32>
    %1 = vector.shape_cast %0 : vector<1x20x576xf32> to vector<20x576xf32>
    %cst = arith.constant 0.000000e+00 : f32
    %2 = vector.broadcast %cst : f32 to vector<18x576xf32>
    %3 = vector.extract_strided_slice %1 {offsets = [0, 0], sizes = [18, 576], strides = [1, 1]} : vector<20x576xf32> to vector<18x576xf32>
    %4 = arith.truncf %3 : vector<18x576xf32> to vector<18x576xbf16>
    %c0_2 = arith.constant 0 : index
    %c0_3 = arith.constant 0 : index
    %c0_4 = arith.constant 0 : index
    %5 = vector.load %arg2[%c0_2, %c0_3, %c0_4] : memref<3x576x576xbf16, #tpu.memory_space<vmem>>, vector<1x576x576xbf16>
    %6 = vector.shape_cast %5 : vector<1x576x576xbf16> to vector<576x576xbf16>
    %cst_5 = arith.constant dense<0.000000e+00> : vector<18x576xf32>
    %7 = tpu.matmul %4, %6, %cst_5 {dimension_numbers = #tpu.dot_dimension_numbers<[1], [0], [0], [1], [0, 0, 1, 1], [], []>} : vector<18x576xbf16>, vector<576x576xbf16>, vector<18x576xf32> -> vector<18x576xf32>
    %8 = arith.addf %2, %7 : vector<18x576xf32>
    %9 = vector.extract_strided_slice %1 {offsets = [1, 0], sizes = [18, 576], strides = [1, 1]} : vector<20x576xf32> to vector<18x576xf32>
    %10 = arith.truncf %9 : vector<18x576xf32> to vector<18x576xbf16>
    %c1 = arith.constant 1 : index
    %c0_6 = arith.constant 0 : index
    %c0_7 = arith.constant 0 : index
    %11 = vector.load %arg2[%c1, %c0_6, %c0_7] : memref<3x576x576xbf16, #tpu.memory_space<vmem>>, vector<1x576x576xbf16>
    %12 = vector.shape_cast %11 : vector<1x576x576xbf16> to vector<576x576xbf16>
    %cst_8 = arith.constant dense<0.000000e+00> : vector<18x576xf32>
    %13 = tpu.matmul %10, %12, %cst_8 {dimension_numbers = #tpu.dot_dimension_numbers<[1], [0], [0], [1], [0, 0, 1, 1], [], []>} : vector<18x576xbf16>, vector<576x576xbf16>, vector<18x576xf32> -> vector<18x576xf32>
    %14 = arith.addf %8, %13 : vector<18x576xf32>
    %15 = vector.extract_strided_slice %1 {offsets = [2, 0], sizes = [18, 576], strides = [1, 1]} : vector<20x576xf32> to vector<18x576xf32>
    %16 = arith.truncf %15 : vector<18x576xf32> to vector<18x576xbf16>
    %c2 = arith.constant 2 : index
    %c0_9 = arith.constant 0 : index
    %c0_10 = arith.constant 0 : index
    %17 = vector.load %arg2[%c2, %c0_9, %c0_10] : memref<3x576x576xbf16, #tpu.memory_space<vmem>>, vector<1x576x576xbf16>
    %18 = vector.shape_cast %17 : vector<1x576x576xbf16> to vector<576x576xbf16>
    %cst_11 = arith.constant dense<0.000000e+00> : vector<18x576xf32>
    %19 = tpu.matmul %16, %18, %cst_11 {dimension_numbers = #tpu.dot_dimension_numbers<[1], [0], [0], [1], [0, 0, 1, 1], [], []>} : vector<18x576xbf16>, vector<576x576xbf16>, vector<18x576xf32> -> vector<18x576xf32>
    %20 = arith.addf %14, %19 : vector<18x576xf32>
    %c0_12 = arith.constant 0 : index
    %c0_13 = arith.constant 0 : index
    %21 = vector.load %arg3[%c0_12, %c0_13] : memref<1x576xf32, #tpu.memory_space<vmem>>, vector<1x576xf32>
    %22 = vector.broadcast %21 : vector<1x576xf32> to vector<18x576xf32>
    %23 = arith.addf %20, %22 : vector<18x576xf32>
    %cst_14 = arith.constant 0.000000e+00 : f32
    %24 = vector.broadcast %cst_14 : f32 to vector<18x576xf32>
    %25 = arith.cmpf ogt, %23, %24 : vector<18x576xf32>
    %c0_15 = arith.constant 0 : index
    %c0_16 = arith.constant 0 : index
    %26 = vector.load %arg6[%c0_15, %c0_16] : memref<1x576xf32, #tpu.memory_space<vmem>>, vector<1x576xf32>
    %27 = vector.broadcast %26 : vector<1x576xf32> to vector<18x576xf32>
    %28 = arith.mulf %27, %23 : vector<18x576xf32>
    %29 = arith.select %25, %23, %28 : vector<18x576xi1>, vector<18x576xf32>
    %30 = tpu.iota {dimensions = array<i32: 0>} : vector<18x1xi32>
    %c1_i32 = arith.constant 1 : i32
    %31 = vector.broadcast %c1_i32 : i32 to vector<18x1xi32>
    %32 = arith.cmpi sge, %30, %31 : vector<18x1xi32>
    %c16_i32 = arith.constant 16 : i32
    %33 = vector.broadcast %c16_i32 : i32 to vector<18x1xi32>
    %34 = arith.cmpi sle, %30, %33 : vector<18x1xi32>
    %35 = arith.andi %32, %34 : vector<18x1xi1>
    %cst_17 = arith.constant 0.000000e+00 : f32
    %36 = vector.shape_cast %35 : vector<18x1xi1> to vector<18x1xi1>
    %37 = vector.broadcast %36 : vector<18x1xi1> to vector<18x576xi1>
    %38 = vector.broadcast %cst_17 : f32 to vector<18x576xf32>
    %39 = arith.select %37, %29, %38 : vector<18x576xi1>, vector<18x576xf32>
    %cst_18 = arith.constant 0.000000e+00 : f32
    %40 = vector.broadcast %cst_18 : f32 to vector<16x512xf32>
    %41 = vector.extract_strided_slice %39 {offsets = [0, 0], sizes = [16, 576], strides = [1, 1]} : vector<18x576xf32> to vector<16x576xf32>
    %42 = arith.truncf %41 : vector<16x576xf32> to vector<16x576xbf16>
    %c0_19 = arith.constant 0 : index
    %c0_20 = arith.constant 0 : index
    %c0_21 = arith.constant 0 : index
    %43 = vector.load %arg4[%c0_19, %c0_20, %c0_21] : memref<3x576x512xbf16, #tpu.memory_space<vmem>>, vector<1x576x512xbf16>
    %44 = vector.shape_cast %43 : vector<1x576x512xbf16> to vector<576x512xbf16>
    %cst_22 = arith.constant dense<0.000000e+00> : vector<16x512xf32>
    %45 = tpu.matmul %42, %44, %cst_22 {dimension_numbers = #tpu.dot_dimension_numbers<[1], [0], [0], [1], [0, 0, 1, 1], [], []>} : vector<16x576xbf16>, vector<576x512xbf16>, vector<16x512xf32> -> vector<16x512xf32>
    %46 = arith.addf %40, %45 : vector<16x512xf32>
    %47 = vector.extract_strided_slice %39 {offsets = [1, 0], sizes = [16, 576], strides = [1, 1]} : vector<18x576xf32> to vector<16x576xf32>
    %48 = arith.truncf %47 : vector<16x576xf32> to vector<16x576xbf16>
    %c1_23 = arith.constant 1 : index
    %c0_24 = arith.constant 0 : index
    %c0_25 = arith.constant 0 : index
    %49 = vector.load %arg4[%c1_23, %c0_24, %c0_25] : memref<3x576x512xbf16, #tpu.memory_space<vmem>>, vector<1x576x512xbf16>
    %50 = vector.shape_cast %49 : vector<1x576x512xbf16> to vector<576x512xbf16>
    %cst_26 = arith.constant dense<0.000000e+00> : vector<16x512xf32>
    %51 = tpu.matmul %48, %50, %cst_26 {dimension_numbers = #tpu.dot_dimension_numbers<[1], [0], [0], [1], [0, 0, 1, 1], [], []>} : vector<16x576xbf16>, vector<576x512xbf16>, vector<16x512xf32> -> vector<16x512xf32>
    %52 = arith.addf %46, %51 : vector<16x512xf32>
    %53 = vector.extract_strided_slice %39 {offsets = [2, 0], sizes = [16, 576], strides = [1, 1]} : vector<18x576xf32> to vector<16x576xf32>
    %54 = arith.truncf %53 : vector<16x576xf32> to vector<16x576xbf16>
    %c2_27 = arith.constant 2 : index
    %c0_28 = arith.constant 0 : index
    %c0_29 = arith.constant 0 : index
    %55 = vector.load %arg4[%c2_27, %c0_28, %c0_29] : memref<3x576x512xbf16, #tpu.memory_space<vmem>>, vector<1x576x512xbf16>
    %56 = vector.shape_cast %55 : vector<1x576x512xbf16> to vector<576x512xbf16>
    %cst_30 = arith.constant dense<0.000000e+00> : vector<16x512xf32>
    %57 = tpu.matmul %54, %56, %cst_30 {dimension_numbers = #tpu.dot_dimension_numbers<[1], [0], [0], [1], [0, 0, 1, 1], [], []>} : vector<16x576xbf16>, vector<576x512xbf16>, vector<16x512xf32> -> vector<16x512xf32>
    %58 = arith.addf %52, %57 : vector<16x512xf32>
    %c0_31 = arith.constant 0 : index
    %c0_32 = arith.constant 0 : index
    %59 = vector.load %arg5[%c0_31, %c0_32] : memref<1x512xf32, #tpu.memory_space<vmem>>, vector<1x512xf32>
    %60 = vector.broadcast %59 : vector<1x512xf32> to vector<16x512xf32>
    %61 = arith.addf %58, %60 : vector<16x512xf32>
    %cst_33 = arith.constant 1.000000e+00 : f32
    %62 = vector.broadcast %cst_33 : f32 to vector<1x16xf32>
    %cst_34 = arith.constant dense<0.000000e+00> : vector<1x512xf32>
    %63 = tpu.matmul %62, %61, %cst_34 {dimension_numbers = #tpu.dot_dimension_numbers<[1], [0], [0], [1], [0, 0, 1, 1], [], []>} : vector<1x16xf32>, vector<16x512xf32>, vector<1x512xf32> -> vector<1x512xf32>
    %64 = arith.truncf %63 : vector<1x512xf32> to vector<1x512xbf16>
    %c0_35 = arith.constant 0 : index
    %c0_36 = arith.constant 0 : index
    %65 = vector.load %arg8[%c0_35, %c0_36] : memref<512x2xbf16, #tpu.memory_space<vmem>>, vector<512x2xbf16>
    %cst_37 = arith.constant dense<0.000000e+00> : vector<1x2xf32>
    %66 = tpu.matmul %64, %65, %cst_37 {dimension_numbers = #tpu.dot_dimension_numbers<[1], [0], [0], [1], [0, 0, 1, 1], [], []>} : vector<1x512xbf16>, vector<512x2xbf16>, vector<1x2xf32> -> vector<1x2xf32>
    %cst_38 = arith.constant 0.000000e+00 : f32
    %67 = vector.broadcast %cst_38 : f32 to vector<1x2xf32>
    %68 = arith.maximumf %66, %67 : vector<1x2xf32>
    %69 = arith.truncf %68 : vector<1x2xf32> to vector<1x2xbf16>
    %c0_39 = arith.constant 0 : index
    %c0_40 = arith.constant 0 : index
    %70 = vector.load %arg9[%c0_39, %c0_40] : memref<2x512xbf16, #tpu.memory_space<vmem>>, vector<2x512xbf16>
    %cst_41 = arith.constant dense<0.000000e+00> : vector<1x512xf32>
    %71 = tpu.matmul %69, %70, %cst_41 {dimension_numbers = #tpu.dot_dimension_numbers<[1], [0], [0], [1], [0, 0, 1, 1], [], []>} : vector<1x2xbf16>, vector<2x512xbf16>, vector<1x512xf32> -> vector<1x512xf32>
    %72 = arith.negf %71 : vector<1x512xf32>
    %73 = math.exp %72 : vector<1x512xf32>
    %cst_42 = arith.constant 1.000000e+00 : f32
    %74 = vector.broadcast %cst_42 : f32 to vector<1x512xf32>
    %75 = arith.addf %74, %73 : vector<1x512xf32>
    %76 = arith.divf %74, %75 : vector<1x512xf32>
    %77 = vector.broadcast %76 : vector<1x512xf32> to vector<16x512xf32>
    %78 = arith.mulf %61, %77 : vector<16x512xf32>
    %c0_43 = arith.constant 0 : index
    %c0_44 = arith.constant 0 : index
    %c0_45 = arith.constant 0 : index
    %79 = vector.load %arg10[%c0_43, %c0_44, %c0_45] : memref<1x16x512xf32, #tpu.memory_space<vmem>>, vector<1x16x512xf32>
    %80 = vector.shape_cast %79 : vector<1x16x512xf32> to vector<16x512xf32>
    %81 = arith.addf %78, %80 : vector<16x512xf32>
    %cst_46 = arith.constant 0.000000e+00 : f32
    %82 = vector.broadcast %cst_46 : f32 to vector<16x512xf32>
    %83 = arith.cmpf ogt, %81, %82 : vector<16x512xf32>
    %c0_47 = arith.constant 0 : index
    %c0_48 = arith.constant 0 : index
    %84 = vector.load %arg7[%c0_47, %c0_48] : memref<1x512xf32, #tpu.memory_space<vmem>>, vector<1x512xf32>
    %85 = vector.broadcast %84 : vector<1x512xf32> to vector<16x512xf32>
    %86 = arith.mulf %85, %81 : vector<16x512xf32>
    %87 = arith.select %83, %81, %86 : vector<16x512xi1>, vector<16x512xf32>
    %88 = vector.shape_cast %87 : vector<16x512xf32> to vector<1x16x512xf32>
    %c0_49 = arith.constant 0 : index
    %c0_50 = arith.constant 0 : index
    %c0_51 = arith.constant 0 : index
    %89 = vector.load %arg11[%c0_49, %c0_50, %c0_51] : memref<1x16x512xf32, #tpu.memory_space<vmem>>, vector<1x16x512xf32>
    tpu.vector_store %arg11[%c0_49, %c0_50, %c0_51], %88 {strides = array<i32>} : memref<1x16x512xf32, #tpu.memory_space<vmem>>, vector<1x16x512xf32>,
    return
  }
  func.func @transform_0(%arg0: i32) -> (i32, i32, i32) {
    %c0_i32 = arith.constant 0 : i32
    %c0_i32_0 = arith.constant 0 : i32
    %c0_i32_1 = arith.constant 0 : i32
    return %arg0, %c0_i32, %c0_i32_0 : i32, i32, i32
  }
  func.func @transform_1(%arg0: i32) -> (i32, i32, i32) {
    %c0_i32 = arith.constant 0 : i32
    %c0_i32_0 = arith.constant 0 : i32
    %c0_i32_1 = arith.constant 0 : i32
    %c0_i32_2 = arith.constant 0 : i32
    return %c0_i32, %c0_i32_0, %c0_i32_1 : i32, i32, i32
  }
  func.func @transform_2(%arg0: i32) -> (i32, i32) {
    %c0_i32 = arith.constant 0 : i32
    %c0_i32_0 = arith.constant 0 : i32
    %c0_i32_1 = arith.constant 0 : i32
    return %c0_i32, %c0_i32_0 : i32, i32
  }
  func.func @transform_3(%arg0: i32) -> (i32, i32, i32) {
    %c0_i32 = arith.constant 0 : i32
    %c0_i32_0 = arith.constant 0 : i32
    %c0_i32_1 = arith.constant 0 : i32
    %c0_i32_2 = arith.constant 0 : i32
    return %c0_i32, %c0_i32_0, %c0_i32_1 : i32, i32, i32
  }
  func.func @transform_4(%arg0: i32) -> (i32, i32) {
    %c0_i32 = arith.constant 0 : i32
    %c0_i32_0 = arith.constant 0 : i32
    %c0_i32_1 = arith.constant 0 : i32
    return %c0_i32, %c0_i32_0 : i32, i32
  }
  func.func @transform_5(%arg0: i32) -> (i32, i32) {
    %c0_i32 = arith.constant 0 : i32
    %c0_i32_0 = arith.constant 0 : i32
    %c0_i32_1 = arith.constant 0 : i32
    return %c0_i32, %c0_i32_0 : i32, i32
  }
  func.func @transform_6(%arg0: i32) -> (i32, i32) {
    %c0_i32 = arith.constant 0 : i32
    %c0_i32_0 = arith.constant 0 : i32
    %c0_i32_1 = arith.constant 0 : i32
    return %c0_i32, %c0_i32_0 : i32, i32
  }
  func.func @transform_7(%arg0: i32) -> (i32, i32) {
    %c0_i32 = arith.constant 0 : i32
    %c0_i32_0 = arith.constant 0 : i32
    %c0_i32_1 = arith.constant 0 : i32
    return %c0_i32, %c0_i32_0 : i32, i32
  }
  func.func @transform_8(%arg0: i32) -> (i32, i32) {
    %c0_i32 = arith.constant 0 : i32
    %c0_i32_0 = arith.constant 0 : i32
    %c0_i32_1 = arith.constant 0 : i32
    return %c0_i32, %c0_i32_0 : i32, i32
  }
  func.func @transform_9(%arg0: i32) -> (i32, i32, i32) {
    %c0_i32 = arith.constant 0 : i32
    %c0_i32_0 = arith.constant 0 : i32
    %c0_i32_1 = arith.constant 0 : i32
    return %arg0, %c0_i32, %c0_i32_0 : i32, i32, i32
  }
  func.func @transform_10(%arg0: i32) -> (i32, i32, i32) {
    %c0_i32 = arith.constant 0 : i32
    %c0_i32_0 = arith.constant 0 : i32
    %c0_i32_1 = arith.constant 0 : i32
    return %arg0, %c0_i32, %c0_i32_0 : i32, i32, i32
  }
}

</mosaic_0001>

<llo_original>
// kernel: tpu_custom_call.1
$region0: #{tpu_custom_call.1}
  #allocation0 [shape = 'u32[]', space=smem, size = 0x4, offset = 0x4, fixed_abs, tag = 'smem constant byte address 0x4 - core index']
  #allocation1 [shape = 'u32[144,128]{1,0:T(1,128)}', space=vmem, size = 0x12000, scoped, tag = 'internal scratch']
  %s0 = inlined_call_operand.vmem [shape: f32[2,20,576], index: 0, kind: input, shape index: {}]
  %s1 = inlined_call_operand.hbm [shape: bf16[3,576,576], index: 1, kind: input, shape index: {}]
  %s2 = inlined_call_operand.hbm [shape: f32[1,576], index: 2, kind: input, shape index: {}]
  %s3 = inlined_call_operand.hbm [shape: bf16[3,576,512], index: 3, kind: input, shape index: {}]
  %s4 = inlined_call_operand.hbm [shape: f32[1,512], index: 4, kind: input, shape index: {}]
  %s5 = inlined_call_operand.hbm [shape: f32[1,576], index: 5, kind: input, shape index: {}]
  %s6 = inlined_call_operand.hbm [shape: f32[1,512], index: 6, kind: input, shape index: {}]
  %s7 = inlined_call_operand.vmem [shape: bf16[512,2], index: 7, kind: input, shape index: {}]
  %s8 = inlined_call_operand.hbm [shape: bf16[2,512], index: 8, kind: input, shape index: {}]
  %s9 = inlined_call_operand.hbm [shape: f32[2,16,512], index: 9, kind: input, shape index: {}]
  %s10 = inlined_call_operand.hbm [shape: f32[2,16,512], index: 10, kind: output, shape index: {}]
  %s11 = sld [smem:[#allocation0]]
  $region105: #{tpu_custom_call.1} parent=0
    _
  %s13 = ssub.s32 1, %s11
  %s14 = scalar_select 0, %s13, %s11
  $region1: #{tpu_custom_call.1} parent=0
    #allocation2 [shape = 'u8[2211840]{0}', space=vmem, size = 0x21c000, scoped, tag = 'input window, operand 1, single buffered']
    #allocation3 [shape = 's32[2]{0}', space=sflag, size = 0x8, scoped, tag = 'scoped memory for tpu_custom_call.1']
    #allocation4 [shape = 's32[2]{0}', space=sflag, size = 0x8, scoped, tag = 'scoped memory for tpu_custom_call.1']
    #allocation5 [shape = 'u8[2560]{0}', space=vmem, size = 0xc00, scoped, tag = 'input window, operand 2, single buffered']
    #allocation6 [shape = 's32[1]{0}', space=sflag, size = 0x4, scoped, tag = 'scoped memory for tpu_custom_call.1']
    #allocation7 [shape = 'u8[1769472]{0}', space=vmem, size = 0x1b0000, scoped, tag = 'input window, operand 3, single buffered']
    #allocation8 [shape = 'u8[2048]{0}', space=vmem, size = 0x800, scoped, tag = 'input window, operand 4, single buffered']
    #allocation9 [shape = 's32[1]{0}', space=sflag, size = 0x4, scoped, tag = 'scoped memory for tpu_custom_call.1']
    #allocation10 [shape = 'u8[2560]{0}', space=vmem, size = 0xc00, scoped, tag = 'input window, operand 5, single buffered']
    #allocation11 [shape = 'u8[2048]{0}', space=vmem, size = 0x800, scoped, tag = 'input window, operand 6, single buffered']
    #allocation12 [shape = 's32[1]{0}', space=sflag, size = 0x4, scoped, tag = 'scoped memory for tpu_custom_call.1']
    #allocation13 [shape = 'u8[2048]{0}', space=vmem, size = 0x800, scoped, tag = 'input window, operand 8, single buffered']
    #allocation14 [shape = 'u8[65536]{0}', space=vmem, size = 0x10000, scoped, tag = 'input window, operand 9']
    #allocation15 [shape = 's32[2]{0}', space=sflag, size = 0x8, scoped, tag = 'scoped memory for tpu_custom_call.1']
    #allocation16 [shape = 'u8[65536]{0}', space=vmem, size = 0x10000, scoped, tag = 'output window, operand 0']
    %15 = vsyncpa [#allocation3], 0
    %16 = vsyncpa [#allocation6], 0
    %17 = vsyncpa [#allocation9], 0
    %18 = vsyncpa [#allocation12], 0
    %19 = vsyncpa [#allocation15], 0
    %s20 = scalar_lea.sflag [#allocation15], 1
    %21 = vsyncpa %s20, 0
    %22 = vsyncpa [#allocation4], 0
    %s23 = scalar_lea.sflag [#allocation4], 1
    %24 = vsyncpa %s23, 0
    loop: start=0, step=1, limit=4
    $region2: #{tpu_custom_call.1} parent=1 // loop_pre_header
      _
    $region3: #{tpu_custom_call.1} parent=1 // loop_header
      %s26 = sphi 0, %s30
      %p27 = scmp.ge.s32.totalorder %s26, 4
      %s36 = sphi 0, %s38
      %s39 = sphi 0, %s36
      %s40 = sphi 0, %s39
      %s56 = sphi 0, %s40
      %s60 = sphi 0, %s60
      %s62 = sphi 0, %s60
      %s63 = sphi 0, %s62
      %s77 = sphi 0, %s63
      %s81 = sphi 0, %s81
      %s83 = sphi 0, %s81
      %s84 = sphi 0, %s83
      %s98 = sphi 0, %s84
      %s102 = sphi 0, %s102
      %s104 = sphi 0, %s102
      %s105 = sphi 0, %s104
      %s119 = sphi 0, %s105
      %s123 = sphi 0, %s123
      %s125 = sphi 0, %s123
      %s126 = sphi 0, %s125
      %s140 = sphi 0, %s126
      %s144 = sphi 0, %s144
      %s146 = sphi 0, %s144
      %s147 = sphi 0, %s146
      %s161 = sphi 0, %s147
      %s165 = sphi 0, %s165
      %s167 = sphi 0, %s165
      %s168 = sphi 0, %s167
      %s182 = sphi 0, %s168
      %s186 = sphi 0, %s186
      %s188 = sphi 0, %s186
      %s189 = sphi 0, %s188
      %s203 = sphi 0, %s189
      %s207 = sphi 0, %s207
      %s209 = sphi 0, %s207
      %s210 = sphi 0, %s209
      %s224 = sphi 0, %s210
      %s230 = sphi 0, %s232
      %s233 = sphi 0, %s230
      %s234 = sphi 0, %s233
      %s250 = sphi 0, %s234
      %s256 = sphi 0, %s258
      %s259 = sphi 0, %s256
      %s260 = sphi 0, %s259
      %s276 = sphi 0, %s260
    $region4: #{tpu_custom_call.1} parent=1 // loop_header_branch
      %29 = sbr.rel (%p27) target = $region8
    $region5: #{tpu_custom_call.1} parent=1 // loop_body
      %s31 = ssub.s32 %s26, 1
      %s32 = ssub.s32 %s26, 2
      %s33 = sadd.s32 %s26, 1
      %s34 = ssub.s32 %s26, %s33
      %p35 = scmp.eq.s32.totalorder %s34, 0
      %s37 = sadd.s32 %s36, 1
      %s38 = scalar_select %p35, %s36, %s37
      %p41 = pneg %p35
      %p42 = scmp.eq.s32.totalorder %s26, 1
      %p43 = por %p41, %p42
      %p44 = scmp.ne.s32.totalorder %s36, %s39
      %p45 = scmp.eq.s32.totalorder %s26, 0
      %p46 = por %p44, %p45
      %p47 = scmp.ne.s32.totalorder %s36, %s39
      %p48 = scmp.eq.s32.totalorder %s31, 1
      %p49 = por %p47, %p48
      %p50 = scmp.ne.s32.totalorder %s39, %s40
      %p51 = scmp.eq.s32.totalorder %s31, 0
      %p52 = por %p50, %p51
      %p53 = scmp.ne.s32.totalorder %s39, %s40
      %p54 = scmp.eq.s32.totalorder %s32, 1
      %p55 = por %p53, %p54
      %p57 = scmp.ne.s32.totalorder %s40, %s56
      %p58 = scmp.eq.s32.totalorder %s32, 0
      %p59 = por %p57, %p58
      %s61 = sadd.s32 %s60, 1
      %p64 = scmp.eq.s32.totalorder %s26, 1
      %p65 = scmp.ne.s32.totalorder %s60, %s62
      %p66 = scmp.eq.s32.totalorder %s26, 0
      %p67 = por %p65, %p66
      %p68 = scmp.ne.s32.totalorder %s60, %s62
      %p69 = scmp.eq.s32.totalorder %s31, 1
      %p70 = por %p68, %p69
      %p71 = scmp.ne.s32.totalorder %s62, %s63
      %p72 = scmp.eq.s32.totalorder %s31, 0
      %p73 = por %p71, %p72
      %p74 = scmp.ne.s32.totalorder %s62, %s63
      %p75 = scmp.eq.s32.totalorder %s32, 1
      %p76 = por %p74, %p75
      %p78 = scmp.ne.s32.totalorder %s63, %s77
      %p79 = scmp.eq.s32.totalorder %s32, 0
      %p80 = por %p78, %p79
      %s82 = sadd.s32 %s81, 1
      %p85 = scmp.eq.s32.totalorder %s26, 1
      %p86 = scmp.ne.s32.totalorder %s81, %s83
      %p87 = scmp.eq.s32.totalorder %s26, 0
      %p88 = por %p86, %p87
      %p89 = scmp.ne.s32.totalorder %s81, %s83
      %p90 = scmp.eq.s32.totalorder %s31, 1
      %p91 = por %p89, %p90
      %p92 = scmp.ne.s32.totalorder %s83, %s84
      %p93 = scmp.eq.s32.totalorder %s31, 0
      %p94 = por %p92, %p93
      %p95 = scmp.ne.s32.totalorder %s83, %s84
      %p96 = scmp.eq.s32.totalorder %s32, 1
      %p97 = por %p95, %p96
      %p99 = scmp.ne.s32.totalorder %s84, %s98
      %p100 = scmp.eq.s32.totalorder %s32, 0
      %p101 = por %p99, %p100
      %s103 = sadd.s32 %s102, 1
      %p106 = scmp.eq.s32.totalorder %s26, 1
      %p107 = scmp.ne.s32.totalorder %s102, %s104
      %p108 = scmp.eq.s32.totalorder %s26, 0
      %p109 = por %p107, %p108
      %p110 = scmp.ne.s32.totalorder %s102, %s104
      %p111 = scmp.eq.s32.totalorder %s31, 1
      %p112 = por %p110, %p111
      %p113 = scmp.ne.s32.totalorder %s104, %s105
      %p114 = scmp.eq.s32.totalorder %s31, 0
      %p115 = por %p113, %p114
      %p116 = scmp.ne.s32.totalorder %s104, %s105
      %p117 = scmp.eq.s32.totalorder %s32, 1
      %p118 = por %p116, %p117
      %p120 = scmp.ne.s32.totalorder %s105, %s119
      %p121 = scmp.eq.s32.totalorder %s32, 0
      %p122 = por %p120, %p121
      %s124 = sadd.s32 %s123, 1
      %p127 = scmp.eq.s32.totalorder %s26, 1
      %p128 = scmp.ne.s32.totalorder %s123, %s125
      %p129 = scmp.eq.s32.totalorder %s26, 0
      %p130 = por %p128, %p129
      %p131 = scmp.ne.s32.totalorder %s123, %s125
      %p132 = scmp.eq.s32.totalorder %s31, 1
      %p133 = por %p131, %p132
      %p134 = scmp.ne.s32.totalorder %s125, %s126
      %p135 = scmp.eq.s32.totalorder %s31, 0
      %p136 = por %p134, %p135
      %p137 = scmp.ne.s32.totalorder %s125, %s126
      %p138 = scmp.eq.s32.totalorder %s32, 1
      %p139 = por %p137, %p138
      %p141 = scmp.ne.s32.totalorder %s126, %s140
      %p142 = scmp.eq.s32.totalorder %s32, 0
      %p143 = por %p141, %p142
      %s145 = sadd.s32 %s144, 1
      %p148 = scmp.eq.s32.totalorder %s26, 1
      %p149 = scmp.ne.s32.totalorder %s144, %s146
      %p150 = scmp.eq.s32.totalorder %s26, 0
      %p151 = por %p149, %p150
      %p152 = scmp.ne.s32.totalorder %s144, %s146
      %p153 = scmp.eq.s32.totalorder %s31, 1
      %p154 = por %p152, %p153
      %p155 = scmp.ne.s32.totalorder %s146, %s147
      %p156 = scmp.eq.s32.totalorder %s31, 0
      %p157 = por %p155, %p156
      %p158 = scmp.ne.s32.totalorder %s146, %s147
      %p159 = scmp.eq.s32.totalorder %s32, 1
      %p160 = por %p158, %p159
      %p162 = scmp.ne.s32.totalorder %s147, %s161
      %p163 = scmp.eq.s32.totalorder %s32, 0
      %p164 = por %p162, %p163
      %s166 = sadd.s32 %s165, 1
      %p169 = scmp.eq.s32.totalorder %s26, 1
      %p170 = scmp.ne.s32.totalorder %s165, %s167
      %p171 = scmp.eq.s32.totalorder %s26, 0
      %p172 = por %p170, %p171
      %p173 = scmp.ne.s32.totalorder %s165, %s167
      %p174 = scmp.eq.s32.totalorder %s31, 1
      %p175 = por %p173, %p174
      %p176 = scmp.ne.s32.totalorder %s167, %s168
      %p177 = scmp.eq.s32.totalorder %s31, 0
      %p178 = por %p176, %p177
      %p179 = scmp.ne.s32.totalorder %s167, %s168
      %p180 = scmp.eq.s32.totalorder %s32, 1
      %p181 = por %p179, %p180
      %p183 = scmp.ne.s32.totalorder %s168, %s182
      %p184 = scmp.eq.s32.totalorder %s32, 0
      %p185 = por %p183, %p184
      %s187 = sadd.s32 %s186, 1
      %p190 = scmp.eq.s32.totalorder %s26, 1
      %p191 = scmp.ne.s32.totalorder %s186, %s188
      %p192 = scmp.eq.s32.totalorder %s26, 0
      %p193 = por %p191, %p192
      %p194 = scmp.ne.s32.totalorder %s186, %s188
      %p195 = scmp.eq.s32.totalorder %s31, 1
      %p196 = por %p194, %p195
      %p197 = scmp.ne.s32.totalorder %s188, %s189
      %p198 = scmp.eq.s32.totalorder %s31, 0
      %p199 = por %p197, %p198
      %p200 = scmp.ne.s32.totalorder %s188, %s189
      %p201 = scmp.eq.s32.totalorder %s32, 1
      %p202 = por %p200, %p201
      %p204 = scmp.ne.s32.totalorder %s189, %s203
      %p205 = scmp.eq.s32.totalorder %s32, 0
      %p206 = por %p204, %p205
      %s208 = sadd.s32 %s207, 1
      %p211 = scmp.eq.s32.totalorder %s26, 1
      %p212 = scmp.ne.s32.totalorder %s207, %s209
      %p213 = scmp.eq.s32.totalorder %s26, 0
      %p214 = por %p212, %p213
      %p215 = scmp.ne.s32.totalorder %s207, %s209
      %p216 = scmp.eq.s32.totalorder %s31, 1
      %p217 = por %p215, %p216
      %p218 = scmp.ne.s32.totalorder %s209, %s210
      %p219 = scmp.eq.s32.totalorder %s31, 0
      %p220 = por %p218, %p219
      %p221 = scmp.ne.s32.totalorder %s209, %s210
      %p222 = scmp.eq.s32.totalorder %s32, 1
      %p223 = por %p221, %p222
      %p225 = scmp.ne.s32.totalorder %s210, %s224
      %p226 = scmp.eq.s32.totalorder %s32, 0
      %p227 = por %p225, %p226
      %s228 = ssub.s32 %s26, %s33
      %p229 = scmp.eq.s32.totalorder %s228, 0
      %s231 = sadd.s32 %s230, 1
      %s232 = scalar_select %p229, %s230, %s231
      %p235 = pneg %p229
      %p236 = scmp.eq.s32.totalorder %s26, 1
      %p237 = por %p235, %p236
      %p238 = scmp.ne.s32.totalorder %s230, %s233
      %p239 = scmp.eq.s32.totalorder %s26, 0
      %p240 = por %p238, %p239
      %p241 = scmp.ne.s32.totalorder %s230, %s233
      %p242 = scmp.eq.s32.totalorder %s31, 1
      %p243 = por %p241, %p242
      %p244 = scmp.ne.s32.totalorder %s233, %s234
      %p245 = scmp.eq.s32.totalorder %s31, 0
      %p246 = por %p244, %p245
      %p247 = scmp.ne.s32.totalorder %s233, %s234
      %p248 = scmp.eq.s32.totalorder %s32, 1
      %p249 = por %p247, %p248
      %p251 = scmp.ne.s32.totalorder %s234, %s250
      %p252 = scmp.eq.s32.totalorder %s32, 0
      %p253 = por %p251, %p252
      %s254 = ssub.s32 %s26, %s33
      %p255 = scmp.eq.s32.totalorder %s254, 0
      %s257 = sadd.s32 %s256, 1
      %s258 = scalar_select %p255, %s256, %s257
      %p261 = pneg %p255
      %p262 = scmp.eq.s32.totalorder %s26, 1
      %p263 = por %p261, %p262
      %p264 = scmp.ne.s32.totalorder %s256, %s259
      %p265 = scmp.eq.s32.totalorder %s26, 0
      %p266 = por %p264, %p265
      %p267 = scmp.ne.s32.totalorder %s256, %s259
      %p268 = scmp.eq.s32.totalorder %s31, 1
      %p269 = por %p267, %p268
      %p270 = scmp.ne.s32.totalorder %s259, %s260
      %p271 = scmp.eq.s32.totalorder %s31, 0
      %p272 = por %p270, %p271
      %p273 = scmp.ne.s32.totalorder %s259, %s260
      %p274 = scmp.eq.s32.totalorder %s32, 1
      %p275 = por %p273, %p274
      %p277 = scmp.ne.s32.totalorder %s260, %s276
      %p278 = scmp.eq.s32.totalorder %s32, 0
      %p279 = por %p277, %p278
      %p280 = scmp.le.s32.totalorder 1, %s26
      %p281 = scmp.lt.s32.totalorder %s26, 3
      %p282 = pnand %p280, %p281
      %p283 = pneg %p282
      // Predicated region
      $region9: #{tpu_custom_call.1} parent=5 // pred_check
        _
      $region10: #{tpu_custom_call.1} parent=5 // pred_check_branch
        %285 = sbr.rel (%p282) target = $region12
      $region11: #{tpu_custom_call.1} parent=5 // pred_region
        %s286 = ssub.s32 %s26, 1
        // Predicated region
        $region13: #{tpu_custom_call.1} parent=11 // pred_check
          %p287 = pneg %p73
        $region14: #{tpu_custom_call.1} parent=11 // pred_check_branch
          %289 = sbr.rel (%p287) target = $region16
        $region15: #{tpu_custom_call.1} parent=11 // pred_region
          %s291 = ssub.s32 69120, 69120
          %292 = vsyncadd [#allocation3], %s291
          %s293 = sshll.u32 [#allocation2], 4
          %s294 = int_to_ptr.vmem [resolvable:$true] %s293
          %299 = dma.hbm_to_vmem [thread:$0]  %s1, 69120, %s294, [#allocation3], 320, 320, 20
        $region16: #{tpu_custom_call.1} parent=11 // pred_fallthru
          _
        // Predicated region
        $region17: #{tpu_custom_call.1} parent=11 // pred_check
          %p300 = pneg %p94
        $region18: #{tpu_custom_call.1} parent=11 // pred_check_branch
          %302 = sbr.rel (%p300) target = $region20
        $region19: #{tpu_custom_call.1} parent=11 // pred_region
          %s304 = ssub.s32 80, 80
          %305 = vsyncadd [#allocation6], %s304
          %s307 = sshll.u32 [#allocation5], 4
          %s308 = int_to_ptr.vmem [resolvable:$true] %s307
          %310 = dma.hbm_to_vmem [thread:$0]  %s2, 80, %s308, [#allocation6]
        $region20: #{tpu_custom_call.1} parent=11 // pred_fallthru
          _
        // Predicated region
        $region21: #{tpu_custom_call.1} parent=11 // pred_check
          %p311 = pneg %p115
        $region22: #{tpu_custom_call.1} parent=11 // pred_check_branch
          %313 = sbr.rel (%p311) target = $region24
        $region23: #{tpu_custom_call.1} parent=11 // pred_region
          %s315 = ssub.s32 55296, 55296
          %316 = vsyncadd [#allocation6], %s315
          %s317 = sshll.u32 [#allocation7], 4
          %s318 = int_to_ptr.vmem [resolvable:$true] %s317
          %323 = dma.hbm_to_vmem [thread:$0]  %s3, 55296, %s318, [#allocation6], 256, 256, 16
        $region24: #{tpu_custom_call.1} parent=11 // pred_fallthru
          _
        // Predicated region
        $region25: #{tpu_custom_call.1} parent=11 // pred_check
          %p324 = pneg %p136
        $region26: #{tpu_custom_call.1} parent=11 // pred_check_branch
          %326 = sbr.rel (%p324) target = $region28
        $region27: #{tpu_custom_call.1} parent=11 // pred_region
          %s328 = ssub.s32 64, 64
          %329 = vsyncadd [#allocation9], %s328
          %s331 = sshll.u32 [#allocation8], 4
          %s332 = int_to_ptr.vmem [resolvable:$true] %s331
          %334 = dma.hbm_to_vmem [thread:$0]  %s4, 64, %s332, [#allocation9]
        $region28: #{tpu_custom_call.1} parent=11 // pred_fallthru
          _
        // Predicated region
        $region29: #{tpu_custom_call.1} parent=11 // pred_check
          %p335 = pneg %p157
        $region30: #{tpu_custom_call.1} parent=11 // pred_check_branch
          %337 = sbr.rel (%p335) target = $region32
        $region31: #{tpu_custom_call.1} parent=11 // pred_region
          %s339 = ssub.s32 80, 80
          %340 = vsyncadd [#allocation9], %s339
          %s342 = sshll.u32 [#allocation10], 4
          %s343 = int_to_ptr.vmem [resolvable:$true] %s342
          %345 = dma.hbm_to_vmem [thread:$0]  %s5, 80, %s343, [#allocation9]
        $region32: #{tpu_custom_call.1} parent=11 // pred_fallthru
          _
        // Predicated region
        $region33: #{tpu_custom_call.1} parent=11 // pred_check
          %p346 = pneg %p178
        $region34: #{tpu_custom_call.1} parent=11 // pred_check_branch
          %348 = sbr.rel (%p346) target = $region36
        $region35: #{tpu_custom_call.1} parent=11 // pred_region
          %s350 = ssub.s32 64, 64
          %351 = vsyncadd [#allocation12], %s350
          %s353 = sshll.u32 [#allocation11], 4
          %s354 = int_to_ptr.vmem [resolvable:$true] %s353
          %356 = dma.hbm_to_vmem [thread:$0]  %s6, 64, %s354, [#allocation12]
        $region36: #{tpu_custom_call.1} parent=11 // pred_fallthru
          _
        // Predicated region
        $region37: #{tpu_custom_call.1} parent=11 // pred_check
          %p357 = pneg %p199
        $region38: #{tpu_custom_call.1} parent=11 // pred_check_branch
          %359 = sbr.rel (%p357) target = $region40
        $region39: #{tpu_custom_call.1} parent=11 // pred_region
          _
        $region40: #{tpu_custom_call.1} parent=11 // pred_fallthru
          _
        // Predicated region
        $region41: #{tpu_custom_call.1} parent=11 // pred_check
          %p360 = pneg %p220
        $region42: #{tpu_custom_call.1} parent=11 // pred_check_branch
          %362 = sbr.rel (%p360) target = $region44
        $region43: #{tpu_custom_call.1} parent=11 // pred_region
          %s364 = ssub.s32 64, 64
          %365 = vsyncadd [#allocation12], %s364
          %s367 = sshll.u32 [#allocation13], 4
          %s368 = int_to_ptr.vmem [resolvable:$true] %s367
          %370 = dma.hbm_to_vmem [thread:$0]  %s8, 64, %s368, [#allocation12]
        $region44: #{tpu_custom_call.1} parent=11 // pred_fallthru
          _
      $region12: #{tpu_custom_call.1} parent=5 // pred_fallthru
        _
      %p371 = scmp.lt.s32.totalorder %s26, 2
      // Predicated region
      $region45: #{tpu_custom_call.1} parent=5 // pred_check
        %p372 = pneg %p371
      $region46: #{tpu_custom_call.1} parent=5 // pred_check_branch
        %374 = sbr.rel (%p372) target = $region48
      $region47: #{tpu_custom_call.1} parent=5 // pred_region
        // Predicated region
        $region49: #{tpu_custom_call.1} parent=47 // pred_check
          %p375 = pneg %p46
        $region50: #{tpu_custom_call.1} parent=47 // pred_check_branch
          %377 = sbr.rel (%p375) target = $region52
        $region51: #{tpu_custom_call.1} parent=47 // pred_region
          %p378 = scmp.lt.s32.totalorder %s26, 1
          %s379 = scalar_select %p378, %s26, 1
          %s380 = smul.addr %s379, 15
          %s381 = smul.addr %s380, 8
          %s382 = scalar_lea.vmem %s0, %s381
        $region52: #{tpu_custom_call.1} parent=47 // pred_fallthru
          _
        // Predicated region
        $region53: #{tpu_custom_call.1} parent=47 // pred_check
          %p383 = pneg %p240
        $region54: #{tpu_custom_call.1} parent=47 // pred_check_branch
          %385 = sbr.rel (%p383) target = $region56
        $region55: #{tpu_custom_call.1} parent=47 // pred_region
          %s386 = sand.u32 %s230, 1
          %s387 = scalar_lea.sflag [#allocation15], %s386
          %s388 = sand.u32 %s230, 1
          %s389 = smul.addr %s388, 64
          %s390 = scalar_lea.vmem [#allocation14], %s389
          %s392 = ssub.s32 1024, 1024
          %393 = vsyncadd %s387, %s392
          %s394 = smul.addr %s26, 8
          %s395 = smul.addr %s394, 128
          %s396 = scalar_lea.hbm %s9, %s395
          %s397 = sshll.u32 %s390, 4
          %s398 = int_to_ptr.vmem [resolvable:$true] %s397
          %403 = dma.hbm_to_vmem [thread:$0]  %s396, 1024, %s398, %s387, 512, 512, 32
        $region56: #{tpu_custom_call.1} parent=47 // pred_fallthru
          _
      $region48: #{tpu_custom_call.1} parent=5 // pred_fallthru
        _
      %p404 = scmp.le.s32.totalorder 1, %s26
      %p405 = scmp.lt.s32.totalorder %s26, 3
      %p406 = pnand %p404, %p405
      %p407 = pneg %p406
      // Predicated region
      $region57: #{tpu_custom_call.1} parent=5 // pred_check
        _
      $region58: #{tpu_custom_call.1} parent=5 // pred_check_branch
        %409 = sbr.rel (%p406) target = $region60
      $region59: #{tpu_custom_call.1} parent=5 // pred_region
        %s410 = ssub.s32 %s26, 1
        // Predicated region
        $region61: #{tpu_custom_call.1} parent=59 // pred_check
          %p411 = pneg %p73
        $region62: #{tpu_custom_call.1} parent=59 // pred_check_branch
          %413 = sbr.rel (%p411) target = $region64
        $region63: #{tpu_custom_call.1} parent=59 // pred_region
          %414 = dma.done [#allocation3], 69120
        $region64: #{tpu_custom_call.1} parent=59 // pred_fallthru
          _
        // Predicated region
        $region65: #{tpu_custom_call.1} parent=59 // pred_check
          %p415 = pneg %p94
        $region66: #{tpu_custom_call.1} parent=59 // pred_check_branch
          %417 = sbr.rel (%p415) target = $region68
        $region67: #{tpu_custom_call.1} parent=59 // pred_region
          %418 = dma.done [#allocation6], 80
        $region68: #{tpu_custom_call.1} parent=59 // pred_fallthru
          _
        // Predicated region
        $region69: #{tpu_custom_call.1} parent=59 // pred_check
          %p419 = pneg %p115
        $region70: #{tpu_custom_call.1} parent=59 // pred_check_branch
          %421 = sbr.rel (%p419) target = $region72
        $region71: #{tpu_custom_call.1} parent=59 // pred_region
          %422 = dma.done [#allocation6], 55296
        $region72: #{tpu_custom_call.1} parent=59 // pred_fallthru
          _
        // Predicated region
        $region73: #{tpu_custom_call.1} parent=59 // pred_check
          %p423 = pneg %p136
        $region74: #{tpu_custom_call.1} parent=59 // pred_check_branch
          %425 = sbr.rel (%p423) target = $region76
        $region75: #{tpu_custom_call.1} parent=59 // pred_region
          %426 = dma.done [#allocation9], 64
        $region76: #{tpu_custom_call.1} parent=59 // pred_fallthru
          _
        // Predicated region
        $region77: #{tpu_custom_call.1} parent=59 // pred_check
          %p427 = pneg %p157
        $region78: #{tpu_custom_call.1} parent=59 // pred_check_branch
          %429 = sbr.rel (%p427) target = $region80
        $region79: #{tpu_custom_call.1} parent=59 // pred_region
          %430 = dma.done [#allocation9], 80
        $region80: #{tpu_custom_call.1} parent=59 // pred_fallthru
          _
        // Predicated region
        $region81: #{tpu_custom_call.1} parent=59 // pred_check
          %p431 = pneg %p178
        $region82: #{tpu_custom_call.1} parent=59 // pred_check_branch
          %433 = sbr.rel (%p431) target = $region84
        $region83: #{tpu_custom_call.1} parent=59 // pred_region
          %434 = dma.done [#allocation12], 64
        $region84: #{tpu_custom_call.1} parent=59 // pred_fallthru
          _
        // Predicated region
        $region85: #{tpu_custom_call.1} parent=59 // pred_check
          %p435 = pneg %p220
        $region86: #{tpu_custom_call.1} parent=59 // pred_check_branch
          %437 = sbr.rel (%p435) target = $region88
        $region87: #{tpu_custom_call.1} parent=59 // pred_region
          %438 = dma.done [#allocation12], 64
        $region88: #{tpu_custom_call.1} parent=59 // pred_fallthru
          _
        %s439 = sand.u32 %s233, 1
        %s440 = scalar_lea.sflag [#allocation15], %s439
        %s441 = sand.u32 %s233, 1
        %s442 = smul.addr %s441, 64
        %s443 = scalar_lea.vmem [#allocation14], %s442
        // Predicated region
        $region89: #{tpu_custom_call.1} parent=59 // pred_check
          %p444 = pneg %p246
        $region90: #{tpu_custom_call.1} parent=59 // pred_check_branch
          %446 = sbr.rel (%p444) target = $region92
        $region91: #{tpu_custom_call.1} parent=59 // pred_region
          %447 = dma.done %s440, 1024
        $region92: #{tpu_custom_call.1} parent=59 // pred_fallthru
          _
        %p448 = scmp.lt.s32.totalorder %s31, 1
        %s449 = scalar_select %p448, %s31, 1
        %s450 = smul.addr %s449, 15
        %s451 = smul.addr %s450, 8
        %s452 = scalar_lea.vmem %s0, %s451
        %p453 = pneg %p52
        %p454 = pneg %p49
        %p455 = pneg %p73
        %p456 = pneg %p70
        %p457 = pneg %p94
        %p458 = pneg %p91
        %p459 = pneg %p115
        %p460 = pneg %p112
        %p461 = pneg %p136
        %p462 = pneg %p133
        %p463 = pneg %p157
        %p464 = pneg %p154
        %p465 = pneg %p178
        %p466 = pneg %p175
        %p467 = pneg %p199
        %p468 = pneg %p196
        %p469 = pneg %p220
        %p470 = pneg %p217
        %s471 = sand.u32 %s233, 1
        %s472 = scalar_lea.sflag [#allocation15], %s471
        %s473 = sand.u32 %s233, 1
        %s474 = smul.addr %s473, 64
        %s475 = scalar_lea.vmem [#allocation14], %s474
        %p476 = pneg %p246
        %p477 = pneg %p243
        %p478 = pneg %p272
        %p479 = pneg %p269
        %s480 = sand.u32 %s259, 1
        %s481 = scalar_lea.sflag [#allocation4], %s480
        %s482 = sand.u32 %s259, 1
        %s483 = smul.addr %s482, 64
        %s484 = scalar_lea.vmem [#allocation16], %s483
        %p485 = scmp.lt.s32.totalorder %s31, 1
        %s486 = scalar_select %p485, %s31, 1
        %s487 = smul.addr %s486, 15
        %s488 = smul.addr %s487, 8
        %s489 = scalar_lea.vmem %s0, %s488
        %v491 = vld [vmem:[%s489] sm:$0xff]
        %v492 = vld [vmem:[%s489 + $0x8] sm:$0xff]
        %v493 = vld [vmem:[%s489 + $0x10] sm:$0xff]
        %v494 = vld [vmem:[%s489 + $0x18] sm:$0xff]
        %v495 = vld [vmem:[%s489 + $0x20] sm:$0xff]
        %v496 = vld [vmem:[%s489 + $0x28] sm:$0xff]
        %v497 = vld [vmem:[%s489 + $0x30] sm:$0xff]
        %v498 = vld [vmem:[%s489 + $0x38] sm:$0xff]
        %v499 = vld [vmem:[%s489 + $0x40] sm:$0xff]
        %v500 = vld [vmem:[%s489 + $0x48] sm:$0xff]
        %v501 = vld [vmem:[%s489 + $0x50] sm:$0xf]
        %v502 = vld [vmem:[%s489 + $0x58] sm:$0xf]
        %v503 = vld [vmem:[%s489 + $0x60] sm:$0xf]
        %v504 = vld [vmem:[%s489 + $0x68] sm:$0xf]
        %v505 = vld [vmem:[%s489 + $0x70] sm:$0xf]
        %v506 = vpack.c.bf16 %v496, %v491
        %v507 = vpack.c.bf16 %v497, %v492
        %v508 = vpack.c.bf16 %v498, %v493
        %v509 = vpack.c.bf16 %v499, %v494
        %v510 = vpack.c.bf16 %v500, %v495
        %v511 = vpack.c.bf16 %v501, %v501
        %v512 = vpack.c.bf16 %v502, %v502
        %v513 = vpack.c.bf16 %v503, %v503
        %v514 = vpack.c.bf16 %v504, %v504
        %v515 = vpack.c.bf16 %v505, %v505
        %v516 = vld [vmem:[#allocation2] sm:$0xff]
        %v517 = vld [vmem:[#allocation2 + $0x8] sm:$0xff]
        %v518 = vld [vmem:[#allocation2 + $0x10] sm:$0xf]
        %v519 = vld [vmem:[#allocation2 + $0x14] sm:$0xff]
        %v520 = vld [vmem:[#allocation2 + $0x1c] sm:$0xff]
        %v521 = vld [vmem:[#allocation2 + $0x24] sm:$0xf]
        %v522 = vld [vmem:[#allocation2 + $0x28] sm:$0xff]
        %v523 = vld [vmem:[#allocation2 + $0x30] sm:$0xff]
        %v524 = vld [vmem:[#allocation2 + $0x38] sm:$0xf]
        %v525 = vld [vmem:[#allocation2 + $0x3c] sm:$0xff]
        %v526 = vld [vmem:[#allocation2 + $0x44] sm:$0xff]
        %v527 = vld [vmem:[#allocation2 + $0x4c] sm:$0xf]
        %v528 = vld [vmem:[#allocation2 + $0x50] sm:$0xff]
        %v529 = vld [vmem:[#allocation2 + $0x58] sm:$0xff]
        %v530 = vld [vmem:[#allocation2 + $0x60] sm:$0xf]
        %v531 = vld [vmem:[#allocation2 + $0x64] sm:$0xff]
        %v532 = vld [vmem:[#allocation2 + $0x6c] sm:$0xff]
        %v533 = vld [vmem:[#allocation2 + $0x74] sm:$0xf]
        %v534 = vld [vmem:[#allocation2 + $0x78] sm:$0xff]
        %v535 = vld [vmem:[#allocation2 + $0x80] sm:$0xff]
        %v536 = vld [vmem:[#allocation2 + $0x88] sm:$0xf]
        %v537 = vld [vmem:[#allocation2 + $0x8c] sm:$0xff]
        %v538 = vld [vmem:[#allocation2 + $0x94] sm:$0xff]
        %v539 = vld [vmem:[#allocation2 + $0x9c] sm:$0xf]
        %v540 = vld [vmem:[#allocation2 + $0xa0] sm:$0xff]
        %v541 = vld [vmem:[#allocation2 + $0xa8] sm:$0xff]
        %v542 = vld [vmem:[#allocation2 + $0xb0] sm:$0xf]
        %v543 = vld [vmem:[#allocation2 + $0xb4] sm:$0xff]
        %v544 = vld [vmem:[#allocation2 + $0xbc] sm:$0xff]
        %v545 = vld [vmem:[#allocation2 + $0xc4] sm:$0xf]
        %v546 = vld [vmem:[#allocation2 + $0xc8] sm:$0xff]
        %v547 = vld [vmem:[#allocation2 + $0xd0] sm:$0xff]
        %v548 = vld [vmem:[#allocation2 + $0xd8] sm:$0xf]
        %v549 = vld [vmem:[#allocation2 + $0xdc] sm:$0xff]
        %v550 = vld [vmem:[#allocation2 + $0xe4] sm:$0xff]
        %v551 = vld [vmem:[#allocation2 + $0xec] sm:$0xf]
        %v552 = vld [vmem:[#allocation2 + $0xf0] sm:$0xff]
        %v553 = vld [vmem:[#allocation2 + $0xf8] sm:$0xff]
        %v554 = vld [vmem:[#allocation2 + $0x100] sm:$0xf]
        %v555 = vld [vmem:[#allocation2 + $0x104] sm:$0xff]
        %v556 = vld [vmem:[#allocation2 + $0x10c] sm:$0xff]
        %v557 = vld [vmem:[#allocation2 + $0x114] sm:$0xf]
        %v558 = vld [vmem:[#allocation2 + $0x118] sm:$0xff]
        %v559 = vld [vmem:[#allocation2 + $0x120] sm:$0xff]
        %v560 = vld [vmem:[#allocation2 + $0x128] sm:$0xf]
        %v561 = vld [vmem:[#allocation2 + $0x12c] sm:$0xff]
        %v562 = vld [vmem:[#allocation2 + $0x134] sm:$0xff]
        %v563 = vld [vmem:[#allocation2 + $0x13c] sm:$0xf]
        %v564 = vld [vmem:[#allocation2 + $0x140] sm:$0xff]
        %v565 = vld [vmem:[#allocation2 + $0x148] sm:$0xff]
        %v566 = vld [vmem:[#allocation2 + $0x150] sm:$0xf]
        %v567 = vld [vmem:[#allocation2 + $0x154] sm:$0xff]
        %v568 = vld [vmem:[#allocation2 + $0x15c] sm:$0xff]
        %v569 = vld [vmem:[#allocation2 + $0x164] sm:$0xf]
        %v570 = vld [vmem:[#allocation2 + $0x168] sm:$0xff]
        %v571 = vld [vmem:[#allocation2 + $0x170] sm:$0xff]
        %v572 = vld [vmem:[#allocation2 + $0x178] sm:$0xf]
        %v573 = vld [vmem:[#allocation2 + $0x17c] sm:$0xff]
        %v574 = vld [vmem:[#allocation2 + $0x184] sm:$0xff]
        %v575 = vld [vmem:[#allocation2 + $0x18c] sm:$0xf]
        %v576 = vld [vmem:[#allocation2 + $0x190] sm:$0xff]
        %v577 = vld [vmem:[#allocation2 + $0x198] sm:$0xff]
        %v578 = vld [vmem:[#allocation2 + $0x1a0] sm:$0xf]
        %v579 = vld [vmem:[#allocation2 + $0x1a4] sm:$0xff]
        %v580 = vld [vmem:[#allocation2 + $0x1ac] sm:$0xff]
        %v581 = vld [vmem:[#allocation2 + $0x1b4] sm:$0xf]
        %v582 = vld [vmem:[#allocation2 + $0x1b8] sm:$0xff]
        %v583 = vld [vmem:[#allocation2 + $0x1c0] sm:$0xff]
        %v584 = vld [vmem:[#allocation2 + $0x1c8] sm:$0xf]
        %v585 = vld [vmem:[#allocation2 + $0x1cc] sm:$0xff]
        %v586 = vld [vmem:[#allocation2 + $0x1d4] sm:$0xff]
        %v587 = vld [vmem:[#allocation2 + $0x1dc] sm:$0xf]
        %v588 = vld [vmem:[#allocation2 + $0x1e0] sm:$0xff]
        %v589 = vld [vmem:[#allocation2 + $0x1e8] sm:$0xff]
        %v590 = vld [vmem:[#allocation2 + $0x1f0] sm:$0xf]
        %v591 = vld [vmem:[#allocation2 + $0x1f4] sm:$0xff]
        %v592 = vld [vmem:[#allocation2 + $0x1fc] sm:$0xff]
        %v593 = vld [vmem:[#allocation2 + $0x204] sm:$0xf]
        %v594 = vld [vmem:[#allocation2 + $0x208] sm:$0xff]
        %v595 = vld [vmem:[#allocation2 + $0x210] sm:$0xff]
        %v596 = vld [vmem:[#allocation2 + $0x218] sm:$0xf]
        %v597 = vld [vmem:[#allocation2 + $0x21c] sm:$0xff]
        %v598 = vld [vmem:[#allocation2 + $0x224] sm:$0xff]
        %v599 = vld [vmem:[#allocation2 + $0x22c] sm:$0xf]
        %v600 = vld [vmem:[#allocation2 + $0x230] sm:$0xff]
        %v601 = vld [vmem:[#allocation2 + $0x238] sm:$0xff]
        %v602 = vld [vmem:[#allocation2 + $0x240] sm:$0xf]
        %v603 = vld [vmem:[#allocation2 + $0x244] sm:$0xff]
        %v604 = vld [vmem:[#allocation2 + $0x24c] sm:$0xff]
        %v605 = vld [vmem:[#allocation2 + $0x254] sm:$0xf]
        %v606 = vld [vmem:[#allocation2 + $0x258] sm:$0xff]
        %v607 = vld [vmem:[#allocation2 + $0x260] sm:$0xff]
        %v608 = vld [vmem:[#allocation2 + $0x268] sm:$0xf]
        %v609 = vld [vmem:[#allocation2 + $0x26c] sm:$0xff]
        %v610 = vld [vmem:[#allocation2 + $0x274] sm:$0xff]
        %v611 = vld [vmem:[#allocation2 + $0x27c] sm:$0xf]
        %v612 = vld [vmem:[#allocation2 + $0x280] sm:$0xff]
        %v613 = vld [vmem:[#allocation2 + $0x288] sm:$0xff]
        %v614 = vld [vmem:[#allocation2 + $0x290] sm:$0xf]
        %v615 = vld [vmem:[#allocation2 + $0x294] sm:$0xff]
        %v616 = vld [vmem:[#allocation2 + $0x29c] sm:$0xff]
        %v617 = vld [vmem:[#allocation2 + $0x2a4] sm:$0xf]
        %v618 = vld [vmem:[#allocation2 + $0x2a8] sm:$0xff]
        %v619 = vld [vmem:[#allocation2 + $0x2b0] sm:$0xff]
        %v620 = vld [vmem:[#allocation2 + $0x2b8] sm:$0xf]
        %v621 = vld [vmem:[#allocation2 + $0x2bc] sm:$0xff]
        %v622 = vld [vmem:[#allocation2 + $0x2c4] sm:$0xff]
        %v623 = vld [vmem:[#allocation2 + $0x2cc] sm:$0xf]
        %v624 = vld [vmem:[#allocation2 + $0x2d0] sm:$0xff]
        %v625 = vld [vmem:[#allocation2 + $0x2d8] sm:$0xff]
        %v626 = vld [vmem:[#allocation2 + $0x2e0] sm:$0xf]
        %v627 = vld [vmem:[#allocation2 + $0x2e4] sm:$0xff]
        %v628 = vld [vmem:[#allocation2 + $0x2ec] sm:$0xff]
        %v629 = vld [vmem:[#allocation2 + $0x2f4] sm:$0xf]
        %v630 = vld [vmem:[#allocation2 + $0x2f8] sm:$0xff]
        %v631 = vld [vmem:[#allocation2 + $0x300] sm:$0xff]
        %v632 = vld [vmem:[#allocation2 + $0x308] sm:$0xf]
        %v633 = vld [vmem:[#allocation2 + $0x30c] sm:$0xff]
        %v634 = vld [vmem:[#allocation2 + $0x314] sm:$0xff]
        %v635 = vld [vmem:[#allocation2 + $0x31c] sm:$0xf]
        %v636 = vld [vmem:[#allocation2 + $0x320] sm:$0xff]
        %v637 = vld [vmem:[#allocation2 + $0x328] sm:$0xff]
        %v638 = vld [vmem:[#allocation2 + $0x330] sm:$0xf]
        %v639 = vld [vmem:[#allocation2 + $0x334] sm:$0xff]
        %v640 = vld [vmem:[#allocation2 + $0x33c] sm:$0xff]
        %v641 = vld [vmem:[#allocation2 + $0x344] sm:$0xf]
        %v642 = vld [vmem:[#allocation2 + $0x348] sm:$0xff]
        %v643 = vld [vmem:[#allocation2 + $0x350] sm:$0xff]
        %v644 = vld [vmem:[#allocation2 + $0x358] sm:$0xf]
        %v645 = vld [vmem:[#allocation2 + $0x35c] sm:$0xff]
        %v646 = vld [vmem:[#allocation2 + $0x364] sm:$0xff]
        %v647 = vld [vmem:[#allocation2 + $0x36c] sm:$0xf]
        %v648 = vld [vmem:[#allocation2 + $0x370] sm:$0xff]
        %v649 = vld [vmem:[#allocation2 + $0x378] sm:$0xff]
        %v650 = vld [vmem:[#allocation2 + $0x380] sm:$0xf]
        %v651 = vld [vmem:[#allocation2 + $0x384] sm:$0xff]
        %v652 = vld [vmem:[#allocation2 + $0x38c] sm:$0xff]
        %v653 = vld [vmem:[#allocation2 + $0x394] sm:$0xf]
        %v654 = vld [vmem:[#allocation2 + $0x398] sm:$0xff]
        %v655 = vld [vmem:[#allocation2 + $0x3a0] sm:$0xff]
        %v656 = vld [vmem:[#allocation2 + $0x3a8] sm:$0xf]
        %v657 = vld [vmem:[#allocation2 + $0x3ac] sm:$0xff]
        %v658 = vld [vmem:[#allocation2 + $0x3b4] sm:$0xff]
        %v659 = vld [vmem:[#allocation2 + $0x3bc] sm:$0xf]
        %v660 = vld [vmem:[#allocation2 + $0x3c0] sm:$0xff]
        %v661 = vld [vmem:[#allocation2 + $0x3c8] sm:$0xff]
        %v662 = vld [vmem:[#allocation2 + $0x3d0] sm:$0xf]
        %v663 = vld [vmem:[#allocation2 + $0x3d4] sm:$0xff]
        %v664 = vld [vmem:[#allocation2 + $0x3dc] sm:$0xff]
        %v665 = vld [vmem:[#allocation2 + $0x3e4] sm:$0xf]
        %v666 = vld [vmem:[#allocation2 + $0x3e8] sm:$0xff]
        %v667 = vld [vmem:[#allocation2 + $0x3f0] sm:$0xff]
        %v668 = vld [vmem:[#allocation2 + $0x3f8] sm:$0xf]
        %v669 = vld [vmem:[#allocation2 + $0x3fc] sm:$0xff]
        %v670 = vld [vmem:[#allocation2 + $0x404] sm:$0xff]
        %v671 = vld [vmem:[#allocation2 + $0x40c] sm:$0xf]
        %v672 = vld [vmem:[#allocation2 + $0x410] sm:$0xff]
        %v673 = vld [vmem:[#allocation2 + $0x418] sm:$0xff]
        %v674 = vld [vmem:[#allocation2 + $0x420] sm:$0xf]
        %v675 = vld [vmem:[#allocation2 + $0x424] sm:$0xff]
        %v676 = vld [vmem:[#allocation2 + $0x42c] sm:$0xff]
        %v677 = vld [vmem:[#allocation2 + $0x434] sm:$0xf]
        %v678 = vld [vmem:[#allocation2 + $0x438] sm:$0xff]
        %v679 = vld [vmem:[#allocation2 + $0x440] sm:$0xff]
        %v680 = vld [vmem:[#allocation2 + $0x448] sm:$0xf]
        %v681 = vld [vmem:[#allocation2 + $0x44c] sm:$0xff]
        %v682 = vld [vmem:[#allocation2 + $0x454] sm:$0xff]
        %v683 = vld [vmem:[#allocation2 + $0x45c] sm:$0xf]
        %v684 = vld [vmem:[#allocation2 + $0x460] sm:$0xff]
        %v685 = vld [vmem:[#allocation2 + $0x468] sm:$0xff]
        %v686 = vld [vmem:[#allocation2 + $0x470] sm:$0xf]
        %v687 = vld [vmem:[#allocation2 + $0x474] sm:$0xff]
        %v688 = vld [vmem:[#allocation2 + $0x47c] sm:$0xff]
        %v689 = vld [vmem:[#allocation2 + $0x484] sm:$0xf]
        %v690 = vld [vmem:[#allocation2 + $0x488] sm:$0xff]
        %v691 = vld [vmem:[#allocation2 + $0x490] sm:$0xff]
        %v692 = vld [vmem:[#allocation2 + $0x498] sm:$0xf]
        %v693 = vld [vmem:[#allocation2 + $0x49c] sm:$0xff]
        %v694 = vld [vmem:[#allocation2 + $0x4a4] sm:$0xff]
        %v695 = vld [vmem:[#allocation2 + $0x4ac] sm:$0xf]
        %v696 = vld [vmem:[#allocation2 + $0x4b0] sm:$0xff]
        %v697 = vld [vmem:[#allocation2 + $0x4b8] sm:$0xff]
        %v698 = vld [vmem:[#allocation2 + $0x4c0] sm:$0xf]
        %v699 = vld [vmem:[#allocation2 + $0x4c4] sm:$0xff]
        %v700 = vld [vmem:[#allocation2 + $0x4cc] sm:$0xff]
        %v701 = vld [vmem:[#allocation2 + $0x4d4] sm:$0xf]
        %v702 = vld [vmem:[#allocation2 + $0x4d8] sm:$0xff]
        %v703 = vld [vmem:[#allocation2 + $0x4e0] sm:$0xff]
        %v704 = vld [vmem:[#allocation2 + $0x4e8] sm:$0xf]
        %v705 = vld [vmem:[#allocation2 + $0x4ec] sm:$0xff]
        %v706 = vld [vmem:[#allocation2 + $0x4f4] sm:$0xff]
        %v707 = vld [vmem:[#allocation2 + $0x4fc] sm:$0xf]
        %v708 = vld [vmem:[#allocation2 + $0x500] sm:$0xff]
        %v709 = vld [vmem:[#allocation2 + $0x508] sm:$0xff]
        %v710 = vld [vmem:[#allocation2 + $0x510] sm:$0xf]
        %v711 = vld [vmem:[#allocation2 + $0x514] sm:$0xff]
        %v712 = vld [vmem:[#allocation2 + $0x51c] sm:$0xff]
        %v713 = vld [vmem:[#allocation2 + $0x524] sm:$0xf]
        %v714 = vld [vmem:[#allocation2 + $0x528] sm:$0xff]
        %v715 = vld [vmem:[#allocation2 + $0x530] sm:$0xff]
        %v716 = vld [vmem:[#allocation2 + $0x538] sm:$0xf]
        %v717 = vld [vmem:[#allocation2 + $0x53c] sm:$0xff]
        %v718 = vld [vmem:[#allocation2 + $0x544] sm:$0xff]
        %v719 = vld [vmem:[#allocation2 + $0x54c] sm:$0xf]
        %v720 = vld [vmem:[#allocation2 + $0x550] sm:$0xff]
        %v721 = vld [vmem:[#allocation2 + $0x558] sm:$0xff]
        %v722 = vld [vmem:[#allocation2 + $0x560] sm:$0xf]
        %v723 = vld [vmem:[#allocation2 + $0x564] sm:$0xff]
        %v724 = vld [vmem:[#allocation2 + $0x56c] sm:$0xff]
        %v725 = vld [vmem:[#allocation2 + $0x574] sm:$0xf]
        %v726 = vld [vmem:[#allocation2 + $0x578] sm:$0xff]
        %v727 = vld [vmem:[#allocation2 + $0x580] sm:$0xff]
        %v728 = vld [vmem:[#allocation2 + $0x588] sm:$0xf]
        %v729 = vld [vmem:[#allocation2 + $0x58c] sm:$0xff]
        %v730 = vld [vmem:[#allocation2 + $0x594] sm:$0xff]
        %v731 = vld [vmem:[#allocation2 + $0x59c] sm:$0xf]
        %s732 = scalar_lea.vmem [#allocation2], 1440
        %v733 = vld [vmem:[%s732] sm:$0xff]
        %v734 = vld [vmem:[%s732 + $0x8] sm:$0xff]
        %v735 = vld [vmem:[%s732 + $0x10] sm:$0xf]
        %v736 = vld [vmem:[%s732 + $0x14] sm:$0xff]
        %v737 = vld [vmem:[%s732 + $0x1c] sm:$0xff]
        %v738 = vld [vmem:[%s732 + $0x24] sm:$0xf]
        %v739 = vld [vmem:[%s732 + $0x28] sm:$0xff]
        %v740 = vld [vmem:[%s732 + $0x30] sm:$0xff]
        %v741 = vld [vmem:[%s732 + $0x38] sm:$0xf]
        %v742 = vld [vmem:[%s732 + $0x3c] sm:$0xff]
        %v743 = vld [vmem:[%s732 + $0x44] sm:$0xff]
        %v744 = vld [vmem:[%s732 + $0x4c] sm:$0xf]
        %v745 = vld [vmem:[%s732 + $0x50] sm:$0xff]
        %v746 = vld [vmem:[%s732 + $0x58] sm:$0xff]
        %v747 = vld [vmem:[%s732 + $0x60] sm:$0xf]
        %v748 = vld [vmem:[%s732 + $0x64] sm:$0xff]
        %v749 = vld [vmem:[%s732 + $0x6c] sm:$0xff]
        %v750 = vld [vmem:[%s732 + $0x74] sm:$0xf]
        %v751 = vld [vmem:[%s732 + $0x78] sm:$0xff]
        %v752 = vld [vmem:[%s732 + $0x80] sm:$0xff]
        %v753 = vld [vmem:[%s732 + $0x88] sm:$0xf]
        %v754 = vld [vmem:[%s732 + $0x8c] sm:$0xff]
        %v755 = vld [vmem:[%s732 + $0x94] sm:$0xff]
        %v756 = vld [vmem:[%s732 + $0x9c] sm:$0xf]
        %v757 = vld [vmem:[%s732 + $0xa0] sm:$0xff]
        %v758 = vld [vmem:[%s732 + $0xa8] sm:$0xff]
        %v759 = vld [vmem:[%s732 + $0xb0] sm:$0xf]
        %v760 = vld [vmem:[%s732 + $0xb4] sm:$0xff]
        %v761 = vld [vmem:[%s732 + $0xbc] sm:$0xff]
        %v762 = vld [vmem:[%s732 + $0xc4] sm:$0xf]
        %v763 = vld [vmem:[%s732 + $0xc8] sm:$0xff]
        %v764 = vld [vmem:[%s732 + $0xd0] sm:$0xff]
        %v765 = vld [vmem:[%s732 + $0xd8] sm:$0xf]
        %v766 = vld [vmem:[%s732 + $0xdc] sm:$0xff]
        %v767 = vld [vmem:[%s732 + $0xe4] sm:$0xff]
        %v768 = vld [vmem:[%s732 + $0xec] sm:$0xf]
        %v769 = vld [vmem:[%s732 + $0xf0] sm:$0xff]
        %v770 = vld [vmem:[%s732 + $0xf8] sm:$0xff]
        %v771 = vld [vmem:[%s732 + $0x100] sm:$0xf]
        %v772 = vld [vmem:[%s732 + $0x104] sm:$0xff]
        %v773 = vld [vmem:[%s732 + $0x10c] sm:$0xff]
        %v774 = vld [vmem:[%s732 + $0x114] sm:$0xf]
        %v775 = vld [vmem:[%s732 + $0x118] sm:$0xff]
        %v776 = vld [vmem:[%s732 + $0x120] sm:$0xff]
        %v777 = vld [vmem:[%s732 + $0x128] sm:$0xf]
        %v778 = vld [vmem:[%s732 + $0x12c] sm:$0xff]
        %v779 = vld [vmem:[%s732 + $0x134] sm:$0xff]
        %v780 = vld [vmem:[%s732 + $0x13c] sm:$0xf]
        %v781 = vld [vmem:[%s732 + $0x140] sm:$0xff]
        %v782 = vld [vmem:[%s732 + $0x148] sm:$0xff]
        %v783 = vld [vmem:[%s732 + $0x150] sm:$0xf]
        %v784 = vld [vmem:[%s732 + $0x154] sm:$0xff]
        %v785 = vld [vmem:[%s732 + $0x15c] sm:$0xff]
        %v786 = vld [vmem:[%s732 + $0x164] sm:$0xf]
        %v787 = vld [vmem:[%s732 + $0x168] sm:$0xff]
        %v788 = vld [vmem:[%s732 + $0x170] sm:$0xff]
        %v789 = vld [vmem:[%s732 + $0x178] sm:$0xf]
        %v790 = vld [vmem:[%s732 + $0x17c] sm:$0xff]
        %v791 = vld [vmem:[%s732 + $0x184] sm:$0xff]
        %v792 = vld [vmem:[%s732 + $0x18c] sm:$0xf]
        %v793 = vld [vmem:[%s732 + $0x190] sm:$0xff]
        %v794 = vld [vmem:[%s732 + $0x198] sm:$0xff]
        %v795 = vld [vmem:[%s732 + $0x1a0] sm:$0xf]
        %v796 = vld [vmem:[%s732 + $0x1a4] sm:$0xff]
        %v797 = vld [vmem:[%s732 + $0x1ac] sm:$0xff]
        %v798 = vld [vmem:[%s732 + $0x1b4] sm:$0xf]
        %v799 = vld [vmem:[%s732 + $0x1b8] sm:$0xff]
        %v800 = vld [vmem:[%s732 + $0x1c0] sm:$0xff]
        %v801 = vld [vmem:[%s732 + $0x1c8] sm:$0xf]
        %v802 = vld [vmem:[%s732 + $0x1cc] sm:$0xff]
        %v803 = vld [vmem:[%s732 + $0x1d4] sm:$0xff]
        %v804 = vld [vmem:[%s732 + $0x1dc] sm:$0xf]
        %v805 = vld [vmem:[%s732 + $0x1e0] sm:$0xff]
        %v806 = vld [vmem:[%s732 + $0x1e8] sm:$0xff]
        %v807 = vld [vmem:[%s732 + $0x1f0] sm:$0xf]
        %v808 = vld [vmem:[%s732 + $0x1f4] sm:$0xff]
        %v809 = vld [vmem:[%s732 + $0x1fc] sm:$0xff]
        %v810 = vld [vmem:[%s732 + $0x204] sm:$0xf]
        %v811 = vld [vmem:[%s732 + $0x208] sm:$0xff]
        %v812 = vld [vmem:[%s732 + $0x210] sm:$0xff]
        %v813 = vld [vmem:[%s732 + $0x218] sm:$0xf]
        %v814 = vld [vmem:[%s732 + $0x21c] sm:$0xff]
        %v815 = vld [vmem:[%s732 + $0x224] sm:$0xff]
        %v816 = vld [vmem:[%s732 + $0x22c] sm:$0xf]
        %v817 = vld [vmem:[%s732 + $0x230] sm:$0xff]
        %v818 = vld [vmem:[%s732 + $0x238] sm:$0xff]
        %v819 = vld [vmem:[%s732 + $0x240] sm:$0xf]
        %v820 = vld [vmem:[%s732 + $0x244] sm:$0xff]
        %v821 = vld [vmem:[%s732 + $0x24c] sm:$0xff]
        %v822 = vld [vmem:[%s732 + $0x254] sm:$0xf]
        %v823 = vld [vmem:[%s732 + $0x258] sm:$0xff]
        %v824 = vld [vmem:[%s732 + $0x260] sm:$0xff]
        %v825 = vld [vmem:[%s732 + $0x268] sm:$0xf]
        %v826 = vld [vmem:[%s732 + $0x26c] sm:$0xff]
        %v827 = vld [vmem:[%s732 + $0x274] sm:$0xff]
        %v828 = vld [vmem:[%s732 + $0x27c] sm:$0xf]
        %v829 = vld [vmem:[%s732 + $0x280] sm:$0xff]
        %v830 = vld [vmem:[%s732 + $0x288] sm:$0xff]
        %v831 = vld [vmem:[%s732 + $0x290] sm:$0xf]
        %v832 = vld [vmem:[%s732 + $0x294] sm:$0xff]
        %v833 = vld [vmem:[%s732 + $0x29c] sm:$0xff]
        %v834 = vld [vmem:[%s732 + $0x2a4] sm:$0xf]
        %v835 = vld [vmem:[%s732 + $0x2a8] sm:$0xff]
        %v836 = vld [vmem:[%s732 + $0x2b0] sm:$0xff]
        %v837 = vld [vmem:[%s732 + $0x2b8] sm:$0xf]
        %v838 = vld [vmem:[%s732 + $0x2bc] sm:$0xff]
        %v839 = vld [vmem:[%s732 + $0x2c4] sm:$0xff]
        %v840 = vld [vmem:[%s732 + $0x2cc] sm:$0xf]
        %v841 = vld [vmem:[%s732 + $0x2d0] sm:$0xff]
        %v842 = vld [vmem:[%s732 + $0x2d8] sm:$0xff]
        %v843 = vld [vmem:[%s732 + $0x2e0] sm:$0xf]
        %v844 = vld [vmem:[%s732 + $0x2e4] sm:$0xff]
        %v845 = vld [vmem:[%s732 + $0x2ec] sm:$0xff]
        %v846 = vld [vmem:[%s732 + $0x2f4] sm:$0xf]
        %v847 = vld [vmem:[%s732 + $0x2f8] sm:$0xff]
        %v848 = vld [vmem:[%s732 + $0x300] sm:$0xff]
        %v849 = vld [vmem:[%s732 + $0x308] sm:$0xf]
        %v850 = vld [vmem:[%s732 + $0x30c] sm:$0xff]
        %v851 = vld [vmem:[%s732 + $0x314] sm:$0xff]
        %v852 = vld [vmem:[%s732 + $0x31c] sm:$0xf]
        %v853 = vld [vmem:[%s732 + $0x320] sm:$0xff]
        %v854 = vld [vmem:[%s732 + $0x328] sm:$0xff]
        %v855 = vld [vmem:[%s732 + $0x330] sm:$0xf]
        %v856 = vld [vmem:[%s732 + $0x334] sm:$0xff]
        %v857 = vld [vmem:[%s732 + $0x33c] sm:$0xff]
        %v858 = vld [vmem:[%s732 + $0x344] sm:$0xf]
        %v859 = vld [vmem:[%s732 + $0x348] sm:$0xff]
        %v860 = vld [vmem:[%s732 + $0x350] sm:$0xff]
        %v861 = vld [vmem:[%s732 + $0x358] sm:$0xf]
        %v862 = vld [vmem:[%s732 + $0x35c] sm:$0xff]
        %v863 = vld [vmem:[%s732 + $0x364] sm:$0xff]
        %v864 = vld [vmem:[%s732 + $0x36c] sm:$0xf]
        %v865 = vld [vmem:[%s732 + $0x370] sm:$0xff]
        %v866 = vld [vmem:[%s732 + $0x378] sm:$0xff]
        %v867 = vld [vmem:[%s732 + $0x380] sm:$0xf]
        %v868 = vld [vmem:[%s732 + $0x384] sm:$0xff]
        %v869 = vld [vmem:[%s732 + $0x38c] sm:$0xff]
        %v870 = vld [vmem:[%s732 + $0x394] sm:$0xf]
        %v871 = vld [vmem:[%s732 + $0x398] sm:$0xff]
        %v872 = vld [vmem:[%s732 + $0x3a0] sm:$0xff]
        %v873 = vld [vmem:[%s732 + $0x3a8] sm:$0xf]
        %v874 = vld [vmem:[%s732 + $0x3ac] sm:$0xff]
        %v875 = vld [vmem:[%s732 + $0x3b4] sm:$0xff]
        %v876 = vld [vmem:[%s732 + $0x3bc] sm:$0xf]
        %v877 = vld [vmem:[%s732 + $0x3c0] sm:$0xff]
        %v878 = vld [vmem:[%s732 + $0x3c8] sm:$0xff]
        %v879 = vld [vmem:[%s732 + $0x3d0] sm:$0xf]
        %v880 = vld [vmem:[%s732 + $0x3d4] sm:$0xff]
        %v881 = vld [vmem:[%s732 + $0x3dc] sm:$0xff]
        %v882 = vld [vmem:[%s732 + $0x3e4] sm:$0xf]
        %v883 = vld [vmem:[%s732 + $0x3e8] sm:$0xff]
        %v884 = vld [vmem:[%s732 + $0x3f0] sm:$0xff]
        %v885 = vld [vmem:[%s732 + $0x3f8] sm:$0xf]
        %v886 = vld [vmem:[%s732 + $0x3fc] sm:$0xff]
        %v887 = vld [vmem:[%s732 + $0x404] sm:$0xff]
        %v888 = vld [vmem:[%s732 + $0x40c] sm:$0xf]
        %v889 = vld [vmem:[%s732 + $0x410] sm:$0xff]
        %v890 = vld [vmem:[%s732 + $0x418] sm:$0xff]
        %v891 = vld [vmem:[%s732 + $0x420] sm:$0xf]
        %v892 = vld [vmem:[%s732 + $0x424] sm:$0xff]
        %v893 = vld [vmem:[%s732 + $0x42c] sm:$0xff]
        %v894 = vld [vmem:[%s732 + $0x434] sm:$0xf]
        %v895 = vld [vmem:[%s732 + $0x438] sm:$0xff]
        %v896 = vld [vmem:[%s732 + $0x440] sm:$0xff]
        %v897 = vld [vmem:[%s732 + $0x448] sm:$0xf]
        %v898 = vld [vmem:[%s732 + $0x44c] sm:$0xff]
        %v899 = vld [vmem:[%s732 + $0x454] sm:$0xff]
        %v900 = vld [vmem:[%s732 + $0x45c] sm:$0xf]
        %v901 = vld [vmem:[%s732 + $0x460] sm:$0xff]
        %v902 = vld [vmem:[%s732 + $0x468] sm:$0xff]
        %v903 = vld [vmem:[%s732 + $0x470] sm:$0xf]
        %v904 = vld [vmem:[%s732 + $0x474] sm:$0xff]
        %v905 = vld [vmem:[%s732 + $0x47c] sm:$0xff]
        %v906 = vld [vmem:[%s732 + $0x484] sm:$0xf]
        %v907 = vld [vmem:[%s732 + $0x488] sm:$0xff]
        %v908 = vld [vmem:[%s732 + $0x490] sm:$0xff]
        %v909 = vld [vmem:[%s732 + $0x498] sm:$0xf]
        %v910 = vld [vmem:[%s732 + $0x49c] sm:$0xff]
        %v911 = vld [vmem:[%s732 + $0x4a4] sm:$0xff]
        %v912 = vld [vmem:[%s732 + $0x4ac] sm:$0xf]
        %v913 = vld [vmem:[%s732 + $0x4b0] sm:$0xff]
        %v914 = vld [vmem:[%s732 + $0x4b8] sm:$0xff]
        %v915 = vld [vmem:[%s732 + $0x4c0] sm:$0xf]
        %v916 = vld [vmem:[%s732 + $0x4c4] sm:$0xff]
        %v917 = vld [vmem:[%s732 + $0x4cc] sm:$0xff]
        %v918 = vld [vmem:[%s732 + $0x4d4] sm:$0xf]
        %v919 = vld [vmem:[%s732 + $0x4d8] sm:$0xff]
        %v920 = vld [vmem:[%s732 + $0x4e0] sm:$0xff]
        %v921 = vld [vmem:[%s732 + $0x4e8] sm:$0xf]
        %v922 = vld [vmem:[%s732 + $0x4ec] sm:$0xff]
        %v923 = vld [vmem:[%s732 + $0x4f4] sm:$0xff]
        %v924 = vld [vmem:[%s732 + $0x4fc] sm:$0xf]
        %v925 = vld [vmem:[%s732 + $0x500] sm:$0xff]
        %v926 = vld [vmem:[%s732 + $0x508] sm:$0xff]
        %v927 = vld [vmem:[%s732 + $0x510] sm:$0xf]
        %v928 = vld [vmem:[%s732 + $0x514] sm:$0xff]
        %v929 = vld [vmem:[%s732 + $0x51c] sm:$0xff]
        %v930 = vld [vmem:[%s732 + $0x524] sm:$0xf]
        %v931 = vld [vmem:[%s732 + $0x528] sm:$0xff]
        %v932 = vld [vmem:[%s732 + $0x530] sm:$0xff]
        %v933 = vld [vmem:[%s732 + $0x538] sm:$0xf]
        %v934 = vld [vmem:[%s732 + $0x53c] sm:$0xff]
        %v935 = vld [vmem:[%s732 + $0x544] sm:$0xff]
        %v936 = vld [vmem:[%s732 + $0x54c] sm:$0xf]
        %v937 = vld [vmem:[%s732 + $0x550] sm:$0xff]
        %v938 = vld [vmem:[%s732 + $0x558] sm:$0xff]
        %v939 = vld [vmem:[%s732 + $0x560] sm:$0xf]
        %v940 = vld [vmem:[%s732 + $0x564] sm:$0xff]
        %v941 = vld [vmem:[%s732 + $0x56c] sm:$0xff]
        %v942 = vld [vmem:[%s732 + $0x574] sm:$0xf]
        %v943 = vld [vmem:[%s732 + $0x578] sm:$0xff]
        %v944 = vld [vmem:[%s732 + $0x580] sm:$0xff]
        %v945 = vld [vmem:[%s732 + $0x588] sm:$0xf]
        %v946 = vld [vmem:[%s732 + $0x58c] sm:$0xff]
        %v947 = vld [vmem:[%s732 + $0x594] sm:$0xff]
        %v948 = vld [vmem:[%s732 + $0x59c] sm:$0xf]
        %vm949 = vsmask.f32 7424
        %v951 = vshrl.u32 %v506, 16
        %v953 = vshll.u32 %v506, 16
        %v955 = vrot.slane %v953, 1
        %v956 = vor.u32 %v951, %v955
        %v958 = vshll.u32 %v511, 16
        %v960 = vrot.slane %v958, 1
        %v961 = vsel %vm949, %v956, %v960
        %v963 = vshrl.u32 %v507, 16
        %v965 = vshll.u32 %v507, 16
        %v967 = vrot.slane %v965, 1
        %v968 = vor.u32 %v963, %v967
        %v970 = vshll.u32 %v512, 16
        %v972 = vrot.slane %v970, 1
        %v973 = vsel %vm949, %v968, %v972
        %v975 = vshrl.u32 %v508, 16
        %v977 = vshll.u32 %v508, 16
        %v979 = vrot.slane %v977, 1
        %v980 = vor.u32 %v975, %v979
        %v982 = vshll.u32 %v513, 16
        %v984 = vrot.slane %v982, 1
        %v985 = vsel %vm949, %v980, %v984
        %v987 = vshrl.u32 %v509, 16
        %v989 = vshll.u32 %v509, 16
        %v991 = vrot.slane %v989, 1
        %v992 = vor.u32 %v987, %v991
        %v994 = vshll.u32 %v514, 16
        %v996 = vrot.slane %v994, 1
        %v997 = vsel %vm949, %v992, %v996
        %v999 = vshrl.u32 %v510, 16
        %v1001 = vshll.u32 %v510, 16
        %v1003 = vrot.slane %v1001, 1
        %v1004 = vor.u32 %v999, %v1003
        %v1006 = vshll.u32 %v515, 16
        %v1008 = vrot.slane %v1006, 1
        %v1009 = vsel %vm949, %v1004, %v1008
        %v1010 = vshrl.u32 %v511, 16
        %v1012 = vor.u32 %v1010, %v960
        %v1013 = vshrl.u32 %v512, 16
        %v1015 = vor.u32 %v1013, %v972
        %v1016 = vshrl.u32 %v513, 16
        %v1018 = vor.u32 %v1016, %v984
        %v1019 = vshrl.u32 %v514, 16
        %v1021 = vor.u32 %v1019, %v996
        %v1022 = vshrl.u32 %v515, 16
        %v1024 = vor.u32 %v1022, %v1008
        %v1249 = vunpack.c.l.b16 %v733
        %v1250 = vunpack.c.h.b16 %v733
        %v1251 = vunpack.c.l.b16 %v734
        %v1252 = vunpack.c.h.b16 %v734
        %v1253 = vunpack.c.l.b16 %v735
        %v1254 = vunpack.c.l.b16 %v736
        %v1255 = vunpack.c.h.b16 %v736
        %v1256 = vunpack.c.l.b16 %v737
        %v1257 = vunpack.c.h.b16 %v737
        %v1258 = vunpack.c.l.b16 %v738
        %v1259 = vunpack.c.l.b16 %v739
        %v1260 = vunpack.c.h.b16 %v739
        %v1261 = vunpack.c.l.b16 %v740
        %v1262 = vunpack.c.h.b16 %v740
        %v1263 = vunpack.c.l.b16 %v741
        %v1264 = vunpack.c.l.b16 %v742
        %v1265 = vunpack.c.h.b16 %v742
        %v1266 = vunpack.c.l.b16 %v743
        %v1267 = vunpack.c.h.b16 %v743
        %v1268 = vunpack.c.l.b16 %v744
        %v1269 = vunpack.c.l.b16 %v745
        %v1270 = vunpack.c.h.b16 %v745
        %v1271 = vunpack.c.l.b16 %v746
        %v1272 = vunpack.c.h.b16 %v746
        %v1273 = vunpack.c.l.b16 %v747
        %v1274 = vunpack.c.l.b16 %v748
        %v1275 = vunpack.c.h.b16 %v748
        %v1276 = vunpack.c.l.b16 %v749
        %v1277 = vunpack.c.h.b16 %v749
        %v1278 = vunpack.c.l.b16 %v750
        %v1279 = vunpack.c.l.b16 %v751
        %v1280 = vunpack.c.h.b16 %v751
        %v1281 = vunpack.c.l.b16 %v752
        %v1282 = vunpack.c.h.b16 %v752
        %v1283 = vunpack.c.l.b16 %v753
        %v1284 = vunpack.c.l.b16 %v754
        %v1285 = vunpack.c.h.b16 %v754
        %v1286 = vunpack.c.l.b16 %v755
        %v1287 = vunpack.c.h.b16 %v755
        %v1288 = vunpack.c.l.b16 %v756
        %v1289 = vunpack.c.l.b16 %v757
        %v1290 = vunpack.c.h.b16 %v757
        %v1291 = vunpack.c.l.b16 %v758
        %v1292 = vunpack.c.h.b16 %v758
        %v1293 = vunpack.c.l.b16 %v759
        %v1294 = vunpack.c.l.b16 %v760
        %v1295 = vunpack.c.h.b16 %v760
        %v1296 = vunpack.c.l.b16 %v761
        %v1297 = vunpack.c.h.b16 %v761
        %v1298 = vunpack.c.l.b16 %v762
        %v1299 = vunpack.c.l.b16 %v763
        %v1300 = vunpack.c.h.b16 %v763
        %v1301 = vunpack.c.l.b16 %v764
        %v1302 = vunpack.c.h.b16 %v764
        %v1303 = vunpack.c.l.b16 %v765
        %v1304 = vunpack.c.l.b16 %v766
        %v1305 = vunpack.c.h.b16 %v766
        %v1306 = vunpack.c.l.b16 %v767
        %v1307 = vunpack.c.h.b16 %v767
        %v1308 = vunpack.c.l.b16 %v768
        %v1309 = vunpack.c.l.b16 %v769
        %v1310 = vunpack.c.h.b16 %v769
        %v1311 = vunpack.c.l.b16 %v770
        %v1312 = vunpack.c.h.b16 %v770
        %v1313 = vunpack.c.l.b16 %v771
        %v1314 = vunpack.c.l.b16 %v772
        %v1315 = vunpack.c.h.b16 %v772
        %v1316 = vunpack.c.l.b16 %v773
        %v1317 = vunpack.c.h.b16 %v773
        %v1318 = vunpack.c.l.b16 %v774
        %v1319 = vunpack.c.l.b16 %v775
        %v1320 = vunpack.c.h.b16 %v775
        %v1321 = vunpack.c.l.b16 %v776
        %v1322 = vunpack.c.h.b16 %v776
        %v1323 = vunpack.c.l.b16 %v777
        %v1324 = vunpack.c.l.b16 %v778
        %v1325 = vunpack.c.h.b16 %v778
        %v1326 = vunpack.c.l.b16 %v779
        %v1327 = vunpack.c.h.b16 %v779
        %v1328 = vunpack.c.l.b16 %v780
        %v1329 = vunpack.c.l.b16 %v781
        %v1330 = vunpack.c.h.b16 %v781
        %v1331 = vunpack.c.l.b16 %v782
        %v1332 = vunpack.c.h.b16 %v782
        %v1333 = vunpack.c.l.b16 %v783
        %v1334 = vunpack.c.l.b16 %v784
        %v1335 = vunpack.c.h.b16 %v784
        %v1336 = vunpack.c.l.b16 %v785
        %v1337 = vunpack.c.h.b16 %v785
        %v1338 = vunpack.c.l.b16 %v786
        %v1339 = vunpack.c.l.b16 %v787
        %v1340 = vunpack.c.h.b16 %v787
        %v1341 = vunpack.c.l.b16 %v788
        %v1342 = vunpack.c.h.b16 %v788
        %v1343 = vunpack.c.l.b16 %v789
        %v1344 = vunpack.c.l.b16 %v790
        %v1345 = vunpack.c.h.b16 %v790
        %v1346 = vunpack.c.l.b16 %v791
        %v1347 = vunpack.c.h.b16 %v791
        %v1348 = vunpack.c.l.b16 %v792
        %v1349 = vunpack.c.l.b16 %v793
        %v1350 = vunpack.c.h.b16 %v793
        %v1351 = vunpack.c.l.b16 %v794
        %v1352 = vunpack.c.h.b16 %v794
        %v1353 = vunpack.c.l.b16 %v795
        %v1354 = vunpack.c.l.b16 %v796
        %v1355 = vunpack.c.h.b16 %v796
        %v1356 = vunpack.c.l.b16 %v797
        %v1357 = vunpack.c.h.b16 %v797
        %v1358 = vunpack.c.l.b16 %v798
        %v1359 = vunpack.c.l.b16 %v799
        %v1360 = vunpack.c.h.b16 %v799
        %v1361 = vunpack.c.l.b16 %v800
        %v1362 = vunpack.c.h.b16 %v800
        %v1363 = vunpack.c.l.b16 %v801
        %v1364 = vunpack.c.l.b16 %v802
        %v1365 = vunpack.c.h.b16 %v802
        %v1366 = vunpack.c.l.b16 %v803
        %v1367 = vunpack.c.h.b16 %v803
        %v1368 = vunpack.c.l.b16 %v804
        %v1369 = vunpack.c.l.b16 %v805
        %v1370 = vunpack.c.h.b16 %v805
        %v1371 = vunpack.c.l.b16 %v806
        %v1372 = vunpack.c.h.b16 %v806
        %v1373 = vunpack.c.l.b16 %v807
        %v1374 = vunpack.c.l.b16 %v808
        %v1375 = vunpack.c.h.b16 %v808
        %v1376 = vunpack.c.l.b16 %v809
        %v1377 = vunpack.c.h.b16 %v809
        %v1378 = vunpack.c.l.b16 %v810
        %v1379 = vunpack.c.l.b16 %v811
        %v1380 = vunpack.c.h.b16 %v811
        %v1381 = vunpack.c.l.b16 %v812
        %v1382 = vunpack.c.h.b16 %v812
        %v1383 = vunpack.c.l.b16 %v813
        %v1384 = vunpack.c.l.b16 %v814
        %v1385 = vunpack.c.h.b16 %v814
        %v1386 = vunpack.c.l.b16 %v815
        %v1387 = vunpack.c.h.b16 %v815
        %v1388 = vunpack.c.l.b16 %v816
        %v1389 = vunpack.c.l.b16 %v817
        %v1390 = vunpack.c.h.b16 %v817
        %v1391 = vunpack.c.l.b16 %v818
        %v1392 = vunpack.c.h.b16 %v818
        %v1393 = vunpack.c.l.b16 %v819
        %v1394 = vunpack.c.l.b16 %v820
        %v1395 = vunpack.c.h.b16 %v820
        %v1396 = vunpack.c.l.b16 %v821
        %v1397 = vunpack.c.h.b16 %v821
        %v1398 = vunpack.c.l.b16 %v822
        %v1399 = vunpack.c.l.b16 %v823
        %v1400 = vunpack.c.h.b16 %v823
        %v1401 = vunpack.c.l.b16 %v824
        %v1402 = vunpack.c.h.b16 %v824
        %v1403 = vunpack.c.l.b16 %v825
        %v1404 = vunpack.c.l.b16 %v826
        %v1405 = vunpack.c.h.b16 %v826
        %v1406 = vunpack.c.l.b16 %v827
        %v1407 = vunpack.c.h.b16 %v827
        %v1408 = vunpack.c.l.b16 %v828
        %v1409 = vunpack.c.l.b16 %v829
        %v1410 = vunpack.c.h.b16 %v829
        %v1411 = vunpack.c.l.b16 %v830
        %v1412 = vunpack.c.h.b16 %v830
        %v1413 = vunpack.c.l.b16 %v831
        %v1414 = vunpack.c.l.b16 %v832
        %v1415 = vunpack.c.h.b16 %v832
        %v1416 = vunpack.c.l.b16 %v833
        %v1417 = vunpack.c.h.b16 %v833
        %v1418 = vunpack.c.l.b16 %v834
        %v1419 = vunpack.c.l.b16 %v835
        %v1420 = vunpack.c.h.b16 %v835
        %v1421 = vunpack.c.l.b16 %v836
        %v1422 = vunpack.c.h.b16 %v836
        %v1423 = vunpack.c.l.b16 %v837
        %v1424 = vunpack.c.l.b16 %v838
        %v1425 = vunpack.c.h.b16 %v838
        %v1426 = vunpack.c.l.b16 %v839
        %v1427 = vunpack.c.h.b16 %v839
        %v1428 = vunpack.c.l.b16 %v840
        %v1429 = vunpack.c.l.b16 %v841
        %v1430 = vunpack.c.h.b16 %v841
        %v1431 = vunpack.c.l.b16 %v842
        %v1432 = vunpack.c.h.b16 %v842
        %v1433 = vunpack.c.l.b16 %v843
        %v1434 = vunpack.c.l.b16 %v844
        %v1435 = vunpack.c.h.b16 %v844
        %v1436 = vunpack.c.l.b16 %v845
        %v1437 = vunpack.c.h.b16 %v845
        %v1438 = vunpack.c.l.b16 %v846
        %v1439 = vunpack.c.l.b16 %v847
        %v1440 = vunpack.c.h.b16 %v847
        %v1441 = vunpack.c.l.b16 %v848
        %v1442 = vunpack.c.h.b16 %v848
        %v1443 = vunpack.c.l.b16 %v849
        %v1444 = vunpack.c.l.b16 %v850
        %v1445 = vunpack.c.h.b16 %v850
        %v1446 = vunpack.c.l.b16 %v851
        %v1447 = vunpack.c.h.b16 %v851
        %v1448 = vunpack.c.l.b16 %v852
        %v1449 = vunpack.c.l.b16 %v853
        %v1450 = vunpack.c.h.b16 %v853
        %v1451 = vunpack.c.l.b16 %v854
        %v1452 = vunpack.c.h.b16 %v854
        %v1453 = vunpack.c.l.b16 %v855
        %v1454 = vunpack.c.l.b16 %v856
        %v1455 = vunpack.c.h.b16 %v856
        %v1456 = vunpack.c.l.b16 %v857
        %v1457 = vunpack.c.h.b16 %v857
        %v1458 = vunpack.c.l.b16 %v858
        %v1459 = vunpack.c.l.b16 %v859
        %v1460 = vunpack.c.h.b16 %v859
        %v1461 = vunpack.c.l.b16 %v860
        %v1462 = vunpack.c.h.b16 %v860
        %v1463 = vunpack.c.l.b16 %v861
        %v1464 = vunpack.c.l.b16 %v862
        %v1465 = vunpack.c.h.b16 %v862
        %v1466 = vunpack.c.l.b16 %v863
        %v1467 = vunpack.c.h.b16 %v863
        %v1468 = vunpack.c.l.b16 %v864
        %v1469 = vunpack.c.l.b16 %v865
        %v1470 = vunpack.c.h.b16 %v865
        %v1471 = vunpack.c.l.b16 %v866
        %v1472 = vunpack.c.h.b16 %v866
        %v1473 = vunpack.c.l.b16 %v867
        %v1474 = vunpack.c.l.b16 %v868
        %v1475 = vunpack.c.h.b16 %v868
        %v1476 = vunpack.c.l.b16 %v869
        %v1477 = vunpack.c.h.b16 %v869
        %v1478 = vunpack.c.l.b16 %v870
        %v1479 = vunpack.c.l.b16 %v871
        %v1480 = vunpack.c.h.b16 %v871
        %v1481 = vunpack.c.l.b16 %v872
        %v1482 = vunpack.c.h.b16 %v872
        %v1483 = vunpack.c.l.b16 %v873
        %v1484 = vunpack.c.l.b16 %v874
        %v1485 = vunpack.c.h.b16 %v874
        %v1486 = vunpack.c.l.b16 %v875
        %v1487 = vunpack.c.h.b16 %v875
        %v1488 = vunpack.c.l.b16 %v876
        %v1489 = vunpack.c.l.b16 %v877
        %v1490 = vunpack.c.h.b16 %v877
        %v1491 = vunpack.c.l.b16 %v878
        %v1492 = vunpack.c.h.b16 %v878
        %v1493 = vunpack.c.l.b16 %v879
        %v1494 = vunpack.c.l.b16 %v880
        %v1495 = vunpack.c.h.b16 %v880
        %v1496 = vunpack.c.l.b16 %v881
        %v1497 = vunpack.c.h.b16 %v881
        %v1498 = vunpack.c.l.b16 %v882
        %v1499 = vunpack.c.l.b16 %v883
        %v1500 = vunpack.c.h.b16 %v883
        %v1501 = vunpack.c.l.b16 %v884
        %v1502 = vunpack.c.h.b16 %v884
        %v1503 = vunpack.c.l.b16 %v885
        %v1504 = vunpack.c.l.b16 %v886
        %v1505 = vunpack.c.h.b16 %v886
        %v1506 = vunpack.c.l.b16 %v887
        %v1507 = vunpack.c.h.b16 %v887
        %v1508 = vunpack.c.l.b16 %v888
        %v1509 = vunpack.c.l.b16 %v889
        %v1510 = vunpack.c.h.b16 %v889
        %v1511 = vunpack.c.l.b16 %v890
        %v1512 = vunpack.c.h.b16 %v890
        %v1513 = vunpack.c.l.b16 %v891
        %v1514 = vunpack.c.l.b16 %v892
        %v1515 = vunpack.c.h.b16 %v892
        %v1516 = vunpack.c.l.b16 %v893
        %v1517 = vunpack.c.h.b16 %v893
        %v1518 = vunpack.c.l.b16 %v894
        %v1519 = vunpack.c.l.b16 %v895
        %v1520 = vunpack.c.h.b16 %v895
        %v1521 = vunpack.c.l.b16 %v896
        %v1522 = vunpack.c.h.b16 %v896
        %v1523 = vunpack.c.l.b16 %v897
        %v1524 = vunpack.c.l.b16 %v898
        %v1525 = vunpack.c.h.b16 %v898
        %v1526 = vunpack.c.l.b16 %v899
        %v1527 = vunpack.c.h.b16 %v899
        %v1528 = vunpack.c.l.b16 %v900
        %v1529 = vunpack.c.l.b16 %v901
        %v1530 = vunpack.c.h.b16 %v901
        %v1531 = vunpack.c.l.b16 %v902
        %v1532 = vunpack.c.h.b16 %v902
        %v1533 = vunpack.c.l.b16 %v903
        %v1534 = vunpack.c.l.b16 %v904
        %v1535 = vunpack.c.h.b16 %v904
        %v1536 = vunpack.c.l.b16 %v905
        %v1537 = vunpack.c.h.b16 %v905
        %v1538 = vunpack.c.l.b16 %v906
        %v1539 = vunpack.c.l.b16 %v907
        %v1540 = vunpack.c.h.b16 %v907
        %v1541 = vunpack.c.l.b16 %v908
        %v1542 = vunpack.c.h.b16 %v908
        %v1543 = vunpack.c.l.b16 %v909
        %v1544 = vunpack.c.l.b16 %v910
        %v1545 = vunpack.c.h.b16 %v910
        %v1546 = vunpack.c.l.b16 %v911
        %v1547 = vunpack.c.h.b16 %v911
        %v1548 = vunpack.c.l.b16 %v912
        %v1549 = vunpack.c.l.b16 %v913
        %v1550 = vunpack.c.h.b16 %v913
        %v1551 = vunpack.c.l.b16 %v914
        %v1552 = vunpack.c.h.b16 %v914
        %v1553 = vunpack.c.l.b16 %v915
        %v1554 = vunpack.c.l.b16 %v916
        %v1555 = vunpack.c.h.b16 %v916
        %v1556 = vunpack.c.l.b16 %v917
        %v1557 = vunpack.c.h.b16 %v917
        %v1558 = vunpack.c.l.b16 %v918
        %v1559 = vunpack.c.l.b16 %v919
        %v1560 = vunpack.c.h.b16 %v919
        %v1561 = vunpack.c.l.b16 %v920
        %v1562 = vunpack.c.h.b16 %v920
        %v1563 = vunpack.c.l.b16 %v921
        %v1564 = vunpack.c.l.b16 %v922
        %v1565 = vunpack.c.h.b16 %v922
        %v1566 = vunpack.c.l.b16 %v923
        %v1567 = vunpack.c.h.b16 %v923
        %v1568 = vunpack.c.l.b16 %v924
        %v1569 = vunpack.c.l.b16 %v925
        %v1570 = vunpack.c.h.b16 %v925
        %v1571 = vunpack.c.l.b16 %v926
        %v1572 = vunpack.c.h.b16 %v926
        %v1573 = vunpack.c.l.b16 %v927
        %v1574 = vunpack.c.l.b16 %v928
        %v1575 = vunpack.c.h.b16 %v928
        %v1576 = vunpack.c.l.b16 %v929
        %v1577 = vunpack.c.h.b16 %v929
        %v1578 = vunpack.c.l.b16 %v930
        %v1579 = vunpack.c.l.b16 %v931
        %v1580 = vunpack.c.h.b16 %v931
        %v1581 = vunpack.c.l.b16 %v932
        %v1582 = vunpack.c.h.b16 %v932
        %v1583 = vunpack.c.l.b16 %v933
        %v1584 = vunpack.c.l.b16 %v934
        %v1585 = vunpack.c.h.b16 %v934
        %v1586 = vunpack.c.l.b16 %v935
        %v1587 = vunpack.c.h.b16 %v935
        %v1588 = vunpack.c.l.b16 %v936
        %v1589 = vunpack.c.l.b16 %v937
        %v1590 = vunpack.c.h.b16 %v937
        %v1591 = vunpack.c.l.b16 %v938
        %v1592 = vunpack.c.h.b16 %v938
        %v1593 = vunpack.c.l.b16 %v939
        %v1594 = vunpack.c.l.b16 %v940
        %v1595 = vunpack.c.h.b16 %v940
        %v1596 = vunpack.c.l.b16 %v941
        %v1597 = vunpack.c.h.b16 %v941
        %v1598 = vunpack.c.l.b16 %v942
        %v1599 = vunpack.c.l.b16 %v943
        %v1600 = vunpack.c.h.b16 %v943
        %v1601 = vunpack.c.l.b16 %v944
        %v1602 = vunpack.c.h.b16 %v944
        %v1603 = vunpack.c.l.b16 %v945
        %v1604 = vunpack.c.l.b16 %v946
        %v1605 = vunpack.c.h.b16 %v946
        %v1606 = vunpack.c.l.b16 %v947
        %v1607 = vunpack.c.h.b16 %v947
        %v1608 = vunpack.c.l.b16 %v948
        %v1609 = vpack.c.b16 %v1254, %v1249
        %v1610 = vpack.c.b16 %v1255, %v1250
        %v1611 = vpack.c.b16 %v1256, %v1251
        %v1612 = vpack.c.b16 %v1257, %v1252
        %v1613 = vpack.c.b16 %v1258, %v1253
        %v1614 = vpack.c.b16 %v1264, %v1259
        %v1615 = vpack.c.b16 %v1265, %v1260
        %v1616 = vpack.c.b16 %v1266, %v1261
        %v1617 = vpack.c.b16 %v1267, %v1262
        %v1618 = vpack.c.b16 %v1268, %v1263
        %v1619 = vpack.c.b16 %v1274, %v1269
        %v1620 = vpack.c.b16 %v1275, %v1270
        %v1621 = vpack.c.b16 %v1276, %v1271
        %v1622 = vpack.c.b16 %v1277, %v1272
        %v1623 = vpack.c.b16 %v1278, %v1273
        %v1624 = vpack.c.b16 %v1284, %v1279
        %v1625 = vpack.c.b16 %v1285, %v1280
        %v1626 = vpack.c.b16 %v1286, %v1281
        %v1627 = vpack.c.b16 %v1287, %v1282
        %v1628 = vpack.c.b16 %v1288, %v1283
        %v1629 = vpack.c.b16 %v1294, %v1289
        %v1630 = vpack.c.b16 %v1295, %v1290
        %v1631 = vpack.c.b16 %v1296, %v1291
        %v1632 = vpack.c.b16 %v1297, %v1292
        %v1633 = vpack.c.b16 %v1298, %v1293
        %v1634 = vpack.c.b16 %v1304, %v1299
        %v1635 = vpack.c.b16 %v1305, %v1300
        %v1636 = vpack.c.b16 %v1306, %v1301
        %v1637 = vpack.c.b16 %v1307, %v1302
        %v1638 = vpack.c.b16 %v1308, %v1303
        %v1639 = vpack.c.b16 %v1314, %v1309
        %v1640 = vpack.c.b16 %v1315, %v1310
        %v1641 = vpack.c.b16 %v1316, %v1311
        %v1642 = vpack.c.b16 %v1317, %v1312
        %v1643 = vpack.c.b16 %v1318, %v1313
        %v1644 = vpack.c.b16 %v1324, %v1319
        %v1645 = vpack.c.b16 %v1325, %v1320
        %v1646 = vpack.c.b16 %v1326, %v1321
        %v1647 = vpack.c.b16 %v1327, %v1322
        %v1648 = vpack.c.b16 %v1328, %v1323
        %v1649 = vpack.c.b16 %v1334, %v1329
        %v1650 = vpack.c.b16 %v1335, %v1330
        %v1651 = vpack.c.b16 %v1336, %v1331
        %v1652 = vpack.c.b16 %v1337, %v1332
        %v1653 = vpack.c.b16 %v1338, %v1333
        %v1654 = vpack.c.b16 %v1344, %v1339
        %v1655 = vpack.c.b16 %v1345, %v1340
        %v1656 = vpack.c.b16 %v1346, %v1341
        %v1657 = vpack.c.b16 %v1347, %v1342
        %v1658 = vpack.c.b16 %v1348, %v1343
        %v1659 = vpack.c.b16 %v1354, %v1349
        %v1660 = vpack.c.b16 %v1355, %v1350
        %v1661 = vpack.c.b16 %v1356, %v1351
        %v1662 = vpack.c.b16 %v1357, %v1352
        %v1663 = vpack.c.b16 %v1358, %v1353
        %v1664 = vpack.c.b16 %v1364, %v1359
        %v1665 = vpack.c.b16 %v1365, %v1360
        %v1666 = vpack.c.b16 %v1366, %v1361
        %v1667 = vpack.c.b16 %v1367, %v1362
        %v1668 = vpack.c.b16 %v1368, %v1363
        %v1669 = vpack.c.b16 %v1374, %v1369
        %v1670 = vpack.c.b16 %v1375, %v1370
        %v1671 = vpack.c.b16 %v1376, %v1371
        %v1672 = vpack.c.b16 %v1377, %v1372
        %v1673 = vpack.c.b16 %v1378, %v1373
        %v1674 = vpack.c.b16 %v1384, %v1379
        %v1675 = vpack.c.b16 %v1385, %v1380
        %v1676 = vpack.c.b16 %v1386, %v1381
        %v1677 = vpack.c.b16 %v1387, %v1382
        %v1678 = vpack.c.b16 %v1388, %v1383
        %v1679 = vpack.c.b16 %v1394, %v1389
        %v1680 = vpack.c.b16 %v1395, %v1390
        %v1681 = vpack.c.b16 %v1396, %v1391
        %v1682 = vpack.c.b16 %v1397, %v1392
        %v1683 = vpack.c.b16 %v1398, %v1393
        %v1684 = vpack.c.b16 %v1404, %v1399
        %v1685 = vpack.c.b16 %v1405, %v1400
        %v1686 = vpack.c.b16 %v1406, %v1401
        %v1687 = vpack.c.b16 %v1407, %v1402
        %v1688 = vpack.c.b16 %v1408, %v1403
        %v1689 = vpack.c.b16 %v1414, %v1409
        %v1690 = vpack.c.b16 %v1415, %v1410
        %v1691 = vpack.c.b16 %v1416, %v1411
        %v1692 = vpack.c.b16 %v1417, %v1412
        %v1693 = vpack.c.b16 %v1418, %v1413
        %v1694 = vpack.c.b16 %v1424, %v1419
        %v1695 = vpack.c.b16 %v1425, %v1420
        %v1696 = vpack.c.b16 %v1426, %v1421
        %v1697 = vpack.c.b16 %v1427, %v1422
        %v1698 = vpack.c.b16 %v1428, %v1423
        %v1699 = vpack.c.b16 %v1434, %v1429
        %v1700 = vpack.c.b16 %v1435, %v1430
        %v1701 = vpack.c.b16 %v1436, %v1431
        %v1702 = vpack.c.b16 %v1437, %v1432
        %v1703 = vpack.c.b16 %v1438, %v1433
        %v1704 = vpack.c.b16 %v1444, %v1439
        %v1705 = vpack.c.b16 %v1445, %v1440
        %v1706 = vpack.c.b16 %v1446, %v1441
        %v1707 = vpack.c.b16 %v1447, %v1442
        %v1708 = vpack.c.b16 %v1448, %v1443
        %v1709 = vpack.c.b16 %v1454, %v1449
        %v1710 = vpack.c.b16 %v1455, %v1450
        %v1711 = vpack.c.b16 %v1456, %v1451
        %v1712 = vpack.c.b16 %v1457, %v1452
        %v1713 = vpack.c.b16 %v1458, %v1453
        %v1714 = vpack.c.b16 %v1464, %v1459
        %v1715 = vpack.c.b16 %v1465, %v1460
        %v1716 = vpack.c.b16 %v1466, %v1461
        %v1717 = vpack.c.b16 %v1467, %v1462
        %v1718 = vpack.c.b16 %v1468, %v1463
        %v1719 = vpack.c.b16 %v1474, %v1469
        %v1720 = vpack.c.b16 %v1475, %v1470
        %v1721 = vpack.c.b16 %v1476, %v1471
        %v1722 = vpack.c.b16 %v1477, %v1472
        %v1723 = vpack.c.b16 %v1478, %v1473
        %v1724 = vpack.c.b16 %v1484, %v1479
        %v1725 = vpack.c.b16 %v1485, %v1480
        %v1726 = vpack.c.b16 %v1486, %v1481
        %v1727 = vpack.c.b16 %v1487, %v1482
        %v1728 = vpack.c.b16 %v1488, %v1483
        %v1729 = vpack.c.b16 %v1494, %v1489
        %v1730 = vpack.c.b16 %v1495, %v1490
        %v1731 = vpack.c.b16 %v1496, %v1491
        %v1732 = vpack.c.b16 %v1497, %v1492
        %v1733 = vpack.c.b16 %v1498, %v1493
        %v1734 = vpack.c.b16 %v1504, %v1499
        %v1735 = vpack.c.b16 %v1505, %v1500
        %v1736 = vpack.c.b16 %v1506, %v1501
        %v1737 = vpack.c.b16 %v1507, %v1502
        %v1738 = vpack.c.b16 %v1508, %v1503
        %v1739 = vpack.c.b16 %v1514, %v1509
        %v1740 = vpack.c.b16 %v1515, %v1510
        %v1741 = vpack.c.b16 %v1516, %v1511
        %v1742 = vpack.c.b16 %v1517, %v1512
        %v1743 = vpack.c.b16 %v1518, %v1513
        %v1744 = vpack.c.b16 %v1524, %v1519
        %v1745 = vpack.c.b16 %v1525, %v1520
        %v1746 = vpack.c.b16 %v1526, %v1521
        %v1747 = vpack.c.b16 %v1527, %v1522
        %v1748 = vpack.c.b16 %v1528, %v1523
        %v1749 = vpack.c.b16 %v1534, %v1529
        %v1750 = vpack.c.b16 %v1535, %v1530
        %v1751 = vpack.c.b16 %v1536, %v1531
        %v1752 = vpack.c.b16 %v1537, %v1532
        %v1753 = vpack.c.b16 %v1538, %v1533
        %v1754 = vpack.c.b16 %v1544, %v1539
        %v1755 = vpack.c.b16 %v1545, %v1540
        %v1756 = vpack.c.b16 %v1546, %v1541
        %v1757 = vpack.c.b16 %v1547, %v1542
        %v1758 = vpack.c.b16 %v1548, %v1543
        %v1759 = vpack.c.b16 %v1554, %v1549
        %v1760 = vpack.c.b16 %v1555, %v1550
        %v1761 = vpack.c.b16 %v1556, %v1551
        %v1762 = vpack.c.b16 %v1557, %v1552
        %v1763 = vpack.c.b16 %v1558, %v1553
        %v1764 = vpack.c.b16 %v1564, %v1559
        %v1765 = vpack.c.b16 %v1565, %v1560
        %v1766 = vpack.c.b16 %v1566, %v1561
        %v1767 = vpack.c.b16 %v1567, %v1562
        %v1768 = vpack.c.b16 %v1568, %v1563
        %v1769 = vpack.c.b16 %v1574, %v1569
        %v1770 = vpack.c.b16 %v1575, %v1570
        %v1771 = vpack.c.b16 %v1576, %v1571
        %v1772 = vpack.c.b16 %v1577, %v1572
        %v1773 = vpack.c.b16 %v1578, %v1573
        %v1774 = vpack.c.b16 %v1584, %v1579
        %v1775 = vpack.c.b16 %v1585, %v1580
        %v1776 = vpack.c.b16 %v1586, %v1581
        %v1777 = vpack.c.b16 %v1587, %v1582
        %v1778 = vpack.c.b16 %v1588, %v1583
        %v1779 = vpack.c.b16 %v1594, %v1589
        %v1780 = vpack.c.b16 %v1595, %v1590
        %v1781 = vpack.c.b16 %v1596, %v1591
        %v1782 = vpack.c.b16 %v1597, %v1592
        %v1783 = vpack.c.b16 %v1598, %v1593
        %v1784 = vpack.c.b16 %v1604, %v1599
        %v1785 = vpack.c.b16 %v1605, %v1600
        %v1786 = vpack.c.b16 %v1606, %v1601
        %v1787 = vpack.c.b16 %v1607, %v1602
        %v1788 = vpack.c.b16 %v1608, %v1603
        %vm1969 = vcmask 523264
        %v1971 = vsel %vm1969, %v1009, 0
        %v1974 = vsel %vm1969, %v1024, 0
        %1976 = vmatprep.subr.bf16.mxu0 %v1645
        %1977 = vmatpush1.bf16.msra.mxu0 %v1644
        %1978 = vmatprep.subr.bf16.mxu0 %v1640
        %1979 = vmatpush1.bf16.msra.mxu0 %v1639
        %1980 = vmatprep.subr.bf16.mxu0 %v1635
        %1981 = vmatpush1.bf16.msra.mxu0 %v1634
        %1982 = vmatprep.subr.bf16.mxu0 %v1630
        %1983 = vmatpush1.bf16.msra.mxu0 %v1629
        %1984 = vmatprep.subr.bf16.mxu0 %v1625
        %1985 = vmatpush1.bf16.msra.mxu0 %v1624
        %1986 = vmatprep.subr.bf16.mxu0 %v1620
        %1987 = vmatpush1.bf16.msra.mxu0 %v1619
        %1988 = vmatprep.subr.bf16.mxu0 %v1615
        %1989 = vmatpush1.bf16.msra.mxu0 %v1614
        %1990 = vmatprep.subr.bf16.mxu0 %v1610
        %1991 = vmatpush1.bf16.msra.mxu0 %v1609
        %1992 = vmatprep.subr.bf16.mxu0 %v1685
        %1993 = vmatpush2.bf16.msra.mxu0 %v1684
        %1994 = vmatprep.subr.bf16.mxu0 %v1680
        %1995 = vmatpush2.bf16.msra.mxu0 %v1679
        %1996 = vmatprep.subr.bf16.mxu0 %v1675
        %1997 = vmatpush2.bf16.msra.mxu0 %v1674
        %1998 = vmatprep.subr.bf16.mxu0 %v1670
        %1999 = vmatpush2.bf16.msra.mxu0 %v1669
        %2000 = vmatprep.subr.bf16.mxu0 %v1665
        %2001 = vmatpush2.bf16.msra.mxu0 %v1664
        %2002 = vmatprep.subr.bf16.mxu0 %v1660
        %2003 = vmatpush2.bf16.msra.mxu0 %v1659
        %2004 = vmatprep.subr.bf16.mxu0 %v1655
        %2005 = vmatpush2.bf16.msra.mxu0 %v1654
        %2006 = vmatprep.subr.bf16.mxu0 %v1650
        %2007 = vmatpush2.bf16.msra.mxu0 %v1649
        %2008 = vmatprep.mubr.bf16.mxu0 %v973
        %2009 = vmatmul.mubr.bf16.gmra.mxu0 %v961
        %v2010 = vpop.f32.mrf.mxu0
        %v2011 = vadd.f32 0.0, %v2010
        %v2012 = vpop.f32.mrf.mxu0
        %v2013 = vadd.f32 0.0, %v2012
        %v2014 = vpop.f32.mrf.mxu0
        %v2015 = vadd.f32 0.0, %v2014
        %v2016 = vpop.f32.mrf.mxu0
        %v2017 = vadd.f32 0.0, %v2016
        %2018 = vmatprep.mubr.bf16.mxu0 %v1015
        %2019 = vmatmul.mubr.bf16.gmra.mxu0 %v1012
        %v2020 = vpop.f32.mrf.mxu0
        %v2021 = vadd.f32 0.0, %v2020
        %v2022 = vpop.f32.mrf.mxu0
        %v2023 = vadd.f32 0.0, %v2022
        %v2024 = vpop.f32.mrf.mxu0
        %v2025 = vpop.f32.mrf.mxu0
        %2026 = vdwg.mxu0
        %2027 = vmatprep.subr.bf16.mxu0 %v1725
        %2028 = vmatpush1.bf16.msra.mxu0 %v1724
        %2029 = vmatprep.subr.bf16.mxu0 %v1720
        %2030 = vmatpush1.bf16.msra.mxu0 %v1719
        %2031 = vmatprep.subr.bf16.mxu0 %v1715
        %2032 = vmatpush1.bf16.msra.mxu0 %v1714
        %2033 = vmatprep.subr.bf16.mxu0 %v1710
        %2034 = vmatpush1.bf16.msra.mxu0 %v1709
        %2035 = vmatprep.subr.bf16.mxu0 %v1705
        %2036 = vmatpush1.bf16.msra.mxu0 %v1704
        %2037 = vmatprep.subr.bf16.mxu0 %v1700
        %2038 = vmatpush1.bf16.msra.mxu0 %v1699
        %2039 = vmatprep.subr.bf16.mxu0 %v1695
        %2040 = vmatpush1.bf16.msra.mxu0 %v1694
        %2041 = vmatprep.subr.bf16.mxu0 %v1690
        %2042 = vmatpush1.bf16.msra.mxu0 %v1689
        %2043 = vmatprep.subr.bf16.mxu0 %v1765
        %2044 = vmatpush2.bf16.msra.mxu0 %v1764
        %2045 = vmatprep.subr.bf16.mxu0 %v1760
        %2046 = vmatpush2.bf16.msra.mxu0 %v1759
        %2047 = vmatprep.subr.bf16.mxu0 %v1755
        %2048 = vmatpush2.bf16.msra.mxu0 %v1754
        %2049 = vmatprep.subr.bf16.mxu0 %v1750
        %2050 = vmatpush2.bf16.msra.mxu0 %v1749
        %2051 = vmatprep.subr.bf16.mxu0 %v1745
        %2052 = vmatpush2.bf16.msra.mxu0 %v1744
        %2053 = vmatprep.subr.bf16.mxu0 %v1740
        %2054 = vmatpush2.bf16.msra.mxu0 %v1739
        %2055 = vmatprep.subr.bf16.mxu0 %v1735
        %2056 = vmatpush2.bf16.msra.mxu0 %v1734
        %2057 = vmatprep.subr.bf16.mxu0 %v1730
        %2058 = vmatpush2.bf16.msra.mxu0 %v1729
        %2059 = vmatprep.mubr.bf16.mxu0 %v997
        %2060 = vmatmul.mubr.bf16.gmra.mxu0 %v985
        %v2061 = vpop.f32.mrf.mxu0
        %v2062 = vadd.f32 %v2011, %v2061
        %v2063 = vpop.f32.mrf.mxu0
        %v2064 = vadd.f32 %v2013, %v2063
        %v2065 = vpop.f32.mrf.mxu0
        %v2066 = vadd.f32 %v2015, %v2065
        %v2067 = vpop.f32.mrf.mxu0
        %v2068 = vadd.f32 %v2017, %v2067
        %2069 = vmatprep.mubr.bf16.mxu0 %v1021
        %2070 = vmatmul.mubr.bf16.gmra.mxu0 %v1018
        %v2071 = vpop.f32.mrf.mxu0
        %v2072 = vadd.f32 %v2021, %v2071
        %v2073 = vpop.f32.mrf.mxu0
        %v2074 = vadd.f32 %v2023, %v2073
        %v2075 = vpop.f32.mrf.mxu0
        %v2076 = vpop.f32.mrf.mxu0
        %2077 = vdwg.mxu0
        %2078 = vmatprep.subr.bf16.mxu0 0
        %2079 = vmatpush1.bf16.msra.mxu0 0
        %2080 = vmatprep.subr.bf16.mxu0 0
        %2081 = vmatpush1.bf16.msra.mxu0 0
        %2082 = vmatprep.subr.bf16.mxu0 0
        %2083 = vmatpush1.bf16.msra.mxu0 0
        %2084 = vmatprep.subr.bf16.mxu0 0
        %2085 = vmatpush1.bf16.msra.mxu0 0
        %2086 = vmatprep.subr.bf16.mxu0 %v1785
        %2087 = vmatpush1.bf16.msra.mxu0 %v1784
        %2088 = vmatprep.subr.bf16.mxu0 %v1780
        %2089 = vmatpush1.bf16.msra.mxu0 %v1779
        %2090 = vmatprep.subr.bf16.mxu0 %v1775
        %2091 = vmatpush1.bf16.msra.mxu0 %v1774
        %2092 = vmatprep.subr.bf16.mxu0 %v1770
        %2093 = vmatpush1.bf16.msra.mxu0 %v1769
        %2094 = vmatprep.subr.bf16.mxu0 0
        %2095 = vmatpush2.bf16.msra.mxu0 0
        %2096 = vmatprep.subr.bf16.mxu0 0
        %2097 = vmatpush2.bf16.msra.mxu0 0
        %2098 = vmatprep.subr.bf16.mxu0 0
        %2099 = vmatpush2.bf16.msra.mxu0 0
        %2100 = vmatprep.subr.bf16.mxu0 0
        %2101 = vmatpush2.bf16.msra.mxu0 0
        %2102 = vmatprep.subr.bf16.mxu0 0
        %2103 = vmatpush2.bf16.msra.mxu0 0
        %2104 = vmatprep.subr.bf16.mxu0 0
        %2105 = vmatpush2.bf16.msra.mxu0 0
        %2106 = vmatprep.subr.bf16.mxu0 0
        %2107 = vmatpush2.bf16.msra.mxu0 0
        %2108 = vmatprep.subr.bf16.mxu0 0
        %2109 = vmatpush2.bf16.msra.mxu0 0
        %2110 = vmatprep.mubr.bf16.mxu0 0
        %2111 = vmatmul.mubr.bf16.gmra.mxu0 %v1971
        %v2112 = vpop.f32.mrf.mxu0
        %v2113 = vadd.f32 %v2062, %v2112
        %v2114 = vpop.f32.mrf.mxu0
        %v2115 = vadd.f32 %v2064, %v2114
        %v2116 = vpop.f32.mrf.mxu0
        %v2117 = vadd.f32 %v2066, %v2116
        %v2118 = vpop.f32.mrf.mxu0
        %v2119 = vadd.f32 %v2068, %v2118
        %2120 = vmatprep.mubr.bf16.mxu0 0
        %2121 = vmatmul.mubr.bf16.gmra.mxu0 %v1974
        %v2122 = vpop.f32.mrf.mxu0
        %v2123 = vadd.f32 %v2072, %v2122
        %v2124 = vpop.f32.mrf.mxu0
        %v2125 = vadd.f32 %v2074, %v2124
        %v2126 = vpop.f32.mrf.mxu0
        %v2127 = vpop.f32.mrf.mxu0
        %2128 = vdwg.mxu0
        %2129 = vmatprep.subr.bf16.mxu0 %v1647
        %2130 = vmatpush1.bf16.msra.mxu0 %v1646
        %2131 = vmatprep.subr.bf16.mxu0 %v1642
        %2132 = vmatpush1.bf16.msra.mxu0 %v1641
        %2133 = vmatprep.subr.bf16.mxu0 %v1637
        %2134 = vmatpush1.bf16.msra.mxu0 %v1636
        %2135 = vmatprep.subr.bf16.mxu0 %v1632
        %2136 = vmatpush1.bf16.msra.mxu0 %v1631
        %2137 = vmatprep.subr.bf16.mxu0 %v1627
        %2138 = vmatpush1.bf16.msra.mxu0 %v1626
        %2139 = vmatprep.subr.bf16.mxu0 %v1622
        %2140 = vmatpush1.bf16.msra.mxu0 %v1621
        %2141 = vmatprep.subr.bf16.mxu0 %v1617
        %2142 = vmatpush1.bf16.msra.mxu0 %v1616
        %2143 = vmatprep.subr.bf16.mxu0 %v1612
        %2144 = vmatpush1.bf16.msra.mxu0 %v1611
        %2145 = vmatprep.subr.bf16.mxu0 %v1687
        %2146 = vmatpush2.bf16.msra.mxu0 %v1686
        %2147 = vmatprep.subr.bf16.mxu0 %v1682
        %2148 = vmatpush2.bf16.msra.mxu0 %v1681
        %2149 = vmatprep.subr.bf16.mxu0 %v1677
        %2150 = vmatpush2.bf16.msra.mxu0 %v1676
        %2151 = vmatprep.subr.bf16.mxu0 %v1672
        %2152 = vmatpush2.bf16.msra.mxu0 %v1671
        %2153 = vmatprep.subr.bf16.mxu0 %v1667
        %2154 = vmatpush2.bf16.msra.mxu0 %v1666
        %2155 = vmatprep.subr.bf16.mxu0 %v1662
        %2156 = vmatpush2.bf16.msra.mxu0 %v1661
        %2157 = vmatprep.subr.bf16.mxu0 %v1657
        %2158 = vmatpush2.bf16.msra.mxu0 %v1656
        %2159 = vmatprep.subr.bf16.mxu0 %v1652
        %2160 = vmatpush2.bf16.msra.mxu0 %v1651
        %2161 = vmatprep.mubr.bf16.mxu0 %v973
        %2162 = vmatmul.mubr.bf16.gmra.mxu0 %v961
        %v2163 = vpop.f32.mrf.mxu0
        %v2164 = vadd.f32 0.0, %v2163
        %v2165 = vpop.f32.mrf.mxu0
        %v2166 = vadd.f32 0.0, %v2165
        %v2167 = vpop.f32.mrf.mxu0
        %v2168 = vadd.f32 0.0, %v2167
        %v2169 = vpop.f32.mrf.mxu0
        %v2170 = vadd.f32 0.0, %v2169
        %2171 = vmatprep.mubr.bf16.mxu0 %v1015
        %2172 = vmatmul.mubr.bf16.gmra.mxu0 %v1012
        %v2173 = vpop.f32.mrf.mxu0
        %v2174 = vadd.f32 0.0, %v2173
        %v2175 = vpop.f32.mrf.mxu0
        %v2176 = vadd.f32 0.0, %v2175
        %v2177 = vpop.f32.mrf.mxu0
        %v2178 = vpop.f32.mrf.mxu0
        %2179 = vdwg.mxu0
        %2180 = vmatprep.subr.bf16.mxu0 %v1727
        %2181 = vmatpush1.bf16.msra.mxu0 %v1726
        %2182 = vmatprep.subr.bf16.mxu0 %v1722
        %2183 = vmatpush1.bf16.msra.mxu0 %v1721
        %2184 = vmatprep.subr.bf16.mxu0 %v1717
        %2185 = vmatpush1.bf16.msra.mxu0 %v1716
        %2186 = vmatprep.subr.bf16.mxu0 %v1712
        %2187 = vmatpush1.bf16.msra.mxu0 %v1711
        %2188 = vmatprep.subr.bf16.mxu0 %v1707
        %2189 = vmatpush1.bf16.msra.mxu0 %v1706
        %2190 = vmatprep.subr.bf16.mxu0 %v1702
        %2191 = vmatpush1.bf16.msra.mxu0 %v1701
        %2192 = vmatprep.subr.bf16.mxu0 %v1697
        %2193 = vmatpush1.bf16.msra.mxu0 %v1696
        %2194 = vmatprep.subr.bf16.mxu0 %v1692
        %2195 = vmatpush1.bf16.msra.mxu0 %v1691
        %2196 = vmatprep.subr.bf16.mxu0 %v1767
        %2197 = vmatpush2.bf16.msra.mxu0 %v1766
        %2198 = vmatprep.subr.bf16.mxu0 %v1762
        %2199 = vmatpush2.bf16.msra.mxu0 %v1761
        %2200 = vmatprep.subr.bf16.mxu0 %v1757
        %2201 = vmatpush2.bf16.msra.mxu0 %v1756
        %2202 = vmatprep.subr.bf16.mxu0 %v1752
        %2203 = vmatpush2.bf16.msra.mxu0 %v1751
        %2204 = vmatprep.subr.bf16.mxu0 %v1747
        %2205 = vmatpush2.bf16.msra.mxu0 %v1746
        %2206 = vmatprep.subr.bf16.mxu0 %v1742
        %2207 = vmatpush2.bf16.msra.mxu0 %v1741
        %2208 = vmatprep.subr.bf16.mxu0 %v1737
        %2209 = vmatpush2.bf16.msra.mxu0 %v1736
        %2210 = vmatprep.subr.bf16.mxu0 %v1732
        %2211 = vmatpush2.bf16.msra.mxu0 %v1731
        %2212 = vmatprep.mubr.bf16.mxu0 %v997
        %2213 = vmatmul.mubr.bf16.gmra.mxu0 %v985
        %v2214 = vpop.f32.mrf.mxu0
        %v2215 = vadd.f32 %v2164, %v2214
        %v2216 = vpop.f32.mrf.mxu0
        %v2217 = vadd.f32 %v2166, %v2216
        %v2218 = vpop.f32.mrf.mxu0
        %v2219 = vadd.f32 %v2168, %v2218
        %v2220 = vpop.f32.mrf.mxu0
        %v2221 = vadd.f32 %v2170, %v2220
        %2222 = vmatprep.mubr.bf16.mxu0 %v1021
        %2223 = vmatmul.mubr.bf16.gmra.mxu0 %v1018
        %v2224 = vpop.f32.mrf.mxu0
        %v2225 = vadd.f32 %v2174, %v2224
        %v2226 = vpop.f32.mrf.mxu0
        %v2227 = vadd.f32 %v2176, %v2226
        %v2228 = vpop.f32.mrf.mxu0
        %v2229 = vpop.f32.mrf.mxu0
        %2230 = vdwg.mxu0
        %2231 = vmatprep.subr.bf16.mxu0 0
        %2232 = vmatpush1.bf16.msra.mxu0 0
        %2233 = vmatprep.subr.bf16.mxu0 0
        %2234 = vmatpush1.bf16.msra.mxu0 0
        %2235 = vmatprep.subr.bf16.mxu0 0
        %2236 = vmatpush1.bf16.msra.mxu0 0
        %2237 = vmatprep.subr.bf16.mxu0 0
        %2238 = vmatpush1.bf16.msra.mxu0 0
        %2239 = vmatprep.subr.bf16.mxu0 %v1787
        %2240 = vmatpush1.bf16.msra.mxu0 %v1786
        %2241 = vmatprep.subr.bf16.mxu0 %v1782
        %2242 = vmatpush1.bf16.msra.mxu0 %v1781
        %2243 = vmatprep.subr.bf16.mxu0 %v1777
        %2244 = vmatpush1.bf16.msra.mxu0 %v1776
        %2245 = vmatprep.subr.bf16.mxu0 %v1772
        %2246 = vmatpush1.bf16.msra.mxu0 %v1771
        %2247 = vmatprep.subr.bf16.mxu0 0
        %2248 = vmatpush2.bf16.msra.mxu0 0
        %2249 = vmatprep.subr.bf16.mxu0 0
        %2250 = vmatpush2.bf16.msra.mxu0 0
        %2251 = vmatprep.subr.bf16.mxu0 0
        %2252 = vmatpush2.bf16.msra.mxu0 0
        %2253 = vmatprep.subr.bf16.mxu0 0
        %2254 = vmatpush2.bf16.msra.mxu0 0
        %2255 = vmatprep.subr.bf16.mxu0 0
        %2256 = vmatpush2.bf16.msra.mxu0 0
        %2257 = vmatprep.subr.bf16.mxu0 0
        %2258 = vmatpush2.bf16.msra.mxu0 0
        %2259 = vmatprep.subr.bf16.mxu0 0
        %2260 = vmatpush2.bf16.msra.mxu0 0
        %2261 = vmatprep.subr.bf16.mxu0 0
        %2262 = vmatpush2.bf16.msra.mxu0 0
        %2263 = vmatprep.mubr.bf16.mxu0 0
        %2264 = vmatmul.mubr.bf16.gmra.mxu0 %v1971
        %v2265 = vpop.f32.mrf.mxu0
        %v2266 = vadd.f32 %v2215, %v2265
        %v2267 = vpop.f32.mrf.mxu0
        %v2268 = vadd.f32 %v2217, %v2267
        %v2269 = vpop.f32.mrf.mxu0
        %v2270 = vadd.f32 %v2219, %v2269
        %v2271 = vpop.f32.mrf.mxu0
        %v2272 = vadd.f32 %v2221, %v2271
        %2273 = vmatprep.mubr.bf16.mxu0 0
        %2274 = vmatmul.mubr.bf16.gmra.mxu0 %v1974
        %v2275 = vpop.f32.mrf.mxu0
        %v2276 = vadd.f32 %v2225, %v2275
        %v2277 = vpop.f32.mrf.mxu0
        %v2278 = vadd.f32 %v2227, %v2277
        %v2279 = vpop.f32.mrf.mxu0
        %v2280 = vpop.f32.mrf.mxu0
        %2281 = vdwg.mxu0
        %2282 = vmatprep.subr.bf16.mxu0 0
        %2283 = vmatpush1.bf16.msra.mxu0 %v1648
        %2284 = vmatprep.subr.bf16.mxu0 0
        %2285 = vmatpush1.bf16.msra.mxu0 %v1643
        %2286 = vmatprep.subr.bf16.mxu0 0
        %2287 = vmatpush1.bf16.msra.mxu0 %v1638
        %2288 = vmatprep.subr.bf16.mxu0 0
        %2289 = vmatpush1.bf16.msra.mxu0 %v1633
        %2290 = vmatprep.subr.bf16.mxu0 0
        %2291 = vmatpush1.bf16.msra.mxu0 %v1628
        %2292 = vmatprep.subr.bf16.mxu0 0
        %2293 = vmatpush1.bf16.msra.mxu0 %v1623
        %2294 = vmatprep.subr.bf16.mxu0 0
        %2295 = vmatpush1.bf16.msra.mxu0 %v1618
        %2296 = vmatprep.subr.bf16.mxu0 0
        %2297 = vmatpush1.bf16.msra.mxu0 %v1613
        %2298 = vmatprep.subr.bf16.mxu0 0
        %2299 = vmatpush2.bf16.msra.mxu0 %v1688
        %2300 = vmatprep.subr.bf16.mxu0 0
        %2301 = vmatpush2.bf16.msra.mxu0 %v1683
        %2302 = vmatprep.subr.bf16.mxu0 0
        %2303 = vmatpush2.bf16.msra.mxu0 %v1678
        %2304 = vmatprep.subr.bf16.mxu0 0
        %2305 = vmatpush2.bf16.msra.mxu0 %v1673
        %2306 = vmatprep.subr.bf16.mxu0 0
        %2307 = vmatpush2.bf16.msra.mxu0 %v1668
        %2308 = vmatprep.subr.bf16.mxu0 0
        %2309 = vmatpush2.bf16.msra.mxu0 %v1663
        %2310 = vmatprep.subr.bf16.mxu0 0
        %2311 = vmatpush2.bf16.msra.mxu0 %v1658
        %2312 = vmatprep.subr.bf16.mxu0 0
        %2313 = vmatpush2.bf16.msra.mxu0 %v1653
        %2314 = vmatprep.mubr.bf16.mxu0 %v973
        %2315 = vmatmul.mubr.bf16.gmra.mxu0 %v961
        %v2316 = vpop.f32.mrf.mxu0
        %v2317 = vadd.f32 0.0, %v2316
        %v2318 = vpop.f32.mrf.mxu0
        %v2319 = vpop.f32.mrf.mxu0
        %v2320 = vadd.f32 0.0, %v2319
        %v2321 = vpop.f32.mrf.mxu0
        %2322 = vmatprep.mubr.bf16.mxu0 %v1015
        %2323 = vmatmul.mubr.bf16.gmra.mxu0 %v1012
        %v2324 = vpop.f32.mrf.mxu0
        %v2325 = vadd.f32 0.0, %v2324
        %v2326 = vpop.f32.mrf.mxu0
        %v2327 = vpop.f32.mrf.mxu0
        %v2328 = vpop.f32.mrf.mxu0
        %2329 = vdwg.mxu0
        %2330 = vmatprep.subr.bf16.mxu0 0
        %2331 = vmatpush1.bf16.msra.mxu0 %v1728
        %2332 = vmatprep.subr.bf16.mxu0 0
        %2333 = vmatpush1.bf16.msra.mxu0 %v1723
        %2334 = vmatprep.subr.bf16.mxu0 0
        %2335 = vmatpush1.bf16.msra.mxu0 %v1718
        %2336 = vmatprep.subr.bf16.mxu0 0
        %2337 = vmatpush1.bf16.msra.mxu0 %v1713
        %2338 = vmatprep.subr.bf16.mxu0 0
        %2339 = vmatpush1.bf16.msra.mxu0 %v1708
        %2340 = vmatprep.subr.bf16.mxu0 0
        %2341 = vmatpush1.bf16.msra.mxu0 %v1703
        %2342 = vmatprep.subr.bf16.mxu0 0
        %2343 = vmatpush1.bf16.msra.mxu0 %v1698
        %2344 = vmatprep.subr.bf16.mxu0 0
        %2345 = vmatpush1.bf16.msra.mxu0 %v1693
        %2346 = vmatprep.subr.bf16.mxu0 0
        %2347 = vmatpush2.bf16.msra.mxu0 %v1768
        %2348 = vmatprep.subr.bf16.mxu0 0
        %2349 = vmatpush2.bf16.msra.mxu0 %v1763
        %2350 = vmatprep.subr.bf16.mxu0 0
        %2351 = vmatpush2.bf16.msra.mxu0 %v1758
        %2352 = vmatprep.subr.bf16.mxu0 0
        %2353 = vmatpush2.bf16.msra.mxu0 %v1753
        %2354 = vmatprep.subr.bf16.mxu0 0
        %2355 = vmatpush2.bf16.msra.mxu0 %v1748
        %2356 = vmatprep.subr.bf16.mxu0 0
        %2357 = vmatpush2.bf16.msra.mxu0 %v1743
        %2358 = vmatprep.subr.bf16.mxu0 0
        %2359 = vmatpush2.bf16.msra.mxu0 %v1738
        %2360 = vmatprep.subr.bf16.mxu0 0
        %2361 = vmatpush2.bf16.msra.mxu0 %v1733
        %2362 = vmatprep.mubr.bf16.mxu0 %v997
        %2363 = vmatmul.mubr.bf16.gmra.mxu0 %v985
        %v2364 = vpop.f32.mrf.mxu0
        %v2365 = vadd.f32 %v2317, %v2364
        %v2366 = vpop.f32.mrf.mxu0
        %v2367 = vpop.f32.mrf.mxu0
        %v2368 = vadd.f32 %v2320, %v2367
        %v2369 = vpop.f32.mrf.mxu0
        %2370 = vmatprep.mubr.bf16.mxu0 %v1021
        %2371 = vmatmul.mubr.bf16.gmra.mxu0 %v1018
        %v2372 = vpop.f32.mrf.mxu0
        %v2373 = vadd.f32 %v2325, %v2372
        %v2374 = vpop.f32.mrf.mxu0
        %v2375 = vpop.f32.mrf.mxu0
        %v2376 = vpop.f32.mrf.mxu0
        %2377 = vdwg.mxu0
        %2378 = vmatprep.subr.bf16.mxu0 0
        %2379 = vmatpush1.bf16.msra.mxu0 0
        %2380 = vmatprep.subr.bf16.mxu0 0
        %2381 = vmatpush1.bf16.msra.mxu0 0
        %2382 = vmatprep.subr.bf16.mxu0 0
        %2383 = vmatpush1.bf16.msra.mxu0 0
        %2384 = vmatprep.subr.bf16.mxu0 0
        %2385 = vmatpush1.bf16.msra.mxu0 0
        %2386 = vmatprep.subr.bf16.mxu0 0
        %2387 = vmatpush1.bf16.msra.mxu0 %v1788
        %2388 = vmatprep.subr.bf16.mxu0 0
        %2389 = vmatpush1.bf16.msra.mxu0 %v1783
        %2390 = vmatprep.subr.bf16.mxu0 0
        %2391 = vmatpush1.bf16.msra.mxu0 %v1778
        %2392 = vmatprep.subr.bf16.mxu0 0
        %2393 = vmatpush1.bf16.msra.mxu0 %v1773
        %2394 = vmatprep.subr.bf16.mxu0 0
        %2395 = vmatpush2.bf16.msra.mxu0 0
        %2396 = vmatprep.subr.bf16.mxu0 0
        %2397 = vmatpush2.bf16.msra.mxu0 0
        %2398 = vmatprep.subr.bf16.mxu0 0
        %2399 = vmatpush2.bf16.msra.mxu0 0
        %2400 = vmatprep.subr.bf16.mxu0 0
        %2401 = vmatpush2.bf16.msra.mxu0 0
        %2402 = vmatprep.subr.bf16.mxu0 0
        %2403 = vmatpush2.bf16.msra.mxu0 0
        %2404 = vmatprep.subr.bf16.mxu0 0
        %2405 = vmatpush2.bf16.msra.mxu0 0
        %2406 = vmatprep.subr.bf16.mxu0 0
        %2407 = vmatpush2.bf16.msra.mxu0 0
        %2408 = vmatprep.subr.bf16.mxu0 0
        %2409 = vmatpush2.bf16.msra.mxu0 0
        %2410 = vmatprep.mubr.bf16.mxu0 0
        %2411 = vmatmul.mubr.bf16.gmra.mxu0 %v1971
        %v2412 = vpop.f32.mrf.mxu0
        %v2413 = vadd.f32 %v2365, %v2412
        %v2414 = vpop.f32.mrf.mxu0
        %v2415 = vpop.f32.mrf.mxu0
        %v2416 = vadd.f32 %v2368, %v2415
        %v2417 = vpop.f32.mrf.mxu0
        %2418 = vmatprep.mubr.bf16.mxu0 0
        %2419 = vmatmul.mubr.bf16.gmra.mxu0 %v1974
        %v2420 = vpop.f32.mrf.mxu0
        %v2421 = vadd.f32 %v2373, %v2420
        %v2422 = vpop.f32.mrf.mxu0
        %v2423 = vpop.f32.mrf.mxu0
        %v2424 = vpop.f32.mrf.mxu0
        %2425 = vdwg.mxu0
        %v2642 = vunpack.c.l.b16 %v516
        %v2643 = vunpack.c.h.b16 %v516
        %v2644 = vunpack.c.l.b16 %v517
        %v2645 = vunpack.c.h.b16 %v517
        %v2646 = vunpack.c.l.b16 %v518
        %v2647 = vunpack.c.l.b16 %v519
        %v2648 = vunpack.c.h.b16 %v519
        %v2649 = vunpack.c.l.b16 %v520
        %v2650 = vunpack.c.h.b16 %v520
        %v2651 = vunpack.c.l.b16 %v521
        %v2652 = vunpack.c.l.b16 %v522
        %v2653 = vunpack.c.h.b16 %v522
        %v2654 = vunpack.c.l.b16 %v523
        %v2655 = vunpack.c.h.b16 %v523
        %v2656 = vunpack.c.l.b16 %v524
        %v2657 = vunpack.c.l.b16 %v525
        %v2658 = vunpack.c.h.b16 %v525
        %v2659 = vunpack.c.l.b16 %v526
        %v2660 = vunpack.c.h.b16 %v526
        %v2661 = vunpack.c.l.b16 %v527
        %v2662 = vunpack.c.l.b16 %v528
        %v2663 = vunpack.c.h.b16 %v528
        %v2664 = vunpack.c.l.b16 %v529
        %v2665 = vunpack.c.h.b16 %v529
        %v2666 = vunpack.c.l.b16 %v530
        %v2667 = vunpack.c.l.b16 %v531
        %v2668 = vunpack.c.h.b16 %v531
        %v2669 = vunpack.c.l.b16 %v532
        %v2670 = vunpack.c.h.b16 %v532
        %v2671 = vunpack.c.l.b16 %v533
        %v2672 = vunpack.c.l.b16 %v534
        %v2673 = vunpack.c.h.b16 %v534
        %v2674 = vunpack.c.l.b16 %v535
        %v2675 = vunpack.c.h.b16 %v535
        %v2676 = vunpack.c.l.b16 %v536
        %v2677 = vunpack.c.l.b16 %v537
        %v2678 = vunpack.c.h.b16 %v537
        %v2679 = vunpack.c.l.b16 %v538
        %v2680 = vunpack.c.h.b16 %v538
        %v2681 = vunpack.c.l.b16 %v539
        %v2682 = vunpack.c.l.b16 %v540
        %v2683 = vunpack.c.h.b16 %v540
        %v2684 = vunpack.c.l.b16 %v541
        %v2685 = vunpack.c.h.b16 %v541
        %v2686 = vunpack.c.l.b16 %v542
        %v2687 = vunpack.c.l.b16 %v543
        %v2688 = vunpack.c.h.b16 %v543
        %v2689 = vunpack.c.l.b16 %v544
        %v2690 = vunpack.c.h.b16 %v544
        %v2691 = vunpack.c.l.b16 %v545
        %v2692 = vunpack.c.l.b16 %v546
        %v2693 = vunpack.c.h.b16 %v546
        %v2694 = vunpack.c.l.b16 %v547
        %v2695 = vunpack.c.h.b16 %v547
        %v2696 = vunpack.c.l.b16 %v548
        %v2697 = vunpack.c.l.b16 %v549
        %v2698 = vunpack.c.h.b16 %v549
        %v2699 = vunpack.c.l.b16 %v550
        %v2700 = vunpack.c.h.b16 %v550
        %v2701 = vunpack.c.l.b16 %v551
        %v2702 = vunpack.c.l.b16 %v552
        %v2703 = vunpack.c.h.b16 %v552
        %v2704 = vunpack.c.l.b16 %v553
        %v2705 = vunpack.c.h.b16 %v553
        %v2706 = vunpack.c.l.b16 %v554
        %v2707 = vunpack.c.l.b16 %v555
        %v2708 = vunpack.c.h.b16 %v555
        %v2709 = vunpack.c.l.b16 %v556
        %v2710 = vunpack.c.h.b16 %v556
        %v2711 = vunpack.c.l.b16 %v557
        %v2712 = vunpack.c.l.b16 %v558
        %v2713 = vunpack.c.h.b16 %v558
        %v2714 = vunpack.c.l.b16 %v559
        %v2715 = vunpack.c.h.b16 %v559
        %v2716 = vunpack.c.l.b16 %v560
        %v2717 = vunpack.c.l.b16 %v561
        %v2718 = vunpack.c.h.b16 %v561
        %v2719 = vunpack.c.l.b16 %v562
        %v2720 = vunpack.c.h.b16 %v562
        %v2721 = vunpack.c.l.b16 %v563
        %v2722 = vunpack.c.l.b16 %v564
        %v2723 = vunpack.c.h.b16 %v564
        %v2724 = vunpack.c.l.b16 %v565
        %v2725 = vunpack.c.h.b16 %v565
        %v2726 = vunpack.c.l.b16 %v566
        %v2727 = vunpack.c.l.b16 %v567
        %v2728 = vunpack.c.h.b16 %v567
        %v2729 = vunpack.c.l.b16 %v568
        %v2730 = vunpack.c.h.b16 %v568
        %v2731 = vunpack.c.l.b16 %v569
        %v2732 = vunpack.c.l.b16 %v570
        %v2733 = vunpack.c.h.b16 %v570
        %v2734 = vunpack.c.l.b16 %v571
        %v2735 = vunpack.c.h.b16 %v571
        %v2736 = vunpack.c.l.b16 %v572
        %v2737 = vunpack.c.l.b16 %v573
        %v2738 = vunpack.c.h.b16 %v573
        %v2739 = vunpack.c.l.b16 %v574
        %v2740 = vunpack.c.h.b16 %v574
        %v2741 = vunpack.c.l.b16 %v575
        %v2742 = vunpack.c.l.b16 %v576
        %v2743 = vunpack.c.h.b16 %v576
        %v2744 = vunpack.c.l.b16 %v577
        %v2745 = vunpack.c.h.b16 %v577
        %v2746 = vunpack.c.l.b16 %v578
        %v2747 = vunpack.c.l.b16 %v579
        %v2748 = vunpack.c.h.b16 %v579
        %v2749 = vunpack.c.l.b16 %v580
        %v2750 = vunpack.c.h.b16 %v580
        %v2751 = vunpack.c.l.b16 %v581
        %v2752 = vunpack.c.l.b16 %v582
        %v2753 = vunpack.c.h.b16 %v582
        %v2754 = vunpack.c.l.b16 %v583
        %v2755 = vunpack.c.h.b16 %v583
        %v2756 = vunpack.c.l.b16 %v584
        %v2757 = vunpack.c.l.b16 %v585
        %v2758 = vunpack.c.h.b16 %v585
        %v2759 = vunpack.c.l.b16 %v586
        %v2760 = vunpack.c.h.b16 %v586
        %v2761 = vunpack.c.l.b16 %v587
        %v2762 = vunpack.c.l.b16 %v588
        %v2763 = vunpack.c.h.b16 %v588
        %v2764 = vunpack.c.l.b16 %v589
        %v2765 = vunpack.c.h.b16 %v589
        %v2766 = vunpack.c.l.b16 %v590
        %v2767 = vunpack.c.l.b16 %v591
        %v2768 = vunpack.c.h.b16 %v591
        %v2769 = vunpack.c.l.b16 %v592
        %v2770 = vunpack.c.h.b16 %v592
        %v2771 = vunpack.c.l.b16 %v593
        %v2772 = vunpack.c.l.b16 %v594
        %v2773 = vunpack.c.h.b16 %v594
        %v2774 = vunpack.c.l.b16 %v595
        %v2775 = vunpack.c.h.b16 %v595
        %v2776 = vunpack.c.l.b16 %v596
        %v2777 = vunpack.c.l.b16 %v597
        %v2778 = vunpack.c.h.b16 %v597
        %v2779 = vunpack.c.l.b16 %v598
        %v2780 = vunpack.c.h.b16 %v598
        %v2781 = vunpack.c.l.b16 %v599
        %v2782 = vunpack.c.l.b16 %v600
        %v2783 = vunpack.c.h.b16 %v600
        %v2784 = vunpack.c.l.b16 %v601
        %v2785 = vunpack.c.h.b16 %v601
        %v2786 = vunpack.c.l.b16 %v602
        %v2787 = vunpack.c.l.b16 %v603
        %v2788 = vunpack.c.h.b16 %v603
        %v2789 = vunpack.c.l.b16 %v604
        %v2790 = vunpack.c.h.b16 %v604
        %v2791 = vunpack.c.l.b16 %v605
        %v2792 = vunpack.c.l.b16 %v606
        %v2793 = vunpack.c.h.b16 %v606
        %v2794 = vunpack.c.l.b16 %v607
        %v2795 = vunpack.c.h.b16 %v607
        %v2796 = vunpack.c.l.b16 %v608
        %v2797 = vunpack.c.l.b16 %v609
        %v2798 = vunpack.c.h.b16 %v609
        %v2799 = vunpack.c.l.b16 %v610
        %v2800 = vunpack.c.h.b16 %v610
        %v2801 = vunpack.c.l.b16 %v611
        %v2802 = vunpack.c.l.b16 %v612
        %v2803 = vunpack.c.h.b16 %v612
        %v2804 = vunpack.c.l.b16 %v613
        %v2805 = vunpack.c.h.b16 %v613
        %v2806 = vunpack.c.l.b16 %v614
        %v2807 = vunpack.c.l.b16 %v615
        %v2808 = vunpack.c.h.b16 %v615
        %v2809 = vunpack.c.l.b16 %v616
        %v2810 = vunpack.c.h.b16 %v616
        %v2811 = vunpack.c.l.b16 %v617
        %v2812 = vunpack.c.l.b16 %v618
        %v2813 = vunpack.c.h.b16 %v618
        %v2814 = vunpack.c.l.b16 %v619
        %v2815 = vunpack.c.h.b16 %v619
        %v2816 = vunpack.c.l.b16 %v620
        %v2817 = vunpack.c.l.b16 %v621
        %v2818 = vunpack.c.h.b16 %v621
        %v2819 = vunpack.c.l.b16 %v622
        %v2820 = vunpack.c.h.b16 %v622
        %v2821 = vunpack.c.l.b16 %v623
        %v2822 = vunpack.c.l.b16 %v624
        %v2823 = vunpack.c.h.b16 %v624
        %v2824 = vunpack.c.l.b16 %v625
        %v2825 = vunpack.c.h.b16 %v625
        %v2826 = vunpack.c.l.b16 %v626
        %v2827 = vunpack.c.l.b16 %v627
        %v2828 = vunpack.c.h.b16 %v627
        %v2829 = vunpack.c.l.b16 %v628
        %v2830 = vunpack.c.h.b16 %v628
        %v2831 = vunpack.c.l.b16 %v629
        %v2832 = vunpack.c.l.b16 %v630
        %v2833 = vunpack.c.h.b16 %v630
        %v2834 = vunpack.c.l.b16 %v631
        %v2835 = vunpack.c.h.b16 %v631
        %v2836 = vunpack.c.l.b16 %v632
        %v2837 = vunpack.c.l.b16 %v633
        %v2838 = vunpack.c.h.b16 %v633
        %v2839 = vunpack.c.l.b16 %v634
        %v2840 = vunpack.c.h.b16 %v634
        %v2841 = vunpack.c.l.b16 %v635
        %v2842 = vunpack.c.l.b16 %v636
        %v2843 = vunpack.c.h.b16 %v636
        %v2844 = vunpack.c.l.b16 %v637
        %v2845 = vunpack.c.h.b16 %v637
        %v2846 = vunpack.c.l.b16 %v638
        %v2847 = vunpack.c.l.b16 %v639
        %v2848 = vunpack.c.h.b16 %v639
        %v2849 = vunpack.c.l.b16 %v640
        %v2850 = vunpack.c.h.b16 %v640
        %v2851 = vunpack.c.l.b16 %v641
        %v2852 = vunpack.c.l.b16 %v642
        %v2853 = vunpack.c.h.b16 %v642
        %v2854 = vunpack.c.l.b16 %v643
        %v2855 = vunpack.c.h.b16 %v643
        %v2856 = vunpack.c.l.b16 %v644
        %v2857 = vunpack.c.l.b16 %v645
        %v2858 = vunpack.c.h.b16 %v645
        %v2859 = vunpack.c.l.b16 %v646
        %v2860 = vunpack.c.h.b16 %v646
        %v2861 = vunpack.c.l.b16 %v647
        %v2862 = vunpack.c.l.b16 %v648
        %v2863 = vunpack.c.h.b16 %v648
        %v2864 = vunpack.c.l.b16 %v649
        %v2865 = vunpack.c.h.b16 %v649
        %v2866 = vunpack.c.l.b16 %v650
        %v2867 = vunpack.c.l.b16 %v651
        %v2868 = vunpack.c.h.b16 %v651
        %v2869 = vunpack.c.l.b16 %v652
        %v2870 = vunpack.c.h.b16 %v652
        %v2871 = vunpack.c.l.b16 %v653
        %v2872 = vunpack.c.l.b16 %v654
        %v2873 = vunpack.c.h.b16 %v654
        %v2874 = vunpack.c.l.b16 %v655
        %v2875 = vunpack.c.h.b16 %v655
        %v2876 = vunpack.c.l.b16 %v656
        %v2877 = vunpack.c.l.b16 %v657
        %v2878 = vunpack.c.h.b16 %v657
        %v2879 = vunpack.c.l.b16 %v658
        %v2880 = vunpack.c.h.b16 %v658
        %v2881 = vunpack.c.l.b16 %v659
        %v2882 = vunpack.c.l.b16 %v660
        %v2883 = vunpack.c.h.b16 %v660
        %v2884 = vunpack.c.l.b16 %v661
        %v2885 = vunpack.c.h.b16 %v661
        %v2886 = vunpack.c.l.b16 %v662
        %v2887 = vunpack.c.l.b16 %v663
        %v2888 = vunpack.c.h.b16 %v663
        %v2889 = vunpack.c.l.b16 %v664
        %v2890 = vunpack.c.h.b16 %v664
        %v2891 = vunpack.c.l.b16 %v665
        %v2892 = vunpack.c.l.b16 %v666
        %v2893 = vunpack.c.h.b16 %v666
        %v2894 = vunpack.c.l.b16 %v667
        %v2895 = vunpack.c.h.b16 %v667
        %v2896 = vunpack.c.l.b16 %v668
        %v2897 = vunpack.c.l.b16 %v669
        %v2898 = vunpack.c.h.b16 %v669
        %v2899 = vunpack.c.l.b16 %v670
        %v2900 = vunpack.c.h.b16 %v670
        %v2901 = vunpack.c.l.b16 %v671
        %v2902 = vunpack.c.l.b16 %v672
        %v2903 = vunpack.c.h.b16 %v672
        %v2904 = vunpack.c.l.b16 %v673
        %v2905 = vunpack.c.h.b16 %v673
        %v2906 = vunpack.c.l.b16 %v674
        %v2907 = vunpack.c.l.b16 %v675
        %v2908 = vunpack.c.h.b16 %v675
        %v2909 = vunpack.c.l.b16 %v676
        %v2910 = vunpack.c.h.b16 %v676
        %v2911 = vunpack.c.l.b16 %v677
        %v2912 = vunpack.c.l.b16 %v678
        %v2913 = vunpack.c.h.b16 %v678
        %v2914 = vunpack.c.l.b16 %v679
        %v2915 = vunpack.c.h.b16 %v679
        %v2916 = vunpack.c.l.b16 %v680
        %v2917 = vunpack.c.l.b16 %v681
        %v2918 = vunpack.c.h.b16 %v681
        %v2919 = vunpack.c.l.b16 %v682
        %v2920 = vunpack.c.h.b16 %v682
        %v2921 = vunpack.c.l.b16 %v683
        %v2922 = vunpack.c.l.b16 %v684
        %v2923 = vunpack.c.h.b16 %v684
        %v2924 = vunpack.c.l.b16 %v685
        %v2925 = vunpack.c.h.b16 %v685
        %v2926 = vunpack.c.l.b16 %v686
        %v2927 = vunpack.c.l.b16 %v687
        %v2928 = vunpack.c.h.b16 %v687
        %v2929 = vunpack.c.l.b16 %v688
        %v2930 = vunpack.c.h.b16 %v688
        %v2931 = vunpack.c.l.b16 %v689
        %v2932 = vunpack.c.l.b16 %v690
        %v2933 = vunpack.c.h.b16 %v690
        %v2934 = vunpack.c.l.b16 %v691
        %v2935 = vunpack.c.h.b16 %v691
        %v2936 = vunpack.c.l.b16 %v692
        %v2937 = vunpack.c.l.b16 %v693
        %v2938 = vunpack.c.h.b16 %v693
        %v2939 = vunpack.c.l.b16 %v694
        %v2940 = vunpack.c.h.b16 %v694
        %v2941 = vunpack.c.l.b16 %v695
        %v2942 = vunpack.c.l.b16 %v696
        %v2943 = vunpack.c.h.b16 %v696
        %v2944 = vunpack.c.l.b16 %v697
        %v2945 = vunpack.c.h.b16 %v697
        %v2946 = vunpack.c.l.b16 %v698
        %v2947 = vunpack.c.l.b16 %v699
        %v2948 = vunpack.c.h.b16 %v699
        %v2949 = vunpack.c.l.b16 %v700
        %v2950 = vunpack.c.h.b16 %v700
        %v2951 = vunpack.c.l.b16 %v701
        %v2952 = vunpack.c.l.b16 %v702
        %v2953 = vunpack.c.h.b16 %v702
        %v2954 = vunpack.c.l.b16 %v703
        %v2955 = vunpack.c.h.b16 %v703
        %v2956 = vunpack.c.l.b16 %v704
        %v2957 = vunpack.c.l.b16 %v705
        %v2958 = vunpack.c.h.b16 %v705
        %v2959 = vunpack.c.l.b16 %v706
        %v2960 = vunpack.c.h.b16 %v706
        %v2961 = vunpack.c.l.b16 %v707
        %v2962 = vunpack.c.l.b16 %v708
        %v2963 = vunpack.c.h.b16 %v708
        %v2964 = vunpack.c.l.b16 %v709
        %v2965 = vunpack.c.h.b16 %v709
        %v2966 = vunpack.c.l.b16 %v710
        %v2967 = vunpack.c.l.b16 %v711
        %v2968 = vunpack.c.h.b16 %v711
        %v2969 = vunpack.c.l.b16 %v712
        %v2970 = vunpack.c.h.b16 %v712
        %v2971 = vunpack.c.l.b16 %v713
        %v2972 = vunpack.c.l.b16 %v714
        %v2973 = vunpack.c.h.b16 %v714
        %v2974 = vunpack.c.l.b16 %v715
        %v2975 = vunpack.c.h.b16 %v715
        %v2976 = vunpack.c.l.b16 %v716
        %v2977 = vunpack.c.l.b16 %v717
        %v2978 = vunpack.c.h.b16 %v717
        %v2979 = vunpack.c.l.b16 %v718
        %v2980 = vunpack.c.h.b16 %v718
        %v2981 = vunpack.c.l.b16 %v719
        %v2982 = vunpack.c.l.b16 %v720
        %v2983 = vunpack.c.h.b16 %v720
        %v2984 = vunpack.c.l.b16 %v721
        %v2985 = vunpack.c.h.b16 %v721
        %v2986 = vunpack.c.l.b16 %v722
        %v2987 = vunpack.c.l.b16 %v723
        %v2988 = vunpack.c.h.b16 %v723
        %v2989 = vunpack.c.l.b16 %v724
        %v2990 = vunpack.c.h.b16 %v724
        %v2991 = vunpack.c.l.b16 %v725
        %v2992 = vunpack.c.l.b16 %v726
        %v2993 = vunpack.c.h.b16 %v726
        %v2994 = vunpack.c.l.b16 %v727
        %v2995 = vunpack.c.h.b16 %v727
        %v2996 = vunpack.c.l.b16 %v728
        %v2997 = vunpack.c.l.b16 %v729
        %v2998 = vunpack.c.h.b16 %v729
        %v2999 = vunpack.c.l.b16 %v730
        %v3000 = vunpack.c.h.b16 %v730
        %v3001 = vunpack.c.l.b16 %v731
        %v3002 = vpack.c.b16 %v2647, %v2642
        %v3003 = vpack.c.b16 %v2648, %v2643
        %v3004 = vpack.c.b16 %v2649, %v2644
        %v3005 = vpack.c.b16 %v2650, %v2645
        %v3006 = vpack.c.b16 %v2651, %v2646
        %v3007 = vpack.c.b16 %v2657, %v2652
        %v3008 = vpack.c.b16 %v2658, %v2653
        %v3009 = vpack.c.b16 %v2659, %v2654
        %v3010 = vpack.c.b16 %v2660, %v2655
        %v3011 = vpack.c.b16 %v2661, %v2656
        %v3012 = vpack.c.b16 %v2667, %v2662
        %v3013 = vpack.c.b16 %v2668, %v2663
        %v3014 = vpack.c.b16 %v2669, %v2664
        %v3015 = vpack.c.b16 %v2670, %v2665
        %v3016 = vpack.c.b16 %v2671, %v2666
        %v3017 = vpack.c.b16 %v2677, %v2672
        %v3018 = vpack.c.b16 %v2678, %v2673
        %v3019 = vpack.c.b16 %v2679, %v2674
        %v3020 = vpack.c.b16 %v2680, %v2675
        %v3021 = vpack.c.b16 %v2681, %v2676
        %v3022 = vpack.c.b16 %v2687, %v2682
        %v3023 = vpack.c.b16 %v2688, %v2683
        %v3024 = vpack.c.b16 %v2689, %v2684
        %v3025 = vpack.c.b16 %v2690, %v2685
        %v3026 = vpack.c.b16 %v2691, %v2686
        %v3027 = vpack.c.b16 %v2697, %v2692
        %v3028 = vpack.c.b16 %v2698, %v2693
        %v3029 = vpack.c.b16 %v2699, %v2694
        %v3030 = vpack.c.b16 %v2700, %v2695
        %v3031 = vpack.c.b16 %v2701, %v2696
        %v3032 = vpack.c.b16 %v2707, %v2702
        %v3033 = vpack.c.b16 %v2708, %v2703
        %v3034 = vpack.c.b16 %v2709, %v2704
        %v3035 = vpack.c.b16 %v2710, %v2705
        %v3036 = vpack.c.b16 %v2711, %v2706
        %v3037 = vpack.c.b16 %v2717, %v2712
        %v3038 = vpack.c.b16 %v2718, %v2713
        %v3039 = vpack.c.b16 %v2719, %v2714
        %v3040 = vpack.c.b16 %v2720, %v2715
        %v3041 = vpack.c.b16 %v2721, %v2716
        %v3042 = vpack.c.b16 %v2727, %v2722
        %v3043 = vpack.c.b16 %v2728, %v2723
        %v3044 = vpack.c.b16 %v2729, %v2724
        %v3045 = vpack.c.b16 %v2730, %v2725
        %v3046 = vpack.c.b16 %v2731, %v2726
        %v3047 = vpack.c.b16 %v2737, %v2732
        %v3048 = vpack.c.b16 %v2738, %v2733
        %v3049 = vpack.c.b16 %v2739, %v2734
        %v3050 = vpack.c.b16 %v2740, %v2735
        %v3051 = vpack.c.b16 %v2741, %v2736
        %v3052 = vpack.c.b16 %v2747, %v2742
        %v3053 = vpack.c.b16 %v2748, %v2743
        %v3054 = vpack.c.b16 %v2749, %v2744
        %v3055 = vpack.c.b16 %v2750, %v2745
        %v3056 = vpack.c.b16 %v2751, %v2746
        %v3057 = vpack.c.b16 %v2757, %v2752
        %v3058 = vpack.c.b16 %v2758, %v2753
        %v3059 = vpack.c.b16 %v2759, %v2754
        %v3060 = vpack.c.b16 %v2760, %v2755
        %v3061 = vpack.c.b16 %v2761, %v2756
        %v3062 = vpack.c.b16 %v2767, %v2762
        %v3063 = vpack.c.b16 %v2768, %v2763
        %v3064 = vpack.c.b16 %v2769, %v2764
        %v3065 = vpack.c.b16 %v2770, %v2765
        %v3066 = vpack.c.b16 %v2771, %v2766
        %v3067 = vpack.c.b16 %v2777, %v2772
        %v3068 = vpack.c.b16 %v2778, %v2773
        %v3069 = vpack.c.b16 %v2779, %v2774
        %v3070 = vpack.c.b16 %v2780, %v2775
        %v3071 = vpack.c.b16 %v2781, %v2776
        %v3072 = vpack.c.b16 %v2787, %v2782
        %v3073 = vpack.c.b16 %v2788, %v2783
        %v3074 = vpack.c.b16 %v2789, %v2784
        %v3075 = vpack.c.b16 %v2790, %v2785
        %v3076 = vpack.c.b16 %v2791, %v2786
        %v3077 = vpack.c.b16 %v2797, %v2792
        %v3078 = vpack.c.b16 %v2798, %v2793
        %v3079 = vpack.c.b16 %v2799, %v2794
        %v3080 = vpack.c.b16 %v2800, %v2795
        %v3081 = vpack.c.b16 %v2801, %v2796
        %v3082 = vpack.c.b16 %v2807, %v2802
        %v3083 = vpack.c.b16 %v2808, %v2803
        %v3084 = vpack.c.b16 %v2809, %v2804
        %v3085 = vpack.c.b16 %v2810, %v2805
        %v3086 = vpack.c.b16 %v2811, %v2806
        %v3087 = vpack.c.b16 %v2817, %v2812
        %v3088 = vpack.c.b16 %v2818, %v2813
        %v3089 = vpack.c.b16 %v2819, %v2814
        %v3090 = vpack.c.b16 %v2820, %v2815
        %v3091 = vpack.c.b16 %v2821, %v2816
        %v3092 = vpack.c.b16 %v2827, %v2822
        %v3093 = vpack.c.b16 %v2828, %v2823
        %v3094 = vpack.c.b16 %v2829, %v2824
        %v3095 = vpack.c.b16 %v2830, %v2825
        %v3096 = vpack.c.b16 %v2831, %v2826
        %v3097 = vpack.c.b16 %v2837, %v2832
        %v3098 = vpack.c.b16 %v2838, %v2833
        %v3099 = vpack.c.b16 %v2839, %v2834
        %v3100 = vpack.c.b16 %v2840, %v2835
        %v3101 = vpack.c.b16 %v2841, %v2836
        %v3102 = vpack.c.b16 %v2847, %v2842
        %v3103 = vpack.c.b16 %v2848, %v2843
        %v3104 = vpack.c.b16 %v2849, %v2844
        %v3105 = vpack.c.b16 %v2850, %v2845
        %v3106 = vpack.c.b16 %v2851, %v2846
        %v3107 = vpack.c.b16 %v2857, %v2852
        %v3108 = vpack.c.b16 %v2858, %v2853
        %v3109 = vpack.c.b16 %v2859, %v2854
        %v3110 = vpack.c.b16 %v2860, %v2855
        %v3111 = vpack.c.b16 %v2861, %v2856
        %v3112 = vpack.c.b16 %v2867, %v2862
        %v3113 = vpack.c.b16 %v2868, %v2863
        %v3114 = vpack.c.b16 %v2869, %v2864
        %v3115 = vpack.c.b16 %v2870, %v2865
        %v3116 = vpack.c.b16 %v2871, %v2866
        %v3117 = vpack.c.b16 %v2877, %v2872
        %v3118 = vpack.c.b16 %v2878, %v2873
        %v3119 = vpack.c.b16 %v2879, %v2874
        %v3120 = vpack.c.b16 %v2880, %v2875
        %v3121 = vpack.c.b16 %v2881, %v2876
        %v3122 = vpack.c.b16 %v2887, %v2882
        %v3123 = vpack.c.b16 %v2888, %v2883
        %v3124 = vpack.c.b16 %v2889, %v2884
        %v3125 = vpack.c.b16 %v2890, %v2885
        %v3126 = vpack.c.b16 %v2891, %v2886
        %v3127 = vpack.c.b16 %v2897, %v2892
        %v3128 = vpack.c.b16 %v2898, %v2893
        %v3129 = vpack.c.b16 %v2899, %v2894
        %v3130 = vpack.c.b16 %v2900, %v2895
        %v3131 = vpack.c.b16 %v2901, %v2896
        %v3132 = vpack.c.b16 %v2907, %v2902
        %v3133 = vpack.c.b16 %v2908, %v2903
        %v3134 = vpack.c.b16 %v2909, %v2904
        %v3135 = vpack.c.b16 %v2910, %v2905
        %v3136 = vpack.c.b16 %v2911, %v2906
        %v3137 = vpack.c.b16 %v2917, %v2912
        %v3138 = vpack.c.b16 %v2918, %v2913
        %v3139 = vpack.c.b16 %v2919, %v2914
        %v3140 = vpack.c.b16 %v2920, %v2915
        %v3141 = vpack.c.b16 %v2921, %v2916
        %v3142 = vpack.c.b16 %v2927, %v2922
        %v3143 = vpack.c.b16 %v2928, %v2923
        %v3144 = vpack.c.b16 %v2929, %v2924
        %v3145 = vpack.c.b16 %v2930, %v2925
        %v3146 = vpack.c.b16 %v2931, %v2926
        %v3147 = vpack.c.b16 %v2937, %v2932
        %v3148 = vpack.c.b16 %v2938, %v2933
        %v3149 = vpack.c.b16 %v2939, %v2934
        %v3150 = vpack.c.b16 %v2940, %v2935
        %v3151 = vpack.c.b16 %v2941, %v2936
        %v3152 = vpack.c.b16 %v2947, %v2942
        %v3153 = vpack.c.b16 %v2948, %v2943
        %v3154 = vpack.c.b16 %v2949, %v2944
        %v3155 = vpack.c.b16 %v2950, %v2945
        %v3156 = vpack.c.b16 %v2951, %v2946
        %v3157 = vpack.c.b16 %v2957, %v2952
        %v3158 = vpack.c.b16 %v2958, %v2953
        %v3159 = vpack.c.b16 %v2959, %v2954
        %v3160 = vpack.c.b16 %v2960, %v2955
        %v3161 = vpack.c.b16 %v2961, %v2956
        %v3162 = vpack.c.b16 %v2967, %v2962
        %v3163 = vpack.c.b16 %v2968, %v2963
        %v3164 = vpack.c.b16 %v2969, %v2964
        %v3165 = vpack.c.b16 %v2970, %v2965
        %v3166 = vpack.c.b16 %v2971, %v2966
        %v3167 = vpack.c.b16 %v2977, %v2972
        %v3168 = vpack.c.b16 %v2978, %v2973
        %v3169 = vpack.c.b16 %v2979, %v2974
        %v3170 = vpack.c.b16 %v2980, %v2975
        %v3171 = vpack.c.b16 %v2981, %v2976
        %v3172 = vpack.c.b16 %v2987, %v2982
        %v3173 = vpack.c.b16 %v2988, %v2983
        %v3174 = vpack.c.b16 %v2989, %v2984
        %v3175 = vpack.c.b16 %v2990, %v2985
        %v3176 = vpack.c.b16 %v2991, %v2986
        %v3177 = vpack.c.b16 %v2997, %v2992
        %v3178 = vpack.c.b16 %v2998, %v2993
        %v3179 = vpack.c.b16 %v2999, %v2994
        %v3180 = vpack.c.b16 %v3000, %v2995
        %v3181 = vpack.c.b16 %v3001, %v2996
        %v3362 = vsel %vm1969, %v510, 0
        %v3364 = vsel %vm1969, %v515, 0
        %3366 = vmatprep.subr.bf16.mxu0 %v3038
        %3367 = vmatpush1.bf16.msra.mxu0 %v3037
        %3368 = vmatprep.subr.bf16.mxu0 %v3033
        %3369 = vmatpush1.bf16.msra.mxu0 %v3032
        %3370 = vmatprep.subr.bf16.mxu0 %v3028
        %3371 = vmatpush1.bf16.msra.mxu0 %v3027
        %3372 = vmatprep.subr.bf16.mxu0 %v3023
        %3373 = vmatpush1.bf16.msra.mxu0 %v3022
        %3374 = vmatprep.subr.bf16.mxu0 %v3018
        %3375 = vmatpush1.bf16.msra.mxu0 %v3017
        %3376 = vmatprep.subr.bf16.mxu0 %v3013
        %3377 = vmatpush1.bf16.msra.mxu0 %v3012
        %3378 = vmatprep.subr.bf16.mxu0 %v3008
        %3379 = vmatpush1.bf16.msra.mxu0 %v3007
        %3380 = vmatprep.subr.bf16.mxu0 %v3003
        %3381 = vmatpush1.bf16.msra.mxu0 %v3002
        %3382 = vmatprep.subr.bf16.mxu0 %v3078
        %3383 = vmatpush2.bf16.msra.mxu0 %v3077
        %3384 = vmatprep.subr.bf16.mxu0 %v3073
        %3385 = vmatpush2.bf16.msra.mxu0 %v3072
        %3386 = vmatprep.subr.bf16.mxu0 %v3068
        %3387 = vmatpush2.bf16.msra.mxu0 %v3067
        %3388 = vmatprep.subr.bf16.mxu0 %v3063
        %3389 = vmatpush2.bf16.msra.mxu0 %v3062
        %3390 = vmatprep.subr.bf16.mxu0 %v3058
        %3391 = vmatpush2.bf16.msra.mxu0 %v3057
        %3392 = vmatprep.subr.bf16.mxu0 %v3053
        %3393 = vmatpush2.bf16.msra.mxu0 %v3052
        %3394 = vmatprep.subr.bf16.mxu0 %v3048
        %3395 = vmatpush2.bf16.msra.mxu0 %v3047
        %3396 = vmatprep.subr.bf16.mxu0 %v3043
        %3397 = vmatpush2.bf16.msra.mxu0 %v3042
        %3398 = vmatprep.mubr.bf16.mxu0 %v507
        %3399 = vmatmul.mubr.bf16.gmra.mxu0 %v506
        %v3400 = vpop.f32.mrf.mxu0
        %v3401 = vadd.f32 %v2113, %v3400
        %v3402 = vpop.f32.mrf.mxu0
        %v3403 = vadd.f32 %v2115, %v3402
        %v3404 = vpop.f32.mrf.mxu0
        %v3405 = vadd.f32 %v2117, %v3404
        %v3406 = vpop.f32.mrf.mxu0
        %v3407 = vadd.f32 %v2119, %v3406
        %3408 = vmatprep.mubr.bf16.mxu0 %v512
        %3409 = vmatmul.mubr.bf16.gmra.mxu0 %v511
        %v3410 = vpop.f32.mrf.mxu0
        %v3411 = vadd.f32 %v2123, %v3410
        %v3412 = vpop.f32.mrf.mxu0
        %v3413 = vadd.f32 %v2125, %v3412
        %v3414 = vpop.f32.mrf.mxu0
        %v3415 = vpop.f32.mrf.mxu0
        %3416 = vdwg.mxu0
        %3417 = vmatprep.subr.bf16.mxu0 %v3118
        %3418 = vmatpush1.bf16.msra.mxu0 %v3117
        %3419 = vmatprep.subr.bf16.mxu0 %v3113
        %3420 = vmatpush1.bf16.msra.mxu0 %v3112
        %3421 = vmatprep.subr.bf16.mxu0 %v3108
        %3422 = vmatpush1.bf16.msra.mxu0 %v3107
        %3423 = vmatprep.subr.bf16.mxu0 %v3103
        %3424 = vmatpush1.bf16.msra.mxu0 %v3102
        %3425 = vmatprep.subr.bf16.mxu0 %v3098
        %3426 = vmatpush1.bf16.msra.mxu0 %v3097
        %3427 = vmatprep.subr.bf16.mxu0 %v3093
        %3428 = vmatpush1.bf16.msra.mxu0 %v3092
        %3429 = vmatprep.subr.bf16.mxu0 %v3088
        %3430 = vmatpush1.bf16.msra.mxu0 %v3087
        %3431 = vmatprep.subr.bf16.mxu0 %v3083
        %3432 = vmatpush1.bf16.msra.mxu0 %v3082
        %3433 = vmatprep.subr.bf16.mxu0 %v3158
        %3434 = vmatpush2.bf16.msra.mxu0 %v3157
        %3435 = vmatprep.subr.bf16.mxu0 %v3153
        %3436 = vmatpush2.bf16.msra.mxu0 %v3152
        %3437 = vmatprep.subr.bf16.mxu0 %v3148
        %3438 = vmatpush2.bf16.msra.mxu0 %v3147
        %3439 = vmatprep.subr.bf16.mxu0 %v3143
        %3440 = vmatpush2.bf16.msra.mxu0 %v3142
        %3441 = vmatprep.subr.bf16.mxu0 %v3138
        %3442 = vmatpush2.bf16.msra.mxu0 %v3137
        %3443 = vmatprep.subr.bf16.mxu0 %v3133
        %3444 = vmatpush2.bf16.msra.mxu0 %v3132
        %3445 = vmatprep.subr.bf16.mxu0 %v3128
        %3446 = vmatpush2.bf16.msra.mxu0 %v3127
        %3447 = vmatprep.subr.bf16.mxu0 %v3123
        %3448 = vmatpush2.bf16.msra.mxu0 %v3122
        %3449 = vmatprep.mubr.bf16.mxu0 %v509
        %3450 = vmatmul.mubr.bf16.gmra.mxu0 %v508
        %v3451 = vpop.f32.mrf.mxu0
        %v3452 = vadd.f32 %v3401, %v3451
        %v3453 = vpop.f32.mrf.mxu0
        %v3454 = vadd.f32 %v3403, %v3453
        %v3455 = vpop.f32.mrf.mxu0
        %v3456 = vadd.f32 %v3405, %v3455
        %v3457 = vpop.f32.mrf.mxu0
        %v3458 = vadd.f32 %v3407, %v3457
        %3459 = vmatprep.mubr.bf16.mxu0 %v514
        %3460 = vmatmul.mubr.bf16.gmra.mxu0 %v513
        %v3461 = vpop.f32.mrf.mxu0
        %v3462 = vadd.f32 %v3411, %v3461
        %v3463 = vpop.f32.mrf.mxu0
        %v3464 = vadd.f32 %v3413, %v3463
        %v3465 = vpop.f32.mrf.mxu0
        %v3466 = vpop.f32.mrf.mxu0
        %3467 = vdwg.mxu0
        %3468 = vmatprep.subr.bf16.mxu0 0
        %3469 = vmatpush1.bf16.msra.mxu0 0
        %3470 = vmatprep.subr.bf16.mxu0 0
        %3471 = vmatpush1.bf16.msra.mxu0 0
        %3472 = vmatprep.subr.bf16.mxu0 0
        %3473 = vmatpush1.bf16.msra.mxu0 0
        %3474 = vmatprep.subr.bf16.mxu0 0
        %3475 = vmatpush1.bf16.msra.mxu0 0
        %3476 = vmatprep.subr.bf16.mxu0 %v3178
        %3477 = vmatpush1.bf16.msra.mxu0 %v3177
        %3478 = vmatprep.subr.bf16.mxu0 %v3173
        %3479 = vmatpush1.bf16.msra.mxu0 %v3172
        %3480 = vmatprep.subr.bf16.mxu0 %v3168
        %3481 = vmatpush1.bf16.msra.mxu0 %v3167
        %3482 = vmatprep.subr.bf16.mxu0 %v3163
        %3483 = vmatpush1.bf16.msra.mxu0 %v3162
        %3484 = vmatprep.subr.bf16.mxu0 0
        %3485 = vmatpush2.bf16.msra.mxu0 0
        %3486 = vmatprep.subr.bf16.mxu0 0
        %3487 = vmatpush2.bf16.msra.mxu0 0
        %3488 = vmatprep.subr.bf16.mxu0 0
        %3489 = vmatpush2.bf16.msra.mxu0 0
        %3490 = vmatprep.subr.bf16.mxu0 0
        %3491 = vmatpush2.bf16.msra.mxu0 0
        %3492 = vmatprep.subr.bf16.mxu0 0
        %3493 = vmatpush2.bf16.msra.mxu0 0
        %3494 = vmatprep.subr.bf16.mxu0 0
        %3495 = vmatpush2.bf16.msra.mxu0 0
        %3496 = vmatprep.subr.bf16.mxu0 0
        %3497 = vmatpush2.bf16.msra.mxu0 0
        %3498 = vmatprep.subr.bf16.mxu0 0
        %3499 = vmatpush2.bf16.msra.mxu0 0
        %3500 = vmatprep.mubr.bf16.mxu0 0
        %3501 = vmatmul.mubr.bf16.gmra.mxu0 %v3362
        %v3502 = vpop.f32.mrf.mxu0
        %v3503 = vadd.f32 %v3452, %v3502
        %v3504 = vpop.f32.mrf.mxu0
        %v3505 = vadd.f32 %v3454, %v3504
        %v3506 = vpop.f32.mrf.mxu0
        %v3507 = vadd.f32 %v3456, %v3506
        %v3508 = vpop.f32.mrf.mxu0
        %v3509 = vadd.f32 %v3458, %v3508
        %3510 = vmatprep.mubr.bf16.mxu0 0
        %3511 = vmatmul.mubr.bf16.gmra.mxu0 %v3364
        %v3512 = vpop.f32.mrf.mxu0
        %v3513 = vadd.f32 %v3462, %v3512
        %v3514 = vpop.f32.mrf.mxu0
        %v3515 = vadd.f32 %v3464, %v3514
        %v3516 = vpop.f32.mrf.mxu0
        %v3517 = vpop.f32.mrf.mxu0
        %3518 = vdwg.mxu0
        %3519 = vmatprep.subr.bf16.mxu0 %v3040
        %3520 = vmatpush1.bf16.msra.mxu0 %v3039
        %3521 = vmatprep.subr.bf16.mxu0 %v3035
        %3522 = vmatpush1.bf16.msra.mxu0 %v3034
        %3523 = vmatprep.subr.bf16.mxu0 %v3030
        %3524 = vmatpush1.bf16.msra.mxu0 %v3029
        %3525 = vmatprep.subr.bf16.mxu0 %v3025
        %3526 = vmatpush1.bf16.msra.mxu0 %v3024
        %3527 = vmatprep.subr.bf16.mxu0 %v3020
        %3528 = vmatpush1.bf16.msra.mxu0 %v3019
        %3529 = vmatprep.subr.bf16.mxu0 %v3015
        %3530 = vmatpush1.bf16.msra.mxu0 %v3014
        %3531 = vmatprep.subr.bf16.mxu0 %v3010
        %3532 = vmatpush1.bf16.msra.mxu0 %v3009
        %3533 = vmatprep.subr.bf16.mxu0 %v3005
        %3534 = vmatpush1.bf16.msra.mxu0 %v3004
        %3535 = vmatprep.subr.bf16.mxu0 %v3080
        %3536 = vmatpush2.bf16.msra.mxu0 %v3079
        %3537 = vmatprep.subr.bf16.mxu0 %v3075
        %3538 = vmatpush2.bf16.msra.mxu0 %v3074
        %3539 = vmatprep.subr.bf16.mxu0 %v3070
        %3540 = vmatpush2.bf16.msra.mxu0 %v3069
        %3541 = vmatprep.subr.bf16.mxu0 %v3065
        %3542 = vmatpush2.bf16.msra.mxu0 %v3064
        %3543 = vmatprep.subr.bf16.mxu0 %v3060
        %3544 = vmatpush2.bf16.msra.mxu0 %v3059
        %3545 = vmatprep.subr.bf16.mxu0 %v3055
        %3546 = vmatpush2.bf16.msra.mxu0 %v3054
        %3547 = vmatprep.subr.bf16.mxu0 %v3050
        %3548 = vmatpush2.bf16.msra.mxu0 %v3049
        %3549 = vmatprep.subr.bf16.mxu0 %v3045
        %3550 = vmatpush2.bf16.msra.mxu0 %v3044
        %3551 = vmatprep.mubr.bf16.mxu0 %v507
        %3552 = vmatmul.mubr.bf16.gmra.mxu0 %v506
        %v3553 = vpop.f32.mrf.mxu0
        %v3554 = vadd.f32 %v2266, %v3553
        %v3555 = vpop.f32.mrf.mxu0
        %v3556 = vadd.f32 %v2268, %v3555
        %v3557 = vpop.f32.mrf.mxu0
        %v3558 = vadd.f32 %v2270, %v3557
        %v3559 = vpop.f32.mrf.mxu0
        %v3560 = vadd.f32 %v2272, %v3559
        %3561 = vmatprep.mubr.bf16.mxu0 %v512
        %3562 = vmatmul.mubr.bf16.gmra.mxu0 %v511
        %v3563 = vpop.f32.mrf.mxu0
        %v3564 = vadd.f32 %v2276, %v3563
        %v3565 = vpop.f32.mrf.mxu0
        %v3566 = vadd.f32 %v2278, %v3565
        %v3567 = vpop.f32.mrf.mxu0
        %v3568 = vpop.f32.mrf.mxu0
        %3569 = vdwg.mxu0
        %3570 = vmatprep.subr.bf16.mxu0 %v3120
        %3571 = vmatpush1.bf16.msra.mxu0 %v3119
        %3572 = vmatprep.subr.bf16.mxu0 %v3115
        %3573 = vmatpush1.bf16.msra.mxu0 %v3114
        %3574 = vmatprep.subr.bf16.mxu0 %v3110
        %3575 = vmatpush1.bf16.msra.mxu0 %v3109
        %3576 = vmatprep.subr.bf16.mxu0 %v3105
        %3577 = vmatpush1.bf16.msra.mxu0 %v3104
        %3578 = vmatprep.subr.bf16.mxu0 %v3100
        %3579 = vmatpush1.bf16.msra.mxu0 %v3099
        %3580 = vmatprep.subr.bf16.mxu0 %v3095
        %3581 = vmatpush1.bf16.msra.mxu0 %v3094
        %3582 = vmatprep.subr.bf16.mxu0 %v3090
        %3583 = vmatpush1.bf16.msra.mxu0 %v3089
        %3584 = vmatprep.subr.bf16.mxu0 %v3085
        %3585 = vmatpush1.bf16.msra.mxu0 %v3084
        %3586 = vmatprep.subr.bf16.mxu0 %v3160
        %3587 = vmatpush2.bf16.msra.mxu0 %v3159
        %3588 = vmatprep.subr.bf16.mxu0 %v3155
        %3589 = vmatpush2.bf16.msra.mxu0 %v3154
        %3590 = vmatprep.subr.bf16.mxu0 %v3150
        %3591 = vmatpush2.bf16.msra.mxu0 %v3149
        %3592 = vmatprep.subr.bf16.mxu0 %v3145
        %3593 = vmatpush2.bf16.msra.mxu0 %v3144
        %3594 = vmatprep.subr.bf16.mxu0 %v3140
        %3595 = vmatpush2.bf16.msra.mxu0 %v3139
        %3596 = vmatprep.subr.bf16.mxu0 %v3135
        %3597 = vmatpush2.bf16.msra.mxu0 %v3134
        %3598 = vmatprep.subr.bf16.mxu0 %v3130
        %3599 = vmatpush2.bf16.msra.mxu0 %v3129
        %3600 = vmatprep.subr.bf16.mxu0 %v3125
        %3601 = vmatpush2.bf16.msra.mxu0 %v3124
        %3602 = vmatprep.mubr.bf16.mxu0 %v509
        %3603 = vmatmul.mubr.bf16.gmra.mxu0 %v508
        %v3604 = vpop.f32.mrf.mxu0
        %v3605 = vadd.f32 %v3554, %v3604
        %v3606 = vpop.f32.mrf.mxu0
        %v3607 = vadd.f32 %v3556, %v3606
        %v3608 = vpop.f32.mrf.mxu0
        %v3609 = vadd.f32 %v3558, %v3608
        %v3610 = vpop.f32.mrf.mxu0
        %v3611 = vadd.f32 %v3560, %v3610
        %3612 = vmatprep.mubr.bf16.mxu0 %v514
        %3613 = vmatmul.mubr.bf16.gmra.mxu0 %v513
        %v3614 = vpop.f32.mrf.mxu0
        %v3615 = vadd.f32 %v3564, %v3614
        %v3616 = vpop.f32.mrf.mxu0
        %v3617 = vadd.f32 %v3566, %v3616
        %v3618 = vpop.f32.mrf.mxu0
        %v3619 = vpop.f32.mrf.mxu0
        %3620 = vdwg.mxu0
        %3621 = vmatprep.subr.bf16.mxu0 0
        %3622 = vmatpush1.bf16.msra.mxu0 0
        %3623 = vmatprep.subr.bf16.mxu0 0
        %3624 = vmatpush1.bf16.msra.mxu0 0
        %3625 = vmatprep.subr.bf16.mxu0 0
        %3626 = vmatpush1.bf16.msra.mxu0 0
        %3627 = vmatprep.subr.bf16.mxu0 0
        %3628 = vmatpush1.bf16.msra.mxu0 0
        %3629 = vmatprep.subr.bf16.mxu0 %v3180
        %3630 = vmatpush1.bf16.msra.mxu0 %v3179
        %3631 = vmatprep.subr.bf16.mxu0 %v3175
        %3632 = vmatpush1.bf16.msra.mxu0 %v3174
        %3633 = vmatprep.subr.bf16.mxu0 %v3170
        %3634 = vmatpush1.bf16.msra.mxu0 %v3169
        %3635 = vmatprep.subr.bf16.mxu0 %v3165
        %3636 = vmatpush1.bf16.msra.mxu0 %v3164
        %3637 = vmatprep.subr.bf16.mxu0 0
        %3638 = vmatpush2.bf16.msra.mxu0 0
        %3639 = vmatprep.subr.bf16.mxu0 0
        %3640 = vmatpush2.bf16.msra.mxu0 0
        %3641 = vmatprep.subr.bf16.mxu0 0
        %3642 = vmatpush2.bf16.msra.mxu0 0
        %3643 = vmatprep.subr.bf16.mxu0 0
        %3644 = vmatpush2.bf16.msra.mxu0 0
        %3645 = vmatprep.subr.bf16.mxu0 0
        %3646 = vmatpush2.bf16.msra.mxu0 0
        %3647 = vmatprep.subr.bf16.mxu0 0
        %3648 = vmatpush2.bf16.msra.mxu0 0
        %3649 = vmatprep.subr.bf16.mxu0 0
        %3650 = vmatpush2.bf16.msra.mxu0 0
        %3651 = vmatprep.subr.bf16.mxu0 0
        %3652 = vmatpush2.bf16.msra.mxu0 0
        %3653 = vmatprep.mubr.bf16.mxu0 0
        %3654 = vmatmul.mubr.bf16.gmra.mxu0 %v3362
        %v3655 = vpop.f32.mrf.mxu0
        %v3656 = vadd.f32 %v3605, %v3655
        %v3657 = vpop.f32.mrf.mxu0
        %v3658 = vadd.f32 %v3607, %v3657
        %v3659 = vpop.f32.mrf.mxu0
        %v3660 = vadd.f32 %v3609, %v3659
        %v3661 = vpop.f32.mrf.mxu0
        %v3662 = vadd.f32 %v3611, %v3661
        %3663 = vmatprep.mubr.bf16.mxu0 0
        %3664 = vmatmul.mubr.bf16.gmra.mxu0 %v3364
        %v3665 = vpop.f32.mrf.mxu0
        %v3666 = vadd.f32 %v3615, %v3665
        %v3667 = vpop.f32.mrf.mxu0
        %v3668 = vadd.f32 %v3617, %v3667
        %v3669 = vpop.f32.mrf.mxu0
        %v3670 = vpop.f32.mrf.mxu0
        %3671 = vdwg.mxu0
        %3672 = vmatprep.subr.bf16.mxu0 0
        %3673 = vmatpush1.bf16.msra.mxu0 %v3041
        %3674 = vmatprep.subr.bf16.mxu0 0
        %3675 = vmatpush1.bf16.msra.mxu0 %v3036
        %3676 = vmatprep.subr.bf16.mxu0 0
        %3677 = vmatpush1.bf16.msra.mxu0 %v3031
        %3678 = vmatprep.subr.bf16.mxu0 0
        %3679 = vmatpush1.bf16.msra.mxu0 %v3026
        %3680 = vmatprep.subr.bf16.mxu0 0
        %3681 = vmatpush1.bf16.msra.mxu0 %v3021
        %3682 = vmatprep.subr.bf16.mxu0 0
        %3683 = vmatpush1.bf16.msra.mxu0 %v3016
        %3684 = vmatprep.subr.bf16.mxu0 0
        %3685 = vmatpush1.bf16.msra.mxu0 %v3011
        %3686 = vmatprep.subr.bf16.mxu0 0
        %3687 = vmatpush1.bf16.msra.mxu0 %v3006
        %3688 = vmatprep.subr.bf16.mxu0 0
        %3689 = vmatpush2.bf16.msra.mxu0 %v3081
        %3690 = vmatprep.subr.bf16.mxu0 0
        %3691 = vmatpush2.bf16.msra.mxu0 %v3076
        %3692 = vmatprep.subr.bf16.mxu0 0
        %3693 = vmatpush2.bf16.msra.mxu0 %v3071
        %3694 = vmatprep.subr.bf16.mxu0 0
        %3695 = vmatpush2.bf16.msra.mxu0 %v3066
        %3696 = vmatprep.subr.bf16.mxu0 0
        %3697 = vmatpush2.bf16.msra.mxu0 %v3061
        %3698 = vmatprep.subr.bf16.mxu0 0
        %3699 = vmatpush2.bf16.msra.mxu0 %v3056
        %3700 = vmatprep.subr.bf16.mxu0 0
        %3701 = vmatpush2.bf16.msra.mxu0 %v3051
        %3702 = vmatprep.subr.bf16.mxu0 0
        %3703 = vmatpush2.bf16.msra.mxu0 %v3046
        %3704 = vmatprep.mubr.bf16.mxu0 %v507
        %3705 = vmatmul.mubr.bf16.gmra.mxu0 %v506
        %v3706 = vpop.f32.mrf.mxu0
        %v3707 = vadd.f32 %v2413, %v3706
        %v3708 = vpop.f32.mrf.mxu0
        %v3709 = vpop.f32.mrf.mxu0
        %v3710 = vadd.f32 %v2416, %v3709
        %v3711 = vpop.f32.mrf.mxu0
        %3712 = vmatprep.mubr.bf16.mxu0 %v512
        %3713 = vmatmul.mubr.bf16.gmra.mxu0 %v511
        %v3714 = vpop.f32.mrf.mxu0
        %v3715 = vadd.f32 %v2421, %v3714
        %v3716 = vpop.f32.mrf.mxu0
        %v3717 = vpop.f32.mrf.mxu0
        %v3718 = vpop.f32.mrf.mxu0
        %3719 = vdwg.mxu0
        %3720 = vmatprep.subr.bf16.mxu0 0
        %3721 = vmatpush1.bf16.msra.mxu0 %v3121
        %3722 = vmatprep.subr.bf16.mxu0 0
        %3723 = vmatpush1.bf16.msra.mxu0 %v3116
        %3724 = vmatprep.subr.bf16.mxu0 0
        %3725 = vmatpush1.bf16.msra.mxu0 %v3111
        %3726 = vmatprep.subr.bf16.mxu0 0
        %3727 = vmatpush1.bf16.msra.mxu0 %v3106
        %3728 = vmatprep.subr.bf16.mxu0 0
        %3729 = vmatpush1.bf16.msra.mxu0 %v3101
        %3730 = vmatprep.subr.bf16.mxu0 0
        %3731 = vmatpush1.bf16.msra.mxu0 %v3096
        %3732 = vmatprep.subr.bf16.mxu0 0
        %3733 = vmatpush1.bf16.msra.mxu0 %v3091
        %3734 = vmatprep.subr.bf16.mxu0 0
        %3735 = vmatpush1.bf16.msra.mxu0 %v3086
        %3736 = vmatprep.subr.bf16.mxu0 0
        %3737 = vmatpush2.bf16.msra.mxu0 %v3161
        %3738 = vmatprep.subr.bf16.mxu0 0
        %3739 = vmatpush2.bf16.msra.mxu0 %v3156
        %3740 = vmatprep.subr.bf16.mxu0 0
        %3741 = vmatpush2.bf16.msra.mxu0 %v3151
        %3742 = vmatprep.subr.bf16.mxu0 0
        %3743 = vmatpush2.bf16.msra.mxu0 %v3146
        %3744 = vmatprep.subr.bf16.mxu0 0
        %3745 = vmatpush2.bf16.msra.mxu0 %v3141
        %3746 = vmatprep.subr.bf16.mxu0 0
        %3747 = vmatpush2.bf16.msra.mxu0 %v3136
        %3748 = vmatprep.subr.bf16.mxu0 0
        %3749 = vmatpush2.bf16.msra.mxu0 %v3131
        %3750 = vmatprep.subr.bf16.mxu0 0
        %3751 = vmatpush2.bf16.msra.mxu0 %v3126
        %3752 = vmatprep.mubr.bf16.mxu0 %v509
        %3753 = vmatmul.mubr.bf16.gmra.mxu0 %v508
        %v3754 = vpop.f32.mrf.mxu0
        %v3755 = vadd.f32 %v3707, %v3754
        %v3756 = vpop.f32.mrf.mxu0
        %v3757 = vpop.f32.mrf.mxu0
        %v3758 = vadd.f32 %v3710, %v3757
        %v3759 = vpop.f32.mrf.mxu0
        %3760 = vmatprep.mubr.bf16.mxu0 %v514
        %3761 = vmatmul.mubr.bf16.gmra.mxu0 %v513
        %v3762 = vpop.f32.mrf.mxu0
        %v3763 = vadd.f32 %v3715, %v3762
        %v3764 = vpop.f32.mrf.mxu0
        %v3765 = vpop.f32.mrf.mxu0
        %v3766 = vpop.f32.mrf.mxu0
        %3767 = vdwg.mxu0
        %3768 = vmatprep.subr.bf16.mxu0 0
        %3769 = vmatpush1.bf16.msra.mxu0 0
        %3770 = vmatprep.subr.bf16.mxu0 0
        %3771 = vmatpush1.bf16.msra.mxu0 0
        %3772 = vmatprep.subr.bf16.mxu0 0
        %3773 = vmatpush1.bf16.msra.mxu0 0
        %3774 = vmatprep.subr.bf16.mxu0 0
        %3775 = vmatpush1.bf16.msra.mxu0 0
        %3776 = vmatprep.subr.bf16.mxu0 0
        %3777 = vmatpush1.bf16.msra.mxu0 %v3181
        %3778 = vmatprep.subr.bf16.mxu0 0
        %3779 = vmatpush1.bf16.msra.mxu0 %v3176
        %3780 = vmatprep.subr.bf16.mxu0 0
        %3781 = vmatpush1.bf16.msra.mxu0 %v3171
        %3782 = vmatprep.subr.bf16.mxu0 0
        %3783 = vmatpush1.bf16.msra.mxu0 %v3166
        %3784 = vmatprep.subr.bf16.mxu0 0
        %3785 = vmatpush2.bf16.msra.mxu0 0
        %3786 = vmatprep.subr.bf16.mxu0 0
        %3787 = vmatpush2.bf16.msra.mxu0 0
        %3788 = vmatprep.subr.bf16.mxu0 0
        %3789 = vmatpush2.bf16.msra.mxu0 0
        %3790 = vmatprep.subr.bf16.mxu0 0
        %3791 = vmatpush2.bf16.msra.mxu0 0
        %3792 = vmatprep.subr.bf16.mxu0 0
        %3793 = vmatpush2.bf16.msra.mxu0 0
        %3794 = vmatprep.subr.bf16.mxu0 0
        %3795 = vmatpush2.bf16.msra.mxu0 0
        %3796 = vmatprep.subr.bf16.mxu0 0
        %3797 = vmatpush2.bf16.msra.mxu0 0
        %3798 = vmatprep.subr.bf16.mxu0 0
        %3799 = vmatpush2.bf16.msra.mxu0 0
        %3800 = vmatprep.mubr.bf16.mxu0 0
        %3801 = vmatmul.mubr.bf16.gmra.mxu0 %v3362
        %v3802 = vpop.f32.mrf.mxu0
        %v3803 = vadd.f32 %v3755, %v3802
        %v3804 = vpop.f32.mrf.mxu0
        %v3805 = vpop.f32.mrf.mxu0
        %v3806 = vadd.f32 %v3758, %v3805
        %v3807 = vpop.f32.mrf.mxu0
        %3808 = vmatprep.mubr.bf16.mxu0 0
        %3809 = vmatmul.mubr.bf16.gmra.mxu0 %v3364
        %v3810 = vpop.f32.mrf.mxu0
        %v3811 = vadd.f32 %v3763, %v3810
        %v3812 = vpop.f32.mrf.mxu0
        %v3813 = vpop.f32.mrf.mxu0
        %v3814 = vpop.f32.mrf.mxu0
        %3815 = vdwg.mxu0
        %s3816 = scalar_lea.vmem [#allocation2], 2880
        %v3817 = vld [vmem:[%s3816] sm:$0xff]
        %v3818 = vld [vmem:[%s3816 + $0x8] sm:$0xff]
        %v3819 = vld [vmem:[%s3816 + $0x10] sm:$0xf]
        %v3820 = vld [vmem:[%s3816 + $0x14] sm:$0xff]
        %v3821 = vld [vmem:[%s3816 + $0x1c] sm:$0xff]
        %v3822 = vld [vmem:[%s3816 + $0x24] sm:$0xf]
        %v3823 = vld [vmem:[%s3816 + $0x28] sm:$0xff]
        %v3824 = vld [vmem:[%s3816 + $0x30] sm:$0xff]
        %v3825 = vld [vmem:[%s3816 + $0x38] sm:$0xf]
        %v3826 = vld [vmem:[%s3816 + $0x3c] sm:$0xff]
        %v3827 = vld [vmem:[%s3816 + $0x44] sm:$0xff]
        %v3828 = vld [vmem:[%s3816 + $0x4c] sm:$0xf]
        %v3829 = vld [vmem:[%s3816 + $0x50] sm:$0xff]
        %v3830 = vld [vmem:[%s3816 + $0x58] sm:$0xff]
        %v3831 = vld [vmem:[%s3816 + $0x60] sm:$0xf]
        %v3832 = vld [vmem:[%s3816 + $0x64] sm:$0xff]
        %v3833 = vld [vmem:[%s3816 + $0x6c] sm:$0xff]
        %v3834 = vld [vmem:[%s3816 + $0x74] sm:$0xf]
        %v3835 = vld [vmem:[%s3816 + $0x78] sm:$0xff]
        %v3836 = vld [vmem:[%s3816 + $0x80] sm:$0xff]
        %v3837 = vld [vmem:[%s3816 + $0x88] sm:$0xf]
        %v3838 = vld [vmem:[%s3816 + $0x8c] sm:$0xff]
        %v3839 = vld [vmem:[%s3816 + $0x94] sm:$0xff]
        %v3840 = vld [vmem:[%s3816 + $0x9c] sm:$0xf]
        %v3841 = vld [vmem:[%s3816 + $0xa0] sm:$0xff]
        %v3842 = vld [vmem:[%s3816 + $0xa8] sm:$0xff]
        %v3843 = vld [vmem:[%s3816 + $0xb0] sm:$0xf]
        %v3844 = vld [vmem:[%s3816 + $0xb4] sm:$0xff]
        %v3845 = vld [vmem:[%s3816 + $0xbc] sm:$0xff]
        %v3846 = vld [vmem:[%s3816 + $0xc4] sm:$0xf]
        %v3847 = vld [vmem:[%s3816 + $0xc8] sm:$0xff]
        %v3848 = vld [vmem:[%s3816 + $0xd0] sm:$0xff]
        %v3849 = vld [vmem:[%s3816 + $0xd8] sm:$0xf]
        %v3850 = vld [vmem:[%s3816 + $0xdc] sm:$0xff]
        %v3851 = vld [vmem:[%s3816 + $0xe4] sm:$0xff]
        %v3852 = vld [vmem:[%s3816 + $0xec] sm:$0xf]
        %v3853 = vld [vmem:[%s3816 + $0xf0] sm:$0xff]
        %v3854 = vld [vmem:[%s3816 + $0xf8] sm:$0xff]
        %v3855 = vld [vmem:[%s3816 + $0x100] sm:$0xf]
        %v3856 = vld [vmem:[%s3816 + $0x104] sm:$0xff]
        %v3857 = vld [vmem:[%s3816 + $0x10c] sm:$0xff]
        %v3858 = vld [vmem:[%s3816 + $0x114] sm:$0xf]
        %v3859 = vld [vmem:[%s3816 + $0x118] sm:$0xff]
        %v3860 = vld [vmem:[%s3816 + $0x120] sm:$0xff]
        %v3861 = vld [vmem:[%s3816 + $0x128] sm:$0xf]
        %v3862 = vld [vmem:[%s3816 + $0x12c] sm:$0xff]
        %v3863 = vld [vmem:[%s3816 + $0x134] sm:$0xff]
        %v3864 = vld [vmem:[%s3816 + $0x13c] sm:$0xf]
        %v3865 = vld [vmem:[%s3816 + $0x140] sm:$0xff]
        %v3866 = vld [vmem:[%s3816 + $0x148] sm:$0xff]
        %v3867 = vld [vmem:[%s3816 + $0x150] sm:$0xf]
        %v3868 = vld [vmem:[%s3816 + $0x154] sm:$0xff]
        %v3869 = vld [vmem:[%s3816 + $0x15c] sm:$0xff]
        %v3870 = vld [vmem:[%s3816 + $0x164] sm:$0xf]
        %v3871 = vld [vmem:[%s3816 + $0x168] sm:$0xff]
        %v3872 = vld [vmem:[%s3816 + $0x170] sm:$0xff]
        %v3873 = vld [vmem:[%s3816 + $0x178] sm:$0xf]
        %v3874 = vld [vmem:[%s3816 + $0x17c] sm:$0xff]
        %v3875 = vld [vmem:[%s3816 + $0x184] sm:$0xff]
        %v3876 = vld [vmem:[%s3816 + $0x18c] sm:$0xf]
        %v3877 = vld [vmem:[%s3816 + $0x190] sm:$0xff]
        %v3878 = vld [vmem:[%s3816 + $0x198] sm:$0xff]
        %v3879 = vld [vmem:[%s3816 + $0x1a0] sm:$0xf]
        %v3880 = vld [vmem:[%s3816 + $0x1a4] sm:$0xff]
        %v3881 = vld [vmem:[%s3816 + $0x1ac] sm:$0xff]
        %v3882 = vld [vmem:[%s3816 + $0x1b4] sm:$0xf]
        %v3883 = vld [vmem:[%s3816 + $0x1b8] sm:$0xff]
        %v3884 = vld [vmem:[%s3816 + $0x1c0] sm:$0xff]
        %v3885 = vld [vmem:[%s3816 + $0x1c8] sm:$0xf]
        %v3886 = vld [vmem:[%s3816 + $0x1cc] sm:$0xff]
        %v3887 = vld [vmem:[%s3816 + $0x1d4] sm:$0xff]
        %v3888 = vld [vmem:[%s3816 + $0x1dc] sm:$0xf]
        %v3889 = vld [vmem:[%s3816 + $0x1e0] sm:$0xff]
        %v3890 = vld [vmem:[%s3816 + $0x1e8] sm:$0xff]
        %v3891 = vld [vmem:[%s3816 + $0x1f0] sm:$0xf]
        %v3892 = vld [vmem:[%s3816 + $0x1f4] sm:$0xff]
        %v3893 = vld [vmem:[%s3816 + $0x1fc] sm:$0xff]
        %v3894 = vld [vmem:[%s3816 + $0x204] sm:$0xf]
        %v3895 = vld [vmem:[%s3816 + $0x208] sm:$0xff]
        %v3896 = vld [vmem:[%s3816 + $0x210] sm:$0xff]
        %v3897 = vld [vmem:[%s3816 + $0x218] sm:$0xf]
        %v3898 = vld [vmem:[%s3816 + $0x21c] sm:$0xff]
        %v3899 = vld [vmem:[%s3816 + $0x224] sm:$0xff]
        %v3900 = vld [vmem:[%s3816 + $0x22c] sm:$0xf]
        %v3901 = vld [vmem:[%s3816 + $0x230] sm:$0xff]
        %v3902 = vld [vmem:[%s3816 + $0x238] sm:$0xff]
        %v3903 = vld [vmem:[%s3816 + $0x240] sm:$0xf]
        %v3904 = vld [vmem:[%s3816 + $0x244] sm:$0xff]
        %v3905 = vld [vmem:[%s3816 + $0x24c] sm:$0xff]
        %v3906 = vld [vmem:[%s3816 + $0x254] sm:$0xf]
        %v3907 = vld [vmem:[%s3816 + $0x258] sm:$0xff]
        %v3908 = vld [vmem:[%s3816 + $0x260] sm:$0xff]
        %v3909 = vld [vmem:[%s3816 + $0x268] sm:$0xf]
        %v3910 = vld [vmem:[%s3816 + $0x26c] sm:$0xff]
        %v3911 = vld [vmem:[%s3816 + $0x274] sm:$0xff]
        %v3912 = vld [vmem:[%s3816 + $0x27c] sm:$0xf]
        %v3913 = vld [vmem:[%s3816 + $0x280] sm:$0xff]
        %v3914 = vld [vmem:[%s3816 + $0x288] sm:$0xff]
        %v3915 = vld [vmem:[%s3816 + $0x290] sm:$0xf]
        %v3916 = vld [vmem:[%s3816 + $0x294] sm:$0xff]
        %v3917 = vld [vmem:[%s3816 + $0x29c] sm:$0xff]
        %v3918 = vld [vmem:[%s3816 + $0x2a4] sm:$0xf]
        %v3919 = vld [vmem:[%s3816 + $0x2a8] sm:$0xff]
        %v3920 = vld [vmem:[%s3816 + $0x2b0] sm:$0xff]
        %v3921 = vld [vmem:[%s3816 + $0x2b8] sm:$0xf]
        %v3922 = vld [vmem:[%s3816 + $0x2bc] sm:$0xff]
        %v3923 = vld [vmem:[%s3816 + $0x2c4] sm:$0xff]
        %v3924 = vld [vmem:[%s3816 + $0x2cc] sm:$0xf]
        %v3925 = vld [vmem:[%s3816 + $0x2d0] sm:$0xff]
        %v3926 = vld [vmem:[%s3816 + $0x2d8] sm:$0xff]
        %v3927 = vld [vmem:[%s3816 + $0x2e0] sm:$0xf]
        %v3928 = vld [vmem:[%s3816 + $0x2e4] sm:$0xff]
        %v3929 = vld [vmem:[%s3816 + $0x2ec] sm:$0xff]
        %v3930 = vld [vmem:[%s3816 + $0x2f4] sm:$0xf]
        %v3931 = vld [vmem:[%s3816 + $0x2f8] sm:$0xff]
        %v3932 = vld [vmem:[%s3816 + $0x300] sm:$0xff]
        %v3933 = vld [vmem:[%s3816 + $0x308] sm:$0xf]
        %v3934 = vld [vmem:[%s3816 + $0x30c] sm:$0xff]
        %v3935 = vld [vmem:[%s3816 + $0x314] sm:$0xff]
        %v3936 = vld [vmem:[%s3816 + $0x31c] sm:$0xf]
        %v3937 = vld [vmem:[%s3816 + $0x320] sm:$0xff]
        %v3938 = vld [vmem:[%s3816 + $0x328] sm:$0xff]
        %v3939 = vld [vmem:[%s3816 + $0x330] sm:$0xf]
        %v3940 = vld [vmem:[%s3816 + $0x334] sm:$0xff]
        %v3941 = vld [vmem:[%s3816 + $0x33c] sm:$0xff]
        %v3942 = vld [vmem:[%s3816 + $0x344] sm:$0xf]
        %v3943 = vld [vmem:[%s3816 + $0x348] sm:$0xff]
        %v3944 = vld [vmem:[%s3816 + $0x350] sm:$0xff]
        %v3945 = vld [vmem:[%s3816 + $0x358] sm:$0xf]
        %v3946 = vld [vmem:[%s3816 + $0x35c] sm:$0xff]
        %v3947 = vld [vmem:[%s3816 + $0x364] sm:$0xff]
        %v3948 = vld [vmem:[%s3816 + $0x36c] sm:$0xf]
        %v3949 = vld [vmem:[%s3816 + $0x370] sm:$0xff]
        %v3950 = vld [vmem:[%s3816 + $0x378] sm:$0xff]
        %v3951 = vld [vmem:[%s3816 + $0x380] sm:$0xf]
        %v3952 = vld [vmem:[%s3816 + $0x384] sm:$0xff]
        %v3953 = vld [vmem:[%s3816 + $0x38c] sm:$0xff]
        %v3954 = vld [vmem:[%s3816 + $0x394] sm:$0xf]
        %v3955 = vld [vmem:[%s3816 + $0x398] sm:$0xff]
        %v3956 = vld [vmem:[%s3816 + $0x3a0] sm:$0xff]
        %v3957 = vld [vmem:[%s3816 + $0x3a8] sm:$0xf]
        %v3958 = vld [vmem:[%s3816 + $0x3ac] sm:$0xff]
        %v3959 = vld [vmem:[%s3816 + $0x3b4] sm:$0xff]
        %v3960 = vld [vmem:[%s3816 + $0x3bc] sm:$0xf]
        %v3961 = vld [vmem:[%s3816 + $0x3c0] sm:$0xff]
        %v3962 = vld [vmem:[%s3816 + $0x3c8] sm:$0xff]
        %v3963 = vld [vmem:[%s3816 + $0x3d0] sm:$0xf]
        %v3964 = vld [vmem:[%s3816 + $0x3d4] sm:$0xff]
        %v3965 = vld [vmem:[%s3816 + $0x3dc] sm:$0xff]
        %v3966 = vld [vmem:[%s3816 + $0x3e4] sm:$0xf]
        %v3967 = vld [vmem:[%s3816 + $0x3e8] sm:$0xff]
        %v3968 = vld [vmem:[%s3816 + $0x3f0] sm:$0xff]
        %v3969 = vld [vmem:[%s3816 + $0x3f8] sm:$0xf]
        %v3970 = vld [vmem:[%s3816 + $0x3fc] sm:$0xff]
        %v3971 = vld [vmem:[%s3816 + $0x404] sm:$0xff]
        %v3972 = vld [vmem:[%s3816 + $0x40c] sm:$0xf]
        %v3973 = vld [vmem:[%s3816 + $0x410] sm:$0xff]
        %v3974 = vld [vmem:[%s3816 + $0x418] sm:$0xff]
        %v3975 = vld [vmem:[%s3816 + $0x420] sm:$0xf]
        %v3976 = vld [vmem:[%s3816 + $0x424] sm:$0xff]
        %v3977 = vld [vmem:[%s3816 + $0x42c] sm:$0xff]
        %v3978 = vld [vmem:[%s3816 + $0x434] sm:$0xf]
        %v3979 = vld [vmem:[%s3816 + $0x438] sm:$0xff]
        %v3980 = vld [vmem:[%s3816 + $0x440] sm:$0xff]
        %v3981 = vld [vmem:[%s3816 + $0x448] sm:$0xf]
        %v3982 = vld [vmem:[%s3816 + $0x44c] sm:$0xff]
        %v3983 = vld [vmem:[%s3816 + $0x454] sm:$0xff]
        %v3984 = vld [vmem:[%s3816 + $0x45c] sm:$0xf]
        %v3985 = vld [vmem:[%s3816 + $0x460] sm:$0xff]
        %v3986 = vld [vmem:[%s3816 + $0x468] sm:$0xff]
        %v3987 = vld [vmem:[%s3816 + $0x470] sm:$0xf]
        %v3988 = vld [vmem:[%s3816 + $0x474] sm:$0xff]
        %v3989 = vld [vmem:[%s3816 + $0x47c] sm:$0xff]
        %v3990 = vld [vmem:[%s3816 + $0x484] sm:$0xf]
        %v3991 = vld [vmem:[%s3816 + $0x488] sm:$0xff]
        %v3992 = vld [vmem:[%s3816 + $0x490] sm:$0xff]
        %v3993 = vld [vmem:[%s3816 + $0x498] sm:$0xf]
        %v3994 = vld [vmem:[%s3816 + $0x49c] sm:$0xff]
        %v3995 = vld [vmem:[%s3816 + $0x4a4] sm:$0xff]
        %v3996 = vld [vmem:[%s3816 + $0x4ac] sm:$0xf]
        %v3997 = vld [vmem:[%s3816 + $0x4b0] sm:$0xff]
        %v3998 = vld [vmem:[%s3816 + $0x4b8] sm:$0xff]
        %v3999 = vld [vmem:[%s3816 + $0x4c0] sm:$0xf]
        %v4000 = vld [vmem:[%s3816 + $0x4c4] sm:$0xff]
        %v4001 = vld [vmem:[%s3816 + $0x4cc] sm:$0xff]
        %v4002 = vld [vmem:[%s3816 + $0x4d4] sm:$0xf]
        %v4003 = vld [vmem:[%s3816 + $0x4d8] sm:$0xff]
        %v4004 = vld [vmem:[%s3816 + $0x4e0] sm:$0xff]
        %v4005 = vld [vmem:[%s3816 + $0x4e8] sm:$0xf]
        %v4006 = vld [vmem:[%s3816 + $0x4ec] sm:$0xff]
        %v4007 = vld [vmem:[%s3816 + $0x4f4] sm:$0xff]
        %v4008 = vld [vmem:[%s3816 + $0x4fc] sm:$0xf]
        %v4009 = vld [vmem:[%s3816 + $0x500] sm:$0xff]
        %v4010 = vld [vmem:[%s3816 + $0x508] sm:$0xff]
        %v4011 = vld [vmem:[%s3816 + $0x510] sm:$0xf]
        %v4012 = vld [vmem:[%s3816 + $0x514] sm:$0xff]
        %v4013 = vld [vmem:[%s3816 + $0x51c] sm:$0xff]
        %v4014 = vld [vmem:[%s3816 + $0x524] sm:$0xf]
        %v4015 = vld [vmem:[%s3816 + $0x528] sm:$0xff]
        %v4016 = vld [vmem:[%s3816 + $0x530] sm:$0xff]
        %v4017 = vld [vmem:[%s3816 + $0x538] sm:$0xf]
        %v4018 = vld [vmem:[%s3816 + $0x53c] sm:$0xff]
        %v4019 = vld [vmem:[%s3816 + $0x544] sm:$0xff]
        %v4020 = vld [vmem:[%s3816 + $0x54c] sm:$0xf]
        %v4021 = vld [vmem:[%s3816 + $0x550] sm:$0xff]
        %v4022 = vld [vmem:[%s3816 + $0x558] sm:$0xff]
        %v4023 = vld [vmem:[%s3816 + $0x560] sm:$0xf]
        %v4024 = vld [vmem:[%s3816 + $0x564] sm:$0xff]
        %v4025 = vld [vmem:[%s3816 + $0x56c] sm:$0xff]
        %v4026 = vld [vmem:[%s3816 + $0x574] sm:$0xf]
        %v4027 = vld [vmem:[%s3816 + $0x578] sm:$0xff]
        %v4028 = vld [vmem:[%s3816 + $0x580] sm:$0xff]
        %v4029 = vld [vmem:[%s3816 + $0x588] sm:$0xf]
        %v4030 = vld [vmem:[%s3816 + $0x58c] sm:$0xff]
        %v4031 = vld [vmem:[%s3816 + $0x594] sm:$0xff]
        %v4032 = vld [vmem:[%s3816 + $0x59c] sm:$0xf]
        %vm4043 = vcmask 1046528
        %v4044 = vrot.slane %v506, 1
        %v4045 = vrot.slane %v511, 1
        %v4046 = vsel %vm4043, %v4044, %v4045
        %v4047 = vrot.slane %v507, 1
        %v4048 = vrot.slane %v512, 1
        %v4049 = vsel %vm4043, %v4047, %v4048
        %v4050 = vrot.slane %v508, 1
        %v4051 = vrot.slane %v513, 1
        %v4052 = vsel %vm4043, %v4050, %v4051
        %v4053 = vrot.slane %v509, 1
        %v4054 = vrot.slane %v514, 1
        %v4055 = vsel %vm4043, %v4053, %v4054
        %v4056 = vrot.slane %v510, 1
        %v4057 = vrot.slane %v515, 1
        %v4058 = vsel %vm4043, %v4056, %v4057
        %v4283 = vunpack.c.l.b16 %v3817
        %v4284 = vunpack.c.h.b16 %v3817
        %v4285 = vunpack.c.l.b16 %v3818
        %v4286 = vunpack.c.h.b16 %v3818
        %v4287 = vunpack.c.l.b16 %v3819
        %v4288 = vunpack.c.l.b16 %v3820
        %v4289 = vunpack.c.h.b16 %v3820
        %v4290 = vunpack.c.l.b16 %v3821
        %v4291 = vunpack.c.h.b16 %v3821
        %v4292 = vunpack.c.l.b16 %v3822
        %v4293 = vunpack.c.l.b16 %v3823
        %v4294 = vunpack.c.h.b16 %v3823
        %v4295 = vunpack.c.l.b16 %v3824
        %v4296 = vunpack.c.h.b16 %v3824
        %v4297 = vunpack.c.l.b16 %v3825
        %v4298 = vunpack.c.l.b16 %v3826
        %v4299 = vunpack.c.h.b16 %v3826
        %v4300 = vunpack.c.l.b16 %v3827
        %v4301 = vunpack.c.h.b16 %v3827
        %v4302 = vunpack.c.l.b16 %v3828
        %v4303 = vunpack.c.l.b16 %v3829
        %v4304 = vunpack.c.h.b16 %v3829
        %v4305 = vunpack.c.l.b16 %v3830
        %v4306 = vunpack.c.h.b16 %v3830
        %v4307 = vunpack.c.l.b16 %v3831
        %v4308 = vunpack.c.l.b16 %v3832
        %v4309 = vunpack.c.h.b16 %v3832
        %v4310 = vunpack.c.l.b16 %v3833
        %v4311 = vunpack.c.h.b16 %v3833
        %v4312 = vunpack.c.l.b16 %v3834
        %v4313 = vunpack.c.l.b16 %v3835
        %v4314 = vunpack.c.h.b16 %v3835
        %v4315 = vunpack.c.l.b16 %v3836
        %v4316 = vunpack.c.h.b16 %v3836
        %v4317 = vunpack.c.l.b16 %v3837
        %v4318 = vunpack.c.l.b16 %v3838
        %v4319 = vunpack.c.h.b16 %v3838
        %v4320 = vunpack.c.l.b16 %v3839
        %v4321 = vunpack.c.h.b16 %v3839
        %v4322 = vunpack.c.l.b16 %v3840
        %v4323 = vunpack.c.l.b16 %v3841
        %v4324 = vunpack.c.h.b16 %v3841
        %v4325 = vunpack.c.l.b16 %v3842
        %v4326 = vunpack.c.h.b16 %v3842
        %v4327 = vunpack.c.l.b16 %v3843
        %v4328 = vunpack.c.l.b16 %v3844
        %v4329 = vunpack.c.h.b16 %v3844
        %v4330 = vunpack.c.l.b16 %v3845
        %v4331 = vunpack.c.h.b16 %v3845
        %v4332 = vunpack.c.l.b16 %v3846
        %v4333 = vunpack.c.l.b16 %v3847
        %v4334 = vunpack.c.h.b16 %v3847
        %v4335 = vunpack.c.l.b16 %v3848
        %v4336 = vunpack.c.h.b16 %v3848
        %v4337 = vunpack.c.l.b16 %v3849
        %v4338 = vunpack.c.l.b16 %v3850
        %v4339 = vunpack.c.h.b16 %v3850
        %v4340 = vunpack.c.l.b16 %v3851
        %v4341 = vunpack.c.h.b16 %v3851
        %v4342 = vunpack.c.l.b16 %v3852
        %v4343 = vunpack.c.l.b16 %v3853
        %v4344 = vunpack.c.h.b16 %v3853
        %v4345 = vunpack.c.l.b16 %v3854
        %v4346 = vunpack.c.h.b16 %v3854
        %v4347 = vunpack.c.l.b16 %v3855
        %v4348 = vunpack.c.l.b16 %v3856
        %v4349 = vunpack.c.h.b16 %v3856
        %v4350 = vunpack.c.l.b16 %v3857
        %v4351 = vunpack.c.h.b16 %v3857
        %v4352 = vunpack.c.l.b16 %v3858
        %v4353 = vunpack.c.l.b16 %v3859
        %v4354 = vunpack.c.h.b16 %v3859
        %v4355 = vunpack.c.l.b16 %v3860
        %v4356 = vunpack.c.h.b16 %v3860
        %v4357 = vunpack.c.l.b16 %v3861
        %v4358 = vunpack.c.l.b16 %v3862
        %v4359 = vunpack.c.h.b16 %v3862
        %v4360 = vunpack.c.l.b16 %v3863
        %v4361 = vunpack.c.h.b16 %v3863
        %v4362 = vunpack.c.l.b16 %v3864
        %v4363 = vunpack.c.l.b16 %v3865
        %v4364 = vunpack.c.h.b16 %v3865
        %v4365 = vunpack.c.l.b16 %v3866
        %v4366 = vunpack.c.h.b16 %v3866
        %v4367 = vunpack.c.l.b16 %v3867
        %v4368 = vunpack.c.l.b16 %v3868
        %v4369 = vunpack.c.h.b16 %v3868
        %v4370 = vunpack.c.l.b16 %v3869
        %v4371 = vunpack.c.h.b16 %v3869
        %v4372 = vunpack.c.l.b16 %v3870
        %v4373 = vunpack.c.l.b16 %v3871
        %v4374 = vunpack.c.h.b16 %v3871
        %v4375 = vunpack.c.l.b16 %v3872
        %v4376 = vunpack.c.h.b16 %v3872
        %v4377 = vunpack.c.l.b16 %v3873
        %v4378 = vunpack.c.l.b16 %v3874
        %v4379 = vunpack.c.h.b16 %v3874
        %v4380 = vunpack.c.l.b16 %v3875
        %v4381 = vunpack.c.h.b16 %v3875
        %v4382 = vunpack.c.l.b16 %v3876
        %v4383 = vunpack.c.l.b16 %v3877
        %v4384 = vunpack.c.h.b16 %v3877
        %v4385 = vunpack.c.l.b16 %v3878
        %v4386 = vunpack.c.h.b16 %v3878
        %v4387 = vunpack.c.l.b16 %v3879
        %v4388 = vunpack.c.l.b16 %v3880
        %v4389 = vunpack.c.h.b16 %v3880
        %v4390 = vunpack.c.l.b16 %v3881
        %v4391 = vunpack.c.h.b16 %v3881
        %v4392 = vunpack.c.l.b16 %v3882
        %v4393 = vunpack.c.l.b16 %v3883
        %v4394 = vunpack.c.h.b16 %v3883
        %v4395 = vunpack.c.l.b16 %v3884
        %v4396 = vunpack.c.h.b16 %v3884
        %v4397 = vunpack.c.l.b16 %v3885
        %v4398 = vunpack.c.l.b16 %v3886
        %v4399 = vunpack.c.h.b16 %v3886
        %v4400 = vunpack.c.l.b16 %v3887
        %v4401 = vunpack.c.h.b16 %v3887
        %v4402 = vunpack.c.l.b16 %v3888
        %v4403 = vunpack.c.l.b16 %v3889
        %v4404 = vunpack.c.h.b16 %v3889
        %v4405 = vunpack.c.l.b16 %v3890
        %v4406 = vunpack.c.h.b16 %v3890
        %v4407 = vunpack.c.l.b16 %v3891
        %v4408 = vunpack.c.l.b16 %v3892
        %v4409 = vunpack.c.h.b16 %v3892
        %v4410 = vunpack.c.l.b16 %v3893
        %v4411 = vunpack.c.h.b16 %v3893
        %v4412 = vunpack.c.l.b16 %v3894
        %v4413 = vunpack.c.l.b16 %v3895
        %v4414 = vunpack.c.h.b16 %v3895
        %v4415 = vunpack.c.l.b16 %v3896
        %v4416 = vunpack.c.h.b16 %v3896
        %v4417 = vunpack.c.l.b16 %v3897
        %v4418 = vunpack.c.l.b16 %v3898
        %v4419 = vunpack.c.h.b16 %v3898
        %v4420 = vunpack.c.l.b16 %v3899
        %v4421 = vunpack.c.h.b16 %v3899
        %v4422 = vunpack.c.l.b16 %v3900
        %v4423 = vunpack.c.l.b16 %v3901
        %v4424 = vunpack.c.h.b16 %v3901
        %v4425 = vunpack.c.l.b16 %v3902
        %v4426 = vunpack.c.h.b16 %v3902
        %v4427 = vunpack.c.l.b16 %v3903
        %v4428 = vunpack.c.l.b16 %v3904
        %v4429 = vunpack.c.h.b16 %v3904
        %v4430 = vunpack.c.l.b16 %v3905
        %v4431 = vunpack.c.h.b16 %v3905
        %v4432 = vunpack.c.l.b16 %v3906
        %v4433 = vunpack.c.l.b16 %v3907
        %v4434 = vunpack.c.h.b16 %v3907
        %v4435 = vunpack.c.l.b16 %v3908
        %v4436 = vunpack.c.h.b16 %v3908
        %v4437 = vunpack.c.l.b16 %v3909
        %v4438 = vunpack.c.l.b16 %v3910
        %v4439 = vunpack.c.h.b16 %v3910
        %v4440 = vunpack.c.l.b16 %v3911
        %v4441 = vunpack.c.h.b16 %v3911
        %v4442 = vunpack.c.l.b16 %v3912
        %v4443 = vunpack.c.l.b16 %v3913
        %v4444 = vunpack.c.h.b16 %v3913
        %v4445 = vunpack.c.l.b16 %v3914
        %v4446 = vunpack.c.h.b16 %v3914
        %v4447 = vunpack.c.l.b16 %v3915
        %v4448 = vunpack.c.l.b16 %v3916
        %v4449 = vunpack.c.h.b16 %v3916
        %v4450 = vunpack.c.l.b16 %v3917
        %v4451 = vunpack.c.h.b16 %v3917
        %v4452 = vunpack.c.l.b16 %v3918
        %v4453 = vunpack.c.l.b16 %v3919
        %v4454 = vunpack.c.h.b16 %v3919
        %v4455 = vunpack.c.l.b16 %v3920
        %v4456 = vunpack.c.h.b16 %v3920
        %v4457 = vunpack.c.l.b16 %v3921
        %v4458 = vunpack.c.l.b16 %v3922
        %v4459 = vunpack.c.h.b16 %v3922
        %v4460 = vunpack.c.l.b16 %v3923
        %v4461 = vunpack.c.h.b16 %v3923
        %v4462 = vunpack.c.l.b16 %v3924
        %v4463 = vunpack.c.l.b16 %v3925
        %v4464 = vunpack.c.h.b16 %v3925
        %v4465 = vunpack.c.l.b16 %v3926
        %v4466 = vunpack.c.h.b16 %v3926
        %v4467 = vunpack.c.l.b16 %v3927
        %v4468 = vunpack.c.l.b16 %v3928
        %v4469 = vunpack.c.h.b16 %v3928
        %v4470 = vunpack.c.l.b16 %v3929
        %v4471 = vunpack.c.h.b16 %v3929
        %v4472 = vunpack.c.l.b16 %v3930
        %v4473 = vunpack.c.l.b16 %v3931
        %v4474 = vunpack.c.h.b16 %v3931
        %v4475 = vunpack.c.l.b16 %v3932
        %v4476 = vunpack.c.h.b16 %v3932
        %v4477 = vunpack.c.l.b16 %v3933
        %v4478 = vunpack.c.l.b16 %v3934
        %v4479 = vunpack.c.h.b16 %v3934
        %v4480 = vunpack.c.l.b16 %v3935
        %v4481 = vunpack.c.h.b16 %v3935
        %v4482 = vunpack.c.l.b16 %v3936
        %v4483 = vunpack.c.l.b16 %v3937
        %v4484 = vunpack.c.h.b16 %v3937
        %v4485 = vunpack.c.l.b16 %v3938
        %v4486 = vunpack.c.h.b16 %v3938
        %v4487 = vunpack.c.l.b16 %v3939
        %v4488 = vunpack.c.l.b16 %v3940
        %v4489 = vunpack.c.h.b16 %v3940
        %v4490 = vunpack.c.l.b16 %v3941
        %v4491 = vunpack.c.h.b16 %v3941
        %v4492 = vunpack.c.l.b16 %v3942
        %v4493 = vunpack.c.l.b16 %v3943
        %v4494 = vunpack.c.h.b16 %v3943
        %v4495 = vunpack.c.l.b16 %v3944
        %v4496 = vunpack.c.h.b16 %v3944
        %v4497 = vunpack.c.l.b16 %v3945
        %v4498 = vunpack.c.l.b16 %v3946
        %v4499 = vunpack.c.h.b16 %v3946
        %v4500 = vunpack.c.l.b16 %v3947
        %v4501 = vunpack.c.h.b16 %v3947
        %v4502 = vunpack.c.l.b16 %v3948
        %v4503 = vunpack.c.l.b16 %v3949
        %v4504 = vunpack.c.h.b16 %v3949
        %v4505 = vunpack.c.l.b16 %v3950
        %v4506 = vunpack.c.h.b16 %v3950
        %v4507 = vunpack.c.l.b16 %v3951
        %v4508 = vunpack.c.l.b16 %v3952
        %v4509 = vunpack.c.h.b16 %v3952
        %v4510 = vunpack.c.l.b16 %v3953
        %v4511 = vunpack.c.h.b16 %v3953
        %v4512 = vunpack.c.l.b16 %v3954
        %v4513 = vunpack.c.l.b16 %v3955
        %v4514 = vunpack.c.h.b16 %v3955
        %v4515 = vunpack.c.l.b16 %v3956
        %v4516 = vunpack.c.h.b16 %v3956
        %v4517 = vunpack.c.l.b16 %v3957
        %v4518 = vunpack.c.l.b16 %v3958
        %v4519 = vunpack.c.h.b16 %v3958
        %v4520 = vunpack.c.l.b16 %v3959
        %v4521 = vunpack.c.h.b16 %v3959
        %v4522 = vunpack.c.l.b16 %v3960
        %v4523 = vunpack.c.l.b16 %v3961
        %v4524 = vunpack.c.h.b16 %v3961
        %v4525 = vunpack.c.l.b16 %v3962
        %v4526 = vunpack.c.h.b16 %v3962
        %v4527 = vunpack.c.l.b16 %v3963
        %v4528 = vunpack.c.l.b16 %v3964
        %v4529 = vunpack.c.h.b16 %v3964
        %v4530 = vunpack.c.l.b16 %v3965
        %v4531 = vunpack.c.h.b16 %v3965
        %v4532 = vunpack.c.l.b16 %v3966
        %v4533 = vunpack.c.l.b16 %v3967
        %v4534 = vunpack.c.h.b16 %v3967
        %v4535 = vunpack.c.l.b16 %v3968
        %v4536 = vunpack.c.h.b16 %v3968
        %v4537 = vunpack.c.l.b16 %v3969
        %v4538 = vunpack.c.l.b16 %v3970
        %v4539 = vunpack.c.h.b16 %v3970
        %v4540 = vunpack.c.l.b16 %v3971
        %v4541 = vunpack.c.h.b16 %v3971
        %v4542 = vunpack.c.l.b16 %v3972
        %v4543 = vunpack.c.l.b16 %v3973
        %v4544 = vunpack.c.h.b16 %v3973
        %v4545 = vunpack.c.l.b16 %v3974
        %v4546 = vunpack.c.h.b16 %v3974
        %v4547 = vunpack.c.l.b16 %v3975
        %v4548 = vunpack.c.l.b16 %v3976
        %v4549 = vunpack.c.h.b16 %v3976
        %v4550 = vunpack.c.l.b16 %v3977
        %v4551 = vunpack.c.h.b16 %v3977
        %v4552 = vunpack.c.l.b16 %v3978
        %v4553 = vunpack.c.l.b16 %v3979
        %v4554 = vunpack.c.h.b16 %v3979
        %v4555 = vunpack.c.l.b16 %v3980
        %v4556 = vunpack.c.h.b16 %v3980
        %v4557 = vunpack.c.l.b16 %v3981
        %v4558 = vunpack.c.l.b16 %v3982
        %v4559 = vunpack.c.h.b16 %v3982
        %v4560 = vunpack.c.l.b16 %v3983
        %v4561 = vunpack.c.h.b16 %v3983
        %v4562 = vunpack.c.l.b16 %v3984
        %v4563 = vunpack.c.l.b16 %v3985
        %v4564 = vunpack.c.h.b16 %v3985
        %v4565 = vunpack.c.l.b16 %v3986
        %v4566 = vunpack.c.h.b16 %v3986
        %v4567 = vunpack.c.l.b16 %v3987
        %v4568 = vunpack.c.l.b16 %v3988
        %v4569 = vunpack.c.h.b16 %v3988
        %v4570 = vunpack.c.l.b16 %v3989
        %v4571 = vunpack.c.h.b16 %v3989
        %v4572 = vunpack.c.l.b16 %v3990
        %v4573 = vunpack.c.l.b16 %v3991
        %v4574 = vunpack.c.h.b16 %v3991
        %v4575 = vunpack.c.l.b16 %v3992
        %v4576 = vunpack.c.h.b16 %v3992
        %v4577 = vunpack.c.l.b16 %v3993
        %v4578 = vunpack.c.l.b16 %v3994
        %v4579 = vunpack.c.h.b16 %v3994
        %v4580 = vunpack.c.l.b16 %v3995
        %v4581 = vunpack.c.h.b16 %v3995
        %v4582 = vunpack.c.l.b16 %v3996
        %v4583 = vunpack.c.l.b16 %v3997
        %v4584 = vunpack.c.h.b16 %v3997
        %v4585 = vunpack.c.l.b16 %v3998
        %v4586 = vunpack.c.h.b16 %v3998
        %v4587 = vunpack.c.l.b16 %v3999
        %v4588 = vunpack.c.l.b16 %v4000
        %v4589 = vunpack.c.h.b16 %v4000
        %v4590 = vunpack.c.l.b16 %v4001
        %v4591 = vunpack.c.h.b16 %v4001
        %v4592 = vunpack.c.l.b16 %v4002
        %v4593 = vunpack.c.l.b16 %v4003
        %v4594 = vunpack.c.h.b16 %v4003
        %v4595 = vunpack.c.l.b16 %v4004
        %v4596 = vunpack.c.h.b16 %v4004
        %v4597 = vunpack.c.l.b16 %v4005
        %v4598 = vunpack.c.l.b16 %v4006
        %v4599 = vunpack.c.h.b16 %v4006
        %v4600 = vunpack.c.l.b16 %v4007
        %v4601 = vunpack.c.h.b16 %v4007
        %v4602 = vunpack.c.l.b16 %v4008
        %v4603 = vunpack.c.l.b16 %v4009
        %v4604 = vunpack.c.h.b16 %v4009
        %v4605 = vunpack.c.l.b16 %v4010
        %v4606 = vunpack.c.h.b16 %v4010
        %v4607 = vunpack.c.l.b16 %v4011
        %v4608 = vunpack.c.l.b16 %v4012
        %v4609 = vunpack.c.h.b16 %v4012
        %v4610 = vunpack.c.l.b16 %v4013
        %v4611 = vunpack.c.h.b16 %v4013
        %v4612 = vunpack.c.l.b16 %v4014
        %v4613 = vunpack.c.l.b16 %v4015
        %v4614 = vunpack.c.h.b16 %v4015
        %v4615 = vunpack.c.l.b16 %v4016
        %v4616 = vunpack.c.h.b16 %v4016
        %v4617 = vunpack.c.l.b16 %v4017
        %v4618 = vunpack.c.l.b16 %v4018
        %v4619 = vunpack.c.h.b16 %v4018
        %v4620 = vunpack.c.l.b16 %v4019
        %v4621 = vunpack.c.h.b16 %v4019
        %v4622 = vunpack.c.l.b16 %v4020
        %v4623 = vunpack.c.l.b16 %v4021
        %v4624 = vunpack.c.h.b16 %v4021
        %v4625 = vunpack.c.l.b16 %v4022
        %v4626 = vunpack.c.h.b16 %v4022
        %v4627 = vunpack.c.l.b16 %v4023
        %v4628 = vunpack.c.l.b16 %v4024
        %v4629 = vunpack.c.h.b16 %v4024
        %v4630 = vunpack.c.l.b16 %v4025
        %v4631 = vunpack.c.h.b16 %v4025
        %v4632 = vunpack.c.l.b16 %v4026
        %v4633 = vunpack.c.l.b16 %v4027
        %v4634 = vunpack.c.h.b16 %v4027
        %v4635 = vunpack.c.l.b16 %v4028
        %v4636 = vunpack.c.h.b16 %v4028
        %v4637 = vunpack.c.l.b16 %v4029
        %v4638 = vunpack.c.l.b16 %v4030
        %v4639 = vunpack.c.h.b16 %v4030
        %v4640 = vunpack.c.l.b16 %v4031
        %v4641 = vunpack.c.h.b16 %v4031
        %v4642 = vunpack.c.l.b16 %v4032
        %v4643 = vpack.c.b16 %v4288, %v4283
        %v4644 = vpack.c.b16 %v4289, %v4284
        %v4645 = vpack.c.b16 %v4290, %v4285
        %v4646 = vpack.c.b16 %v4291, %v4286
        %v4647 = vpack.c.b16 %v4292, %v4287
        %v4648 = vpack.c.b16 %v4298, %v4293
        %v4649 = vpack.c.b16 %v4299, %v4294
        %v4650 = vpack.c.b16 %v4300, %v4295
        %v4651 = vpack.c.b16 %v4301, %v4296
        %v4652 = vpack.c.b16 %v4302, %v4297
        %v4653 = vpack.c.b16 %v4308, %v4303
        %v4654 = vpack.c.b16 %v4309, %v4304
        %v4655 = vpack.c.b16 %v4310, %v4305
        %v4656 = vpack.c.b16 %v4311, %v4306
        %v4657 = vpack.c.b16 %v4312, %v4307
        %v4658 = vpack.c.b16 %v4318, %v4313
        %v4659 = vpack.c.b16 %v4319, %v4314
        %v4660 = vpack.c.b16 %v4320, %v4315
        %v4661 = vpack.c.b16 %v4321, %v4316
        %v4662 = vpack.c.b16 %v4322, %v4317
        %v4663 = vpack.c.b16 %v4328, %v4323
        %v4664 = vpack.c.b16 %v4329, %v4324
        %v4665 = vpack.c.b16 %v4330, %v4325
        %v4666 = vpack.c.b16 %v4331, %v4326
        %v4667 = vpack.c.b16 %v4332, %v4327
        %v4668 = vpack.c.b16 %v4338, %v4333
        %v4669 = vpack.c.b16 %v4339, %v4334
        %v4670 = vpack.c.b16 %v4340, %v4335
        %v4671 = vpack.c.b16 %v4341, %v4336
        %v4672 = vpack.c.b16 %v4342, %v4337
        %v4673 = vpack.c.b16 %v4348, %v4343
        %v4674 = vpack.c.b16 %v4349, %v4344
        %v4675 = vpack.c.b16 %v4350, %v4345
        %v4676 = vpack.c.b16 %v4351, %v4346
        %v4677 = vpack.c.b16 %v4352, %v4347
        %v4678 = vpack.c.b16 %v4358, %v4353
        %v4679 = vpack.c.b16 %v4359, %v4354
        %v4680 = vpack.c.b16 %v4360, %v4355
        %v4681 = vpack.c.b16 %v4361, %v4356
        %v4682 = vpack.c.b16 %v4362, %v4357
        %v4683 = vpack.c.b16 %v4368, %v4363
        %v4684 = vpack.c.b16 %v4369, %v4364
        %v4685 = vpack.c.b16 %v4370, %v4365
        %v4686 = vpack.c.b16 %v4371, %v4366
        %v4687 = vpack.c.b16 %v4372, %v4367
        %v4688 = vpack.c.b16 %v4378, %v4373
        %v4689 = vpack.c.b16 %v4379, %v4374
        %v4690 = vpack.c.b16 %v4380, %v4375
        %v4691 = vpack.c.b16 %v4381, %v4376
        %v4692 = vpack.c.b16 %v4382, %v4377
        %v4693 = vpack.c.b16 %v4388, %v4383
        %v4694 = vpack.c.b16 %v4389, %v4384
        %v4695 = vpack.c.b16 %v4390, %v4385
        %v4696 = vpack.c.b16 %v4391, %v4386
        %v4697 = vpack.c.b16 %v4392, %v4387
        %v4698 = vpack.c.b16 %v4398, %v4393
        %v4699 = vpack.c.b16 %v4399, %v4394
        %v4700 = vpack.c.b16 %v4400, %v4395
        %v4701 = vpack.c.b16 %v4401, %v4396
        %v4702 = vpack.c.b16 %v4402, %v4397
        %v4703 = vpack.c.b16 %v4408, %v4403
        %v4704 = vpack.c.b16 %v4409, %v4404
        %v4705 = vpack.c.b16 %v4410, %v4405
        %v4706 = vpack.c.b16 %v4411, %v4406
        %v4707 = vpack.c.b16 %v4412, %v4407
        %v4708 = vpack.c.b16 %v4418, %v4413
        %v4709 = vpack.c.b16 %v4419, %v4414
        %v4710 = vpack.c.b16 %v4420, %v4415
        %v4711 = vpack.c.b16 %v4421, %v4416
        %v4712 = vpack.c.b16 %v4422, %v4417
        %v4713 = vpack.c.b16 %v4428, %v4423
        %v4714 = vpack.c.b16 %v4429, %v4424
        %v4715 = vpack.c.b16 %v4430, %v4425
        %v4716 = vpack.c.b16 %v4431, %v4426
        %v4717 = vpack.c.b16 %v4432, %v4427
        %v4718 = vpack.c.b16 %v4438, %v4433
        %v4719 = vpack.c.b16 %v4439, %v4434
        %v4720 = vpack.c.b16 %v4440, %v4435
        %v4721 = vpack.c.b16 %v4441, %v4436
        %v4722 = vpack.c.b16 %v4442, %v4437
        %v4723 = vpack.c.b16 %v4448, %v4443
        %v4724 = vpack.c.b16 %v4449, %v4444
        %v4725 = vpack.c.b16 %v4450, %v4445
        %v4726 = vpack.c.b16 %v4451, %v4446
        %v4727 = vpack.c.b16 %v4452, %v4447
        %v4728 = vpack.c.b16 %v4458, %v4453
        %v4729 = vpack.c.b16 %v4459, %v4454
        %v4730 = vpack.c.b16 %v4460, %v4455
        %v4731 = vpack.c.b16 %v4461, %v4456
        %v4732 = vpack.c.b16 %v4462, %v4457
        %v4733 = vpack.c.b16 %v4468, %v4463
        %v4734 = vpack.c.b16 %v4469, %v4464
        %v4735 = vpack.c.b16 %v4470, %v4465
        %v4736 = vpack.c.b16 %v4471, %v4466
        %v4737 = vpack.c.b16 %v4472, %v4467
        %v4738 = vpack.c.b16 %v4478, %v4473
        %v4739 = vpack.c.b16 %v4479, %v4474
        %v4740 = vpack.c.b16 %v4480, %v4475
        %v4741 = vpack.c.b16 %v4481, %v4476
        %v4742 = vpack.c.b16 %v4482, %v4477
        %v4743 = vpack.c.b16 %v4488, %v4483
        %v4744 = vpack.c.b16 %v4489, %v4484
        %v4745 = vpack.c.b16 %v4490, %v4485
        %v4746 = vpack.c.b16 %v4491, %v4486
        %v4747 = vpack.c.b16 %v4492, %v4487
        %v4748 = vpack.c.b16 %v4498, %v4493
        %v4749 = vpack.c.b16 %v4499, %v4494
        %v4750 = vpack.c.b16 %v4500, %v4495
        %v4751 = vpack.c.b16 %v4501, %v4496
        %v4752 = vpack.c.b16 %v4502, %v4497
        %v4753 = vpack.c.b16 %v4508, %v4503
        %v4754 = vpack.c.b16 %v4509, %v4504
        %v4755 = vpack.c.b16 %v4510, %v4505
        %v4756 = vpack.c.b16 %v4511, %v4506
        %v4757 = vpack.c.b16 %v4512, %v4507
        %v4758 = vpack.c.b16 %v4518, %v4513
        %v4759 = vpack.c.b16 %v4519, %v4514
        %v4760 = vpack.c.b16 %v4520, %v4515
        %v4761 = vpack.c.b16 %v4521, %v4516
        %v4762 = vpack.c.b16 %v4522, %v4517
        %v4763 = vpack.c.b16 %v4528, %v4523
        %v4764 = vpack.c.b16 %v4529, %v4524
        %v4765 = vpack.c.b16 %v4530, %v4525
        %v4766 = vpack.c.b16 %v4531, %v4526
        %v4767 = vpack.c.b16 %v4532, %v4527
        %v4768 = vpack.c.b16 %v4538, %v4533
        %v4769 = vpack.c.b16 %v4539, %v4534
        %v4770 = vpack.c.b16 %v4540, %v4535
        %v4771 = vpack.c.b16 %v4541, %v4536
        %v4772 = vpack.c.b16 %v4542, %v4537
        %v4773 = vpack.c.b16 %v4548, %v4543
        %v4774 = vpack.c.b16 %v4549, %v4544
        %v4775 = vpack.c.b16 %v4550, %v4545
        %v4776 = vpack.c.b16 %v4551, %v4546
        %v4777 = vpack.c.b16 %v4552, %v4547
        %v4778 = vpack.c.b16 %v4558, %v4553
        %v4779 = vpack.c.b16 %v4559, %v4554
        %v4780 = vpack.c.b16 %v4560, %v4555
        %v4781 = vpack.c.b16 %v4561, %v4556
        %v4782 = vpack.c.b16 %v4562, %v4557
        %v4783 = vpack.c.b16 %v4568, %v4563
        %v4784 = vpack.c.b16 %v4569, %v4564
        %v4785 = vpack.c.b16 %v4570, %v4565
        %v4786 = vpack.c.b16 %v4571, %v4566
        %v4787 = vpack.c.b16 %v4572, %v4567
        %v4788 = vpack.c.b16 %v4578, %v4573
        %v4789 = vpack.c.b16 %v4579, %v4574
        %v4790 = vpack.c.b16 %v4580, %v4575
        %v4791 = vpack.c.b16 %v4581, %v4576
        %v4792 = vpack.c.b16 %v4582, %v4577
        %v4793 = vpack.c.b16 %v4588, %v4583
        %v4794 = vpack.c.b16 %v4589, %v4584
        %v4795 = vpack.c.b16 %v4590, %v4585
        %v4796 = vpack.c.b16 %v4591, %v4586
        %v4797 = vpack.c.b16 %v4592, %v4587
        %v4798 = vpack.c.b16 %v4598, %v4593
        %v4799 = vpack.c.b16 %v4599, %v4594
        %v4800 = vpack.c.b16 %v4600, %v4595
        %v4801 = vpack.c.b16 %v4601, %v4596
        %v4802 = vpack.c.b16 %v4602, %v4597
        %v4803 = vpack.c.b16 %v4608, %v4603
        %v4804 = vpack.c.b16 %v4609, %v4604
        %v4805 = vpack.c.b16 %v4610, %v4605
        %v4806 = vpack.c.b16 %v4611, %v4606
        %v4807 = vpack.c.b16 %v4612, %v4607
        %v4808 = vpack.c.b16 %v4618, %v4613
        %v4809 = vpack.c.b16 %v4619, %v4614
        %v4810 = vpack.c.b16 %v4620, %v4615
        %v4811 = vpack.c.b16 %v4621, %v4616
        %v4812 = vpack.c.b16 %v4622, %v4617
        %v4813 = vpack.c.b16 %v4628, %v4623
        %v4814 = vpack.c.b16 %v4629, %v4624
        %v4815 = vpack.c.b16 %v4630, %v4625
        %v4816 = vpack.c.b16 %v4631, %v4626
        %v4817 = vpack.c.b16 %v4632, %v4627
        %v4818 = vpack.c.b16 %v4638, %v4633
        %v4819 = vpack.c.b16 %v4639, %v4634
        %v4820 = vpack.c.b16 %v4640, %v4635
        %v4821 = vpack.c.b16 %v4641, %v4636
        %v4822 = vpack.c.b16 %v4642, %v4637
        %v5004 = vsel %vm1969, %v4058, 0
        %v5007 = vsel %vm1969, %v4057, 0
        %5009 = vmatprep.subr.bf16.mxu0 %v4679
        %5010 = vmatpush1.bf16.msra.mxu0 %v4678
        %5011 = vmatprep.subr.bf16.mxu0 %v4674
        %5012 = vmatpush1.bf16.msra.mxu0 %v4673
        %5013 = vmatprep.subr.bf16.mxu0 %v4669
        %5014 = vmatpush1.bf16.msra.mxu0 %v4668
        %5015 = vmatprep.subr.bf16.mxu0 %v4664
        %5016 = vmatpush1.bf16.msra.mxu0 %v4663
        %5017 = vmatprep.subr.bf16.mxu0 %v4659
        %5018 = vmatpush1.bf16.msra.mxu0 %v4658
        %5019 = vmatprep.subr.bf16.mxu0 %v4654
        %5020 = vmatpush1.bf16.msra.mxu0 %v4653
        %5021 = vmatprep.subr.bf16.mxu0 %v4649
        %5022 = vmatpush1.bf16.msra.mxu0 %v4648
        %5023 = vmatprep.subr.bf16.mxu0 %v4644
        %5024 = vmatpush1.bf16.msra.mxu0 %v4643
        %5025 = vmatprep.subr.bf16.mxu0 %v4719
        %5026 = vmatpush2.bf16.msra.mxu0 %v4718
        %5027 = vmatprep.subr.bf16.mxu0 %v4714
        %5028 = vmatpush2.bf16.msra.mxu0 %v4713
        %5029 = vmatprep.subr.bf16.mxu0 %v4709
        %5030 = vmatpush2.bf16.msra.mxu0 %v4708
        %5031 = vmatprep.subr.bf16.mxu0 %v4704
        %5032 = vmatpush2.bf16.msra.mxu0 %v4703
        %5033 = vmatprep.subr.bf16.mxu0 %v4699
        %5034 = vmatpush2.bf16.msra.mxu0 %v4698
        %5035 = vmatprep.subr.bf16.mxu0 %v4694
        %5036 = vmatpush2.bf16.msra.mxu0 %v4693
        %5037 = vmatprep.subr.bf16.mxu0 %v4689
        %5038 = vmatpush2.bf16.msra.mxu0 %v4688
        %5039 = vmatprep.subr.bf16.mxu0 %v4684
        %5040 = vmatpush2.bf16.msra.mxu0 %v4683
        %5041 = vmatprep.mubr.bf16.mxu0 %v4049
        %5042 = vmatmul.mubr.bf16.gmra.mxu0 %v4046
        %v5043 = vpop.f32.mrf.mxu0
        %v5044 = vadd.f32 0.0, %v5043
        %v5045 = vpop.f32.mrf.mxu0
        %v5046 = vadd.f32 0.0, %v5045
        %v5047 = vpop.f32.mrf.mxu0
        %v5048 = vadd.f32 0.0, %v5047
        %v5049 = vpop.f32.mrf.mxu0
        %v5050 = vadd.f32 0.0, %v5049
        %5051 = vmatprep.mubr.bf16.mxu0 %v4048
        %5052 = vmatmul.mubr.bf16.gmra.mxu0 %v4045
        %v5053 = vpop.f32.mrf.mxu0
        %v5054 = vadd.f32 0.0, %v5053
        %v5055 = vpop.f32.mrf.mxu0
        %v5056 = vadd.f32 0.0, %v5055
        %v5057 = vpop.f32.mrf.mxu0
        %v5058 = vpop.f32.mrf.mxu0
        %5059 = vdwg.mxu0
        %5060 = vmatprep.subr.bf16.mxu0 %v4759
        %5061 = vmatpush1.bf16.msra.mxu0 %v4758
        %5062 = vmatprep.subr.bf16.mxu0 %v4754
        %5063 = vmatpush1.bf16.msra.mxu0 %v4753
        %5064 = vmatprep.subr.bf16.mxu0 %v4749
        %5065 = vmatpush1.bf16.msra.mxu0 %v4748
        %5066 = vmatprep.subr.bf16.mxu0 %v4744
        %5067 = vmatpush1.bf16.msra.mxu0 %v4743
        %5068 = vmatprep.subr.bf16.mxu0 %v4739
        %5069 = vmatpush1.bf16.msra.mxu0 %v4738
        %5070 = vmatprep.subr.bf16.mxu0 %v4734
        %5071 = vmatpush1.bf16.msra.mxu0 %v4733
        %5072 = vmatprep.subr.bf16.mxu0 %v4729
        %5073 = vmatpush1.bf16.msra.mxu0 %v4728
        %5074 = vmatprep.subr.bf16.mxu0 %v4724
        %5075 = vmatpush1.bf16.msra.mxu0 %v4723
        %5076 = vmatprep.subr.bf16.mxu0 %v4799
        %5077 = vmatpush2.bf16.msra.mxu0 %v4798
        %5078 = vmatprep.subr.bf16.mxu0 %v4794
        %5079 = vmatpush2.bf16.msra.mxu0 %v4793
        %5080 = vmatprep.subr.bf16.mxu0 %v4789
        %5081 = vmatpush2.bf16.msra.mxu0 %v4788
        %5082 = vmatprep.subr.bf16.mxu0 %v4784
        %5083 = vmatpush2.bf16.msra.mxu0 %v4783
        %5084 = vmatprep.subr.bf16.mxu0 %v4779
        %5085 = vmatpush2.bf16.msra.mxu0 %v4778
        %5086 = vmatprep.subr.bf16.mxu0 %v4774
        %5087 = vmatpush2.bf16.msra.mxu0 %v4773
        %5088 = vmatprep.subr.bf16.mxu0 %v4769
        %5089 = vmatpush2.bf16.msra.mxu0 %v4768
        %5090 = vmatprep.subr.bf16.mxu0 %v4764
        %5091 = vmatpush2.bf16.msra.mxu0 %v4763
        %5092 = vmatprep.mubr.bf16.mxu0 %v4055
        %5093 = vmatmul.mubr.bf16.gmra.mxu0 %v4052
        %v5094 = vpop.f32.mrf.mxu0
        %v5095 = vadd.f32 %v5044, %v5094
        %v5096 = vpop.f32.mrf.mxu0
        %v5097 = vadd.f32 %v5046, %v5096
        %v5098 = vpop.f32.mrf.mxu0
        %v5099 = vadd.f32 %v5048, %v5098
        %v5100 = vpop.f32.mrf.mxu0
        %v5101 = vadd.f32 %v5050, %v5100
        %5102 = vmatprep.mubr.bf16.mxu0 %v4054
        %5103 = vmatmul.mubr.bf16.gmra.mxu0 %v4051
        %v5104 = vpop.f32.mrf.mxu0
        %v5105 = vadd.f32 %v5054, %v5104
        %v5106 = vpop.f32.mrf.mxu0
        %v5107 = vadd.f32 %v5056, %v5106
        %v5108 = vpop.f32.mrf.mxu0
        %v5109 = vpop.f32.mrf.mxu0
        %5110 = vdwg.mxu0
        %5111 = vmatprep.subr.bf16.mxu0 0
        %5112 = vmatpush1.bf16.msra.mxu0 0
        %5113 = vmatprep.subr.bf16.mxu0 0
        %5114 = vmatpush1.bf16.msra.mxu0 0
        %5115 = vmatprep.subr.bf16.mxu0 0
        %5116 = vmatpush1.bf16.msra.mxu0 0
        %5117 = vmatprep.subr.bf16.mxu0 0
        %5118 = vmatpush1.bf16.msra.mxu0 0
        %5119 = vmatprep.subr.bf16.mxu0 %v4819
        %5120 = vmatpush1.bf16.msra.mxu0 %v4818
        %5121 = vmatprep.subr.bf16.mxu0 %v4814
        %5122 = vmatpush1.bf16.msra.mxu0 %v4813
        %5123 = vmatprep.subr.bf16.mxu0 %v4809
        %5124 = vmatpush1.bf16.msra.mxu0 %v4808
        %5125 = vmatprep.subr.bf16.mxu0 %v4804
        %5126 = vmatpush1.bf16.msra.mxu0 %v4803
        %5127 = vmatprep.subr.bf16.mxu0 0
        %5128 = vmatpush2.bf16.msra.mxu0 0
        %5129 = vmatprep.subr.bf16.mxu0 0
        %5130 = vmatpush2.bf16.msra.mxu0 0
        %5131 = vmatprep.subr.bf16.mxu0 0
        %5132 = vmatpush2.bf16.msra.mxu0 0
        %5133 = vmatprep.subr.bf16.mxu0 0
        %5134 = vmatpush2.bf16.msra.mxu0 0
        %5135 = vmatprep.subr.bf16.mxu0 0
        %5136 = vmatpush2.bf16.msra.mxu0 0
        %5137 = vmatprep.subr.bf16.mxu0 0
        %5138 = vmatpush2.bf16.msra.mxu0 0
        %5139 = vmatprep.subr.bf16.mxu0 0
        %5140 = vmatpush2.bf16.msra.mxu0 0
        %5141 = vmatprep.subr.bf16.mxu0 0
        %5142 = vmatpush2.bf16.msra.mxu0 0
        %5143 = vmatprep.mubr.bf16.mxu0 0
        %5144 = vmatmul.mubr.bf16.gmra.mxu0 %v5004
        %v5145 = vpop.f32.mrf.mxu0
        %v5146 = vadd.f32 %v5095, %v5145
        %v5147 = vpop.f32.mrf.mxu0
        %v5148 = vadd.f32 %v5097, %v5147
        %v5149 = vpop.f32.mrf.mxu0
        %v5150 = vadd.f32 %v5099, %v5149
        %v5151 = vpop.f32.mrf.mxu0
        %v5152 = vadd.f32 %v5101, %v5151
        %5153 = vmatprep.mubr.bf16.mxu0 0
        %5154 = vmatmul.mubr.bf16.gmra.mxu0 %v5007
        %v5155 = vpop.f32.mrf.mxu0
        %v5156 = vadd.f32 %v5105, %v5155
        %v5157 = vpop.f32.mrf.mxu0
        %v5158 = vadd.f32 %v5107, %v5157
        %v5159 = vpop.f32.mrf.mxu0
        %v5160 = vpop.f32.mrf.mxu0
        %5161 = vdwg.mxu0
        %5162 = vmatprep.subr.bf16.mxu0 %v4681
        %5163 = vmatpush1.bf16.msra.mxu0 %v4680
        %5164 = vmatprep.subr.bf16.mxu0 %v4676
        %5165 = vmatpush1.bf16.msra.mxu0 %v4675
        %5166 = vmatprep.subr.bf16.mxu0 %v4671
        %5167 = vmatpush1.bf16.msra.mxu0 %v4670
        %5168 = vmatprep.subr.bf16.mxu0 %v4666
        %5169 = vmatpush1.bf16.msra.mxu0 %v4665
        %5170 = vmatprep.subr.bf16.mxu0 %v4661
        %5171 = vmatpush1.bf16.msra.mxu0 %v4660
        %5172 = vmatprep.subr.bf16.mxu0 %v4656
        %5173 = vmatpush1.bf16.msra.mxu0 %v4655
        %5174 = vmatprep.subr.bf16.mxu0 %v4651
        %5175 = vmatpush1.bf16.msra.mxu0 %v4650
        %5176 = vmatprep.subr.bf16.mxu0 %v4646
        %5177 = vmatpush1.bf16.msra.mxu0 %v4645
        %5178 = vmatprep.subr.bf16.mxu0 %v4721
        %5179 = vmatpush2.bf16.msra.mxu0 %v4720
        %5180 = vmatprep.subr.bf16.mxu0 %v4716
        %5181 = vmatpush2.bf16.msra.mxu0 %v4715
        %5182 = vmatprep.subr.bf16.mxu0 %v4711
        %5183 = vmatpush2.bf16.msra.mxu0 %v4710
        %5184 = vmatprep.subr.bf16.mxu0 %v4706
        %5185 = vmatpush2.bf16.msra.mxu0 %v4705
        %5186 = vmatprep.subr.bf16.mxu0 %v4701
        %5187 = vmatpush2.bf16.msra.mxu0 %v4700
        %5188 = vmatprep.subr.bf16.mxu0 %v4696
        %5189 = vmatpush2.bf16.msra.mxu0 %v4695
        %5190 = vmatprep.subr.bf16.mxu0 %v4691
        %5191 = vmatpush2.bf16.msra.mxu0 %v4690
        %5192 = vmatprep.subr.bf16.mxu0 %v4686
        %5193 = vmatpush2.bf16.msra.mxu0 %v4685
        %5194 = vmatprep.mubr.bf16.mxu0 %v4049
        %5195 = vmatmul.mubr.bf16.gmra.mxu0 %v4046
        %v5196 = vpop.f32.mrf.mxu0
        %v5197 = vadd.f32 0.0, %v5196
        %v5198 = vpop.f32.mrf.mxu0
        %v5199 = vadd.f32 0.0, %v5198
        %v5200 = vpop.f32.mrf.mxu0
        %v5201 = vadd.f32 0.0, %v5200
        %v5202 = vpop.f32.mrf.mxu0
        %v5203 = vadd.f32 0.0, %v5202
        %5204 = vmatprep.mubr.bf16.mxu0 %v4048
        %5205 = vmatmul.mubr.bf16.gmra.mxu0 %v4045
        %v5206 = vpop.f32.mrf.mxu0
        %v5207 = vadd.f32 0.0, %v5206
        %v5208 = vpop.f32.mrf.mxu0
        %v5209 = vadd.f32 0.0, %v5208
        %v5210 = vpop.f32.mrf.mxu0
        %v5211 = vpop.f32.mrf.mxu0
        %5212 = vdwg.mxu0
        %5213 = vmatprep.subr.bf16.mxu0 %v4761
        %5214 = vmatpush1.bf16.msra.mxu0 %v4760
        %5215 = vmatprep.subr.bf16.mxu0 %v4756
        %5216 = vmatpush1.bf16.msra.mxu0 %v4755
        %5217 = vmatprep.subr.bf16.mxu0 %v4751
        %5218 = vmatpush1.bf16.msra.mxu0 %v4750
        %5219 = vmatprep.subr.bf16.mxu0 %v4746
        %5220 = vmatpush1.bf16.msra.mxu0 %v4745
        %5221 = vmatprep.subr.bf16.mxu0 %v4741
        %5222 = vmatpush1.bf16.msra.mxu0 %v4740
        %5223 = vmatprep.subr.bf16.mxu0 %v4736
        %5224 = vmatpush1.bf16.msra.mxu0 %v4735
        %5225 = vmatprep.subr.bf16.mxu0 %v4731
        %5226 = vmatpush1.bf16.msra.mxu0 %v4730
        %5227 = vmatprep.subr.bf16.mxu0 %v4726
        %5228 = vmatpush1.bf16.msra.mxu0 %v4725
        %5229 = vmatprep.subr.bf16.mxu0 %v4801
        %5230 = vmatpush2.bf16.msra.mxu0 %v4800
        %5231 = vmatprep.subr.bf16.mxu0 %v4796
        %5232 = vmatpush2.bf16.msra.mxu0 %v4795
        %5233 = vmatprep.subr.bf16.mxu0 %v4791
        %5234 = vmatpush2.bf16.msra.mxu0 %v4790
        %5235 = vmatprep.subr.bf16.mxu0 %v4786
        %5236 = vmatpush2.bf16.msra.mxu0 %v4785
        %5237 = vmatprep.subr.bf16.mxu0 %v4781
        %5238 = vmatpush2.bf16.msra.mxu0 %v4780
        %5239 = vmatprep.subr.bf16.mxu0 %v4776
        %5240 = vmatpush2.bf16.msra.mxu0 %v4775
        %5241 = vmatprep.subr.bf16.mxu0 %v4771
        %5242 = vmatpush2.bf16.msra.mxu0 %v4770
        %5243 = vmatprep.subr.bf16.mxu0 %v4766
        %5244 = vmatpush2.bf16.msra.mxu0 %v4765
        %5245 = vmatprep.mubr.bf16.mxu0 %v4055
        %5246 = vmatmul.mubr.bf16.gmra.mxu0 %v4052
        %v5247 = vpop.f32.mrf.mxu0
        %v5248 = vadd.f32 %v5197, %v5247
        %v5249 = vpop.f32.mrf.mxu0
        %v5250 = vadd.f32 %v5199, %v5249
        %v5251 = vpop.f32.mrf.mxu0
        %v5252 = vadd.f32 %v5201, %v5251
        %v5253 = vpop.f32.mrf.mxu0
        %v5254 = vadd.f32 %v5203, %v5253
        %5255 = vmatprep.mubr.bf16.mxu0 %v4054
        %5256 = vmatmul.mubr.bf16.gmra.mxu0 %v4051
        %v5257 = vpop.f32.mrf.mxu0
        %v5258 = vadd.f32 %v5207, %v5257
        %v5259 = vpop.f32.mrf.mxu0
        %v5260 = vadd.f32 %v5209, %v5259
        %v5261 = vpop.f32.mrf.mxu0
        %v5262 = vpop.f32.mrf.mxu0
        %5263 = vdwg.mxu0
        %5264 = vmatprep.subr.bf16.mxu0 0
        %5265 = vmatpush1.bf16.msra.mxu0 0
        %5266 = vmatprep.subr.bf16.mxu0 0
        %5267 = vmatpush1.bf16.msra.mxu0 0
        %5268 = vmatprep.subr.bf16.mxu0 0
        %5269 = vmatpush1.bf16.msra.mxu0 0
        %5270 = vmatprep.subr.bf16.mxu0 0
        %5271 = vmatpush1.bf16.msra.mxu0 0
        %5272 = vmatprep.subr.bf16.mxu0 %v4821
        %5273 = vmatpush1.bf16.msra.mxu0 %v4820
        %5274 = vmatprep.subr.bf16.mxu0 %v4816
        %5275 = vmatpush1.bf16.msra.mxu0 %v4815
        %5276 = vmatprep.subr.bf16.mxu0 %v4811
        %5277 = vmatpush1.bf16.msra.mxu0 %v4810
        %5278 = vmatprep.subr.bf16.mxu0 %v4806
        %5279 = vmatpush1.bf16.msra.mxu0 %v4805
        %5280 = vmatprep.subr.bf16.mxu0 0
        %5281 = vmatpush2.bf16.msra.mxu0 0
        %5282 = vmatprep.subr.bf16.mxu0 0
        %5283 = vmatpush2.bf16.msra.mxu0 0
        %5284 = vmatprep.subr.bf16.mxu0 0
        %5285 = vmatpush2.bf16.msra.mxu0 0
        %5286 = vmatprep.subr.bf16.mxu0 0
        %5287 = vmatpush2.bf16.msra.mxu0 0
        %5288 = vmatprep.subr.bf16.mxu0 0
        %5289 = vmatpush2.bf16.msra.mxu0 0
        %5290 = vmatprep.subr.bf16.mxu0 0
        %5291 = vmatpush2.bf16.msra.mxu0 0
        %5292 = vmatprep.subr.bf16.mxu0 0
        %5293 = vmatpush2.bf16.msra.mxu0 0
        %5294 = vmatprep.subr.bf16.mxu0 0
        %5295 = vmatpush2.bf16.msra.mxu0 0
        %5296 = vmatprep.mubr.bf16.mxu0 0
        %5297 = vmatmul.mubr.bf16.gmra.mxu0 %v5004
        %v5298 = vpop.f32.mrf.mxu0
        %v5299 = vadd.f32 %v5248, %v5298
        %v5300 = vpop.f32.mrf.mxu0
        %v5301 = vadd.f32 %v5250, %v5300
        %v5302 = vpop.f32.mrf.mxu0
        %v5303 = vadd.f32 %v5252, %v5302
        %v5304 = vpop.f32.mrf.mxu0
        %v5305 = vadd.f32 %v5254, %v5304
        %5306 = vmatprep.mubr.bf16.mxu0 0
        %5307 = vmatmul.mubr.bf16.gmra.mxu0 %v5007
        %v5308 = vpop.f32.mrf.mxu0
        %v5309 = vadd.f32 %v5258, %v5308
        %v5310 = vpop.f32.mrf.mxu0
        %v5311 = vadd.f32 %v5260, %v5310
        %v5312 = vpop.f32.mrf.mxu0
        %v5313 = vpop.f32.mrf.mxu0
        %5314 = vdwg.mxu0
        %5315 = vmatprep.subr.bf16.mxu0 0
        %5316 = vmatpush1.bf16.msra.mxu0 %v4682
        %5317 = vmatprep.subr.bf16.mxu0 0
        %5318 = vmatpush1.bf16.msra.mxu0 %v4677
        %5319 = vmatprep.subr.bf16.mxu0 0
        %5320 = vmatpush1.bf16.msra.mxu0 %v4672
        %5321 = vmatprep.subr.bf16.mxu0 0
        %5322 = vmatpush1.bf16.msra.mxu0 %v4667
        %5323 = vmatprep.subr.bf16.mxu0 0
        %5324 = vmatpush1.bf16.msra.mxu0 %v4662
        %5325 = vmatprep.subr.bf16.mxu0 0
        %5326 = vmatpush1.bf16.msra.mxu0 %v4657
        %5327 = vmatprep.subr.bf16.mxu0 0
        %5328 = vmatpush1.bf16.msra.mxu0 %v4652
        %5329 = vmatprep.subr.bf16.mxu0 0
        %5330 = vmatpush1.bf16.msra.mxu0 %v4647
        %5331 = vmatprep.subr.bf16.mxu0 0
        %5332 = vmatpush2.bf16.msra.mxu0 %v4722
        %5333 = vmatprep.subr.bf16.mxu0 0
        %5334 = vmatpush2.bf16.msra.mxu0 %v4717
        %5335 = vmatprep.subr.bf16.mxu0 0
        %5336 = vmatpush2.bf16.msra.mxu0 %v4712
        %5337 = vmatprep.subr.bf16.mxu0 0
        %5338 = vmatpush2.bf16.msra.mxu0 %v4707
        %5339 = vmatprep.subr.bf16.mxu0 0
        %5340 = vmatpush2.bf16.msra.mxu0 %v4702
        %5341 = vmatprep.subr.bf16.mxu0 0
        %5342 = vmatpush2.bf16.msra.mxu0 %v4697
        %5343 = vmatprep.subr.bf16.mxu0 0
        %5344 = vmatpush2.bf16.msra.mxu0 %v4692
        %5345 = vmatprep.subr.bf16.mxu0 0
        %5346 = vmatpush2.bf16.msra.mxu0 %v4687
        %5347 = vmatprep.mubr.bf16.mxu0 %v4049
        %5348 = vmatmul.mubr.bf16.gmra.mxu0 %v4046
        %v5349 = vpop.f32.mrf.mxu0
        %v5350 = vadd.f32 0.0, %v5349
        %v5351 = vpop.f32.mrf.mxu0
        %v5352 = vpop.f32.mrf.mxu0
        %v5353 = vadd.f32 0.0, %v5352
        %v5354 = vpop.f32.mrf.mxu0
        %5355 = vmatprep.mubr.bf16.mxu0 %v4048
        %5356 = vmatmul.mubr.bf16.gmra.mxu0 %v4045
        %v5357 = vpop.f32.mrf.mxu0
        %v5358 = vadd.f32 0.0, %v5357
        %v5359 = vpop.f32.mrf.mxu0
        %v5360 = vpop.f32.mrf.mxu0
        %v5361 = vpop.f32.mrf.mxu0
        %5362 = vdwg.mxu0
        %5363 = vmatprep.subr.bf16.mxu0 0
        %5364 = vmatpush1.bf16.msra.mxu0 %v4762
        %5365 = vmatprep.subr.bf16.mxu0 0
        %5366 = vmatpush1.bf16.msra.mxu0 %v4757
        %5367 = vmatprep.subr.bf16.mxu0 0
        %5368 = vmatpush1.bf16.msra.mxu0 %v4752
        %5369 = vmatprep.subr.bf16.mxu0 0
        %5370 = vmatpush1.bf16.msra.mxu0 %v4747
        %5371 = vmatprep.subr.bf16.mxu0 0
        %5372 = vmatpush1.bf16.msra.mxu0 %v4742
        %5373 = vmatprep.subr.bf16.mxu0 0
        %5374 = vmatpush1.bf16.msra.mxu0 %v4737
        %5375 = vmatprep.subr.bf16.mxu0 0
        %5376 = vmatpush1.bf16.msra.mxu0 %v4732
        %5377 = vmatprep.subr.bf16.mxu0 0
        %5378 = vmatpush1.bf16.msra.mxu0 %v4727
        %5379 = vmatprep.subr.bf16.mxu0 0
        %5380 = vmatpush2.bf16.msra.mxu0 %v4802
        %5381 = vmatprep.subr.bf16.mxu0 0
        %5382 = vmatpush2.bf16.msra.mxu0 %v4797
        %5383 = vmatprep.subr.bf16.mxu0 0
        %5384 = vmatpush2.bf16.msra.mxu0 %v4792
        %5385 = vmatprep.subr.bf16.mxu0 0
        %5386 = vmatpush2.bf16.msra.mxu0 %v4787
        %5387 = vmatprep.subr.bf16.mxu0 0
        %5388 = vmatpush2.bf16.msra.mxu0 %v4782
        %5389 = vmatprep.subr.bf16.mxu0 0
        %5390 = vmatpush2.bf16.msra.mxu0 %v4777
        %5391 = vmatprep.subr.bf16.mxu0 0
        %5392 = vmatpush2.bf16.msra.mxu0 %v4772
        %5393 = vmatprep.subr.bf16.mxu0 0
        %5394 = vmatpush2.bf16.msra.mxu0 %v4767
        %5395 = vmatprep.mubr.bf16.mxu0 %v4055
        %5396 = vmatmul.mubr.bf16.gmra.mxu0 %v4052
        %v5397 = vpop.f32.mrf.mxu0
        %v5398 = vadd.f32 %v5350, %v5397
        %v5399 = vpop.f32.mrf.mxu0
        %v5400 = vpop.f32.mrf.mxu0
        %v5401 = vadd.f32 %v5353, %v5400
        %v5402 = vpop.f32.mrf.mxu0
        %5403 = vmatprep.mubr.bf16.mxu0 %v4054
        %5404 = vmatmul.mubr.bf16.gmra.mxu0 %v4051
        %v5405 = vpop.f32.mrf.mxu0
        %v5406 = vadd.f32 %v5358, %v5405
        %v5407 = vpop.f32.mrf.mxu0
        %v5408 = vpop.f32.mrf.mxu0
        %v5409 = vpop.f32.mrf.mxu0
        %5410 = vdwg.mxu0
        %5411 = vmatprep.subr.bf16.mxu0 0
        %5412 = vmatpush1.bf16.msra.mxu0 0
        %5413 = vmatprep.subr.bf16.mxu0 0
        %5414 = vmatpush1.bf16.msra.mxu0 0
        %5415 = vmatprep.subr.bf16.mxu0 0
        %5416 = vmatpush1.bf16.msra.mxu0 0
        %5417 = vmatprep.subr.bf16.mxu0 0
        %5418 = vmatpush1.bf16.msra.mxu0 0
        %5419 = vmatprep.subr.bf16.mxu0 0
        %5420 = vmatpush1.bf16.msra.mxu0 %v4822
        %5421 = vmatprep.subr.bf16.mxu0 0
        %5422 = vmatpush1.bf16.msra.mxu0 %v4817
        %5423 = vmatprep.subr.bf16.mxu0 0
        %5424 = vmatpush1.bf16.msra.mxu0 %v4812
        %5425 = vmatprep.subr.bf16.mxu0 0
        %5426 = vmatpush1.bf16.msra.mxu0 %v4807
        %5427 = vmatprep.subr.bf16.mxu0 0
        %5428 = vmatpush2.bf16.msra.mxu0 0
        %5429 = vmatprep.subr.bf16.mxu0 0
        %5430 = vmatpush2.bf16.msra.mxu0 0
        %5431 = vmatprep.subr.bf16.mxu0 0
        %5432 = vmatpush2.bf16.msra.mxu0 0
        %5433 = vmatprep.subr.bf16.mxu0 0
        %5434 = vmatpush2.bf16.msra.mxu0 0
        %5435 = vmatprep.subr.bf16.mxu0 0
        %5436 = vmatpush2.bf16.msra.mxu0 0
        %5437 = vmatprep.subr.bf16.mxu0 0
        %5438 = vmatpush2.bf16.msra.mxu0 0
        %5439 = vmatprep.subr.bf16.mxu0 0
        %5440 = vmatpush2.bf16.msra.mxu0 0
        %5441 = vmatprep.subr.bf16.mxu0 0
        %5442 = vmatpush2.bf16.msra.mxu0 0
        %5443 = vmatprep.mubr.bf16.mxu0 0
        %5444 = vmatmul.mubr.bf16.gmra.mxu0 %v5004
        %v5445 = vpop.f32.mrf.mxu0
        %v5446 = vadd.f32 %v5398, %v5445
        %v5447 = vpop.f32.mrf.mxu0
        %v5448 = vpop.f32.mrf.mxu0
        %v5449 = vadd.f32 %v5401, %v5448
        %v5450 = vpop.f32.mrf.mxu0
        %5451 = vmatprep.mubr.bf16.mxu0 0
        %5452 = vmatmul.mubr.bf16.gmra.mxu0 %v5007
        %v5453 = vpop.f32.mrf.mxu0
        %v5454 = vadd.f32 %v5406, %v5453
        %v5455 = vpop.f32.mrf.mxu0
        %v5456 = vpop.f32.mrf.mxu0
        %v5457 = vpop.f32.mrf.mxu0
        %5458 = vdwg.mxu0
        %v5459 = vadd.f32 %v3503, %v5146
        %v5460 = vadd.f32 %v3505, %v5148
        %v5461 = vadd.f32 %v3656, %v5299
        %v5462 = vadd.f32 %v3658, %v5301
        %v5463 = vadd.f32 %v3803, %v5446
        %v5464 = vadd.f32 %v3507, %v5150
        %v5465 = vadd.f32 %v3509, %v5152
        %v5466 = vadd.f32 %v3660, %v5303
        %v5467 = vadd.f32 %v3662, %v5305
        %v5468 = vadd.f32 %v3806, %v5449
        %v5469 = vadd.f32 %v3513, %v5156
        %v5470 = vadd.f32 %v3515, %v5158
        %v5471 = vadd.f32 %v3666, %v5309
        %v5472 = vadd.f32 %v3668, %v5311
        %v5473 = vadd.f32 %v3811, %v5454
        %v5474 = vld [vmem:[#allocation5] sm:$0x1f]
        %v5476 = vlaneseq
        %v5477 = vshrl.u32 %v5476, 7
        %v5478 = vsub.s32 0, %v5477
        %v5479 = vrot.slane %v5474, %v5478
        %v5480 = vlaneseq
        %v5481 = vshrl.u32 %v5480, 7
        %v5482 = vsub.s32 1, %v5481
        %v5483 = vrot.slane %v5474, %v5482
        %v5484 = vlaneseq
        %v5485 = vshrl.u32 %v5484, 7
        %v5486 = vsub.s32 2, %v5485
        %v5487 = vrot.slane %v5474, %v5486
        %v5488 = vlaneseq
        %v5489 = vshrl.u32 %v5488, 7
        %v5490 = vsub.s32 3, %v5489
        %v5491 = vrot.slane %v5474, %v5490
        %v5492 = vlaneseq
        %v5493 = vshrl.u32 %v5492, 7
        %v5494 = vsub.s32 4, %v5493
        %v5495 = vrot.slane %v5474, %v5494
        %v5501 = vadd.f32 %v5459, %v5479
        %v5502 = vadd.f32 %v5460, %v5483
        %v5503 = vadd.f32 %v5461, %v5487
        %v5504 = vadd.f32 %v5462, %v5491
        %v5505 = vadd.f32 %v5463, %v5495
        %v5506 = vadd.f32 %v5464, %v5479
        %v5507 = vadd.f32 %v5465, %v5483
        %v5508 = vadd.f32 %v5466, %v5487
        %v5509 = vadd.f32 %v5467, %v5491
        %v5510 = vadd.f32 %v5468, %v5495
        %v5511 = vadd.f32 %v5469, %v5479
        %v5512 = vadd.f32 %v5470, %v5483
        %v5513 = vadd.f32 %v5471, %v5487
        %v5514 = vadd.f32 %v5472, %v5491
        %v5515 = vadd.f32 %v5473, %v5495
        %vm5516 = vcmp.gt.f32.partialorder %v5501, 0.0
        %vm5517 = vcmp.gt.f32.partialorder %v5502, 0.0
        %vm5518 = vcmp.gt.f32.partialorder %v5503, 0.0
        %vm5519 = vcmp.gt.f32.partialorder %v5504, 0.0
        %vm5520 = vcmp.gt.f32.partialorder %v5505, 0.0
        %vm5521 = vcmp.gt.f32.partialorder %v5506, 0.0
        %vm5522 = vcmp.gt.f32.partialorder %v5507, 0.0
        %vm5523 = vcmp.gt.f32.partialorder %v5508, 0.0
        %vm5524 = vcmp.gt.f32.partialorder %v5509, 0.0
        %vm5525 = vcmp.gt.f32.partialorder %v5510, 0.0
        %vm5526 = vcmp.gt.f32.partialorder %v5511, 0.0
        %vm5527 = vcmp.gt.f32.partialorder %v5512, 0.0
        %vm5528 = vcmp.gt.f32.partialorder %v5513, 0.0
        %vm5529 = vcmp.gt.f32.partialorder %v5514, 0.0
        %vm5530 = vcmp.gt.f32.partialorder %v5515, 0.0
        %v5531 = vld [vmem:[#allocation10] sm:$0x1f]
        %v5533 = vlaneseq
        %v5534 = vshrl.u32 %v5533, 7
        %v5535 = vsub.s32 0, %v5534
        %v5536 = vrot.slane %v5531, %v5535
        %v5537 = vlaneseq
        %v5538 = vshrl.u32 %v5537, 7
        %v5539 = vsub.s32 1, %v5538
        %v5540 = vrot.slane %v5531, %v5539
        %v5541 = vlaneseq
        %v5542 = vshrl.u32 %v5541, 7
        %v5543 = vsub.s32 2, %v5542
        %v5544 = vrot.slane %v5531, %v5543
        %v5545 = vlaneseq
        %v5546 = vshrl.u32 %v5545, 7
        %v5547 = vsub.s32 3, %v5546
        %v5548 = vrot.slane %v5531, %v5547
        %v5549 = vlaneseq
        %v5550 = vshrl.u32 %v5549, 7
        %v5551 = vsub.s32 4, %v5550
        %v5552 = vrot.slane %v5531, %v5551
        %v5558 = vmul.f32 %v5536, %v5501
        %v5559 = vmul.f32 %v5540, %v5502
        %v5560 = vmul.f32 %v5544, %v5503
        %v5561 = vmul.f32 %v5548, %v5504
        %v5562 = vmul.f32 %v5552, %v5505
        %v5563 = vmul.f32 %v5536, %v5506
        %v5564 = vmul.f32 %v5540, %v5507
        %v5565 = vmul.f32 %v5544, %v5508
        %v5566 = vmul.f32 %v5548, %v5509
        %v5567 = vmul.f32 %v5552, %v5510
        %v5568 = vmul.f32 %v5536, %v5511
        %v5569 = vmul.f32 %v5540, %v5512
        %v5570 = vmul.f32 %v5544, %v5513
        %v5571 = vmul.f32 %v5548, %v5514
        %v5572 = vmul.f32 %v5552, %v5515
        %v5573 = vsel %vm5516, %v5501, %v5558
        %v5574 = vsel %vm5517, %v5502, %v5559
        %v5575 = vsel %vm5518, %v5503, %v5560
        %v5576 = vsel %vm5519, %v5504, %v5561
        %v5577 = vsel %vm5520, %v5505, %v5562
        %v5578 = vsel %vm5521, %v5506, %v5563
        %v5579 = vsel %vm5522, %v5507, %v5564
        %v5580 = vsel %vm5523, %v5508, %v5565
        %v5581 = vsel %vm5524, %v5509, %v5566
        %v5582 = vsel %vm5525, %v5510, %v5567
        %v5583 = vsel %vm5526, %v5511, %v5568
        %v5584 = vsel %vm5527, %v5512, %v5569
        %v5585 = vsel %vm5528, %v5513, %v5570
        %v5586 = vsel %vm5529, %v5514, %v5571
        %v5587 = vsel %vm5530, %v5515, %v5572
        %v5588 = vlaneseq
        %v5589 = vshrl.u32 %v5588, 7
        %v5590 = vadd.s32 %v5589, 8
        %v5591 = vadd.s32 %v5589, 16
        %vm5592 = vcmp.ge.s32.totalorder %v5589, 1
        %vm5593 = vcmp.ge.s32.totalorder %v5590, 1
        %vm5594 = vcmp.ge.s32.totalorder %v5591, 1
        %vm5595 = vcmp.le.s32.totalorder %v5589, 16
        %vm5596 = vcmp.le.s32.totalorder %v5590, 16
        %vm5597 = vcmp.le.s32.totalorder %v5591, 16
        %vm5598 = vmand %vm5592, %vm5595
        %vm5599 = vmand %vm5593, %vm5596
        %vm5600 = vmand %vm5594, %vm5597
        %v5601 = vsel %vm5598, 1, 0
        %v5602 = vsel %vm5599, 1, 0
        %v5603 = vsel %vm5600, 1, 0
        %vm5604 = vcmp.eq.s32.totalorder %v5601, 1
        %vm5605 = vcmp.eq.s32.totalorder %v5602, 1
        %vm5606 = vcmp.eq.s32.totalorder %v5603, 1
        %v5607 = vsel %vm5604, %v5573, 0.0
        %v5608 = vsel %vm5604, %v5574, 0.0
        %v5609 = vsel %vm5604, %v5575, 0.0
        %v5610 = vsel %vm5604, %v5576, 0.0
        %v5611 = vsel %vm5604, %v5577, 0.0
        %v5612 = vsel %vm5605, %v5578, 0.0
        %v5613 = vsel %vm5605, %v5579, 0.0
        %v5614 = vsel %vm5605, %v5580, 0.0
        %v5615 = vsel %vm5605, %v5581, 0.0
        %v5616 = vsel %vm5605, %v5582, 0.0
        %v5617 = vsel %vm5606, %v5583, 0.0
        %v5618 = vsel %vm5606, %v5584, 0.0
        %v5619 = vsel %vm5606, %v5585, 0.0
        %v5620 = vsel %vm5606, %v5586, 0.0
        %v5621 = vsel %vm5606, %v5587, 0.0
        %v5622 = vpack.c.bf16 %v5612, %v5607
        %v5623 = vpack.c.bf16 %v5613, %v5608
        %v5624 = vpack.c.bf16 %v5614, %v5609
        %v5625 = vpack.c.bf16 %v5615, %v5610
        %v5626 = vpack.c.bf16 %v5616, %v5611
        %v5627 = vld [vmem:[#allocation7] sm:$0xff]
        %v5628 = vld [vmem:[#allocation7 + $0x8] sm:$0xff]
        %v5629 = vld [vmem:[#allocation7 + $0x10] sm:$0xff]
        %v5630 = vld [vmem:[#allocation7 + $0x18] sm:$0xff]
        %v5631 = vld [vmem:[#allocation7 + $0x20] sm:$0xff]
        %v5632 = vld [vmem:[#allocation7 + $0x28] sm:$0xff]
        %v5633 = vld [vmem:[#allocation7 + $0x30] sm:$0xff]
        %v5634 = vld [vmem:[#allocation7 + $0x38] sm:$0xff]
        %v5635 = vld [vmem:[#allocation7 + $0x40] sm:$0xff]
        %v5636 = vld [vmem:[#allocation7 + $0x48] sm:$0xff]
        %v5637 = vld [vmem:[#allocation7 + $0x50] sm:$0xff]
        %v5638 = vld [vmem:[#allocation7 + $0x58] sm:$0xff]
        %v5639 = vld [vmem:[#allocation7 + $0x60] sm:$0xff]
        %v5640 = vld [vmem:[#allocation7 + $0x68] sm:$0xff]
        %v5641 = vld [vmem:[#allocation7 + $0x70] sm:$0xff]
        %v5642 = vld [vmem:[#allocation7 + $0x78] sm:$0xff]
        %v5643 = vld [vmem:[#allocation7 + $0x80] sm:$0xff]
        %v5644 = vld [vmem:[#allocation7 + $0x88] sm:$0xff]
        %v5645 = vld [vmem:[#allocation7 + $0x90] sm:$0xff]
        %v5646 = vld [vmem:[#allocation7 + $0x98] sm:$0xff]
        %v5647 = vld [vmem:[#allocation7 + $0xa0] sm:$0xff]
        %v5648 = vld [vmem:[#allocation7 + $0xa8] sm:$0xff]
        %v5649 = vld [vmem:[#allocation7 + $0xb0] sm:$0xff]
        %v5650 = vld [vmem:[#allocation7 + $0xb8] sm:$0xff]
        %v5651 = vld [vmem:[#allocation7 + $0xc0] sm:$0xff]
        %v5652 = vld [vmem:[#allocation7 + $0xc8] sm:$0xff]
        %v5653 = vld [vmem:[#allocation7 + $0xd0] sm:$0xff]
        %v5654 = vld [vmem:[#allocation7 + $0xd8] sm:$0xff]
        %v5655 = vld [vmem:[#allocation7 + $0xe0] sm:$0xff]
        %v5656 = vld [vmem:[#allocation7 + $0xe8] sm:$0xff]
        %v5657 = vld [vmem:[#allocation7 + $0xf0] sm:$0xff]
        %v5658 = vld [vmem:[#allocation7 + $0xf8] sm:$0xff]
        %v5659 = vld [vmem:[#allocation7 + $0x100] sm:$0xff]
        %v5660 = vld [vmem:[#allocation7 + $0x108] sm:$0xff]
        %v5661 = vld [vmem:[#allocation7 + $0x110] sm:$0xff]
        %v5662 = vld [vmem:[#allocation7 + $0x118] sm:$0xff]
        %v5663 = vld [vmem:[#allocation7 + $0x120] sm:$0xff]
        %v5664 = vld [vmem:[#allocation7 + $0x128] sm:$0xff]
        %v5665 = vld [vmem:[#allocation7 + $0x130] sm:$0xff]
        %v5666 = vld [vmem:[#allocation7 + $0x138] sm:$0xff]
        %v5667 = vld [vmem:[#allocation7 + $0x140] sm:$0xff]
        %v5668 = vld [vmem:[#allocation7 + $0x148] sm:$0xff]
        %v5669 = vld [vmem:[#allocation7 + $0x150] sm:$0xff]
        %v5670 = vld [vmem:[#allocation7 + $0x158] sm:$0xff]
        %v5671 = vld [vmem:[#allocation7 + $0x160] sm:$0xff]
        %v5672 = vld [vmem:[#allocation7 + $0x168] sm:$0xff]
        %v5673 = vld [vmem:[#allocation7 + $0x170] sm:$0xff]
        %v5674 = vld [vmem:[#allocation7 + $0x178] sm:$0xff]
        %v5675 = vld [vmem:[#allocation7 + $0x180] sm:$0xff]
        %v5676 = vld [vmem:[#allocation7 + $0x188] sm:$0xff]
        %v5677 = vld [vmem:[#allocation7 + $0x190] sm:$0xff]
        %v5678 = vld [vmem:[#allocation7 + $0x198] sm:$0xff]
        %v5679 = vld [vmem:[#allocation7 + $0x1a0] sm:$0xff]
        %v5680 = vld [vmem:[#allocation7 + $0x1a8] sm:$0xff]
        %v5681 = vld [vmem:[#allocation7 + $0x1b0] sm:$0xff]
        %v5682 = vld [vmem:[#allocation7 + $0x1b8] sm:$0xff]
        %v5683 = vld [vmem:[#allocation7 + $0x1c0] sm:$0xff]
        %v5684 = vld [vmem:[#allocation7 + $0x1c8] sm:$0xff]
        %v5685 = vld [vmem:[#allocation7 + $0x1d0] sm:$0xff]
        %v5686 = vld [vmem:[#allocation7 + $0x1d8] sm:$0xff]
        %v5687 = vld [vmem:[#allocation7 + $0x1e0] sm:$0xff]
        %v5688 = vld [vmem:[#allocation7 + $0x1e8] sm:$0xff]
        %v5689 = vld [vmem:[#allocation7 + $0x1f0] sm:$0xff]
        %v5690 = vld [vmem:[#allocation7 + $0x1f8] sm:$0xff]
        %v5691 = vld [vmem:[#allocation7 + $0x200] sm:$0xff]
        %v5692 = vld [vmem:[#allocation7 + $0x208] sm:$0xff]
        %v5693 = vld [vmem:[#allocation7 + $0x210] sm:$0xff]
        %v5694 = vld [vmem:[#allocation7 + $0x218] sm:$0xff]
        %v5695 = vld [vmem:[#allocation7 + $0x220] sm:$0xff]
        %v5696 = vld [vmem:[#allocation7 + $0x228] sm:$0xff]
        %v5697 = vld [vmem:[#allocation7 + $0x230] sm:$0xff]
        %v5698 = vld [vmem:[#allocation7 + $0x238] sm:$0xff]
        %v5699 = vld [vmem:[#allocation7 + $0x240] sm:$0xff]
        %v5700 = vld [vmem:[#allocation7 + $0x248] sm:$0xff]
        %v5701 = vld [vmem:[#allocation7 + $0x250] sm:$0xff]
        %v5702 = vld [vmem:[#allocation7 + $0x258] sm:$0xff]
        %v5703 = vld [vmem:[#allocation7 + $0x260] sm:$0xff]
        %v5704 = vld [vmem:[#allocation7 + $0x268] sm:$0xff]
        %v5705 = vld [vmem:[#allocation7 + $0x270] sm:$0xff]
        %v5706 = vld [vmem:[#allocation7 + $0x278] sm:$0xff]
        %v5707 = vld [vmem:[#allocation7 + $0x280] sm:$0xff]
        %v5708 = vld [vmem:[#allocation7 + $0x288] sm:$0xff]
        %v5709 = vld [vmem:[#allocation7 + $0x290] sm:$0xff]
        %v5710 = vld [vmem:[#allocation7 + $0x298] sm:$0xff]
        %v5711 = vld [vmem:[#allocation7 + $0x2a0] sm:$0xff]
        %v5712 = vld [vmem:[#allocation7 + $0x2a8] sm:$0xff]
        %v5713 = vld [vmem:[#allocation7 + $0x2b0] sm:$0xff]
        %v5714 = vld [vmem:[#allocation7 + $0x2b8] sm:$0xff]
        %v5715 = vld [vmem:[#allocation7 + $0x2c0] sm:$0xff]
        %v5716 = vld [vmem:[#allocation7 + $0x2c8] sm:$0xff]
        %v5717 = vld [vmem:[#allocation7 + $0x2d0] sm:$0xff]
        %v5718 = vld [vmem:[#allocation7 + $0x2d8] sm:$0xff]
        %v5719 = vld [vmem:[#allocation7 + $0x2e0] sm:$0xff]
        %v5720 = vld [vmem:[#allocation7 + $0x2e8] sm:$0xff]
        %v5721 = vld [vmem:[#allocation7 + $0x2f0] sm:$0xff]
        %v5722 = vld [vmem:[#allocation7 + $0x2f8] sm:$0xff]
        %v5723 = vld [vmem:[#allocation7 + $0x300] sm:$0xff]
        %v5724 = vld [vmem:[#allocation7 + $0x308] sm:$0xff]
        %v5725 = vld [vmem:[#allocation7 + $0x310] sm:$0xff]
        %v5726 = vld [vmem:[#allocation7 + $0x318] sm:$0xff]
        %v5727 = vld [vmem:[#allocation7 + $0x320] sm:$0xff]
        %v5728 = vld [vmem:[#allocation7 + $0x328] sm:$0xff]
        %v5729 = vld [vmem:[#allocation7 + $0x330] sm:$0xff]
        %v5730 = vld [vmem:[#allocation7 + $0x338] sm:$0xff]
        %v5731 = vld [vmem:[#allocation7 + $0x340] sm:$0xff]
        %v5732 = vld [vmem:[#allocation7 + $0x348] sm:$0xff]
        %v5733 = vld [vmem:[#allocation7 + $0x350] sm:$0xff]
        %v5734 = vld [vmem:[#allocation7 + $0x358] sm:$0xff]
        %v5735 = vld [vmem:[#allocation7 + $0x360] sm:$0xff]
        %v5736 = vld [vmem:[#allocation7 + $0x368] sm:$0xff]
        %v5737 = vld [vmem:[#allocation7 + $0x370] sm:$0xff]
        %v5738 = vld [vmem:[#allocation7 + $0x378] sm:$0xff]
        %v5739 = vld [vmem:[#allocation7 + $0x380] sm:$0xff]
        %v5740 = vld [vmem:[#allocation7 + $0x388] sm:$0xff]
        %v5741 = vld [vmem:[#allocation7 + $0x390] sm:$0xff]
        %v5742 = vld [vmem:[#allocation7 + $0x398] sm:$0xff]
        %v5743 = vld [vmem:[#allocation7 + $0x3a0] sm:$0xff]
        %v5744 = vld [vmem:[#allocation7 + $0x3a8] sm:$0xff]
        %v5745 = vld [vmem:[#allocation7 + $0x3b0] sm:$0xff]
        %v5746 = vld [vmem:[#allocation7 + $0x3b8] sm:$0xff]
        %v5747 = vld [vmem:[#allocation7 + $0x3c0] sm:$0xff]
        %v5748 = vld [vmem:[#allocation7 + $0x3c8] sm:$0xff]
        %v5749 = vld [vmem:[#allocation7 + $0x3d0] sm:$0xff]
        %v5750 = vld [vmem:[#allocation7 + $0x3d8] sm:$0xff]
        %v5751 = vld [vmem:[#allocation7 + $0x3e0] sm:$0xff]
        %v5752 = vld [vmem:[#allocation7 + $0x3e8] sm:$0xff]
        %v5753 = vld [vmem:[#allocation7 + $0x3f0] sm:$0xff]
        %v5754 = vld [vmem:[#allocation7 + $0x3f8] sm:$0xff]
        %v5755 = vld [vmem:[#allocation7 + $0x400] sm:$0xff]
        %v5756 = vld [vmem:[#allocation7 + $0x408] sm:$0xff]
        %v5757 = vld [vmem:[#allocation7 + $0x410] sm:$0xff]
        %v5758 = vld [vmem:[#allocation7 + $0x418] sm:$0xff]
        %v5759 = vld [vmem:[#allocation7 + $0x420] sm:$0xff]
        %v5760 = vld [vmem:[#allocation7 + $0x428] sm:$0xff]
        %v5761 = vld [vmem:[#allocation7 + $0x430] sm:$0xff]
        %v5762 = vld [vmem:[#allocation7 + $0x438] sm:$0xff]
        %v5763 = vld [vmem:[#allocation7 + $0x440] sm:$0xff]
        %v5764 = vld [vmem:[#allocation7 + $0x448] sm:$0xff]
        %v5765 = vld [vmem:[#allocation7 + $0x450] sm:$0xff]
        %v5766 = vld [vmem:[#allocation7 + $0x458] sm:$0xff]
        %v5767 = vld [vmem:[#allocation7 + $0x460] sm:$0xff]
        %v5768 = vld [vmem:[#allocation7 + $0x468] sm:$0xff]
        %v5769 = vld [vmem:[#allocation7 + $0x470] sm:$0xff]
        %v5770 = vld [vmem:[#allocation7 + $0x478] sm:$0xff]
        %v5771 = vpack.c.bf16 %v5617, %v5617
        %v5772 = vpack.c.bf16 %v5618, %v5618
        %v5773 = vpack.c.bf16 %v5619, %v5619
        %v5774 = vpack.c.bf16 %v5620, %v5620
        %v5775 = vpack.c.bf16 %v5621, %v5621
        %s5776 = scalar_lea.vmem [#allocation7], 1152
        %v5777 = vld [vmem:[%s5776] sm:$0xff]
        %v5778 = vld [vmem:[%s5776 + $0x8] sm:$0xff]
        %v5779 = vld [vmem:[%s5776 + $0x10] sm:$0xff]
        %v5780 = vld [vmem:[%s5776 + $0x18] sm:$0xff]
        %v5781 = vld [vmem:[%s5776 + $0x20] sm:$0xff]
        %v5782 = vld [vmem:[%s5776 + $0x28] sm:$0xff]
        %v5783 = vld [vmem:[%s5776 + $0x30] sm:$0xff]
        %v5784 = vld [vmem:[%s5776 + $0x38] sm:$0xff]
        %v5785 = vld [vmem:[%s5776 + $0x40] sm:$0xff]
        %v5786 = vld [vmem:[%s5776 + $0x48] sm:$0xff]
        %v5787 = vld [vmem:[%s5776 + $0x50] sm:$0xff]
        %v5788 = vld [vmem:[%s5776 + $0x58] sm:$0xff]
        %v5789 = vld [vmem:[%s5776 + $0x60] sm:$0xff]
        %v5790 = vld [vmem:[%s5776 + $0x68] sm:$0xff]
        %v5791 = vld [vmem:[%s5776 + $0x70] sm:$0xff]
        %v5792 = vld [vmem:[%s5776 + $0x78] sm:$0xff]
        %v5793 = vld [vmem:[%s5776 + $0x80] sm:$0xff]
        %v5794 = vld [vmem:[%s5776 + $0x88] sm:$0xff]
        %v5795 = vld [vmem:[%s5776 + $0x90] sm:$0xff]
        %v5796 = vld [vmem:[%s5776 + $0x98] sm:$0xff]
        %v5797 = vld [vmem:[%s5776 + $0xa0] sm:$0xff]
        %v5798 = vld [vmem:[%s5776 + $0xa8] sm:$0xff]
        %v5799 = vld [vmem:[%s5776 + $0xb0] sm:$0xff]
        %v5800 = vld [vmem:[%s5776 + $0xb8] sm:$0xff]
        %v5801 = vld [vmem:[%s5776 + $0xc0] sm:$0xff]
        %v5802 = vld [vmem:[%s5776 + $0xc8] sm:$0xff]
        %v5803 = vld [vmem:[%s5776 + $0xd0] sm:$0xff]
        %v5804 = vld [vmem:[%s5776 + $0xd8] sm:$0xff]
        %v5805 = vld [vmem:[%s5776 + $0xe0] sm:$0xff]
        %v5806 = vld [vmem:[%s5776 + $0xe8] sm:$0xff]
        %v5807 = vld [vmem:[%s5776 + $0xf0] sm:$0xff]
        %v5808 = vld [vmem:[%s5776 + $0xf8] sm:$0xff]
        %v5809 = vld [vmem:[%s5776 + $0x100] sm:$0xff]
        %v5810 = vld [vmem:[%s5776 + $0x108] sm:$0xff]
        %v5811 = vld [vmem:[%s5776 + $0x110] sm:$0xff]
        %v5812 = vld [vmem:[%s5776 + $0x118] sm:$0xff]
        %v5813 = vld [vmem:[%s5776 + $0x120] sm:$0xff]
        %v5814 = vld [vmem:[%s5776 + $0x128] sm:$0xff]
        %v5815 = vld [vmem:[%s5776 + $0x130] sm:$0xff]
        %v5816 = vld [vmem:[%s5776 + $0x138] sm:$0xff]
        %v5817 = vld [vmem:[%s5776 + $0x140] sm:$0xff]
        %v5818 = vld [vmem:[%s5776 + $0x148] sm:$0xff]
        %v5819 = vld [vmem:[%s5776 + $0x150] sm:$0xff]
        %v5820 = vld [vmem:[%s5776 + $0x158] sm:$0xff]
        %v5821 = vld [vmem:[%s5776 + $0x160] sm:$0xff]
        %v5822 = vld [vmem:[%s5776 + $0x168] sm:$0xff]
        %v5823 = vld [vmem:[%s5776 + $0x170] sm:$0xff]
        %v5824 = vld [vmem:[%s5776 + $0x178] sm:$0xff]
        %v5825 = vld [vmem:[%s5776 + $0x180] sm:$0xff]
        %v5826 = vld [vmem:[%s5776 + $0x188] sm:$0xff]
        %v5827 = vld [vmem:[%s5776 + $0x190] sm:$0xff]
        %v5828 = vld [vmem:[%s5776 + $0x198] sm:$0xff]
        %v5829 = vld [vmem:[%s5776 + $0x1a0] sm:$0xff]
        %v5830 = vld [vmem:[%s5776 + $0x1a8] sm:$0xff]
        %v5831 = vld [vmem:[%s5776 + $0x1b0] sm:$0xff]
        %v5832 = vld [vmem:[%s5776 + $0x1b8] sm:$0xff]
        %v5833 = vld [vmem:[%s5776 + $0x1c0] sm:$0xff]
        %v5834 = vld [vmem:[%s5776 + $0x1c8] sm:$0xff]
        %v5835 = vld [vmem:[%s5776 + $0x1d0] sm:$0xff]
        %v5836 = vld [vmem:[%s5776 + $0x1d8] sm:$0xff]
        %v5837 = vld [vmem:[%s5776 + $0x1e0] sm:$0xff]
        %v5838 = vld [vmem:[%s5776 + $0x1e8] sm:$0xff]
        %v5839 = vld [vmem:[%s5776 + $0x1f0] sm:$0xff]
        %v5840 = vld [vmem:[%s5776 + $0x1f8] sm:$0xff]
        %v5841 = vld [vmem:[%s5776 + $0x200] sm:$0xff]
        %v5842 = vld [vmem:[%s5776 + $0x208] sm:$0xff]
        %v5843 = vld [vmem:[%s5776 + $0x210] sm:$0xff]
        %v5844 = vld [vmem:[%s5776 + $0x218] sm:$0xff]
        %v5845 = vld [vmem:[%s5776 + $0x220] sm:$0xff]
        %v5846 = vld [vmem:[%s5776 + $0x228] sm:$0xff]
        %v5847 = vld [vmem:[%s5776 + $0x230] sm:$0xff]
        %v5848 = vld [vmem:[%s5776 + $0x238] sm:$0xff]
        %v5849 = vld [vmem:[%s5776 + $0x240] sm:$0xff]
        %v5850 = vld [vmem:[%s5776 + $0x248] sm:$0xff]
        %v5851 = vld [vmem:[%s5776 + $0x250] sm:$0xff]
        %v5852 = vld [vmem:[%s5776 + $0x258] sm:$0xff]
        %v5853 = vld [vmem:[%s5776 + $0x260] sm:$0xff]
        %v5854 = vld [vmem:[%s5776 + $0x268] sm:$0xff]
        %v5855 = vld [vmem:[%s5776 + $0x270] sm:$0xff]
        %v5856 = vld [vmem:[%s5776 + $0x278] sm:$0xff]
        %v5857 = vld [vmem:[%s5776 + $0x280] sm:$0xff]
        %v5858 = vld [vmem:[%s5776 + $0x288] sm:$0xff]
        %v5859 = vld [vmem:[%s5776 + $0x290] sm:$0xff]
        %v5860 = vld [vmem:[%s5776 + $0x298] sm:$0xff]
        %v5861 = vld [vmem:[%s5776 + $0x2a0] sm:$0xff]
        %v5862 = vld [vmem:[%s5776 + $0x2a8] sm:$0xff]
        %v5863 = vld [vmem:[%s5776 + $0x2b0] sm:$0xff]
        %v5864 = vld [vmem:[%s5776 + $0x2b8] sm:$0xff]
        %v5865 = vld [vmem:[%s5776 + $0x2c0] sm:$0xff]
        %v5866 = vld [vmem:[%s5776 + $0x2c8] sm:$0xff]
        %v5867 = vld [vmem:[%s5776 + $0x2d0] sm:$0xff]
        %v5868 = vld [vmem:[%s5776 + $0x2d8] sm:$0xff]
        %v5869 = vld [vmem:[%s5776 + $0x2e0] sm:$0xff]
        %v5870 = vld [vmem:[%s5776 + $0x2e8] sm:$0xff]
        %v5871 = vld [vmem:[%s5776 + $0x2f0] sm:$0xff]
        %v5872 = vld [vmem:[%s5776 + $0x2f8] sm:$0xff]
        %v5873 = vld [vmem:[%s5776 + $0x300] sm:$0xff]
        %v5874 = vld [vmem:[%s5776 + $0x308] sm:$0xff]
        %v5875 = vld [vmem:[%s5776 + $0x310] sm:$0xff]
        %v5876 = vld [vmem:[%s5776 + $0x318] sm:$0xff]
        %v5877 = vld [vmem:[%s5776 + $0x320] sm:$0xff]
        %v5878 = vld [vmem:[%s5776 + $0x328] sm:$0xff]
        %v5879 = vld [vmem:[%s5776 + $0x330] sm:$0xff]
        %v5880 = vld [vmem:[%s5776 + $0x338] sm:$0xff]
        %v5881 = vld [vmem:[%s5776 + $0x340] sm:$0xff]
        %v5882 = vld [vmem:[%s5776 + $0x348] sm:$0xff]
        %v5883 = vld [vmem:[%s5776 + $0x350] sm:$0xff]
        %v5884 = vld [vmem:[%s5776 + $0x358] sm:$0xff]
        %v5885 = vld [vmem:[%s5776 + $0x360] sm:$0xff]
        %v5886 = vld [vmem:[%s5776 + $0x368] sm:$0xff]
        %v5887 = vld [vmem:[%s5776 + $0x370] sm:$0xff]
        %v5888 = vld [vmem:[%s5776 + $0x378] sm:$0xff]
        %v5889 = vld [vmem:[%s5776 + $0x380] sm:$0xff]
        %v5890 = vld [vmem:[%s5776 + $0x388] sm:$0xff]
        %v5891 = vld [vmem:[%s5776 + $0x390] sm:$0xff]
        %v5892 = vld [vmem:[%s5776 + $0x398] sm:$0xff]
        %v5893 = vld [vmem:[%s5776 + $0x3a0] sm:$0xff]
        %v5894 = vld [vmem:[%s5776 + $0x3a8] sm:$0xff]
        %v5895 = vld [vmem:[%s5776 + $0x3b0] sm:$0xff]
        %v5896 = vld [vmem:[%s5776 + $0x3b8] sm:$0xff]
        %v5897 = vld [vmem:[%s5776 + $0x3c0] sm:$0xff]
        %v5898 = vld [vmem:[%s5776 + $0x3c8] sm:$0xff]
        %v5899 = vld [vmem:[%s5776 + $0x3d0] sm:$0xff]
        %v5900 = vld [vmem:[%s5776 + $0x3d8] sm:$0xff]
        %v5901 = vld [vmem:[%s5776 + $0x3e0] sm:$0xff]
        %v5902 = vld [vmem:[%s5776 + $0x3e8] sm:$0xff]
        %v5903 = vld [vmem:[%s5776 + $0x3f0] sm:$0xff]
        %v5904 = vld [vmem:[%s5776 + $0x3f8] sm:$0xff]
        %v5905 = vld [vmem:[%s5776 + $0x400] sm:$0xff]
        %v5906 = vld [vmem:[%s5776 + $0x408] sm:$0xff]
        %v5907 = vld [vmem:[%s5776 + $0x410] sm:$0xff]
        %v5908 = vld [vmem:[%s5776 + $0x418] sm:$0xff]
        %v5909 = vld [vmem:[%s5776 + $0x420] sm:$0xff]
        %v5910 = vld [vmem:[%s5776 + $0x428] sm:$0xff]
        %v5911 = vld [vmem:[%s5776 + $0x430] sm:$0xff]
        %v5912 = vld [vmem:[%s5776 + $0x438] sm:$0xff]
        %v5913 = vld [vmem:[%s5776 + $0x440] sm:$0xff]
        %v5914 = vld [vmem:[%s5776 + $0x448] sm:$0xff]
        %v5915 = vld [vmem:[%s5776 + $0x450] sm:$0xff]
        %v5916 = vld [vmem:[%s5776 + $0x458] sm:$0xff]
        %v5917 = vld [vmem:[%s5776 + $0x460] sm:$0xff]
        %v5918 = vld [vmem:[%s5776 + $0x468] sm:$0xff]
        %v5919 = vld [vmem:[%s5776 + $0x470] sm:$0xff]
        %v5920 = vld [vmem:[%s5776 + $0x478] sm:$0xff]
        %v5922 = vshrl.u32 %v5622, 16
        %v5924 = vshll.u32 %v5622, 16
        %v5926 = vrot.slane %v5924, 1
        %v5927 = vor.u32 %v5922, %v5926
        %v5929 = vshll.u32 %v5771, 16
        %v5931 = vrot.slane %v5929, 1
        %v5932 = vsel %vm949, %v5927, %v5931
        %v5934 = vshrl.u32 %v5623, 16
        %v5936 = vshll.u32 %v5623, 16
        %v5938 = vrot.slane %v5936, 1
        %v5939 = vor.u32 %v5934, %v5938
        %v5941 = vshll.u32 %v5772, 16
        %v5943 = vrot.slane %v5941, 1
        %v5944 = vsel %vm949, %v5939, %v5943
        %v5946 = vshrl.u32 %v5624, 16
        %v5948 = vshll.u32 %v5624, 16
        %v5950 = vrot.slane %v5948, 1
        %v5951 = vor.u32 %v5946, %v5950
        %v5953 = vshll.u32 %v5773, 16
        %v5955 = vrot.slane %v5953, 1
        %v5956 = vsel %vm949, %v5951, %v5955
        %v5958 = vshrl.u32 %v5625, 16
        %v5960 = vshll.u32 %v5625, 16
        %v5962 = vrot.slane %v5960, 1
        %v5963 = vor.u32 %v5958, %v5962
        %v5965 = vshll.u32 %v5774, 16
        %v5967 = vrot.slane %v5965, 1
        %v5968 = vsel %vm949, %v5963, %v5967
        %v5970 = vshrl.u32 %v5626, 16
        %v5972 = vshll.u32 %v5626, 16
        %v5974 = vrot.slane %v5972, 1
        %v5975 = vor.u32 %v5970, %v5974
        %v5977 = vshll.u32 %v5775, 16
        %v5979 = vrot.slane %v5977, 1
        %v5980 = vsel %vm949, %v5975, %v5979
        %v6129 = vunpack.c.l.b16 %v5777
        %v6130 = vunpack.c.h.b16 %v5777
        %v6131 = vunpack.c.l.b16 %v5778
        %v6132 = vunpack.c.h.b16 %v5778
        %v6133 = vunpack.c.l.b16 %v5779
        %v6134 = vunpack.c.h.b16 %v5779
        %v6135 = vunpack.c.l.b16 %v5780
        %v6136 = vunpack.c.h.b16 %v5780
        %v6137 = vunpack.c.l.b16 %v5781
        %v6138 = vunpack.c.h.b16 %v5781
        %v6139 = vunpack.c.l.b16 %v5782
        %v6140 = vunpack.c.h.b16 %v5782
        %v6141 = vunpack.c.l.b16 %v5783
        %v6142 = vunpack.c.h.b16 %v5783
        %v6143 = vunpack.c.l.b16 %v5784
        %v6144 = vunpack.c.h.b16 %v5784
        %v6145 = vunpack.c.l.b16 %v5785
        %v6146 = vunpack.c.h.b16 %v5785
        %v6147 = vunpack.c.l.b16 %v5786
        %v6148 = vunpack.c.h.b16 %v5786
        %v6149 = vunpack.c.l.b16 %v5787
        %v6150 = vunpack.c.h.b16 %v5787
        %v6151 = vunpack.c.l.b16 %v5788
        %v6152 = vunpack.c.h.b16 %v5788
        %v6153 = vunpack.c.l.b16 %v5789
        %v6154 = vunpack.c.h.b16 %v5789
        %v6155 = vunpack.c.l.b16 %v5790
        %v6156 = vunpack.c.h.b16 %v5790
        %v6157 = vunpack.c.l.b16 %v5791
        %v6158 = vunpack.c.h.b16 %v5791
        %v6159 = vunpack.c.l.b16 %v5792
        %v6160 = vunpack.c.h.b16 %v5792
        %v6161 = vunpack.c.l.b16 %v5793
        %v6162 = vunpack.c.h.b16 %v5793
        %v6163 = vunpack.c.l.b16 %v5794
        %v6164 = vunpack.c.h.b16 %v5794
        %v6165 = vunpack.c.l.b16 %v5795
        %v6166 = vunpack.c.h.b16 %v5795
        %v6167 = vunpack.c.l.b16 %v5796
        %v6168 = vunpack.c.h.b16 %v5796
        %v6169 = vunpack.c.l.b16 %v5797
        %v6170 = vunpack.c.h.b16 %v5797
        %v6171 = vunpack.c.l.b16 %v5798
        %v6172 = vunpack.c.h.b16 %v5798
        %v6173 = vunpack.c.l.b16 %v5799
        %v6174 = vunpack.c.h.b16 %v5799
        %v6175 = vunpack.c.l.b16 %v5800
        %v6176 = vunpack.c.h.b16 %v5800
        %v6177 = vunpack.c.l.b16 %v5801
        %v6178 = vunpack.c.h.b16 %v5801
        %v6179 = vunpack.c.l.b16 %v5802
        %v6180 = vunpack.c.h.b16 %v5802
        %v6181 = vunpack.c.l.b16 %v5803
        %v6182 = vunpack.c.h.b16 %v5803
        %v6183 = vunpack.c.l.b16 %v5804
        %v6184 = vunpack.c.h.b16 %v5804
        %v6185 = vunpack.c.l.b16 %v5805
        %v6186 = vunpack.c.h.b16 %v5805
        %v6187 = vunpack.c.l.b16 %v5806
        %v6188 = vunpack.c.h.b16 %v5806
        %v6189 = vunpack.c.l.b16 %v5807
        %v6190 = vunpack.c.h.b16 %v5807
        %v6191 = vunpack.c.l.b16 %v5808
        %v6192 = vunpack.c.h.b16 %v5808
        %v6193 = vunpack.c.l.b16 %v5809
        %v6194 = vunpack.c.h.b16 %v5809
        %v6195 = vunpack.c.l.b16 %v5810
        %v6196 = vunpack.c.h.b16 %v5810
        %v6197 = vunpack.c.l.b16 %v5811
        %v6198 = vunpack.c.h.b16 %v5811
        %v6199 = vunpack.c.l.b16 %v5812
        %v6200 = vunpack.c.h.b16 %v5812
        %v6201 = vunpack.c.l.b16 %v5813
        %v6202 = vunpack.c.h.b16 %v5813
        %v6203 = vunpack.c.l.b16 %v5814
        %v6204 = vunpack.c.h.b16 %v5814
        %v6205 = vunpack.c.l.b16 %v5815
        %v6206 = vunpack.c.h.b16 %v5815
        %v6207 = vunpack.c.l.b16 %v5816
        %v6208 = vunpack.c.h.b16 %v5816
        %v6209 = vunpack.c.l.b16 %v5817
        %v6210 = vunpack.c.h.b16 %v5817
        %v6211 = vunpack.c.l.b16 %v5818
        %v6212 = vunpack.c.h.b16 %v5818
        %v6213 = vunpack.c.l.b16 %v5819
        %v6214 = vunpack.c.h.b16 %v5819
        %v6215 = vunpack.c.l.b16 %v5820
        %v6216 = vunpack.c.h.b16 %v5820
        %v6217 = vunpack.c.l.b16 %v5821
        %v6218 = vunpack.c.h.b16 %v5821
        %v6219 = vunpack.c.l.b16 %v5822
        %v6220 = vunpack.c.h.b16 %v5822
        %v6221 = vunpack.c.l.b16 %v5823
        %v6222 = vunpack.c.h.b16 %v5823
        %v6223 = vunpack.c.l.b16 %v5824
        %v6224 = vunpack.c.h.b16 %v5824
        %v6225 = vunpack.c.l.b16 %v5825
        %v6226 = vunpack.c.h.b16 %v5825
        %v6227 = vunpack.c.l.b16 %v5826
        %v6228 = vunpack.c.h.b16 %v5826
        %v6229 = vunpack.c.l.b16 %v5827
        %v6230 = vunpack.c.h.b16 %v5827
        %v6231 = vunpack.c.l.b16 %v5828
        %v6232 = vunpack.c.h.b16 %v5828
        %v6233 = vunpack.c.l.b16 %v5829
        %v6234 = vunpack.c.h.b16 %v5829
        %v6235 = vunpack.c.l.b16 %v5830
        %v6236 = vunpack.c.h.b16 %v5830
        %v6237 = vunpack.c.l.b16 %v5831
        %v6238 = vunpack.c.h.b16 %v5831
        %v6239 = vunpack.c.l.b16 %v5832
        %v6240 = vunpack.c.h.b16 %v5832
        %v6241 = vunpack.c.l.b16 %v5833
        %v6242 = vunpack.c.h.b16 %v5833
        %v6243 = vunpack.c.l.b16 %v5834
        %v6244 = vunpack.c.h.b16 %v5834
        %v6245 = vunpack.c.l.b16 %v5835
        %v6246 = vunpack.c.h.b16 %v5835
        %v6247 = vunpack.c.l.b16 %v5836
        %v6248 = vunpack.c.h.b16 %v5836
        %v6249 = vunpack.c.l.b16 %v5837
        %v6250 = vunpack.c.h.b16 %v5837
        %v6251 = vunpack.c.l.b16 %v5838
        %v6252 = vunpack.c.h.b16 %v5838
        %v6253 = vunpack.c.l.b16 %v5839
        %v6254 = vunpack.c.h.b16 %v5839
        %v6255 = vunpack.c.l.b16 %v5840
        %v6256 = vunpack.c.h.b16 %v5840
        %v6257 = vunpack.c.l.b16 %v5841
        %v6258 = vunpack.c.h.b16 %v5841
        %v6259 = vunpack.c.l.b16 %v5842
        %v6260 = vunpack.c.h.b16 %v5842
        %v6261 = vunpack.c.l.b16 %v5843
        %v6262 = vunpack.c.h.b16 %v5843
        %v6263 = vunpack.c.l.b16 %v5844
        %v6264 = vunpack.c.h.b16 %v5844
        %v6265 = vunpack.c.l.b16 %v5845
        %v6266 = vunpack.c.h.b16 %v5845
        %v6267 = vunpack.c.l.b16 %v5846
        %v6268 = vunpack.c.h.b16 %v5846
        %v6269 = vunpack.c.l.b16 %v5847
        %v6270 = vunpack.c.h.b16 %v5847
        %v6271 = vunpack.c.l.b16 %v5848
        %v6272 = vunpack.c.h.b16 %v5848
        %v6273 = vunpack.c.l.b16 %v5849
        %v6274 = vunpack.c.h.b16 %v5849
        %v6275 = vunpack.c.l.b16 %v5850
        %v6276 = vunpack.c.h.b16 %v5850
        %v6277 = vunpack.c.l.b16 %v5851
        %v6278 = vunpack.c.h.b16 %v5851
        %v6279 = vunpack.c.l.b16 %v5852
        %v6280 = vunpack.c.h.b16 %v5852
        %v6281 = vunpack.c.l.b16 %v5853
        %v6282 = vunpack.c.h.b16 %v5853
        %v6283 = vunpack.c.l.b16 %v5854
        %v6284 = vunpack.c.h.b16 %v5854
        %v6285 = vunpack.c.l.b16 %v5855
        %v6286 = vunpack.c.h.b16 %v5855
        %v6287 = vunpack.c.l.b16 %v5856
        %v6288 = vunpack.c.h.b16 %v5856
        %v6289 = vunpack.c.l.b16 %v5857
        %v6290 = vunpack.c.h.b16 %v5857
        %v6291 = vunpack.c.l.b16 %v5858
        %v6292 = vunpack.c.h.b16 %v5858
        %v6293 = vunpack.c.l.b16 %v5859
        %v6294 = vunpack.c.h.b16 %v5859
        %v6295 = vunpack.c.l.b16 %v5860
        %v6296 = vunpack.c.h.b16 %v5860
        %v6297 = vunpack.c.l.b16 %v5861
        %v6298 = vunpack.c.h.b16 %v5861
        %v6299 = vunpack.c.l.b16 %v5862
        %v6300 = vunpack.c.h.b16 %v5862
        %v6301 = vunpack.c.l.b16 %v5863
        %v6302 = vunpack.c.h.b16 %v5863
        %v6303 = vunpack.c.l.b16 %v5864
        %v6304 = vunpack.c.h.b16 %v5864
        %v6305 = vunpack.c.l.b16 %v5865
        %v6306 = vunpack.c.h.b16 %v5865
        %v6307 = vunpack.c.l.b16 %v5866
        %v6308 = vunpack.c.h.b16 %v5866
        %v6309 = vunpack.c.l.b16 %v5867
        %v6310 = vunpack.c.h.b16 %v5867
        %v6311 = vunpack.c.l.b16 %v5868
        %v6312 = vunpack.c.h.b16 %v5868
        %v6313 = vunpack.c.l.b16 %v5869
        %v6314 = vunpack.c.h.b16 %v5869
        %v6315 = vunpack.c.l.b16 %v5870
        %v6316 = vunpack.c.h.b16 %v5870
        %v6317 = vunpack.c.l.b16 %v5871
        %v6318 = vunpack.c.h.b16 %v5871
        %v6319 = vunpack.c.l.b16 %v5872
        %v6320 = vunpack.c.h.b16 %v5872
        %v6321 = vunpack.c.l.b16 %v5873
        %v6322 = vunpack.c.h.b16 %v5873
        %v6323 = vunpack.c.l.b16 %v5874
        %v6324 = vunpack.c.h.b16 %v5874
        %v6325 = vunpack.c.l.b16 %v5875
        %v6326 = vunpack.c.h.b16 %v5875
        %v6327 = vunpack.c.l.b16 %v5876
        %v6328 = vunpack.c.h.b16 %v5876
        %v6329 = vunpack.c.l.b16 %v5877
        %v6330 = vunpack.c.h.b16 %v5877
        %v6331 = vunpack.c.l.b16 %v5878
        %v6332 = vunpack.c.h.b16 %v5878
        %v6333 = vunpack.c.l.b16 %v5879
        %v6334 = vunpack.c.h.b16 %v5879
        %v6335 = vunpack.c.l.b16 %v5880
        %v6336 = vunpack.c.h.b16 %v5880
        %v6337 = vunpack.c.l.b16 %v5881
        %v6338 = vunpack.c.h.b16 %v5881
        %v6339 = vunpack.c.l.b16 %v5882
        %v6340 = vunpack.c.h.b16 %v5882
        %v6341 = vunpack.c.l.b16 %v5883
        %v6342 = vunpack.c.h.b16 %v5883
        %v6343 = vunpack.c.l.b16 %v5884
        %v6344 = vunpack.c.h.b16 %v5884
        %v6345 = vunpack.c.l.b16 %v5885
        %v6346 = vunpack.c.h.b16 %v5885
        %v6347 = vunpack.c.l.b16 %v5886
        %v6348 = vunpack.c.h.b16 %v5886
        %v6349 = vunpack.c.l.b16 %v5887
        %v6350 = vunpack.c.h.b16 %v5887
        %v6351 = vunpack.c.l.b16 %v5888
        %v6352 = vunpack.c.h.b16 %v5888
        %v6353 = vunpack.c.l.b16 %v5889
        %v6354 = vunpack.c.h.b16 %v5889
        %v6355 = vunpack.c.l.b16 %v5890
        %v6356 = vunpack.c.h.b16 %v5890
        %v6357 = vunpack.c.l.b16 %v5891
        %v6358 = vunpack.c.h.b16 %v5891
        %v6359 = vunpack.c.l.b16 %v5892
        %v6360 = vunpack.c.h.b16 %v5892
        %v6361 = vunpack.c.l.b16 %v5893
        %v6362 = vunpack.c.h.b16 %v5893
        %v6363 = vunpack.c.l.b16 %v5894
        %v6364 = vunpack.c.h.b16 %v5894
        %v6365 = vunpack.c.l.b16 %v5895
        %v6366 = vunpack.c.h.b16 %v5895
        %v6367 = vunpack.c.l.b16 %v5896
        %v6368 = vunpack.c.h.b16 %v5896
        %v6369 = vunpack.c.l.b16 %v5897
        %v6370 = vunpack.c.h.b16 %v5897
        %v6371 = vunpack.c.l.b16 %v5898
        %v6372 = vunpack.c.h.b16 %v5898
        %v6373 = vunpack.c.l.b16 %v5899
        %v6374 = vunpack.c.h.b16 %v5899
        %v6375 = vunpack.c.l.b16 %v5900
        %v6376 = vunpack.c.h.b16 %v5900
        %v6377 = vunpack.c.l.b16 %v5901
        %v6378 = vunpack.c.h.b16 %v5901
        %v6379 = vunpack.c.l.b16 %v5902
        %v6380 = vunpack.c.h.b16 %v5902
        %v6381 = vunpack.c.l.b16 %v5903
        %v6382 = vunpack.c.h.b16 %v5903
        %v6383 = vunpack.c.l.b16 %v5904
        %v6384 = vunpack.c.h.b16 %v5904
        %v6385 = vunpack.c.l.b16 %v5905
        %v6386 = vunpack.c.h.b16 %v5905
        %v6387 = vunpack.c.l.b16 %v5906
        %v6388 = vunpack.c.h.b16 %v5906
        %v6389 = vunpack.c.l.b16 %v5907
        %v6390 = vunpack.c.h.b16 %v5907
        %v6391 = vunpack.c.l.b16 %v5908
        %v6392 = vunpack.c.h.b16 %v5908
        %v6393 = vunpack.c.l.b16 %v5909
        %v6394 = vunpack.c.h.b16 %v5909
        %v6395 = vunpack.c.l.b16 %v5910
        %v6396 = vunpack.c.h.b16 %v5910
        %v6397 = vunpack.c.l.b16 %v5911
        %v6398 = vunpack.c.h.b16 %v5911
        %v6399 = vunpack.c.l.b16 %v5912
        %v6400 = vunpack.c.h.b16 %v5912
        %v6401 = vunpack.c.l.b16 %v5913
        %v6402 = vunpack.c.h.b16 %v5913
        %v6403 = vunpack.c.l.b16 %v5914
        %v6404 = vunpack.c.h.b16 %v5914
        %v6405 = vunpack.c.l.b16 %v5915
        %v6406 = vunpack.c.h.b16 %v5915
        %v6407 = vunpack.c.l.b16 %v5916
        %v6408 = vunpack.c.h.b16 %v5916
        %v6409 = vunpack.c.l.b16 %v5917
        %v6410 = vunpack.c.h.b16 %v5917
        %v6411 = vunpack.c.l.b16 %v5918
        %v6412 = vunpack.c.h.b16 %v5918
        %v6413 = vunpack.c.l.b16 %v5919
        %v6414 = vunpack.c.h.b16 %v5919
        %v6415 = vunpack.c.l.b16 %v5920
        %v6416 = vunpack.c.h.b16 %v5920
        %v6417 = vpack.c.b16 %v6133, %v6129
        %v6418 = vpack.c.b16 %v6134, %v6130
        %v6419 = vpack.c.b16 %v6135, %v6131
        %v6420 = vpack.c.b16 %v6136, %v6132
        %v6421 = vpack.c.b16 %v6141, %v6137
        %v6422 = vpack.c.b16 %v6142, %v6138
        %v6423 = vpack.c.b16 %v6143, %v6139
        %v6424 = vpack.c.b16 %v6144, %v6140
        %v6425 = vpack.c.b16 %v6149, %v6145
        %v6426 = vpack.c.b16 %v6150, %v6146
        %v6427 = vpack.c.b16 %v6151, %v6147
        %v6428 = vpack.c.b16 %v6152, %v6148
        %v6429 = vpack.c.b16 %v6157, %v6153
        %v6430 = vpack.c.b16 %v6158, %v6154
        %v6431 = vpack.c.b16 %v6159, %v6155
        %v6432 = vpack.c.b16 %v6160, %v6156
        %v6433 = vpack.c.b16 %v6165, %v6161
        %v6434 = vpack.c.b16 %v6166, %v6162
        %v6435 = vpack.c.b16 %v6167, %v6163
        %v6436 = vpack.c.b16 %v6168, %v6164
        %v6437 = vpack.c.b16 %v6173, %v6169
        %v6438 = vpack.c.b16 %v6174, %v6170
        %v6439 = vpack.c.b16 %v6175, %v6171
        %v6440 = vpack.c.b16 %v6176, %v6172
        %v6441 = vpack.c.b16 %v6181, %v6177
        %v6442 = vpack.c.b16 %v6182, %v6178
        %v6443 = vpack.c.b16 %v6183, %v6179
        %v6444 = vpack.c.b16 %v6184, %v6180
        %v6445 = vpack.c.b16 %v6189, %v6185
        %v6446 = vpack.c.b16 %v6190, %v6186
        %v6447 = vpack.c.b16 %v6191, %v6187
        %v6448 = vpack.c.b16 %v6192, %v6188
        %v6449 = vpack.c.b16 %v6197, %v6193
        %v6450 = vpack.c.b16 %v6198, %v6194
        %v6451 = vpack.c.b16 %v6199, %v6195
        %v6452 = vpack.c.b16 %v6200, %v6196
        %v6453 = vpack.c.b16 %v6205, %v6201
        %v6454 = vpack.c.b16 %v6206, %v6202
        %v6455 = vpack.c.b16 %v6207, %v6203
        %v6456 = vpack.c.b16 %v6208, %v6204
        %v6457 = vpack.c.b16 %v6213, %v6209
        %v6458 = vpack.c.b16 %v6214, %v6210
        %v6459 = vpack.c.b16 %v6215, %v6211
        %v6460 = vpack.c.b16 %v6216, %v6212
        %v6461 = vpack.c.b16 %v6221, %v6217
        %v6462 = vpack.c.b16 %v6222, %v6218
        %v6463 = vpack.c.b16 %v6223, %v6219
        %v6464 = vpack.c.b16 %v6224, %v6220
        %v6465 = vpack.c.b16 %v6229, %v6225
        %v6466 = vpack.c.b16 %v6230, %v6226
        %v6467 = vpack.c.b16 %v6231, %v6227
        %v6468 = vpack.c.b16 %v6232, %v6228
        %v6469 = vpack.c.b16 %v6237, %v6233
        %v6470 = vpack.c.b16 %v6238, %v6234
        %v6471 = vpack.c.b16 %v6239, %v6235
        %v6472 = vpack.c.b16 %v6240, %v6236
        %v6473 = vpack.c.b16 %v6245, %v6241
        %v6474 = vpack.c.b16 %v6246, %v6242
        %v6475 = vpack.c.b16 %v6247, %v6243
        %v6476 = vpack.c.b16 %v6248, %v6244
        %v6477 = vpack.c.b16 %v6253, %v6249
        %v6478 = vpack.c.b16 %v6254, %v6250
        %v6479 = vpack.c.b16 %v6255, %v6251
        %v6480 = vpack.c.b16 %v6256, %v6252
        %v6481 = vpack.c.b16 %v6261, %v6257
        %v6482 = vpack.c.b16 %v6262, %v6258
        %v6483 = vpack.c.b16 %v6263, %v6259
        %v6484 = vpack.c.b16 %v6264, %v6260
        %v6485 = vpack.c.b16 %v6269, %v6265
        %v6486 = vpack.c.b16 %v6270, %v6266
        %v6487 = vpack.c.b16 %v6271, %v6267
        %v6488 = vpack.c.b16 %v6272, %v6268
        %v6489 = vpack.c.b16 %v6277, %v6273
        %v6490 = vpack.c.b16 %v6278, %v6274
        %v6491 = vpack.c.b16 %v6279, %v6275
        %v6492 = vpack.c.b16 %v6280, %v6276
        %v6493 = vpack.c.b16 %v6285, %v6281
        %v6494 = vpack.c.b16 %v6286, %v6282
        %v6495 = vpack.c.b16 %v6287, %v6283
        %v6496 = vpack.c.b16 %v6288, %v6284
        %v6497 = vpack.c.b16 %v6293, %v6289
        %v6498 = vpack.c.b16 %v6294, %v6290
        %v6499 = vpack.c.b16 %v6295, %v6291
        %v6500 = vpack.c.b16 %v6296, %v6292
        %v6501 = vpack.c.b16 %v6301, %v6297
        %v6502 = vpack.c.b16 %v6302, %v6298
        %v6503 = vpack.c.b16 %v6303, %v6299
        %v6504 = vpack.c.b16 %v6304, %v6300
        %v6505 = vpack.c.b16 %v6309, %v6305
        %v6506 = vpack.c.b16 %v6310, %v6306
        %v6507 = vpack.c.b16 %v6311, %v6307
        %v6508 = vpack.c.b16 %v6312, %v6308
        %v6509 = vpack.c.b16 %v6317, %v6313
        %v6510 = vpack.c.b16 %v6318, %v6314
        %v6511 = vpack.c.b16 %v6319, %v6315
        %v6512 = vpack.c.b16 %v6320, %v6316
        %v6513 = vpack.c.b16 %v6325, %v6321
        %v6514 = vpack.c.b16 %v6326, %v6322
        %v6515 = vpack.c.b16 %v6327, %v6323
        %v6516 = vpack.c.b16 %v6328, %v6324
        %v6517 = vpack.c.b16 %v6333, %v6329
        %v6518 = vpack.c.b16 %v6334, %v6330
        %v6519 = vpack.c.b16 %v6335, %v6331
        %v6520 = vpack.c.b16 %v6336, %v6332
        %v6521 = vpack.c.b16 %v6341, %v6337
        %v6522 = vpack.c.b16 %v6342, %v6338
        %v6523 = vpack.c.b16 %v6343, %v6339
        %v6524 = vpack.c.b16 %v6344, %v6340
        %v6525 = vpack.c.b16 %v6349, %v6345
        %v6526 = vpack.c.b16 %v6350, %v6346
        %v6527 = vpack.c.b16 %v6351, %v6347
        %v6528 = vpack.c.b16 %v6352, %v6348
        %v6529 = vpack.c.b16 %v6357, %v6353
        %v6530 = vpack.c.b16 %v6358, %v6354
        %v6531 = vpack.c.b16 %v6359, %v6355
        %v6532 = vpack.c.b16 %v6360, %v6356
        %v6533 = vpack.c.b16 %v6365, %v6361
        %v6534 = vpack.c.b16 %v6366, %v6362
        %v6535 = vpack.c.b16 %v6367, %v6363
        %v6536 = vpack.c.b16 %v6368, %v6364
        %v6537 = vpack.c.b16 %v6373, %v6369
        %v6538 = vpack.c.b16 %v6374, %v6370
        %v6539 = vpack.c.b16 %v6375, %v6371
        %v6540 = vpack.c.b16 %v6376, %v6372
        %v6541 = vpack.c.b16 %v6381, %v6377
        %v6542 = vpack.c.b16 %v6382, %v6378
        %v6543 = vpack.c.b16 %v6383, %v6379
        %v6544 = vpack.c.b16 %v6384, %v6380
        %v6545 = vpack.c.b16 %v6389, %v6385
        %v6546 = vpack.c.b16 %v6390, %v6386
        %v6547 = vpack.c.b16 %v6391, %v6387
        %v6548 = vpack.c.b16 %v6392, %v6388
        %v6549 = vpack.c.b16 %v6397, %v6393
        %v6550 = vpack.c.b16 %v6398, %v6394
        %v6551 = vpack.c.b16 %v6399, %v6395
        %v6552 = vpack.c.b16 %v6400, %v6396
        %v6553 = vpack.c.b16 %v6405, %v6401
        %v6554 = vpack.c.b16 %v6406, %v6402
        %v6555 = vpack.c.b16 %v6407, %v6403
        %v6556 = vpack.c.b16 %v6408, %v6404
        %v6557 = vpack.c.b16 %v6413, %v6409
        %v6558 = vpack.c.b16 %v6414, %v6410
        %v6559 = vpack.c.b16 %v6415, %v6411
        %v6560 = vpack.c.b16 %v6416, %v6412
        %v6706 = vsel %vm1969, %v5980, 0
        %6708 = vmatprep.subr.bf16.mxu0 %v6446
        %6709 = vmatpush1.bf16.msra.mxu0 %v6445
        %6710 = vmatprep.subr.bf16.mxu0 %v6442
        %6711 = vmatpush1.bf16.msra.mxu0 %v6441
        %6712 = vmatprep.subr.bf16.mxu0 %v6438
        %6713 = vmatpush1.bf16.msra.mxu0 %v6437
        %6714 = vmatprep.subr.bf16.mxu0 %v6434
        %6715 = vmatpush1.bf16.msra.mxu0 %v6433
        %6716 = vmatprep.subr.bf16.mxu0 %v6430
        %6717 = vmatpush1.bf16.msra.mxu0 %v6429
        %6718 = vmatprep.subr.bf16.mxu0 %v6426
        %6719 = vmatpush1.bf16.msra.mxu0 %v6425
        %6720 = vmatprep.subr.bf16.mxu0 %v6422
        %6721 = vmatpush1.bf16.msra.mxu0 %v6421
        %6722 = vmatprep.subr.bf16.mxu0 %v6418
        %6723 = vmatpush1.bf16.msra.mxu0 %v6417
        %6724 = vmatprep.subr.bf16.mxu0 %v6478
        %6725 = vmatpush2.bf16.msra.mxu0 %v6477
        %6726 = vmatprep.subr.bf16.mxu0 %v6474
        %6727 = vmatpush2.bf16.msra.mxu0 %v6473
        %6728 = vmatprep.subr.bf16.mxu0 %v6470
        %6729 = vmatpush2.bf16.msra.mxu0 %v6469
        %6730 = vmatprep.subr.bf16.mxu0 %v6466
        %6731 = vmatpush2.bf16.msra.mxu0 %v6465
        %6732 = vmatprep.subr.bf16.mxu0 %v6462
        %6733 = vmatpush2.bf16.msra.mxu0 %v6461
        %6734 = vmatprep.subr.bf16.mxu0 %v6458
        %6735 = vmatpush2.bf16.msra.mxu0 %v6457
        %6736 = vmatprep.subr.bf16.mxu0 %v6454
        %6737 = vmatpush2.bf16.msra.mxu0 %v6453
        %6738 = vmatprep.subr.bf16.mxu0 %v6450
        %6739 = vmatpush2.bf16.msra.mxu0 %v6449
        %6740 = vmatprep.mubr.bf16.mxu0 %v5944
        %6741 = vmatmul.mubr.bf16.gmra.mxu0 %v5932
        %v6742 = vpop.f32.mrf.mxu0
        %v6743 = vadd.f32 0.0, %v6742
        %v6744 = vpop.f32.mrf.mxu0
        %v6745 = vadd.f32 0.0, %v6744
        %v6746 = vpop.f32.mrf.mxu0
        %v6747 = vadd.f32 0.0, %v6746
        %v6748 = vpop.f32.mrf.mxu0
        %v6749 = vadd.f32 0.0, %v6748
        %6750 = vdwg.mxu0
        %6751 = vmatprep.subr.bf16.mxu0 %v6510
        %6752 = vmatpush1.bf16.msra.mxu0 %v6509
        %6753 = vmatprep.subr.bf16.mxu0 %v6506
        %6754 = vmatpush1.bf16.msra.mxu0 %v6505
        %6755 = vmatprep.subr.bf16.mxu0 %v6502
        %6756 = vmatpush1.bf16.msra.mxu0 %v6501
        %6757 = vmatprep.subr.bf16.mxu0 %v6498
        %6758 = vmatpush1.bf16.msra.mxu0 %v6497
        %6759 = vmatprep.subr.bf16.mxu0 %v6494
        %6760 = vmatpush1.bf16.msra.mxu0 %v6493
        %6761 = vmatprep.subr.bf16.mxu0 %v6490
        %6762 = vmatpush1.bf16.msra.mxu0 %v6489
        %6763 = vmatprep.subr.bf16.mxu0 %v6486
        %6764 = vmatpush1.bf16.msra.mxu0 %v6485
        %6765 = vmatprep.subr.bf16.mxu0 %v6482
        %6766 = vmatpush1.bf16.msra.mxu0 %v6481
        %6767 = vmatprep.subr.bf16.mxu0 %v6542
        %6768 = vmatpush2.bf16.msra.mxu0 %v6541
        %6769 = vmatprep.subr.bf16.mxu0 %v6538
        %6770 = vmatpush2.bf16.msra.mxu0 %v6537
        %6771 = vmatprep.subr.bf16.mxu0 %v6534
        %6772 = vmatpush2.bf16.msra.mxu0 %v6533
        %6773 = vmatprep.subr.bf16.mxu0 %v6530
        %6774 = vmatpush2.bf16.msra.mxu0 %v6529
        %6775 = vmatprep.subr.bf16.mxu0 %v6526
        %6776 = vmatpush2.bf16.msra.mxu0 %v6525
        %6777 = vmatprep.subr.bf16.mxu0 %v6522
        %6778 = vmatpush2.bf16.msra.mxu0 %v6521
        %6779 = vmatprep.subr.bf16.mxu0 %v6518
        %6780 = vmatpush2.bf16.msra.mxu0 %v6517
        %6781 = vmatprep.subr.bf16.mxu0 %v6514
        %6782 = vmatpush2.bf16.msra.mxu0 %v6513
        %6783 = vmatprep.mubr.bf16.mxu0 %v5968
        %6784 = vmatmul.mubr.bf16.gmra.mxu0 %v5956
        %v6785 = vpop.f32.mrf.mxu0
        %v6786 = vadd.f32 %v6743, %v6785
        %v6787 = vpop.f32.mrf.mxu0
        %v6788 = vadd.f32 %v6745, %v6787
        %v6789 = vpop.f32.mrf.mxu0
        %v6790 = vadd.f32 %v6747, %v6789
        %v6791 = vpop.f32.mrf.mxu0
        %v6792 = vadd.f32 %v6749, %v6791
        %6793 = vdwg.mxu0
        %6794 = vmatprep.subr.bf16.mxu0 0
        %6795 = vmatpush1.bf16.msra.mxu0 0
        %6796 = vmatprep.subr.bf16.mxu0 0
        %6797 = vmatpush1.bf16.msra.mxu0 0
        %6798 = vmatprep.subr.bf16.mxu0 0
        %6799 = vmatpush1.bf16.msra.mxu0 0
        %6800 = vmatprep.subr.bf16.mxu0 0
        %6801 = vmatpush1.bf16.msra.mxu0 0
        %6802 = vmatprep.subr.bf16.mxu0 %v6558
        %6803 = vmatpush1.bf16.msra.mxu0 %v6557
        %6804 = vmatprep.subr.bf16.mxu0 %v6554
        %6805 = vmatpush1.bf16.msra.mxu0 %v6553
        %6806 = vmatprep.subr.bf16.mxu0 %v6550
        %6807 = vmatpush1.bf16.msra.mxu0 %v6549
        %6808 = vmatprep.subr.bf16.mxu0 %v6546
        %6809 = vmatpush1.bf16.msra.mxu0 %v6545
        %6810 = vmatprep.subr.bf16.mxu0 0
        %6811 = vmatpush2.bf16.msra.mxu0 0
        %6812 = vmatprep.subr.bf16.mxu0 0
        %6813 = vmatpush2.bf16.msra.mxu0 0
        %6814 = vmatprep.subr.bf16.mxu0 0
        %6815 = vmatpush2.bf16.msra.mxu0 0
        %6816 = vmatprep.subr.bf16.mxu0 0
        %6817 = vmatpush2.bf16.msra.mxu0 0
        %6818 = vmatprep.subr.bf16.mxu0 0
        %6819 = vmatpush2.bf16.msra.mxu0 0
        %6820 = vmatprep.subr.bf16.mxu0 0
        %6821 = vmatpush2.bf16.msra.mxu0 0
        %6822 = vmatprep.subr.bf16.mxu0 0
        %6823 = vmatpush2.bf16.msra.mxu0 0
        %6824 = vmatprep.subr.bf16.mxu0 0
        %6825 = vmatpush2.bf16.msra.mxu0 0
        %6826 = vmatprep.mubr.bf16.mxu0 0
        %6827 = vmatmul.mubr.bf16.gmra.mxu0 %v6706
        %v6828 = vpop.f32.mrf.mxu0
        %v6829 = vadd.f32 %v6786, %v6828
        %v6830 = vpop.f32.mrf.mxu0
        %v6831 = vadd.f32 %v6788, %v6830
        %v6832 = vpop.f32.mrf.mxu0
        %v6833 = vadd.f32 %v6790, %v6832
        %v6834 = vpop.f32.mrf.mxu0
        %v6835 = vadd.f32 %v6792, %v6834
        %6836 = vdwg.mxu0
        %6837 = vmatprep.subr.bf16.mxu0 %v6448
        %6838 = vmatpush1.bf16.msra.mxu0 %v6447
        %6839 = vmatprep.subr.bf16.mxu0 %v6444
        %6840 = vmatpush1.bf16.msra.mxu0 %v6443
        %6841 = vmatprep.subr.bf16.mxu0 %v6440
        %6842 = vmatpush1.bf16.msra.mxu0 %v6439
        %6843 = vmatprep.subr.bf16.mxu0 %v6436
        %6844 = vmatpush1.bf16.msra.mxu0 %v6435
        %6845 = vmatprep.subr.bf16.mxu0 %v6432
        %6846 = vmatpush1.bf16.msra.mxu0 %v6431
        %6847 = vmatprep.subr.bf16.mxu0 %v6428
        %6848 = vmatpush1.bf16.msra.mxu0 %v6427
        %6849 = vmatprep.subr.bf16.mxu0 %v6424
        %6850 = vmatpush1.bf16.msra.mxu0 %v6423
        %6851 = vmatprep.subr.bf16.mxu0 %v6420
        %6852 = vmatpush1.bf16.msra.mxu0 %v6419
        %6853 = vmatprep.subr.bf16.mxu0 %v6480
        %6854 = vmatpush2.bf16.msra.mxu0 %v6479
        %6855 = vmatprep.subr.bf16.mxu0 %v6476
        %6856 = vmatpush2.bf16.msra.mxu0 %v6475
        %6857 = vmatprep.subr.bf16.mxu0 %v6472
        %6858 = vmatpush2.bf16.msra.mxu0 %v6471
        %6859 = vmatprep.subr.bf16.mxu0 %v6468
        %6860 = vmatpush2.bf16.msra.mxu0 %v6467
        %6861 = vmatprep.subr.bf16.mxu0 %v6464
        %6862 = vmatpush2.bf16.msra.mxu0 %v6463
        %6863 = vmatprep.subr.bf16.mxu0 %v6460
        %6864 = vmatpush2.bf16.msra.mxu0 %v6459
        %6865 = vmatprep.subr.bf16.mxu0 %v6456
        %6866 = vmatpush2.bf16.msra.mxu0 %v6455
        %6867 = vmatprep.subr.bf16.mxu0 %v6452
        %6868 = vmatpush2.bf16.msra.mxu0 %v6451
        %6869 = vmatprep.mubr.bf16.mxu0 %v5944
        %6870 = vmatmul.mubr.bf16.gmra.mxu0 %v5932
        %v6871 = vpop.f32.mrf.mxu0
        %v6872 = vadd.f32 0.0, %v6871
        %v6873 = vpop.f32.mrf.mxu0
        %v6874 = vadd.f32 0.0, %v6873
        %v6875 = vpop.f32.mrf.mxu0
        %v6876 = vadd.f32 0.0, %v6875
        %v6877 = vpop.f32.mrf.mxu0
        %v6878 = vadd.f32 0.0, %v6877
        %6879 = vdwg.mxu0
        %6880 = vmatprep.subr.bf16.mxu0 %v6512
        %6881 = vmatpush1.bf16.msra.mxu0 %v6511
        %6882 = vmatprep.subr.bf16.mxu0 %v6508
        %6883 = vmatpush1.bf16.msra.mxu0 %v6507
        %6884 = vmatprep.subr.bf16.mxu0 %v6504
        %6885 = vmatpush1.bf16.msra.mxu0 %v6503
        %6886 = vmatprep.subr.bf16.mxu0 %v6500
        %6887 = vmatpush1.bf16.msra.mxu0 %v6499
        %6888 = vmatprep.subr.bf16.mxu0 %v6496
        %6889 = vmatpush1.bf16.msra.mxu0 %v6495
        %6890 = vmatprep.subr.bf16.mxu0 %v6492
        %6891 = vmatpush1.bf16.msra.mxu0 %v6491
        %6892 = vmatprep.subr.bf16.mxu0 %v6488
        %6893 = vmatpush1.bf16.msra.mxu0 %v6487
        %6894 = vmatprep.subr.bf16.mxu0 %v6484
        %6895 = vmatpush1.bf16.msra.mxu0 %v6483
        %6896 = vmatprep.subr.bf16.mxu0 %v6544
        %6897 = vmatpush2.bf16.msra.mxu0 %v6543
        %6898 = vmatprep.subr.bf16.mxu0 %v6540
        %6899 = vmatpush2.bf16.msra.mxu0 %v6539
        %6900 = vmatprep.subr.bf16.mxu0 %v6536
        %6901 = vmatpush2.bf16.msra.mxu0 %v6535
        %6902 = vmatprep.subr.bf16.mxu0 %v6532
        %6903 = vmatpush2.bf16.msra.mxu0 %v6531
        %6904 = vmatprep.subr.bf16.mxu0 %v6528
        %6905 = vmatpush2.bf16.msra.mxu0 %v6527
        %6906 = vmatprep.subr.bf16.mxu0 %v6524
        %6907 = vmatpush2.bf16.msra.mxu0 %v6523
        %6908 = vmatprep.subr.bf16.mxu0 %v6520
        %6909 = vmatpush2.bf16.msra.mxu0 %v6519
        %6910 = vmatprep.subr.bf16.mxu0 %v6516
        %6911 = vmatpush2.bf16.msra.mxu0 %v6515
        %6912 = vmatprep.mubr.bf16.mxu0 %v5968
        %6913 = vmatmul.mubr.bf16.gmra.mxu0 %v5956
        %v6914 = vpop.f32.mrf.mxu0
        %v6915 = vadd.f32 %v6872, %v6914
        %v6916 = vpop.f32.mrf.mxu0
        %v6917 = vadd.f32 %v6874, %v6916
        %v6918 = vpop.f32.mrf.mxu0
        %v6919 = vadd.f32 %v6876, %v6918
        %v6920 = vpop.f32.mrf.mxu0
        %v6921 = vadd.f32 %v6878, %v6920
        %6922 = vdwg.mxu0
        %6923 = vmatprep.subr.bf16.mxu0 0
        %6924 = vmatpush1.bf16.msra.mxu0 0
        %6925 = vmatprep.subr.bf16.mxu0 0
        %6926 = vmatpush1.bf16.msra.mxu0 0
        %6927 = vmatprep.subr.bf16.mxu0 0
        %6928 = vmatpush1.bf16.msra.mxu0 0
        %6929 = vmatprep.subr.bf16.mxu0 0
        %6930 = vmatpush1.bf16.msra.mxu0 0
        %6931 = vmatprep.subr.bf16.mxu0 %v6560
        %6932 = vmatpush1.bf16.msra.mxu0 %v6559
        %6933 = vmatprep.subr.bf16.mxu0 %v6556
        %6934 = vmatpush1.bf16.msra.mxu0 %v6555
        %6935 = vmatprep.subr.bf16.mxu0 %v6552
        %6936 = vmatpush1.bf16.msra.mxu0 %v6551
        %6937 = vmatprep.subr.bf16.mxu0 %v6548
        %6938 = vmatpush1.bf16.msra.mxu0 %v6547
        %6939 = vmatprep.subr.bf16.mxu0 0
        %6940 = vmatpush2.bf16.msra.mxu0 0
        %6941 = vmatprep.subr.bf16.mxu0 0
        %6942 = vmatpush2.bf16.msra.mxu0 0
        %6943 = vmatprep.subr.bf16.mxu0 0
        %6944 = vmatpush2.bf16.msra.mxu0 0
        %6945 = vmatprep.subr.bf16.mxu0 0
        %6946 = vmatpush2.bf16.msra.mxu0 0
        %6947 = vmatprep.subr.bf16.mxu0 0
        %6948 = vmatpush2.bf16.msra.mxu0 0
        %6949 = vmatprep.subr.bf16.mxu0 0
        %6950 = vmatpush2.bf16.msra.mxu0 0
        %6951 = vmatprep.subr.bf16.mxu0 0
        %6952 = vmatpush2.bf16.msra.mxu0 0
        %6953 = vmatprep.subr.bf16.mxu0 0
        %6954 = vmatpush2.bf16.msra.mxu0 0
        %6955 = vmatprep.mubr.bf16.mxu0 0
        %6956 = vmatmul.mubr.bf16.gmra.mxu0 %v6706
        %v6957 = vpop.f32.mrf.mxu0
        %v6958 = vadd.f32 %v6915, %v6957
        %v6959 = vpop.f32.mrf.mxu0
        %v6960 = vadd.f32 %v6917, %v6959
        %v6961 = vpop.f32.mrf.mxu0
        %v6962 = vadd.f32 %v6919, %v6961
        %v6963 = vpop.f32.mrf.mxu0
        %v6964 = vadd.f32 %v6921, %v6963
        %6965 = vdwg.mxu0
        %v7110 = vunpack.c.l.b16 %v5627
        %v7111 = vunpack.c.h.b16 %v5627
        %v7112 = vunpack.c.l.b16 %v5628
        %v7113 = vunpack.c.h.b16 %v5628
        %v7114 = vunpack.c.l.b16 %v5629
        %v7115 = vunpack.c.h.b16 %v5629
        %v7116 = vunpack.c.l.b16 %v5630
        %v7117 = vunpack.c.h.b16 %v5630
        %v7118 = vunpack.c.l.b16 %v5631
        %v7119 = vunpack.c.h.b16 %v5631
        %v7120 = vunpack.c.l.b16 %v5632
        %v7121 = vunpack.c.h.b16 %v5632
        %v7122 = vunpack.c.l.b16 %v5633
        %v7123 = vunpack.c.h.b16 %v5633
        %v7124 = vunpack.c.l.b16 %v5634
        %v7125 = vunpack.c.h.b16 %v5634
        %v7126 = vunpack.c.l.b16 %v5635
        %v7127 = vunpack.c.h.b16 %v5635
        %v7128 = vunpack.c.l.b16 %v5636
        %v7129 = vunpack.c.h.b16 %v5636
        %v7130 = vunpack.c.l.b16 %v5637
        %v7131 = vunpack.c.h.b16 %v5637
        %v7132 = vunpack.c.l.b16 %v5638
        %v7133 = vunpack.c.h.b16 %v5638
        %v7134 = vunpack.c.l.b16 %v5639
        %v7135 = vunpack.c.h.b16 %v5639
        %v7136 = vunpack.c.l.b16 %v5640
        %v7137 = vunpack.c.h.b16 %v5640
        %v7138 = vunpack.c.l.b16 %v5641
        %v7139 = vunpack.c.h.b16 %v5641
        %v7140 = vunpack.c.l.b16 %v5642
        %v7141 = vunpack.c.h.b16 %v5642
        %v7142 = vunpack.c.l.b16 %v5643
        %v7143 = vunpack.c.h.b16 %v5643
        %v7144 = vunpack.c.l.b16 %v5644
        %v7145 = vunpack.c.h.b16 %v5644
        %v7146 = vunpack.c.l.b16 %v5645
        %v7147 = vunpack.c.h.b16 %v5645
        %v7148 = vunpack.c.l.b16 %v5646
        %v7149 = vunpack.c.h.b16 %v5646
        %v7150 = vunpack.c.l.b16 %v5647
        %v7151 = vunpack.c.h.b16 %v5647
        %v7152 = vunpack.c.l.b16 %v5648
        %v7153 = vunpack.c.h.b16 %v5648
        %v7154 = vunpack.c.l.b16 %v5649
        %v7155 = vunpack.c.h.b16 %v5649
        %v7156 = vunpack.c.l.b16 %v5650
        %v7157 = vunpack.c.h.b16 %v5650
        %v7158 = vunpack.c.l.b16 %v5651
        %v7159 = vunpack.c.h.b16 %v5651
        %v7160 = vunpack.c.l.b16 %v5652
        %v7161 = vunpack.c.h.b16 %v5652
        %v7162 = vunpack.c.l.b16 %v5653
        %v7163 = vunpack.c.h.b16 %v5653
        %v7164 = vunpack.c.l.b16 %v5654
        %v7165 = vunpack.c.h.b16 %v5654
        %v7166 = vunpack.c.l.b16 %v5655
        %v7167 = vunpack.c.h.b16 %v5655
        %v7168 = vunpack.c.l.b16 %v5656
        %v7169 = vunpack.c.h.b16 %v5656
        %v7170 = vunpack.c.l.b16 %v5657
        %v7171 = vunpack.c.h.b16 %v5657
        %v7172 = vunpack.c.l.b16 %v5658
        %v7173 = vunpack.c.h.b16 %v5658
        %v7174 = vunpack.c.l.b16 %v5659
        %v7175 = vunpack.c.h.b16 %v5659
        %v7176 = vunpack.c.l.b16 %v5660
        %v7177 = vunpack.c.h.b16 %v5660
        %v7178 = vunpack.c.l.b16 %v5661
        %v7179 = vunpack.c.h.b16 %v5661
        %v7180 = vunpack.c.l.b16 %v5662
        %v7181 = vunpack.c.h.b16 %v5662
        %v7182 = vunpack.c.l.b16 %v5663
        %v7183 = vunpack.c.h.b16 %v5663
        %v7184 = vunpack.c.l.b16 %v5664
        %v7185 = vunpack.c.h.b16 %v5664
        %v7186 = vunpack.c.l.b16 %v5665
        %v7187 = vunpack.c.h.b16 %v5665
        %v7188 = vunpack.c.l.b16 %v5666
        %v7189 = vunpack.c.h.b16 %v5666
        %v7190 = vunpack.c.l.b16 %v5667
        %v7191 = vunpack.c.h.b16 %v5667
        %v7192 = vunpack.c.l.b16 %v5668
        %v7193 = vunpack.c.h.b16 %v5668
        %v7194 = vunpack.c.l.b16 %v5669
        %v7195 = vunpack.c.h.b16 %v5669
        %v7196 = vunpack.c.l.b16 %v5670
        %v7197 = vunpack.c.h.b16 %v5670
        %v7198 = vunpack.c.l.b16 %v5671
        %v7199 = vunpack.c.h.b16 %v5671
        %v7200 = vunpack.c.l.b16 %v5672
        %v7201 = vunpack.c.h.b16 %v5672
        %v7202 = vunpack.c.l.b16 %v5673
        %v7203 = vunpack.c.h.b16 %v5673
        %v7204 = vunpack.c.l.b16 %v5674
        %v7205 = vunpack.c.h.b16 %v5674
        %v7206 = vunpack.c.l.b16 %v5675
        %v7207 = vunpack.c.h.b16 %v5675
        %v7208 = vunpack.c.l.b16 %v5676
        %v7209 = vunpack.c.h.b16 %v5676
        %v7210 = vunpack.c.l.b16 %v5677
        %v7211 = vunpack.c.h.b16 %v5677
        %v7212 = vunpack.c.l.b16 %v5678
        %v7213 = vunpack.c.h.b16 %v5678
        %v7214 = vunpack.c.l.b16 %v5679
        %v7215 = vunpack.c.h.b16 %v5679
        %v7216 = vunpack.c.l.b16 %v5680
        %v7217 = vunpack.c.h.b16 %v5680
        %v7218 = vunpack.c.l.b16 %v5681
        %v7219 = vunpack.c.h.b16 %v5681
        %v7220 = vunpack.c.l.b16 %v5682
        %v7221 = vunpack.c.h.b16 %v5682
        %v7222 = vunpack.c.l.b16 %v5683
        %v7223 = vunpack.c.h.b16 %v5683
        %v7224 = vunpack.c.l.b16 %v5684
        %v7225 = vunpack.c.h.b16 %v5684
        %v7226 = vunpack.c.l.b16 %v5685
        %v7227 = vunpack.c.h.b16 %v5685
        %v7228 = vunpack.c.l.b16 %v5686
        %v7229 = vunpack.c.h.b16 %v5686
        %v7230 = vunpack.c.l.b16 %v5687
        %v7231 = vunpack.c.h.b16 %v5687
        %v7232 = vunpack.c.l.b16 %v5688
        %v7233 = vunpack.c.h.b16 %v5688
        %v7234 = vunpack.c.l.b16 %v5689
        %v7235 = vunpack.c.h.b16 %v5689
        %v7236 = vunpack.c.l.b16 %v5690
        %v7237 = vunpack.c.h.b16 %v5690
        %v7238 = vunpack.c.l.b16 %v5691
        %v7239 = vunpack.c.h.b16 %v5691
        %v7240 = vunpack.c.l.b16 %v5692
        %v7241 = vunpack.c.h.b16 %v5692
        %v7242 = vunpack.c.l.b16 %v5693
        %v7243 = vunpack.c.h.b16 %v5693
        %v7244 = vunpack.c.l.b16 %v5694
        %v7245 = vunpack.c.h.b16 %v5694
        %v7246 = vunpack.c.l.b16 %v5695
        %v7247 = vunpack.c.h.b16 %v5695
        %v7248 = vunpack.c.l.b16 %v5696
        %v7249 = vunpack.c.h.b16 %v5696
        %v7250 = vunpack.c.l.b16 %v5697
        %v7251 = vunpack.c.h.b16 %v5697
        %v7252 = vunpack.c.l.b16 %v5698
        %v7253 = vunpack.c.h.b16 %v5698
        %v7254 = vunpack.c.l.b16 %v5699
        %v7255 = vunpack.c.h.b16 %v5699
        %v7256 = vunpack.c.l.b16 %v5700
        %v7257 = vunpack.c.h.b16 %v5700
        %v7258 = vunpack.c.l.b16 %v5701
        %v7259 = vunpack.c.h.b16 %v5701
        %v7260 = vunpack.c.l.b16 %v5702
        %v7261 = vunpack.c.h.b16 %v5702
        %v7262 = vunpack.c.l.b16 %v5703
        %v7263 = vunpack.c.h.b16 %v5703
        %v7264 = vunpack.c.l.b16 %v5704
        %v7265 = vunpack.c.h.b16 %v5704
        %v7266 = vunpack.c.l.b16 %v5705
        %v7267 = vunpack.c.h.b16 %v5705
        %v7268 = vunpack.c.l.b16 %v5706
        %v7269 = vunpack.c.h.b16 %v5706
        %v7270 = vunpack.c.l.b16 %v5707
        %v7271 = vunpack.c.h.b16 %v5707
        %v7272 = vunpack.c.l.b16 %v5708
        %v7273 = vunpack.c.h.b16 %v5708
        %v7274 = vunpack.c.l.b16 %v5709
        %v7275 = vunpack.c.h.b16 %v5709
        %v7276 = vunpack.c.l.b16 %v5710
        %v7277 = vunpack.c.h.b16 %v5710
        %v7278 = vunpack.c.l.b16 %v5711
        %v7279 = vunpack.c.h.b16 %v5711
        %v7280 = vunpack.c.l.b16 %v5712
        %v7281 = vunpack.c.h.b16 %v5712
        %v7282 = vunpack.c.l.b16 %v5713
        %v7283 = vunpack.c.h.b16 %v5713
        %v7284 = vunpack.c.l.b16 %v5714
        %v7285 = vunpack.c.h.b16 %v5714
        %v7286 = vunpack.c.l.b16 %v5715
        %v7287 = vunpack.c.h.b16 %v5715
        %v7288 = vunpack.c.l.b16 %v5716
        %v7289 = vunpack.c.h.b16 %v5716
        %v7290 = vunpack.c.l.b16 %v5717
        %v7291 = vunpack.c.h.b16 %v5717
        %v7292 = vunpack.c.l.b16 %v5718
        %v7293 = vunpack.c.h.b16 %v5718
        %v7294 = vunpack.c.l.b16 %v5719
        %v7295 = vunpack.c.h.b16 %v5719
        %v7296 = vunpack.c.l.b16 %v5720
        %v7297 = vunpack.c.h.b16 %v5720
        %v7298 = vunpack.c.l.b16 %v5721
        %v7299 = vunpack.c.h.b16 %v5721
        %v7300 = vunpack.c.l.b16 %v5722
        %v7301 = vunpack.c.h.b16 %v5722
        %v7302 = vunpack.c.l.b16 %v5723
        %v7303 = vunpack.c.h.b16 %v5723
        %v7304 = vunpack.c.l.b16 %v5724
        %v7305 = vunpack.c.h.b16 %v5724
        %v7306 = vunpack.c.l.b16 %v5725
        %v7307 = vunpack.c.h.b16 %v5725
        %v7308 = vunpack.c.l.b16 %v5726
        %v7309 = vunpack.c.h.b16 %v5726
        %v7310 = vunpack.c.l.b16 %v5727
        %v7311 = vunpack.c.h.b16 %v5727
        %v7312 = vunpack.c.l.b16 %v5728
        %v7313 = vunpack.c.h.b16 %v5728
        %v7314 = vunpack.c.l.b16 %v5729
        %v7315 = vunpack.c.h.b16 %v5729
        %v7316 = vunpack.c.l.b16 %v5730
        %v7317 = vunpack.c.h.b16 %v5730
        %v7318 = vunpack.c.l.b16 %v5731
        %v7319 = vunpack.c.h.b16 %v5731
        %v7320 = vunpack.c.l.b16 %v5732
        %v7321 = vunpack.c.h.b16 %v5732
        %v7322 = vunpack.c.l.b16 %v5733
        %v7323 = vunpack.c.h.b16 %v5733
        %v7324 = vunpack.c.l.b16 %v5734
        %v7325 = vunpack.c.h.b16 %v5734
        %v7326 = vunpack.c.l.b16 %v5735
        %v7327 = vunpack.c.h.b16 %v5735
        %v7328 = vunpack.c.l.b16 %v5736
        %v7329 = vunpack.c.h.b16 %v5736
        %v7330 = vunpack.c.l.b16 %v5737
        %v7331 = vunpack.c.h.b16 %v5737
        %v7332 = vunpack.c.l.b16 %v5738
        %v7333 = vunpack.c.h.b16 %v5738
        %v7334 = vunpack.c.l.b16 %v5739
        %v7335 = vunpack.c.h.b16 %v5739
        %v7336 = vunpack.c.l.b16 %v5740
        %v7337 = vunpack.c.h.b16 %v5740
        %v7338 = vunpack.c.l.b16 %v5741
        %v7339 = vunpack.c.h.b16 %v5741
        %v7340 = vunpack.c.l.b16 %v5742
        %v7341 = vunpack.c.h.b16 %v5742
        %v7342 = vunpack.c.l.b16 %v5743
        %v7343 = vunpack.c.h.b16 %v5743
        %v7344 = vunpack.c.l.b16 %v5744
        %v7345 = vunpack.c.h.b16 %v5744
        %v7346 = vunpack.c.l.b16 %v5745
        %v7347 = vunpack.c.h.b16 %v5745
        %v7348 = vunpack.c.l.b16 %v5746
        %v7349 = vunpack.c.h.b16 %v5746
        %v7350 = vunpack.c.l.b16 %v5747
        %v7351 = vunpack.c.h.b16 %v5747
        %v7352 = vunpack.c.l.b16 %v5748
        %v7353 = vunpack.c.h.b16 %v5748
        %v7354 = vunpack.c.l.b16 %v5749
        %v7355 = vunpack.c.h.b16 %v5749
        %v7356 = vunpack.c.l.b16 %v5750
        %v7357 = vunpack.c.h.b16 %v5750
        %v7358 = vunpack.c.l.b16 %v5751
        %v7359 = vunpack.c.h.b16 %v5751
        %v7360 = vunpack.c.l.b16 %v5752
        %v7361 = vunpack.c.h.b16 %v5752
        %v7362 = vunpack.c.l.b16 %v5753
        %v7363 = vunpack.c.h.b16 %v5753
        %v7364 = vunpack.c.l.b16 %v5754
        %v7365 = vunpack.c.h.b16 %v5754
        %v7366 = vunpack.c.l.b16 %v5755
        %v7367 = vunpack.c.h.b16 %v5755
        %v7368 = vunpack.c.l.b16 %v5756
        %v7369 = vunpack.c.h.b16 %v5756
        %v7370 = vunpack.c.l.b16 %v5757
        %v7371 = vunpack.c.h.b16 %v5757
        %v7372 = vunpack.c.l.b16 %v5758
        %v7373 = vunpack.c.h.b16 %v5758
        %v7374 = vunpack.c.l.b16 %v5759
        %v7375 = vunpack.c.h.b16 %v5759
        %v7376 = vunpack.c.l.b16 %v5760
        %v7377 = vunpack.c.h.b16 %v5760
        %v7378 = vunpack.c.l.b16 %v5761
        %v7379 = vunpack.c.h.b16 %v5761
        %v7380 = vunpack.c.l.b16 %v5762
        %v7381 = vunpack.c.h.b16 %v5762
        %v7382 = vunpack.c.l.b16 %v5763
        %v7383 = vunpack.c.h.b16 %v5763
        %v7384 = vunpack.c.l.b16 %v5764
        %v7385 = vunpack.c.h.b16 %v5764
        %v7386 = vunpack.c.l.b16 %v5765
        %v7387 = vunpack.c.h.b16 %v5765
        %v7388 = vunpack.c.l.b16 %v5766
        %v7389 = vunpack.c.h.b16 %v5766
        %v7390 = vunpack.c.l.b16 %v5767
        %v7391 = vunpack.c.h.b16 %v5767
        %v7392 = vunpack.c.l.b16 %v5768
        %v7393 = vunpack.c.h.b16 %v5768
        %v7394 = vunpack.c.l.b16 %v5769
        %v7395 = vunpack.c.h.b16 %v5769
        %v7396 = vunpack.c.l.b16 %v5770
        %v7397 = vunpack.c.h.b16 %v5770
        %v7398 = vpack.c.b16 %v7114, %v7110
        %v7399 = vpack.c.b16 %v7115, %v7111
        %v7400 = vpack.c.b16 %v7116, %v7112
        %v7401 = vpack.c.b16 %v7117, %v7113
        %v7402 = vpack.c.b16 %v7122, %v7118
        %v7403 = vpack.c.b16 %v7123, %v7119
        %v7404 = vpack.c.b16 %v7124, %v7120
        %v7405 = vpack.c.b16 %v7125, %v7121
        %v7406 = vpack.c.b16 %v7130, %v7126
        %v7407 = vpack.c.b16 %v7131, %v7127
        %v7408 = vpack.c.b16 %v7132, %v7128
        %v7409 = vpack.c.b16 %v7133, %v7129
        %v7410 = vpack.c.b16 %v7138, %v7134
        %v7411 = vpack.c.b16 %v7139, %v7135
        %v7412 = vpack.c.b16 %v7140, %v7136
        %v7413 = vpack.c.b16 %v7141, %v7137
        %v7414 = vpack.c.b16 %v7146, %v7142
        %v7415 = vpack.c.b16 %v7147, %v7143
        %v7416 = vpack.c.b16 %v7148, %v7144
        %v7417 = vpack.c.b16 %v7149, %v7145
        %v7418 = vpack.c.b16 %v7154, %v7150
        %v7419 = vpack.c.b16 %v7155, %v7151
        %v7420 = vpack.c.b16 %v7156, %v7152
        %v7421 = vpack.c.b16 %v7157, %v7153
        %v7422 = vpack.c.b16 %v7162, %v7158
        %v7423 = vpack.c.b16 %v7163, %v7159
        %v7424 = vpack.c.b16 %v7164, %v7160
        %v7425 = vpack.c.b16 %v7165, %v7161
        %v7426 = vpack.c.b16 %v7170, %v7166
        %v7427 = vpack.c.b16 %v7171, %v7167
        %v7428 = vpack.c.b16 %v7172, %v7168
        %v7429 = vpack.c.b16 %v7173, %v7169
        %v7430 = vpack.c.b16 %v7178, %v7174
        %v7431 = vpack.c.b16 %v7179, %v7175
        %v7432 = vpack.c.b16 %v7180, %v7176
        %v7433 = vpack.c.b16 %v7181, %v7177
        %v7434 = vpack.c.b16 %v7186, %v7182
        %v7435 = vpack.c.b16 %v7187, %v7183
        %v7436 = vpack.c.b16 %v7188, %v7184
        %v7437 = vpack.c.b16 %v7189, %v7185
        %v7438 = vpack.c.b16 %v7194, %v7190
        %v7439 = vpack.c.b16 %v7195, %v7191
        %v7440 = vpack.c.b16 %v7196, %v7192
        %v7441 = vpack.c.b16 %v7197, %v7193
        %v7442 = vpack.c.b16 %v7202, %v7198
        %v7443 = vpack.c.b16 %v7203, %v7199
        %v7444 = vpack.c.b16 %v7204, %v7200
        %v7445 = vpack.c.b16 %v7205, %v7201
        %v7446 = vpack.c.b16 %v7210, %v7206
        %v7447 = vpack.c.b16 %v7211, %v7207
        %v7448 = vpack.c.b16 %v7212, %v7208
        %v7449 = vpack.c.b16 %v7213, %v7209
        %v7450 = vpack.c.b16 %v7218, %v7214
        %v7451 = vpack.c.b16 %v7219, %v7215
        %v7452 = vpack.c.b16 %v7220, %v7216
        %v7453 = vpack.c.b16 %v7221, %v7217
        %v7454 = vpack.c.b16 %v7226, %v7222
        %v7455 = vpack.c.b16 %v7227, %v7223
        %v7456 = vpack.c.b16 %v7228, %v7224
        %v7457 = vpack.c.b16 %v7229, %v7225
        %v7458 = vpack.c.b16 %v7234, %v7230
        %v7459 = vpack.c.b16 %v7235, %v7231
        %v7460 = vpack.c.b16 %v7236, %v7232
        %v7461 = vpack.c.b16 %v7237, %v7233
        %v7462 = vpack.c.b16 %v7242, %v7238
        %v7463 = vpack.c.b16 %v7243, %v7239
        %v7464 = vpack.c.b16 %v7244, %v7240
        %v7465 = vpack.c.b16 %v7245, %v7241
        %v7466 = vpack.c.b16 %v7250, %v7246
        %v7467 = vpack.c.b16 %v7251, %v7247
        %v7468 = vpack.c.b16 %v7252, %v7248
        %v7469 = vpack.c.b16 %v7253, %v7249
        %v7470 = vpack.c.b16 %v7258, %v7254
        %v7471 = vpack.c.b16 %v7259, %v7255
        %v7472 = vpack.c.b16 %v7260, %v7256
        %v7473 = vpack.c.b16 %v7261, %v7257
        %v7474 = vpack.c.b16 %v7266, %v7262
        %v7475 = vpack.c.b16 %v7267, %v7263
        %v7476 = vpack.c.b16 %v7268, %v7264
        %v7477 = vpack.c.b16 %v7269, %v7265
        %v7478 = vpack.c.b16 %v7274, %v7270
        %v7479 = vpack.c.b16 %v7275, %v7271
        %v7480 = vpack.c.b16 %v7276, %v7272
        %v7481 = vpack.c.b16 %v7277, %v7273
        %v7482 = vpack.c.b16 %v7282, %v7278
        %v7483 = vpack.c.b16 %v7283, %v7279
        %v7484 = vpack.c.b16 %v7284, %v7280
        %v7485 = vpack.c.b16 %v7285, %v7281
        %v7486 = vpack.c.b16 %v7290, %v7286
        %v7487 = vpack.c.b16 %v7291, %v7287
        %v7488 = vpack.c.b16 %v7292, %v7288
        %v7489 = vpack.c.b16 %v7293, %v7289
        %v7490 = vpack.c.b16 %v7298, %v7294
        %v7491 = vpack.c.b16 %v7299, %v7295
        %v7492 = vpack.c.b16 %v7300, %v7296
        %v7493 = vpack.c.b16 %v7301, %v7297
        %v7494 = vpack.c.b16 %v7306, %v7302
        %v7495 = vpack.c.b16 %v7307, %v7303
        %v7496 = vpack.c.b16 %v7308, %v7304
        %v7497 = vpack.c.b16 %v7309, %v7305
        %v7498 = vpack.c.b16 %v7314, %v7310
        %v7499 = vpack.c.b16 %v7315, %v7311
        %v7500 = vpack.c.b16 %v7316, %v7312
        %v7501 = vpack.c.b16 %v7317, %v7313
        %v7502 = vpack.c.b16 %v7322, %v7318
        %v7503 = vpack.c.b16 %v7323, %v7319
        %v7504 = vpack.c.b16 %v7324, %v7320
        %v7505 = vpack.c.b16 %v7325, %v7321
        %v7506 = vpack.c.b16 %v7330, %v7326
        %v7507 = vpack.c.b16 %v7331, %v7327
        %v7508 = vpack.c.b16 %v7332, %v7328
        %v7509 = vpack.c.b16 %v7333, %v7329
        %v7510 = vpack.c.b16 %v7338, %v7334
        %v7511 = vpack.c.b16 %v7339, %v7335
        %v7512 = vpack.c.b16 %v7340, %v7336
        %v7513 = vpack.c.b16 %v7341, %v7337
        %v7514 = vpack.c.b16 %v7346, %v7342
        %v7515 = vpack.c.b16 %v7347, %v7343
        %v7516 = vpack.c.b16 %v7348, %v7344
        %v7517 = vpack.c.b16 %v7349, %v7345
        %v7518 = vpack.c.b16 %v7354, %v7350
        %v7519 = vpack.c.b16 %v7355, %v7351
        %v7520 = vpack.c.b16 %v7356, %v7352
        %v7521 = vpack.c.b16 %v7357, %v7353
        %v7522 = vpack.c.b16 %v7362, %v7358
        %v7523 = vpack.c.b16 %v7363, %v7359
        %v7524 = vpack.c.b16 %v7364, %v7360
        %v7525 = vpack.c.b16 %v7365, %v7361
        %v7526 = vpack.c.b16 %v7370, %v7366
        %v7527 = vpack.c.b16 %v7371, %v7367
        %v7528 = vpack.c.b16 %v7372, %v7368
        %v7529 = vpack.c.b16 %v7373, %v7369
        %v7530 = vpack.c.b16 %v7378, %v7374
        %v7531 = vpack.c.b16 %v7379, %v7375
        %v7532 = vpack.c.b16 %v7380, %v7376
        %v7533 = vpack.c.b16 %v7381, %v7377
        %v7534 = vpack.c.b16 %v7386, %v7382
        %v7535 = vpack.c.b16 %v7387, %v7383
        %v7536 = vpack.c.b16 %v7388, %v7384
        %v7537 = vpack.c.b16 %v7389, %v7385
        %v7538 = vpack.c.b16 %v7394, %v7390
        %v7539 = vpack.c.b16 %v7395, %v7391
        %v7540 = vpack.c.b16 %v7396, %v7392
        %v7541 = vpack.c.b16 %v7397, %v7393
        %v7686 = vsel %vm1969, %v5626, 0
        %7688 = vmatprep.subr.bf16.mxu0 %v7427
        %7689 = vmatpush1.bf16.msra.mxu0 %v7426
        %7690 = vmatprep.subr.bf16.mxu0 %v7423
        %7691 = vmatpush1.bf16.msra.mxu0 %v7422
        %7692 = vmatprep.subr.bf16.mxu0 %v7419
        %7693 = vmatpush1.bf16.msra.mxu0 %v7418
        %7694 = vmatprep.subr.bf16.mxu0 %v7415
        %7695 = vmatpush1.bf16.msra.mxu0 %v7414
        %7696 = vmatprep.subr.bf16.mxu0 %v7411
        %7697 = vmatpush1.bf16.msra.mxu0 %v7410
        %7698 = vmatprep.subr.bf16.mxu0 %v7407
        %7699 = vmatpush1.bf16.msra.mxu0 %v7406
        %7700 = vmatprep.subr.bf16.mxu0 %v7403
        %7701 = vmatpush1.bf16.msra.mxu0 %v7402
        %7702 = vmatprep.subr.bf16.mxu0 %v7399
        %7703 = vmatpush1.bf16.msra.mxu0 %v7398
        %7704 = vmatprep.subr.bf16.mxu0 %v7459
        %7705 = vmatpush2.bf16.msra.mxu0 %v7458
        %7706 = vmatprep.subr.bf16.mxu0 %v7455
        %7707 = vmatpush2.bf16.msra.mxu0 %v7454
        %7708 = vmatprep.subr.bf16.mxu0 %v7451
        %7709 = vmatpush2.bf16.msra.mxu0 %v7450
        %7710 = vmatprep.subr.bf16.mxu0 %v7447
        %7711 = vmatpush2.bf16.msra.mxu0 %v7446
        %7712 = vmatprep.subr.bf16.mxu0 %v7443
        %7713 = vmatpush2.bf16.msra.mxu0 %v7442
        %7714 = vmatprep.subr.bf16.mxu0 %v7439
        %7715 = vmatpush2.bf16.msra.mxu0 %v7438
        %7716 = vmatprep.subr.bf16.mxu0 %v7435
        %7717 = vmatpush2.bf16.msra.mxu0 %v7434
        %7718 = vmatprep.subr.bf16.mxu0 %v7431
        %7719 = vmatpush2.bf16.msra.mxu0 %v7430
        %7720 = vmatprep.mubr.bf16.mxu0 %v5623
        %7721 = vmatmul.mubr.bf16.gmra.mxu0 %v5622
        %v7722 = vpop.f32.mrf.mxu0
        %v7723 = vadd.f32 %v6829, %v7722
        %v7724 = vpop.f32.mrf.mxu0
        %v7725 = vadd.f32 %v6831, %v7724
        %v7726 = vpop.f32.mrf.mxu0
        %v7727 = vadd.f32 %v6833, %v7726
        %v7728 = vpop.f32.mrf.mxu0
        %v7729 = vadd.f32 %v6835, %v7728
        %7730 = vdwg.mxu0
        %7731 = vmatprep.subr.bf16.mxu0 %v7491
        %7732 = vmatpush1.bf16.msra.mxu0 %v7490
        %7733 = vmatprep.subr.bf16.mxu0 %v7487
        %7734 = vmatpush1.bf16.msra.mxu0 %v7486
        %7735 = vmatprep.subr.bf16.mxu0 %v7483
        %7736 = vmatpush1.bf16.msra.mxu0 %v7482
        %7737 = vmatprep.subr.bf16.mxu0 %v7479
        %7738 = vmatpush1.bf16.msra.mxu0 %v7478
        %7739 = vmatprep.subr.bf16.mxu0 %v7475
        %7740 = vmatpush1.bf16.msra.mxu0 %v7474
        %7741 = vmatprep.subr.bf16.mxu0 %v7471
        %7742 = vmatpush1.bf16.msra.mxu0 %v7470
        %7743 = vmatprep.subr.bf16.mxu0 %v7467
        %7744 = vmatpush1.bf16.msra.mxu0 %v7466
        %7745 = vmatprep.subr.bf16.mxu0 %v7463
        %7746 = vmatpush1.bf16.msra.mxu0 %v7462
        %7747 = vmatprep.subr.bf16.mxu0 %v7523
        %7748 = vmatpush2.bf16.msra.mxu0 %v7522
        %7749 = vmatprep.subr.bf16.mxu0 %v7519
        %7750 = vmatpush2.bf16.msra.mxu0 %v7518
        %7751 = vmatprep.subr.bf16.mxu0 %v7515
        %7752 = vmatpush2.bf16.msra.mxu0 %v7514
        %7753 = vmatprep.subr.bf16.mxu0 %v7511
        %7754 = vmatpush2.bf16.msra.mxu0 %v7510
        %7755 = vmatprep.subr.bf16.mxu0 %v7507
        %7756 = vmatpush2.bf16.msra.mxu0 %v7506
        %7757 = vmatprep.subr.bf16.mxu0 %v7503
        %7758 = vmatpush2.bf16.msra.mxu0 %v7502
        %7759 = vmatprep.subr.bf16.mxu0 %v7499
        %7760 = vmatpush2.bf16.msra.mxu0 %v7498
        %7761 = vmatprep.subr.bf16.mxu0 %v7495
        %7762 = vmatpush2.bf16.msra.mxu0 %v7494
        %7763 = vmatprep.mubr.bf16.mxu0 %v5625
        %7764 = vmatmul.mubr.bf16.gmra.mxu0 %v5624
        %v7765 = vpop.f32.mrf.mxu0
        %v7766 = vadd.f32 %v7723, %v7765
        %v7767 = vpop.f32.mrf.mxu0
        %v7768 = vadd.f32 %v7725, %v7767
        %v7769 = vpop.f32.mrf.mxu0
        %v7770 = vadd.f32 %v7727, %v7769
        %v7771 = vpop.f32.mrf.mxu0
        %v7772 = vadd.f32 %v7729, %v7771
        %7773 = vdwg.mxu0
        %7774 = vmatprep.subr.bf16.mxu0 0
        %7775 = vmatpush1.bf16.msra.mxu0 0
        %7776 = vmatprep.subr.bf16.mxu0 0
        %7777 = vmatpush1.bf16.msra.mxu0 0
        %7778 = vmatprep.subr.bf16.mxu0 0
        %7779 = vmatpush1.bf16.msra.mxu0 0
        %7780 = vmatprep.subr.bf16.mxu0 0
        %7781 = vmatpush1.bf16.msra.mxu0 0
        %7782 = vmatprep.subr.bf16.mxu0 %v7539
        %7783 = vmatpush1.bf16.msra.mxu0 %v7538
        %7784 = vmatprep.subr.bf16.mxu0 %v7535
        %7785 = vmatpush1.bf16.msra.mxu0 %v7534
        %7786 = vmatprep.subr.bf16.mxu0 %v7531
        %7787 = vmatpush1.bf16.msra.mxu0 %v7530
        %7788 = vmatprep.subr.bf16.mxu0 %v7527
        %7789 = vmatpush1.bf16.msra.mxu0 %v7526
        %7790 = vmatprep.subr.bf16.mxu0 0
        %7791 = vmatpush2.bf16.msra.mxu0 0
        %7792 = vmatprep.subr.bf16.mxu0 0
        %7793 = vmatpush2.bf16.msra.mxu0 0
        %7794 = vmatprep.subr.bf16.mxu0 0
        %7795 = vmatpush2.bf16.msra.mxu0 0
        %7796 = vmatprep.subr.bf16.mxu0 0
        %7797 = vmatpush2.bf16.msra.mxu0 0
        %7798 = vmatprep.subr.bf16.mxu0 0
        %7799 = vmatpush2.bf16.msra.mxu0 0
        %7800 = vmatprep.subr.bf16.mxu0 0
        %7801 = vmatpush2.bf16.msra.mxu0 0
        %7802 = vmatprep.subr.bf16.mxu0 0
        %7803 = vmatpush2.bf16.msra.mxu0 0
        %7804 = vmatprep.subr.bf16.mxu0 0
        %7805 = vmatpush2.bf16.msra.mxu0 0
        %7806 = vmatprep.mubr.bf16.mxu0 0
        %7807 = vmatmul.mubr.bf16.gmra.mxu0 %v7686
        %v7808 = vpop.f32.mrf.mxu0
        %v7809 = vadd.f32 %v7766, %v7808
        %v7810 = vpop.f32.mrf.mxu0
        %v7811 = vadd.f32 %v7768, %v7810
        %v7812 = vpop.f32.mrf.mxu0
        %v7813 = vadd.f32 %v7770, %v7812
        %v7814 = vpop.f32.mrf.mxu0
        %v7815 = vadd.f32 %v7772, %v7814
        %7816 = vdwg.mxu0
        %7817 = vmatprep.subr.bf16.mxu0 %v7429
        %7818 = vmatpush1.bf16.msra.mxu0 %v7428
        %7819 = vmatprep.subr.bf16.mxu0 %v7425
        %7820 = vmatpush1.bf16.msra.mxu0 %v7424
        %7821 = vmatprep.subr.bf16.mxu0 %v7421
        %7822 = vmatpush1.bf16.msra.mxu0 %v7420
        %7823 = vmatprep.subr.bf16.mxu0 %v7417
        %7824 = vmatpush1.bf16.msra.mxu0 %v7416
        %7825 = vmatprep.subr.bf16.mxu0 %v7413
        %7826 = vmatpush1.bf16.msra.mxu0 %v7412
        %7827 = vmatprep.subr.bf16.mxu0 %v7409
        %7828 = vmatpush1.bf16.msra.mxu0 %v7408
        %7829 = vmatprep.subr.bf16.mxu0 %v7405
        %7830 = vmatpush1.bf16.msra.mxu0 %v7404
        %7831 = vmatprep.subr.bf16.mxu0 %v7401
        %7832 = vmatpush1.bf16.msra.mxu0 %v7400
        %7833 = vmatprep.subr.bf16.mxu0 %v7461
        %7834 = vmatpush2.bf16.msra.mxu0 %v7460
        %7835 = vmatprep.subr.bf16.mxu0 %v7457
        %7836 = vmatpush2.bf16.msra.mxu0 %v7456
        %7837 = vmatprep.subr.bf16.mxu0 %v7453
        %7838 = vmatpush2.bf16.msra.mxu0 %v7452
        %7839 = vmatprep.subr.bf16.mxu0 %v7449
        %7840 = vmatpush2.bf16.msra.mxu0 %v7448
        %7841 = vmatprep.subr.bf16.mxu0 %v7445
        %7842 = vmatpush2.bf16.msra.mxu0 %v7444
        %7843 = vmatprep.subr.bf16.mxu0 %v7441
        %7844 = vmatpush2.bf16.msra.mxu0 %v7440
        %7845 = vmatprep.subr.bf16.mxu0 %v7437
        %7846 = vmatpush2.bf16.msra.mxu0 %v7436
        %7847 = vmatprep.subr.bf16.mxu0 %v7433
        %7848 = vmatpush2.bf16.msra.mxu0 %v7432
        %7849 = vmatprep.mubr.bf16.mxu0 %v5623
        %7850 = vmatmul.mubr.bf16.gmra.mxu0 %v5622
        %v7851 = vpop.f32.mrf.mxu0
        %v7852 = vadd.f32 %v6958, %v7851
        %v7853 = vpop.f32.mrf.mxu0
        %v7854 = vadd.f32 %v6960, %v7853
        %v7855 = vpop.f32.mrf.mxu0
        %v7856 = vadd.f32 %v6962, %v7855
        %v7857 = vpop.f32.mrf.mxu0
        %v7858 = vadd.f32 %v6964, %v7857
        %7859 = vdwg.mxu0
        %7860 = vmatprep.subr.bf16.mxu0 %v7493
        %7861 = vmatpush1.bf16.msra.mxu0 %v7492
        %7862 = vmatprep.subr.bf16.mxu0 %v7489
        %7863 = vmatpush1.bf16.msra.mxu0 %v7488
        %7864 = vmatprep.subr.bf16.mxu0 %v7485
        %7865 = vmatpush1.bf16.msra.mxu0 %v7484
        %7866 = vmatprep.subr.bf16.mxu0 %v7481
        %7867 = vmatpush1.bf16.msra.mxu0 %v7480
        %7868 = vmatprep.subr.bf16.mxu0 %v7477
        %7869 = vmatpush1.bf16.msra.mxu0 %v7476
        %7870 = vmatprep.subr.bf16.mxu0 %v7473
        %7871 = vmatpush1.bf16.msra.mxu0 %v7472
        %7872 = vmatprep.subr.bf16.mxu0 %v7469
        %7873 = vmatpush1.bf16.msra.mxu0 %v7468
        %7874 = vmatprep.subr.bf16.mxu0 %v7465
        %7875 = vmatpush1.bf16.msra.mxu0 %v7464
        %7876 = vmatprep.subr.bf16.mxu0 %v7525
        %7877 = vmatpush2.bf16.msra.mxu0 %v7524
        %7878 = vmatprep.subr.bf16.mxu0 %v7521
        %7879 = vmatpush2.bf16.msra.mxu0 %v7520
        %7880 = vmatprep.subr.bf16.mxu0 %v7517
        %7881 = vmatpush2.bf16.msra.mxu0 %v7516
        %7882 = vmatprep.subr.bf16.mxu0 %v7513
        %7883 = vmatpush2.bf16.msra.mxu0 %v7512
        %7884 = vmatprep.subr.bf16.mxu0 %v7509
        %7885 = vmatpush2.bf16.msra.mxu0 %v7508
        %7886 = vmatprep.subr.bf16.mxu0 %v7505
        %7887 = vmatpush2.bf16.msra.mxu0 %v7504
        %7888 = vmatprep.subr.bf16.mxu0 %v7501
        %7889 = vmatpush2.bf16.msra.mxu0 %v7500
        %7890 = vmatprep.subr.bf16.mxu0 %v7497
        %7891 = vmatpush2.bf16.msra.mxu0 %v7496
        %7892 = vmatprep.mubr.bf16.mxu0 %v5625
        %7893 = vmatmul.mubr.bf16.gmra.mxu0 %v5624
        %v7894 = vpop.f32.mrf.mxu0
        %v7895 = vadd.f32 %v7852, %v7894
        %v7896 = vpop.f32.mrf.mxu0
        %v7897 = vadd.f32 %v7854, %v7896
        %v7898 = vpop.f32.mrf.mxu0
        %v7899 = vadd.f32 %v7856, %v7898
        %v7900 = vpop.f32.mrf.mxu0
        %v7901 = vadd.f32 %v7858, %v7900
        %7902 = vdwg.mxu0
        %7903 = vmatprep.subr.bf16.mxu0 0
        %7904 = vmatpush1.bf16.msra.mxu0 0
        %7905 = vmatprep.subr.bf16.mxu0 0
        %7906 = vmatpush1.bf16.msra.mxu0 0
        %7907 = vmatprep.subr.bf16.mxu0 0
        %7908 = vmatpush1.bf16.msra.mxu0 0
        %7909 = vmatprep.subr.bf16.mxu0 0
        %7910 = vmatpush1.bf16.msra.mxu0 0
        %7911 = vmatprep.subr.bf16.mxu0 %v7541
        %7912 = vmatpush1.bf16.msra.mxu0 %v7540
        %7913 = vmatprep.subr.bf16.mxu0 %v7537
        %7914 = vmatpush1.bf16.msra.mxu0 %v7536
        %7915 = vmatprep.subr.bf16.mxu0 %v7533
        %7916 = vmatpush1.bf16.msra.mxu0 %v7532
        %7917 = vmatprep.subr.bf16.mxu0 %v7529
        %7918 = vmatpush1.bf16.msra.mxu0 %v7528
        %7919 = vmatprep.subr.bf16.mxu0 0
        %7920 = vmatpush2.bf16.msra.mxu0 0
        %7921 = vmatprep.subr.bf16.mxu0 0
        %7922 = vmatpush2.bf16.msra.mxu0 0
        %7923 = vmatprep.subr.bf16.mxu0 0
        %7924 = vmatpush2.bf16.msra.mxu0 0
        %7925 = vmatprep.subr.bf16.mxu0 0
        %7926 = vmatpush2.bf16.msra.mxu0 0
        %7927 = vmatprep.subr.bf16.mxu0 0
        %7928 = vmatpush2.bf16.msra.mxu0 0
        %7929 = vmatprep.subr.bf16.mxu0 0
        %7930 = vmatpush2.bf16.msra.mxu0 0
        %7931 = vmatprep.subr.bf16.mxu0 0
        %7932 = vmatpush2.bf16.msra.mxu0 0
        %7933 = vmatprep.subr.bf16.mxu0 0
        %7934 = vmatpush2.bf16.msra.mxu0 0
        %7935 = vmatprep.mubr.bf16.mxu0 0
        %7936 = vmatmul.mubr.bf16.gmra.mxu0 %v7686
        %v7937 = vpop.f32.mrf.mxu0
        %v7938 = vadd.f32 %v7895, %v7937
        %v7939 = vpop.f32.mrf.mxu0
        %v7940 = vadd.f32 %v7897, %v7939
        %v7941 = vpop.f32.mrf.mxu0
        %v7942 = vadd.f32 %v7899, %v7941
        %v7943 = vpop.f32.mrf.mxu0
        %v7944 = vadd.f32 %v7901, %v7943
        %7945 = vdwg.mxu0
        %s7946 = scalar_lea.vmem [#allocation7], 2304
        %v7947 = vld [vmem:[%s7946] sm:$0xff]
        %v7948 = vld [vmem:[%s7946 + $0x8] sm:$0xff]
        %v7949 = vld [vmem:[%s7946 + $0x10] sm:$0xff]
        %v7950 = vld [vmem:[%s7946 + $0x18] sm:$0xff]
        %v7951 = vld [vmem:[%s7946 + $0x20] sm:$0xff]
        %v7952 = vld [vmem:[%s7946 + $0x28] sm:$0xff]
        %v7953 = vld [vmem:[%s7946 + $0x30] sm:$0xff]
        %v7954 = vld [vmem:[%s7946 + $0x38] sm:$0xff]
        %v7955 = vld [vmem:[%s7946 + $0x40] sm:$0xff]
        %v7956 = vld [vmem:[%s7946 + $0x48] sm:$0xff]
        %v7957 = vld [vmem:[%s7946 + $0x50] sm:$0xff]
        %v7958 = vld [vmem:[%s7946 + $0x58] sm:$0xff]
        %v7959 = vld [vmem:[%s7946 + $0x60] sm:$0xff]
        %v7960 = vld [vmem:[%s7946 + $0x68] sm:$0xff]
        %v7961 = vld [vmem:[%s7946 + $0x70] sm:$0xff]
        %v7962 = vld [vmem:[%s7946 + $0x78] sm:$0xff]
        %v7963 = vld [vmem:[%s7946 + $0x80] sm:$0xff]
        %v7964 = vld [vmem:[%s7946 + $0x88] sm:$0xff]
        %v7965 = vld [vmem:[%s7946 + $0x90] sm:$0xff]
        %v7966 = vld [vmem:[%s7946 + $0x98] sm:$0xff]
        %v7967 = vld [vmem:[%s7946 + $0xa0] sm:$0xff]
        %v7968 = vld [vmem:[%s7946 + $0xa8] sm:$0xff]
        %v7969 = vld [vmem:[%s7946 + $0xb0] sm:$0xff]
        %v7970 = vld [vmem:[%s7946 + $0xb8] sm:$0xff]
        %v7971 = vld [vmem:[%s7946 + $0xc0] sm:$0xff]
        %v7972 = vld [vmem:[%s7946 + $0xc8] sm:$0xff]
        %v7973 = vld [vmem:[%s7946 + $0xd0] sm:$0xff]
        %v7974 = vld [vmem:[%s7946 + $0xd8] sm:$0xff]
        %v7975 = vld [vmem:[%s7946 + $0xe0] sm:$0xff]
        %v7976 = vld [vmem:[%s7946 + $0xe8] sm:$0xff]
        %v7977 = vld [vmem:[%s7946 + $0xf0] sm:$0xff]
        %v7978 = vld [vmem:[%s7946 + $0xf8] sm:$0xff]
        %v7979 = vld [vmem:[%s7946 + $0x100] sm:$0xff]
        %v7980 = vld [vmem:[%s7946 + $0x108] sm:$0xff]
        %v7981 = vld [vmem:[%s7946 + $0x110] sm:$0xff]
        %v7982 = vld [vmem:[%s7946 + $0x118] sm:$0xff]
        %v7983 = vld [vmem:[%s7946 + $0x120] sm:$0xff]
        %v7984 = vld [vmem:[%s7946 + $0x128] sm:$0xff]
        %v7985 = vld [vmem:[%s7946 + $0x130] sm:$0xff]
        %v7986 = vld [vmem:[%s7946 + $0x138] sm:$0xff]
        %v7987 = vld [vmem:[%s7946 + $0x140] sm:$0xff]
        %v7988 = vld [vmem:[%s7946 + $0x148] sm:$0xff]
        %v7989 = vld [vmem:[%s7946 + $0x150] sm:$0xff]
        %v7990 = vld [vmem:[%s7946 + $0x158] sm:$0xff]
        %v7991 = vld [vmem:[%s7946 + $0x160] sm:$0xff]
        %v7992 = vld [vmem:[%s7946 + $0x168] sm:$0xff]
        %v7993 = vld [vmem:[%s7946 + $0x170] sm:$0xff]
        %v7994 = vld [vmem:[%s7946 + $0x178] sm:$0xff]
        %v7995 = vld [vmem:[%s7946 + $0x180] sm:$0xff]
        %v7996 = vld [vmem:[%s7946 + $0x188] sm:$0xff]
        %v7997 = vld [vmem:[%s7946 + $0x190] sm:$0xff]
        %v7998 = vld [vmem:[%s7946 + $0x198] sm:$0xff]
        %v7999 = vld [vmem:[%s7946 + $0x1a0] sm:$0xff]
        %v8000 = vld [vmem:[%s7946 + $0x1a8] sm:$0xff]
        %v8001 = vld [vmem:[%s7946 + $0x1b0] sm:$0xff]
        %v8002 = vld [vmem:[%s7946 + $0x1b8] sm:$0xff]
        %v8003 = vld [vmem:[%s7946 + $0x1c0] sm:$0xff]
        %v8004 = vld [vmem:[%s7946 + $0x1c8] sm:$0xff]
        %v8005 = vld [vmem:[%s7946 + $0x1d0] sm:$0xff]
        %v8006 = vld [vmem:[%s7946 + $0x1d8] sm:$0xff]
        %v8007 = vld [vmem:[%s7946 + $0x1e0] sm:$0xff]
        %v8008 = vld [vmem:[%s7946 + $0x1e8] sm:$0xff]
        %v8009 = vld [vmem:[%s7946 + $0x1f0] sm:$0xff]
        %v8010 = vld [vmem:[%s7946 + $0x1f8] sm:$0xff]
        %v8011 = vld [vmem:[%s7946 + $0x200] sm:$0xff]
        %v8012 = vld [vmem:[%s7946 + $0x208] sm:$0xff]
        %v8013 = vld [vmem:[%s7946 + $0x210] sm:$0xff]
        %v8014 = vld [vmem:[%s7946 + $0x218] sm:$0xff]
        %v8015 = vld [vmem:[%s7946 + $0x220] sm:$0xff]
        %v8016 = vld [vmem:[%s7946 + $0x228] sm:$0xff]
        %v8017 = vld [vmem:[%s7946 + $0x230] sm:$0xff]
        %v8018 = vld [vmem:[%s7946 + $0x238] sm:$0xff]
        %v8019 = vld [vmem:[%s7946 + $0x240] sm:$0xff]
        %v8020 = vld [vmem:[%s7946 + $0x248] sm:$0xff]
        %v8021 = vld [vmem:[%s7946 + $0x250] sm:$0xff]
        %v8022 = vld [vmem:[%s7946 + $0x258] sm:$0xff]
        %v8023 = vld [vmem:[%s7946 + $0x260] sm:$0xff]
        %v8024 = vld [vmem:[%s7946 + $0x268] sm:$0xff]
        %v8025 = vld [vmem:[%s7946 + $0x270] sm:$0xff]
        %v8026 = vld [vmem:[%s7946 + $0x278] sm:$0xff]
        %v8027 = vld [vmem:[%s7946 + $0x280] sm:$0xff]
        %v8028 = vld [vmem:[%s7946 + $0x288] sm:$0xff]
        %v8029 = vld [vmem:[%s7946 + $0x290] sm:$0xff]
        %v8030 = vld [vmem:[%s7946 + $0x298] sm:$0xff]
        %v8031 = vld [vmem:[%s7946 + $0x2a0] sm:$0xff]
        %v8032 = vld [vmem:[%s7946 + $0x2a8] sm:$0xff]
        %v8033 = vld [vmem:[%s7946 + $0x2b0] sm:$0xff]
        %v8034 = vld [vmem:[%s7946 + $0x2b8] sm:$0xff]
        %v8035 = vld [vmem:[%s7946 + $0x2c0] sm:$0xff]
        %v8036 = vld [vmem:[%s7946 + $0x2c8] sm:$0xff]
        %v8037 = vld [vmem:[%s7946 + $0x2d0] sm:$0xff]
        %v8038 = vld [vmem:[%s7946 + $0x2d8] sm:$0xff]
        %v8039 = vld [vmem:[%s7946 + $0x2e0] sm:$0xff]
        %v8040 = vld [vmem:[%s7946 + $0x2e8] sm:$0xff]
        %v8041 = vld [vmem:[%s7946 + $0x2f0] sm:$0xff]
        %v8042 = vld [vmem:[%s7946 + $0x2f8] sm:$0xff]
        %v8043 = vld [vmem:[%s7946 + $0x300] sm:$0xff]
        %v8044 = vld [vmem:[%s7946 + $0x308] sm:$0xff]
        %v8045 = vld [vmem:[%s7946 + $0x310] sm:$0xff]
        %v8046 = vld [vmem:[%s7946 + $0x318] sm:$0xff]
        %v8047 = vld [vmem:[%s7946 + $0x320] sm:$0xff]
        %v8048 = vld [vmem:[%s7946 + $0x328] sm:$0xff]
        %v8049 = vld [vmem:[%s7946 + $0x330] sm:$0xff]
        %v8050 = vld [vmem:[%s7946 + $0x338] sm:$0xff]
        %v8051 = vld [vmem:[%s7946 + $0x340] sm:$0xff]
        %v8052 = vld [vmem:[%s7946 + $0x348] sm:$0xff]
        %v8053 = vld [vmem:[%s7946 + $0x350] sm:$0xff]
        %v8054 = vld [vmem:[%s7946 + $0x358] sm:$0xff]
        %v8055 = vld [vmem:[%s7946 + $0x360] sm:$0xff]
        %v8056 = vld [vmem:[%s7946 + $0x368] sm:$0xff]
        %v8057 = vld [vmem:[%s7946 + $0x370] sm:$0xff]
        %v8058 = vld [vmem:[%s7946 + $0x378] sm:$0xff]
        %v8059 = vld [vmem:[%s7946 + $0x380] sm:$0xff]
        %v8060 = vld [vmem:[%s7946 + $0x388] sm:$0xff]
        %v8061 = vld [vmem:[%s7946 + $0x390] sm:$0xff]
        %v8062 = vld [vmem:[%s7946 + $0x398] sm:$0xff]
        %v8063 = vld [vmem:[%s7946 + $0x3a0] sm:$0xff]
        %v8064 = vld [vmem:[%s7946 + $0x3a8] sm:$0xff]
        %v8065 = vld [vmem:[%s7946 + $0x3b0] sm:$0xff]
        %v8066 = vld [vmem:[%s7946 + $0x3b8] sm:$0xff]
        %v8067 = vld [vmem:[%s7946 + $0x3c0] sm:$0xff]
        %v8068 = vld [vmem:[%s7946 + $0x3c8] sm:$0xff]
        %v8069 = vld [vmem:[%s7946 + $0x3d0] sm:$0xff]
        %v8070 = vld [vmem:[%s7946 + $0x3d8] sm:$0xff]
        %v8071 = vld [vmem:[%s7946 + $0x3e0] sm:$0xff]
        %v8072 = vld [vmem:[%s7946 + $0x3e8] sm:$0xff]
        %v8073 = vld [vmem:[%s7946 + $0x3f0] sm:$0xff]
        %v8074 = vld [vmem:[%s7946 + $0x3f8] sm:$0xff]
        %v8075 = vld [vmem:[%s7946 + $0x400] sm:$0xff]
        %v8076 = vld [vmem:[%s7946 + $0x408] sm:$0xff]
        %v8077 = vld [vmem:[%s7946 + $0x410] sm:$0xff]
        %v8078 = vld [vmem:[%s7946 + $0x418] sm:$0xff]
        %v8079 = vld [vmem:[%s7946 + $0x420] sm:$0xff]
        %v8080 = vld [vmem:[%s7946 + $0x428] sm:$0xff]
        %v8081 = vld [vmem:[%s7946 + $0x430] sm:$0xff]
        %v8082 = vld [vmem:[%s7946 + $0x438] sm:$0xff]
        %v8083 = vld [vmem:[%s7946 + $0x440] sm:$0xff]
        %v8084 = vld [vmem:[%s7946 + $0x448] sm:$0xff]
        %v8085 = vld [vmem:[%s7946 + $0x450] sm:$0xff]
        %v8086 = vld [vmem:[%s7946 + $0x458] sm:$0xff]
        %v8087 = vld [vmem:[%s7946 + $0x460] sm:$0xff]
        %v8088 = vld [vmem:[%s7946 + $0x468] sm:$0xff]
        %v8089 = vld [vmem:[%s7946 + $0x470] sm:$0xff]
        %v8090 = vld [vmem:[%s7946 + $0x478] sm:$0xff]
        %v8101 = vrot.slane %v5622, 1
        %v8102 = vrot.slane %v5771, 1
        %v8103 = vsel %vm4043, %v8101, %v8102
        %v8104 = vrot.slane %v5623, 1
        %v8105 = vrot.slane %v5772, 1
        %v8106 = vsel %vm4043, %v8104, %v8105
        %v8107 = vrot.slane %v5624, 1
        %v8108 = vrot.slane %v5773, 1
        %v8109 = vsel %vm4043, %v8107, %v8108
        %v8110 = vrot.slane %v5625, 1
        %v8111 = vrot.slane %v5774, 1
        %v8112 = vsel %vm4043, %v8110, %v8111
        %v8113 = vrot.slane %v5626, 1
        %v8114 = vrot.slane %v5775, 1
        %v8115 = vsel %vm4043, %v8113, %v8114
        %v8264 = vunpack.c.l.b16 %v7947
        %v8265 = vunpack.c.h.b16 %v7947
        %v8266 = vunpack.c.l.b16 %v7948
        %v8267 = vunpack.c.h.b16 %v7948
        %v8268 = vunpack.c.l.b16 %v7949
        %v8269 = vunpack.c.h.b16 %v7949
        %v8270 = vunpack.c.l.b16 %v7950
        %v8271 = vunpack.c.h.b16 %v7950
        %v8272 = vunpack.c.l.b16 %v7951
        %v8273 = vunpack.c.h.b16 %v7951
        %v8274 = vunpack.c.l.b16 %v7952
        %v8275 = vunpack.c.h.b16 %v7952
        %v8276 = vunpack.c.l.b16 %v7953
        %v8277 = vunpack.c.h.b16 %v7953
        %v8278 = vunpack.c.l.b16 %v7954
        %v8279 = vunpack.c.h.b16 %v7954
        %v8280 = vunpack.c.l.b16 %v7955
        %v8281 = vunpack.c.h.b16 %v7955
        %v8282 = vunpack.c.l.b16 %v7956
        %v8283 = vunpack.c.h.b16 %v7956
        %v8284 = vunpack.c.l.b16 %v7957
        %v8285 = vunpack.c.h.b16 %v7957
        %v8286 = vunpack.c.l.b16 %v7958
        %v8287 = vunpack.c.h.b16 %v7958
        %v8288 = vunpack.c.l.b16 %v7959
        %v8289 = vunpack.c.h.b16 %v7959
        %v8290 = vunpack.c.l.b16 %v7960
        %v8291 = vunpack.c.h.b16 %v7960
        %v8292 = vunpack.c.l.b16 %v7961
        %v8293 = vunpack.c.h.b16 %v7961
        %v8294 = vunpack.c.l.b16 %v7962
        %v8295 = vunpack.c.h.b16 %v7962
        %v8296 = vunpack.c.l.b16 %v7963
        %v8297 = vunpack.c.h.b16 %v7963
        %v8298 = vunpack.c.l.b16 %v7964
        %v8299 = vunpack.c.h.b16 %v7964
        %v8300 = vunpack.c.l.b16 %v7965
        %v8301 = vunpack.c.h.b16 %v7965
        %v8302 = vunpack.c.l.b16 %v7966
        %v8303 = vunpack.c.h.b16 %v7966
        %v8304 = vunpack.c.l.b16 %v7967
        %v8305 = vunpack.c.h.b16 %v7967
        %v8306 = vunpack.c.l.b16 %v7968
        %v8307 = vunpack.c.h.b16 %v7968
        %v8308 = vunpack.c.l.b16 %v7969
        %v8309 = vunpack.c.h.b16 %v7969
        %v8310 = vunpack.c.l.b16 %v7970
        %v8311 = vunpack.c.h.b16 %v7970
        %v8312 = vunpack.c.l.b16 %v7971
        %v8313 = vunpack.c.h.b16 %v7971
        %v8314 = vunpack.c.l.b16 %v7972
        %v8315 = vunpack.c.h.b16 %v7972
        %v8316 = vunpack.c.l.b16 %v7973
        %v8317 = vunpack.c.h.b16 %v7973
        %v8318 = vunpack.c.l.b16 %v7974
        %v8319 = vunpack.c.h.b16 %v7974
        %v8320 = vunpack.c.l.b16 %v7975
        %v8321 = vunpack.c.h.b16 %v7975
        %v8322 = vunpack.c.l.b16 %v7976
        %v8323 = vunpack.c.h.b16 %v7976
        %v8324 = vunpack.c.l.b16 %v7977
        %v8325 = vunpack.c.h.b16 %v7977
        %v8326 = vunpack.c.l.b16 %v7978
        %v8327 = vunpack.c.h.b16 %v7978
        %v8328 = vunpack.c.l.b16 %v7979
        %v8329 = vunpack.c.h.b16 %v7979
        %v8330 = vunpack.c.l.b16 %v7980
        %v8331 = vunpack.c.h.b16 %v7980
        %v8332 = vunpack.c.l.b16 %v7981
        %v8333 = vunpack.c.h.b16 %v7981
        %v8334 = vunpack.c.l.b16 %v7982
        %v8335 = vunpack.c.h.b16 %v7982
        %v8336 = vunpack.c.l.b16 %v7983
        %v8337 = vunpack.c.h.b16 %v7983
        %v8338 = vunpack.c.l.b16 %v7984
        %v8339 = vunpack.c.h.b16 %v7984
        %v8340 = vunpack.c.l.b16 %v7985
        %v8341 = vunpack.c.h.b16 %v7985
        %v8342 = vunpack.c.l.b16 %v7986
        %v8343 = vunpack.c.h.b16 %v7986
        %v8344 = vunpack.c.l.b16 %v7987
        %v8345 = vunpack.c.h.b16 %v7987
        %v8346 = vunpack.c.l.b16 %v7988
        %v8347 = vunpack.c.h.b16 %v7988
        %v8348 = vunpack.c.l.b16 %v7989
        %v8349 = vunpack.c.h.b16 %v7989
        %v8350 = vunpack.c.l.b16 %v7990
        %v8351 = vunpack.c.h.b16 %v7990
        %v8352 = vunpack.c.l.b16 %v7991
        %v8353 = vunpack.c.h.b16 %v7991
        %v8354 = vunpack.c.l.b16 %v7992
        %v8355 = vunpack.c.h.b16 %v7992
        %v8356 = vunpack.c.l.b16 %v7993
        %v8357 = vunpack.c.h.b16 %v7993
        %v8358 = vunpack.c.l.b16 %v7994
        %v8359 = vunpack.c.h.b16 %v7994
        %v8360 = vunpack.c.l.b16 %v7995
        %v8361 = vunpack.c.h.b16 %v7995
        %v8362 = vunpack.c.l.b16 %v7996
        %v8363 = vunpack.c.h.b16 %v7996
        %v8364 = vunpack.c.l.b16 %v7997
        %v8365 = vunpack.c.h.b16 %v7997
        %v8366 = vunpack.c.l.b16 %v7998
        %v8367 = vunpack.c.h.b16 %v7998
        %v8368 = vunpack.c.l.b16 %v7999
        %v8369 = vunpack.c.h.b16 %v7999
        %v8370 = vunpack.c.l.b16 %v8000
        %v8371 = vunpack.c.h.b16 %v8000
        %v8372 = vunpack.c.l.b16 %v8001
        %v8373 = vunpack.c.h.b16 %v8001
        %v8374 = vunpack.c.l.b16 %v8002
        %v8375 = vunpack.c.h.b16 %v8002
        %v8376 = vunpack.c.l.b16 %v8003
        %v8377 = vunpack.c.h.b16 %v8003
        %v8378 = vunpack.c.l.b16 %v8004
        %v8379 = vunpack.c.h.b16 %v8004
        %v8380 = vunpack.c.l.b16 %v8005
        %v8381 = vunpack.c.h.b16 %v8005
        %v8382 = vunpack.c.l.b16 %v8006
        %v8383 = vunpack.c.h.b16 %v8006
        %v8384 = vunpack.c.l.b16 %v8007
        %v8385 = vunpack.c.h.b16 %v8007
        %v8386 = vunpack.c.l.b16 %v8008
        %v8387 = vunpack.c.h.b16 %v8008
        %v8388 = vunpack.c.l.b16 %v8009
        %v8389 = vunpack.c.h.b16 %v8009
        %v8390 = vunpack.c.l.b16 %v8010
        %v8391 = vunpack.c.h.b16 %v8010
        %v8392 = vunpack.c.l.b16 %v8011
        %v8393 = vunpack.c.h.b16 %v8011
        %v8394 = vunpack.c.l.b16 %v8012
        %v8395 = vunpack.c.h.b16 %v8012
        %v8396 = vunpack.c.l.b16 %v8013
        %v8397 = vunpack.c.h.b16 %v8013
        %v8398 = vunpack.c.l.b16 %v8014
        %v8399 = vunpack.c.h.b16 %v8014
        %v8400 = vunpack.c.l.b16 %v8015
        %v8401 = vunpack.c.h.b16 %v8015
        %v8402 = vunpack.c.l.b16 %v8016
        %v8403 = vunpack.c.h.b16 %v8016
        %v8404 = vunpack.c.l.b16 %v8017
        %v8405 = vunpack.c.h.b16 %v8017
        %v8406 = vunpack.c.l.b16 %v8018
        %v8407 = vunpack.c.h.b16 %v8018
        %v8408 = vunpack.c.l.b16 %v8019
        %v8409 = vunpack.c.h.b16 %v8019
        %v8410 = vunpack.c.l.b16 %v8020
        %v8411 = vunpack.c.h.b16 %v8020
        %v8412 = vunpack.c.l.b16 %v8021
        %v8413 = vunpack.c.h.b16 %v8021
        %v8414 = vunpack.c.l.b16 %v8022
        %v8415 = vunpack.c.h.b16 %v8022
        %v8416 = vunpack.c.l.b16 %v8023
        %v8417 = vunpack.c.h.b16 %v8023
        %v8418 = vunpack.c.l.b16 %v8024
        %v8419 = vunpack.c.h.b16 %v8024
        %v8420 = vunpack.c.l.b16 %v8025
        %v8421 = vunpack.c.h.b16 %v8025
        %v8422 = vunpack.c.l.b16 %v8026
        %v8423 = vunpack.c.h.b16 %v8026
        %v8424 = vunpack.c.l.b16 %v8027
        %v8425 = vunpack.c.h.b16 %v8027
        %v8426 = vunpack.c.l.b16 %v8028
        %v8427 = vunpack.c.h.b16 %v8028
        %v8428 = vunpack.c.l.b16 %v8029
        %v8429 = vunpack.c.h.b16 %v8029
        %v8430 = vunpack.c.l.b16 %v8030
        %v8431 = vunpack.c.h.b16 %v8030
        %v8432 = vunpack.c.l.b16 %v8031
        %v8433 = vunpack.c.h.b16 %v8031
        %v8434 = vunpack.c.l.b16 %v8032
        %v8435 = vunpack.c.h.b16 %v8032
        %v8436 = vunpack.c.l.b16 %v8033
        %v8437 = vunpack.c.h.b16 %v8033
        %v8438 = vunpack.c.l.b16 %v8034
        %v8439 = vunpack.c.h.b16 %v8034
        %v8440 = vunpack.c.l.b16 %v8035
        %v8441 = vunpack.c.h.b16 %v8035
        %v8442 = vunpack.c.l.b16 %v8036
        %v8443 = vunpack.c.h.b16 %v8036
        %v8444 = vunpack.c.l.b16 %v8037
        %v8445 = vunpack.c.h.b16 %v8037
        %v8446 = vunpack.c.l.b16 %v8038
        %v8447 = vunpack.c.h.b16 %v8038
        %v8448 = vunpack.c.l.b16 %v8039
        %v8449 = vunpack.c.h.b16 %v8039
        %v8450 = vunpack.c.l.b16 %v8040
        %v8451 = vunpack.c.h.b16 %v8040
        %v8452 = vunpack.c.l.b16 %v8041
        %v8453 = vunpack.c.h.b16 %v8041
        %v8454 = vunpack.c.l.b16 %v8042
        %v8455 = vunpack.c.h.b16 %v8042
        %v8456 = vunpack.c.l.b16 %v8043
        %v8457 = vunpack.c.h.b16 %v8043
        %v8458 = vunpack.c.l.b16 %v8044
        %v8459 = vunpack.c.h.b16 %v8044
        %v8460 = vunpack.c.l.b16 %v8045
        %v8461 = vunpack.c.h.b16 %v8045
        %v8462 = vunpack.c.l.b16 %v8046
        %v8463 = vunpack.c.h.b16 %v8046
        %v8464 = vunpack.c.l.b16 %v8047
        %v8465 = vunpack.c.h.b16 %v8047
        %v8466 = vunpack.c.l.b16 %v8048
        %v8467 = vunpack.c.h.b16 %v8048
        %v8468 = vunpack.c.l.b16 %v8049
        %v8469 = vunpack.c.h.b16 %v8049
        %v8470 = vunpack.c.l.b16 %v8050
        %v8471 = vunpack.c.h.b16 %v8050
        %v8472 = vunpack.c.l.b16 %v8051
        %v8473 = vunpack.c.h.b16 %v8051
        %v8474 = vunpack.c.l.b16 %v8052
        %v8475 = vunpack.c.h.b16 %v8052
        %v8476 = vunpack.c.l.b16 %v8053
        %v8477 = vunpack.c.h.b16 %v8053
        %v8478 = vunpack.c.l.b16 %v8054
        %v8479 = vunpack.c.h.b16 %v8054
        %v8480 = vunpack.c.l.b16 %v8055
        %v8481 = vunpack.c.h.b16 %v8055
        %v8482 = vunpack.c.l.b16 %v8056
        %v8483 = vunpack.c.h.b16 %v8056
        %v8484 = vunpack.c.l.b16 %v8057
        %v8485 = vunpack.c.h.b16 %v8057
        %v8486 = vunpack.c.l.b16 %v8058
        %v8487 = vunpack.c.h.b16 %v8058
        %v8488 = vunpack.c.l.b16 %v8059
        %v8489 = vunpack.c.h.b16 %v8059
        %v8490 = vunpack.c.l.b16 %v8060
        %v8491 = vunpack.c.h.b16 %v8060
        %v8492 = vunpack.c.l.b16 %v8061
        %v8493 = vunpack.c.h.b16 %v8061
        %v8494 = vunpack.c.l.b16 %v8062
        %v8495 = vunpack.c.h.b16 %v8062
        %v8496 = vunpack.c.l.b16 %v8063
        %v8497 = vunpack.c.h.b16 %v8063
        %v8498 = vunpack.c.l.b16 %v8064
        %v8499 = vunpack.c.h.b16 %v8064
        %v8500 = vunpack.c.l.b16 %v8065
        %v8501 = vunpack.c.h.b16 %v8065
        %v8502 = vunpack.c.l.b16 %v8066
        %v8503 = vunpack.c.h.b16 %v8066
        %v8504 = vunpack.c.l.b16 %v8067
        %v8505 = vunpack.c.h.b16 %v8067
        %v8506 = vunpack.c.l.b16 %v8068
        %v8507 = vunpack.c.h.b16 %v8068
        %v8508 = vunpack.c.l.b16 %v8069
        %v8509 = vunpack.c.h.b16 %v8069
        %v8510 = vunpack.c.l.b16 %v8070
        %v8511 = vunpack.c.h.b16 %v8070
        %v8512 = vunpack.c.l.b16 %v8071
        %v8513 = vunpack.c.h.b16 %v8071
        %v8514 = vunpack.c.l.b16 %v8072
        %v8515 = vunpack.c.h.b16 %v8072
        %v8516 = vunpack.c.l.b16 %v8073
        %v8517 = vunpack.c.h.b16 %v8073
        %v8518 = vunpack.c.l.b16 %v8074
        %v8519 = vunpack.c.h.b16 %v8074
        %v8520 = vunpack.c.l.b16 %v8075
        %v8521 = vunpack.c.h.b16 %v8075
        %v8522 = vunpack.c.l.b16 %v8076
        %v8523 = vunpack.c.h.b16 %v8076
        %v8524 = vunpack.c.l.b16 %v8077
        %v8525 = vunpack.c.h.b16 %v8077
        %v8526 = vunpack.c.l.b16 %v8078
        %v8527 = vunpack.c.h.b16 %v8078
        %v8528 = vunpack.c.l.b16 %v8079
        %v8529 = vunpack.c.h.b16 %v8079
        %v8530 = vunpack.c.l.b16 %v8080
        %v8531 = vunpack.c.h.b16 %v8080
        %v8532 = vunpack.c.l.b16 %v8081
        %v8533 = vunpack.c.h.b16 %v8081
        %v8534 = vunpack.c.l.b16 %v8082
        %v8535 = vunpack.c.h.b16 %v8082
        %v8536 = vunpack.c.l.b16 %v8083
        %v8537 = vunpack.c.h.b16 %v8083
        %v8538 = vunpack.c.l.b16 %v8084
        %v8539 = vunpack.c.h.b16 %v8084
        %v8540 = vunpack.c.l.b16 %v8085
        %v8541 = vunpack.c.h.b16 %v8085
        %v8542 = vunpack.c.l.b16 %v8086
        %v8543 = vunpack.c.h.b16 %v8086
        %v8544 = vunpack.c.l.b16 %v8087
        %v8545 = vunpack.c.h.b16 %v8087
        %v8546 = vunpack.c.l.b16 %v8088
        %v8547 = vunpack.c.h.b16 %v8088
        %v8548 = vunpack.c.l.b16 %v8089
        %v8549 = vunpack.c.h.b16 %v8089
        %v8550 = vunpack.c.l.b16 %v8090
        %v8551 = vunpack.c.h.b16 %v8090
        %v8552 = vpack.c.b16 %v8268, %v8264
        %v8553 = vpack.c.b16 %v8269, %v8265
        %v8554 = vpack.c.b16 %v8270, %v8266
        %v8555 = vpack.c.b16 %v8271, %v8267
        %v8556 = vpack.c.b16 %v8276, %v8272
        %v8557 = vpack.c.b16 %v8277, %v8273
        %v8558 = vpack.c.b16 %v8278, %v8274
        %v8559 = vpack.c.b16 %v8279, %v8275
        %v8560 = vpack.c.b16 %v8284, %v8280
        %v8561 = vpack.c.b16 %v8285, %v8281
        %v8562 = vpack.c.b16 %v8286, %v8282
        %v8563 = vpack.c.b16 %v8287, %v8283
        %v8564 = vpack.c.b16 %v8292, %v8288
        %v8565 = vpack.c.b16 %v8293, %v8289
        %v8566 = vpack.c.b16 %v8294, %v8290
        %v8567 = vpack.c.b16 %v8295, %v8291
        %v8568 = vpack.c.b16 %v8300, %v8296
        %v8569 = vpack.c.b16 %v8301, %v8297
        %v8570 = vpack.c.b16 %v8302, %v8298
        %v8571 = vpack.c.b16 %v8303, %v8299
        %v8572 = vpack.c.b16 %v8308, %v8304
        %v8573 = vpack.c.b16 %v8309, %v8305
        %v8574 = vpack.c.b16 %v8310, %v8306
        %v8575 = vpack.c.b16 %v8311, %v8307
        %v8576 = vpack.c.b16 %v8316, %v8312
        %v8577 = vpack.c.b16 %v8317, %v8313
        %v8578 = vpack.c.b16 %v8318, %v8314
        %v8579 = vpack.c.b16 %v8319, %v8315
        %v8580 = vpack.c.b16 %v8324, %v8320
        %v8581 = vpack.c.b16 %v8325, %v8321
        %v8582 = vpack.c.b16 %v8326, %v8322
        %v8583 = vpack.c.b16 %v8327, %v8323
        %v8584 = vpack.c.b16 %v8332, %v8328
        %v8585 = vpack.c.b16 %v8333, %v8329
        %v8586 = vpack.c.b16 %v8334, %v8330
        %v8587 = vpack.c.b16 %v8335, %v8331
        %v8588 = vpack.c.b16 %v8340, %v8336
        %v8589 = vpack.c.b16 %v8341, %v8337
        %v8590 = vpack.c.b16 %v8342, %v8338
        %v8591 = vpack.c.b16 %v8343, %v8339
        %v8592 = vpack.c.b16 %v8348, %v8344
        %v8593 = vpack.c.b16 %v8349, %v8345
        %v8594 = vpack.c.b16 %v8350, %v8346
        %v8595 = vpack.c.b16 %v8351, %v8347
        %v8596 = vpack.c.b16 %v8356, %v8352
        %v8597 = vpack.c.b16 %v8357, %v8353
        %v8598 = vpack.c.b16 %v8358, %v8354
        %v8599 = vpack.c.b16 %v8359, %v8355
        %v8600 = vpack.c.b16 %v8364, %v8360
        %v8601 = vpack.c.b16 %v8365, %v8361
        %v8602 = vpack.c.b16 %v8366, %v8362
        %v8603 = vpack.c.b16 %v8367, %v8363
        %v8604 = vpack.c.b16 %v8372, %v8368
        %v8605 = vpack.c.b16 %v8373, %v8369
        %v8606 = vpack.c.b16 %v8374, %v8370
        %v8607 = vpack.c.b16 %v8375, %v8371
        %v8608 = vpack.c.b16 %v8380, %v8376
        %v8609 = vpack.c.b16 %v8381, %v8377
        %v8610 = vpack.c.b16 %v8382, %v8378
        %v8611 = vpack.c.b16 %v8383, %v8379
        %v8612 = vpack.c.b16 %v8388, %v8384
        %v8613 = vpack.c.b16 %v8389, %v8385
        %v8614 = vpack.c.b16 %v8390, %v8386
        %v8615 = vpack.c.b16 %v8391, %v8387
        %v8616 = vpack.c.b16 %v8396, %v8392
        %v8617 = vpack.c.b16 %v8397, %v8393
        %v8618 = vpack.c.b16 %v8398, %v8394
        %v8619 = vpack.c.b16 %v8399, %v8395
        %v8620 = vpack.c.b16 %v8404, %v8400
        %v8621 = vpack.c.b16 %v8405, %v8401
        %v8622 = vpack.c.b16 %v8406, %v8402
        %v8623 = vpack.c.b16 %v8407, %v8403
        %v8624 = vpack.c.b16 %v8412, %v8408
        %v8625 = vpack.c.b16 %v8413, %v8409
        %v8626 = vpack.c.b16 %v8414, %v8410
        %v8627 = vpack.c.b16 %v8415, %v8411
        %v8628 = vpack.c.b16 %v8420, %v8416
        %v8629 = vpack.c.b16 %v8421, %v8417
        %v8630 = vpack.c.b16 %v8422, %v8418
        %v8631 = vpack.c.b16 %v8423, %v8419
        %v8632 = vpack.c.b16 %v8428, %v8424
        %v8633 = vpack.c.b16 %v8429, %v8425
        %v8634 = vpack.c.b16 %v8430, %v8426
        %v8635 = vpack.c.b16 %v8431, %v8427
        %v8636 = vpack.c.b16 %v8436, %v8432
        %v8637 = vpack.c.b16 %v8437, %v8433
        %v8638 = vpack.c.b16 %v8438, %v8434
        %v8639 = vpack.c.b16 %v8439, %v8435
        %v8640 = vpack.c.b16 %v8444, %v8440
        %v8641 = vpack.c.b16 %v8445, %v8441
        %v8642 = vpack.c.b16 %v8446, %v8442
        %v8643 = vpack.c.b16 %v8447, %v8443
        %v8644 = vpack.c.b16 %v8452, %v8448
        %v8645 = vpack.c.b16 %v8453, %v8449
        %v8646 = vpack.c.b16 %v8454, %v8450
        %v8647 = vpack.c.b16 %v8455, %v8451
        %v8648 = vpack.c.b16 %v8460, %v8456
        %v8649 = vpack.c.b16 %v8461, %v8457
        %v8650 = vpack.c.b16 %v8462, %v8458
        %v8651 = vpack.c.b16 %v8463, %v8459
        %v8652 = vpack.c.b16 %v8468, %v8464
        %v8653 = vpack.c.b16 %v8469, %v8465
        %v8654 = vpack.c.b16 %v8470, %v8466
        %v8655 = vpack.c.b16 %v8471, %v8467
        %v8656 = vpack.c.b16 %v8476, %v8472
        %v8657 = vpack.c.b16 %v8477, %v8473
        %v8658 = vpack.c.b16 %v8478, %v8474
        %v8659 = vpack.c.b16 %v8479, %v8475
        %v8660 = vpack.c.b16 %v8484, %v8480
        %v8661 = vpack.c.b16 %v8485, %v8481
        %v8662 = vpack.c.b16 %v8486, %v8482
        %v8663 = vpack.c.b16 %v8487, %v8483
        %v8664 = vpack.c.b16 %v8492, %v8488
        %v8665 = vpack.c.b16 %v8493, %v8489
        %v8666 = vpack.c.b16 %v8494, %v8490
        %v8667 = vpack.c.b16 %v8495, %v8491
        %v8668 = vpack.c.b16 %v8500, %v8496
        %v8669 = vpack.c.b16 %v8501, %v8497
        %v8670 = vpack.c.b16 %v8502, %v8498
        %v8671 = vpack.c.b16 %v8503, %v8499
        %v8672 = vpack.c.b16 %v8508, %v8504
        %v8673 = vpack.c.b16 %v8509, %v8505
        %v8674 = vpack.c.b16 %v8510, %v8506
        %v8675 = vpack.c.b16 %v8511, %v8507
        %v8676 = vpack.c.b16 %v8516, %v8512
        %v8677 = vpack.c.b16 %v8517, %v8513
        %v8678 = vpack.c.b16 %v8518, %v8514
        %v8679 = vpack.c.b16 %v8519, %v8515
        %v8680 = vpack.c.b16 %v8524, %v8520
        %v8681 = vpack.c.b16 %v8525, %v8521
        %v8682 = vpack.c.b16 %v8526, %v8522
        %v8683 = vpack.c.b16 %v8527, %v8523
        %v8684 = vpack.c.b16 %v8532, %v8528
        %v8685 = vpack.c.b16 %v8533, %v8529
        %v8686 = vpack.c.b16 %v8534, %v8530
        %v8687 = vpack.c.b16 %v8535, %v8531
        %v8688 = vpack.c.b16 %v8540, %v8536
        %v8689 = vpack.c.b16 %v8541, %v8537
        %v8690 = vpack.c.b16 %v8542, %v8538
        %v8691 = vpack.c.b16 %v8543, %v8539
        %v8692 = vpack.c.b16 %v8548, %v8544
        %v8693 = vpack.c.b16 %v8549, %v8545
        %v8694 = vpack.c.b16 %v8550, %v8546
        %v8695 = vpack.c.b16 %v8551, %v8547
        %v8841 = vsel %vm1969, %v8115, 0
        %8843 = vmatprep.subr.bf16.mxu0 %v8581
        %8844 = vmatpush1.bf16.msra.mxu0 %v8580
        %8845 = vmatprep.subr.bf16.mxu0 %v8577
        %8846 = vmatpush1.bf16.msra.mxu0 %v8576
        %8847 = vmatprep.subr.bf16.mxu0 %v8573
        %8848 = vmatpush1.bf16.msra.mxu0 %v8572
        %8849 = vmatprep.subr.bf16.mxu0 %v8569
        %8850 = vmatpush1.bf16.msra.mxu0 %v8568
        %8851 = vmatprep.subr.bf16.mxu0 %v8565
        %8852 = vmatpush1.bf16.msra.mxu0 %v8564
        %8853 = vmatprep.subr.bf16.mxu0 %v8561
        %8854 = vmatpush1.bf16.msra.mxu0 %v8560
        %8855 = vmatprep.subr.bf16.mxu0 %v8557
        %8856 = vmatpush1.bf16.msra.mxu0 %v8556
        %8857 = vmatprep.subr.bf16.mxu0 %v8553
        %8858 = vmatpush1.bf16.msra.mxu0 %v8552
        %8859 = vmatprep.subr.bf16.mxu0 %v8613
        %8860 = vmatpush2.bf16.msra.mxu0 %v8612
        %8861 = vmatprep.subr.bf16.mxu0 %v8609
        %8862 = vmatpush2.bf16.msra.mxu0 %v8608
        %8863 = vmatprep.subr.bf16.mxu0 %v8605
        %8864 = vmatpush2.bf16.msra.mxu0 %v8604
        %8865 = vmatprep.subr.bf16.mxu0 %v8601
        %8866 = vmatpush2.bf16.msra.mxu0 %v8600
        %8867 = vmatprep.subr.bf16.mxu0 %v8597
        %8868 = vmatpush2.bf16.msra.mxu0 %v8596
        %8869 = vmatprep.subr.bf16.mxu0 %v8593
        %8870 = vmatpush2.bf16.msra.mxu0 %v8592
        %8871 = vmatprep.subr.bf16.mxu0 %v8589
        %8872 = vmatpush2.bf16.msra.mxu0 %v8588
        %8873 = vmatprep.subr.bf16.mxu0 %v8585
        %8874 = vmatpush2.bf16.msra.mxu0 %v8584
        %8875 = vmatprep.mubr.bf16.mxu0 %v8106
        %8876 = vmatmul.mubr.bf16.gmra.mxu0 %v8103
        %v8877 = vpop.f32.mrf.mxu0
        %v8878 = vadd.f32 0.0, %v8877
        %v8879 = vpop.f32.mrf.mxu0
        %v8880 = vadd.f32 0.0, %v8879
        %v8881 = vpop.f32.mrf.mxu0
        %v8882 = vadd.f32 0.0, %v8881
        %v8883 = vpop.f32.mrf.mxu0
        %v8884 = vadd.f32 0.0, %v8883
        %8885 = vdwg.mxu0
        %8886 = vmatprep.subr.bf16.mxu0 %v8645
        %8887 = vmatpush1.bf16.msra.mxu0 %v8644
        %8888 = vmatprep.subr.bf16.mxu0 %v8641
        %8889 = vmatpush1.bf16.msra.mxu0 %v8640
        %8890 = vmatprep.subr.bf16.mxu0 %v8637
        %8891 = vmatpush1.bf16.msra.mxu0 %v8636
        %8892 = vmatprep.subr.bf16.mxu0 %v8633
        %8893 = vmatpush1.bf16.msra.mxu0 %v8632
        %8894 = vmatprep.subr.bf16.mxu0 %v8629
        %8895 = vmatpush1.bf16.msra.mxu0 %v8628
        %8896 = vmatprep.subr.bf16.mxu0 %v8625
        %8897 = vmatpush1.bf16.msra.mxu0 %v8624
        %8898 = vmatprep.subr.bf16.mxu0 %v8621
        %8899 = vmatpush1.bf16.msra.mxu0 %v8620
        %8900 = vmatprep.subr.bf16.mxu0 %v8617
        %8901 = vmatpush1.bf16.msra.mxu0 %v8616
        %8902 = vmatprep.subr.bf16.mxu0 %v8677
        %8903 = vmatpush2.bf16.msra.mxu0 %v8676
        %8904 = vmatprep.subr.bf16.mxu0 %v8673
        %8905 = vmatpush2.bf16.msra.mxu0 %v8672
        %8906 = vmatprep.subr.bf16.mxu0 %v8669
        %8907 = vmatpush2.bf16.msra.mxu0 %v8668
        %8908 = vmatprep.subr.bf16.mxu0 %v8665
        %8909 = vmatpush2.bf16.msra.mxu0 %v8664
        %8910 = vmatprep.subr.bf16.mxu0 %v8661
        %8911 = vmatpush2.bf16.msra.mxu0 %v8660
        %8912 = vmatprep.subr.bf16.mxu0 %v8657
        %8913 = vmatpush2.bf16.msra.mxu0 %v8656
        %8914 = vmatprep.subr.bf16.mxu0 %v8653
        %8915 = vmatpush2.bf16.msra.mxu0 %v8652
        %8916 = vmatprep.subr.bf16.mxu0 %v8649
        %8917 = vmatpush2.bf16.msra.mxu0 %v8648
        %8918 = vmatprep.mubr.bf16.mxu0 %v8112
        %8919 = vmatmul.mubr.bf16.gmra.mxu0 %v8109
        %v8920 = vpop.f32.mrf.mxu0
        %v8921 = vadd.f32 %v8878, %v8920
        %v8922 = vpop.f32.mrf.mxu0
        %v8923 = vadd.f32 %v8880, %v8922
        %v8924 = vpop.f32.mrf.mxu0
        %v8925 = vadd.f32 %v8882, %v8924
        %v8926 = vpop.f32.mrf.mxu0
        %v8927 = vadd.f32 %v8884, %v8926
        %8928 = vdwg.mxu0
        %8929 = vmatprep.subr.bf16.mxu0 0
        %8930 = vmatpush1.bf16.msra.mxu0 0
        %8931 = vmatprep.subr.bf16.mxu0 0
        %8932 = vmatpush1.bf16.msra.mxu0 0
        %8933 = vmatprep.subr.bf16.mxu0 0
        %8934 = vmatpush1.bf16.msra.mxu0 0
        %8935 = vmatprep.subr.bf16.mxu0 0
        %8936 = vmatpush1.bf16.msra.mxu0 0
        %8937 = vmatprep.subr.bf16.mxu0 %v8693
        %8938 = vmatpush1.bf16.msra.mxu0 %v8692
        %8939 = vmatprep.subr.bf16.mxu0 %v8689
        %8940 = vmatpush1.bf16.msra.mxu0 %v8688
        %8941 = vmatprep.subr.bf16.mxu0 %v8685
        %8942 = vmatpush1.bf16.msra.mxu0 %v8684
        %8943 = vmatprep.subr.bf16.mxu0 %v8681
        %8944 = vmatpush1.bf16.msra.mxu0 %v8680
        %8945 = vmatprep.subr.bf16.mxu0 0
        %8946 = vmatpush2.bf16.msra.mxu0 0
        %8947 = vmatprep.subr.bf16.mxu0 0
        %8948 = vmatpush2.bf16.msra.mxu0 0
        %8949 = vmatprep.subr.bf16.mxu0 0
        %8950 = vmatpush2.bf16.msra.mxu0 0
        %8951 = vmatprep.subr.bf16.mxu0 0
        %8952 = vmatpush2.bf16.msra.mxu0 0
        %8953 = vmatprep.subr.bf16.mxu0 0
        %8954 = vmatpush2.bf16.msra.mxu0 0
        %8955 = vmatprep.subr.bf16.mxu0 0
        %8956 = vmatpush2.bf16.msra.mxu0 0
        %8957 = vmatprep.subr.bf16.mxu0 0
        %8958 = vmatpush2.bf16.msra.mxu0 0
        %8959 = vmatprep.subr.bf16.mxu0 0
        %8960 = vmatpush2.bf16.msra.mxu0 0
        %8961 = vmatprep.mubr.bf16.mxu0 0
        %8962 = vmatmul.mubr.bf16.gmra.mxu0 %v8841
        %v8963 = vpop.f32.mrf.mxu0
        %v8964 = vadd.f32 %v8921, %v8963
        %v8965 = vpop.f32.mrf.mxu0
        %v8966 = vadd.f32 %v8923, %v8965
        %v8967 = vpop.f32.mrf.mxu0
        %v8968 = vadd.f32 %v8925, %v8967
        %v8969 = vpop.f32.mrf.mxu0
        %v8970 = vadd.f32 %v8927, %v8969
        %8971 = vdwg.mxu0
        %8972 = vmatprep.subr.bf16.mxu0 %v8583
        %8973 = vmatpush1.bf16.msra.mxu0 %v8582
        %8974 = vmatprep.subr.bf16.mxu0 %v8579
        %8975 = vmatpush1.bf16.msra.mxu0 %v8578
        %8976 = vmatprep.subr.bf16.mxu0 %v8575
        %8977 = vmatpush1.bf16.msra.mxu0 %v8574
        %8978 = vmatprep.subr.bf16.mxu0 %v8571
        %8979 = vmatpush1.bf16.msra.mxu0 %v8570
        %8980 = vmatprep.subr.bf16.mxu0 %v8567
        %8981 = vmatpush1.bf16.msra.mxu0 %v8566
        %8982 = vmatprep.subr.bf16.mxu0 %v8563
        %8983 = vmatpush1.bf16.msra.mxu0 %v8562
        %8984 = vmatprep.subr.bf16.mxu0 %v8559
        %8985 = vmatpush1.bf16.msra.mxu0 %v8558
        %8986 = vmatprep.subr.bf16.mxu0 %v8555
        %8987 = vmatpush1.bf16.msra.mxu0 %v8554
        %8988 = vmatprep.subr.bf16.mxu0 %v8615
        %8989 = vmatpush2.bf16.msra.mxu0 %v8614
        %8990 = vmatprep.subr.bf16.mxu0 %v8611
        %8991 = vmatpush2.bf16.msra.mxu0 %v8610
        %8992 = vmatprep.subr.bf16.mxu0 %v8607
        %8993 = vmatpush2.bf16.msra.mxu0 %v8606
        %8994 = vmatprep.subr.bf16.mxu0 %v8603
        %8995 = vmatpush2.bf16.msra.mxu0 %v8602
        %8996 = vmatprep.subr.bf16.mxu0 %v8599
        %8997 = vmatpush2.bf16.msra.mxu0 %v8598
        %8998 = vmatprep.subr.bf16.mxu0 %v8595
        %8999 = vmatpush2.bf16.msra.mxu0 %v8594
        %9000 = vmatprep.subr.bf16.mxu0 %v8591
        %9001 = vmatpush2.bf16.msra.mxu0 %v8590
        %9002 = vmatprep.subr.bf16.mxu0 %v8587
        %9003 = vmatpush2.bf16.msra.mxu0 %v8586
        %9004 = vmatprep.mubr.bf16.mxu0 %v8106
        %9005 = vmatmul.mubr.bf16.gmra.mxu0 %v8103
        %v9006 = vpop.f32.mrf.mxu0
        %v9007 = vadd.f32 0.0, %v9006
        %v9008 = vpop.f32.mrf.mxu0
        %v9009 = vadd.f32 0.0, %v9008
        %v9010 = vpop.f32.mrf.mxu0
        %v9011 = vadd.f32 0.0, %v9010
        %v9012 = vpop.f32.mrf.mxu0
        %v9013 = vadd.f32 0.0, %v9012
        %9014 = vdwg.mxu0
        %9015 = vmatprep.subr.bf16.mxu0 %v8647
        %9016 = vmatpush1.bf16.msra.mxu0 %v8646
        %9017 = vmatprep.subr.bf16.mxu0 %v8643
        %9018 = vmatpush1.bf16.msra.mxu0 %v8642
        %9019 = vmatprep.subr.bf16.mxu0 %v8639
        %9020 = vmatpush1.bf16.msra.mxu0 %v8638
        %9021 = vmatprep.subr.bf16.mxu0 %v8635
        %9022 = vmatpush1.bf16.msra.mxu0 %v8634
        %9023 = vmatprep.subr.bf16.mxu0 %v8631
        %9024 = vmatpush1.bf16.msra.mxu0 %v8630
        %9025 = vmatprep.subr.bf16.mxu0 %v8627
        %9026 = vmatpush1.bf16.msra.mxu0 %v8626
        %9027 = vmatprep.subr.bf16.mxu0 %v8623
        %9028 = vmatpush1.bf16.msra.mxu0 %v8622
        %9029 = vmatprep.subr.bf16.mxu0 %v8619
        %9030 = vmatpush1.bf16.msra.mxu0 %v8618
        %9031 = vmatprep.subr.bf16.mxu0 %v8679
        %9032 = vmatpush2.bf16.msra.mxu0 %v8678
        %9033 = vmatprep.subr.bf16.mxu0 %v8675
        %9034 = vmatpush2.bf16.msra.mxu0 %v8674
        %9035 = vmatprep.subr.bf16.mxu0 %v8671
        %9036 = vmatpush2.bf16.msra.mxu0 %v8670
        %9037 = vmatprep.subr.bf16.mxu0 %v8667
        %9038 = vmatpush2.bf16.msra.mxu0 %v8666
        %9039 = vmatprep.subr.bf16.mxu0 %v8663
        %9040 = vmatpush2.bf16.msra.mxu0 %v8662
        %9041 = vmatprep.subr.bf16.mxu0 %v8659
        %9042 = vmatpush2.bf16.msra.mxu0 %v8658
        %9043 = vmatprep.subr.bf16.mxu0 %v8655
        %9044 = vmatpush2.bf16.msra.mxu0 %v8654
        %9045 = vmatprep.subr.bf16.mxu0 %v8651
        %9046 = vmatpush2.bf16.msra.mxu0 %v8650
        %9047 = vmatprep.mubr.bf16.mxu0 %v8112
        %9048 = vmatmul.mubr.bf16.gmra.mxu0 %v8109
        %v9049 = vpop.f32.mrf.mxu0
        %v9050 = vadd.f32 %v9007, %v9049
        %v9051 = vpop.f32.mrf.mxu0
        %v9052 = vadd.f32 %v9009, %v9051
        %v9053 = vpop.f32.mrf.mxu0
        %v9054 = vadd.f32 %v9011, %v9053
        %v9055 = vpop.f32.mrf.mxu0
        %v9056 = vadd.f32 %v9013, %v9055
        %9057 = vdwg.mxu0
        %9058 = vmatprep.subr.bf16.mxu0 0
        %9059 = vmatpush1.bf16.msra.mxu0 0
        %9060 = vmatprep.subr.bf16.mxu0 0
        %9061 = vmatpush1.bf16.msra.mxu0 0
        %9062 = vmatprep.subr.bf16.mxu0 0
        %9063 = vmatpush1.bf16.msra.mxu0 0
        %9064 = vmatprep.subr.bf16.mxu0 0
        %9065 = vmatpush1.bf16.msra.mxu0 0
        %9066 = vmatprep.subr.bf16.mxu0 %v8695
        %9067 = vmatpush1.bf16.msra.mxu0 %v8694
        %9068 = vmatprep.subr.bf16.mxu0 %v8691
        %9069 = vmatpush1.bf16.msra.mxu0 %v8690
        %9070 = vmatprep.subr.bf16.mxu0 %v8687
        %9071 = vmatpush1.bf16.msra.mxu0 %v8686
        %9072 = vmatprep.subr.bf16.mxu0 %v8683
        %9073 = vmatpush1.bf16.msra.mxu0 %v8682
        %9074 = vmatprep.subr.bf16.mxu0 0
        %9075 = vmatpush2.bf16.msra.mxu0 0
        %9076 = vmatprep.subr.bf16.mxu0 0
        %9077 = vmatpush2.bf16.msra.mxu0 0
        %9078 = vmatprep.subr.bf16.mxu0 0
        %9079 = vmatpush2.bf16.msra.mxu0 0
        %9080 = vmatprep.subr.bf16.mxu0 0
        %9081 = vmatpush2.bf16.msra.mxu0 0
        %9082 = vmatprep.subr.bf16.mxu0 0
        %9083 = vmatpush2.bf16.msra.mxu0 0
        %9084 = vmatprep.subr.bf16.mxu0 0
        %9085 = vmatpush2.bf16.msra.mxu0 0
        %9086 = vmatprep.subr.bf16.mxu0 0
        %9087 = vmatpush2.bf16.msra.mxu0 0
        %9088 = vmatprep.subr.bf16.mxu0 0
        %9089 = vmatpush2.bf16.msra.mxu0 0
        %9090 = vmatprep.mubr.bf16.mxu0 0
        %9091 = vmatmul.mubr.bf16.gmra.mxu0 %v8841
        %v9092 = vpop.f32.mrf.mxu0
        %v9093 = vadd.f32 %v9050, %v9092
        %v9094 = vpop.f32.mrf.mxu0
        %v9095 = vadd.f32 %v9052, %v9094
        %v9096 = vpop.f32.mrf.mxu0
        %v9097 = vadd.f32 %v9054, %v9096
        %v9098 = vpop.f32.mrf.mxu0
        %v9099 = vadd.f32 %v9056, %v9098
        %9100 = vdwg.mxu0
        %v9101 = vadd.f32 %v7809, %v8964
        %v9102 = vadd.f32 %v7811, %v8966
        %v9103 = vadd.f32 %v7938, %v9093
        %v9104 = vadd.f32 %v7940, %v9095
        %v9105 = vadd.f32 %v7813, %v8968
        %v9106 = vadd.f32 %v7815, %v8970
        %v9107 = vadd.f32 %v7942, %v9097
        %v9108 = vadd.f32 %v7944, %v9099
        %v9109 = vld [vmem:[#allocation8] sm:$0xf]
        %v9111 = vlaneseq
        %v9112 = vshrl.u32 %v9111, 7
        %v9113 = vsub.s32 0, %v9112
        %v9114 = vrot.slane %v9109, %v9113
        %v9115 = vlaneseq
        %v9116 = vshrl.u32 %v9115, 7
        %v9117 = vsub.s32 1, %v9116
        %v9118 = vrot.slane %v9109, %v9117
        %v9119 = vlaneseq
        %v9120 = vshrl.u32 %v9119, 7
        %v9121 = vsub.s32 2, %v9120
        %v9122 = vrot.slane %v9109, %v9121
        %v9123 = vlaneseq
        %v9124 = vshrl.u32 %v9123, 7
        %v9125 = vsub.s32 3, %v9124
        %v9126 = vrot.slane %v9109, %v9125
        %v9131 = vadd.f32 %v9101, %v9114
        %v9132 = vadd.f32 %v9102, %v9118
        %v9133 = vadd.f32 %v9103, %v9122
        %v9134 = vadd.f32 %v9104, %v9126
        %v9135 = vadd.f32 %v9105, %v9114
        %v9136 = vadd.f32 %v9106, %v9118
        %v9137 = vadd.f32 %v9107, %v9122
        %v9138 = vadd.f32 %v9108, %v9126
        %vm9139 = vcmask 130048
        %v9141 = vsel %vm9139, 1.0, 0
        %9143 = vmatprep.subr.mxu0 0.0
        %9144 = vmatpush1.msra.mxu0 0.0
        %9145 = vmatprep.subr.mxu0 0.0
        %9146 = vmatpush1.msra.mxu0 0.0
        %9147 = vmatprep.subr.mxu0 0.0
        %9148 = vmatpush1.msra.mxu0 0.0
        %9149 = vmatprep.subr.mxu0 0.0
        %9150 = vmatpush1.msra.mxu0 0.0
        %9151 = vmatprep.subr.mxu0 0.0
        %9152 = vmatpush1.msra.mxu0 0.0
        %9153 = vmatprep.subr.mxu0 0.0
        %9154 = vmatpush1.msra.mxu0 0.0
        %9155 = vmatprep.subr.mxu0 0.0
        %9156 = vmatpush1.msra.mxu0 0.0
        %9157 = vmatprep.subr.mxu0 0.0
        %9158 = vmatpush1.msra.mxu0 0.0
        %9159 = vmatprep.subr.mxu0 0.0
        %9160 = vmatpush1.msra.mxu0 0.0
        %9161 = vmatprep.subr.mxu0 0.0
        %9162 = vmatpush1.msra.mxu0 0.0
        %9163 = vmatprep.subr.mxu0 0.0
        %9164 = vmatpush1.msra.mxu0 0.0
        %9165 = vmatprep.subr.mxu0 0.0
        %9166 = vmatpush1.msra.mxu0 0.0
        %9167 = vmatprep.subr.mxu0 0.0
        %9168 = vmatpush1.msra.mxu0 0.0
        %9169 = vmatprep.subr.mxu0 0.0
        %9170 = vmatpush1.msra.mxu0 0.0
        %9171 = vmatprep.subr.mxu0 %v9136
        %9172 = vmatpush1.msra.mxu0 %v9135
        %9173 = vmatprep.subr.mxu0 %v9132
        %9174 = vmatpush1.msra.mxu0 %v9131
        %9175 = vmatprep.subr.mxu0 0.0
        %9176 = vmatpush2.msra.mxu0 0.0
        %9177 = vmatprep.subr.mxu0 0.0
        %9178 = vmatpush2.msra.mxu0 0.0
        %9179 = vmatprep.subr.mxu0 0.0
        %9180 = vmatpush2.msra.mxu0 0.0
        %9181 = vmatprep.subr.mxu0 0.0
        %9182 = vmatpush2.msra.mxu0 0.0
        %9183 = vmatprep.subr.mxu0 0.0
        %9184 = vmatpush2.msra.mxu0 0.0
        %9185 = vmatprep.subr.mxu0 0.0
        %9186 = vmatpush2.msra.mxu0 0.0
        %9187 = vmatprep.subr.mxu0 0.0
        %9188 = vmatpush2.msra.mxu0 0.0
        %9189 = vmatprep.subr.mxu0 0.0
        %9190 = vmatpush2.msra.mxu0 0.0
        %9191 = vmatprep.subr.mxu0 0.0
        %9192 = vmatpush2.msra.mxu0 0.0
        %9193 = vmatprep.subr.mxu0 0.0
        %9194 = vmatpush2.msra.mxu0 0.0
        %9195 = vmatprep.subr.mxu0 0.0
        %9196 = vmatpush2.msra.mxu0 0.0
        %9197 = vmatprep.subr.mxu0 0.0
        %9198 = vmatpush2.msra.mxu0 0.0
        %9199 = vmatprep.subr.mxu0 0.0
        %9200 = vmatpush2.msra.mxu0 0.0
        %9201 = vmatprep.subr.mxu0 0.0
        %9202 = vmatpush2.msra.mxu0 0.0
        %9203 = vmatprep.subr.mxu0 0.0
        %9204 = vmatpush2.msra.mxu0 0.0
        %9205 = vmatprep.subr.mxu0 0.0
        %9206 = vmatpush2.msra.mxu0 0.0
        %9207 = vmatprep.mubr.f32.mxu0 0.0
        %9208 = vmatmul.mubr.f32.gmra.mxu0 %v9141
        %v9209 = vpop.f32.mrf.mxu0
        %v9210 = vadd.f32 0.0, %v9209
        %v9211 = vpop.f32.mrf.mxu0
        %v9212 = vadd.f32 0.0, %v9211
        %9213 = vdwg.mxu0
        %9214 = vmatprep.subr.mxu0 0.0
        %9215 = vmatpush1.msra.mxu0 0.0
        %9216 = vmatprep.subr.mxu0 0.0
        %9217 = vmatpush1.msra.mxu0 0.0
        %9218 = vmatprep.subr.mxu0 0.0
        %9219 = vmatpush1.msra.mxu0 0.0
        %9220 = vmatprep.subr.mxu0 0.0
        %9221 = vmatpush1.msra.mxu0 0.0
        %9222 = vmatprep.subr.mxu0 0.0
        %9223 = vmatpush1.msra.mxu0 0.0
        %9224 = vmatprep.subr.mxu0 0.0
        %9225 = vmatpush1.msra.mxu0 0.0
        %9226 = vmatprep.subr.mxu0 0.0
        %9227 = vmatpush1.msra.mxu0 0.0
        %9228 = vmatprep.subr.mxu0 0.0
        %9229 = vmatpush1.msra.mxu0 0.0
        %9230 = vmatprep.subr.mxu0 0.0
        %9231 = vmatpush1.msra.mxu0 0.0
        %9232 = vmatprep.subr.mxu0 0.0
        %9233 = vmatpush1.msra.mxu0 0.0
        %9234 = vmatprep.subr.mxu0 0.0
        %9235 = vmatpush1.msra.mxu0 0.0
        %9236 = vmatprep.subr.mxu0 0.0
        %9237 = vmatpush1.msra.mxu0 0.0
        %9238 = vmatprep.subr.mxu0 0.0
        %9239 = vmatpush1.msra.mxu0 0.0
        %9240 = vmatprep.subr.mxu0 0.0
        %9241 = vmatpush1.msra.mxu0 0.0
        %9242 = vmatprep.subr.mxu0 %v9138
        %9243 = vmatpush1.msra.mxu0 %v9137
        %9244 = vmatprep.subr.mxu0 %v9134
        %9245 = vmatpush1.msra.mxu0 %v9133
        %9246 = vmatprep.subr.mxu0 0.0
        %9247 = vmatpush2.msra.mxu0 0.0
        %9248 = vmatprep.subr.mxu0 0.0
        %9249 = vmatpush2.msra.mxu0 0.0
        %9250 = vmatprep.subr.mxu0 0.0
        %9251 = vmatpush2.msra.mxu0 0.0
        %9252 = vmatprep.subr.mxu0 0.0
        %9253 = vmatpush2.msra.mxu0 0.0
        %9254 = vmatprep.subr.mxu0 0.0
        %9255 = vmatpush2.msra.mxu0 0.0
        %9256 = vmatprep.subr.mxu0 0.0
        %9257 = vmatpush2.msra.mxu0 0.0
        %9258 = vmatprep.subr.mxu0 0.0
        %9259 = vmatpush2.msra.mxu0 0.0
        %9260 = vmatprep.subr.mxu0 0.0
        %9261 = vmatpush2.msra.mxu0 0.0
        %9262 = vmatprep.subr.mxu0 0.0
        %9263 = vmatpush2.msra.mxu0 0.0
        %9264 = vmatprep.subr.mxu0 0.0
        %9265 = vmatpush2.msra.mxu0 0.0
        %9266 = vmatprep.subr.mxu0 0.0
        %9267 = vmatpush2.msra.mxu0 0.0
        %9268 = vmatprep.subr.mxu0 0.0
        %9269 = vmatpush2.msra.mxu0 0.0
        %9270 = vmatprep.subr.mxu0 0.0
        %9271 = vmatpush2.msra.mxu0 0.0
        %9272 = vmatprep.subr.mxu0 0.0
        %9273 = vmatpush2.msra.mxu0 0.0
        %9274 = vmatprep.subr.mxu0 0.0
        %9275 = vmatpush2.msra.mxu0 0.0
        %9276 = vmatprep.subr.mxu0 0.0
        %9277 = vmatpush2.msra.mxu0 0.0
        %9278 = vmatprep.mubr.f32.mxu0 0.0
        %9279 = vmatmul.mubr.f32.gmra.mxu0 %v9141
        %v9280 = vpop.f32.mrf.mxu0
        %v9281 = vadd.f32 0.0, %v9280
        %v9282 = vpop.f32.mrf.mxu0
        %v9283 = vadd.f32 0.0, %v9282
        %9284 = vdwg.mxu0
        %v9285 = vpack.c.bf16 %v9210, %v9210
        %v9286 = vpack.c.bf16 %v9212, %v9212
        %v9287 = vpack.c.bf16 %v9281, %v9281
        %v9288 = vpack.c.bf16 %v9283, %v9283
        %v9289 = vld [vmem:[%s7] sm:$0xf]
        %v9290 = vld [vmem:[%s7 + $0x4] sm:$0xf]
        %v9291 = vld [vmem:[%s7 + $0x8] sm:$0xf]
        %v9292 = vld [vmem:[%s7 + $0xc] sm:$0xf]
        %v9293 = vld [vmem:[%s7 + $0x10] sm:$0xf]
        %v9294 = vld [vmem:[%s7 + $0x14] sm:$0xf]
        %v9295 = vld [vmem:[%s7 + $0x18] sm:$0xf]
        %v9296 = vld [vmem:[%s7 + $0x1c] sm:$0xf]
        %v9297 = vld [vmem:[%s7 + $0x20] sm:$0xf]
        %v9298 = vld [vmem:[%s7 + $0x24] sm:$0xf]
        %v9299 = vld [vmem:[%s7 + $0x28] sm:$0xf]
        %v9300 = vld [vmem:[%s7 + $0x2c] sm:$0xf]
        %v9301 = vld [vmem:[%s7 + $0x30] sm:$0xf]
        %v9302 = vld [vmem:[%s7 + $0x34] sm:$0xf]
        %v9303 = vld [vmem:[%s7 + $0x38] sm:$0xf]
        %v9304 = vld [vmem:[%s7 + $0x3c] sm:$0xf]
        %v9305 = vld [vmem:[%s7 + $0x40] sm:$0xf]
        %v9306 = vld [vmem:[%s7 + $0x44] sm:$0xf]
        %v9307 = vld [vmem:[%s7 + $0x48] sm:$0xf]
        %v9308 = vld [vmem:[%s7 + $0x4c] sm:$0xf]
        %v9309 = vld [vmem:[%s7 + $0x50] sm:$0xf]
        %v9310 = vld [vmem:[%s7 + $0x54] sm:$0xf]
        %v9311 = vld [vmem:[%s7 + $0x58] sm:$0xf]
        %v9312 = vld [vmem:[%s7 + $0x5c] sm:$0xf]
        %v9313 = vld [vmem:[%s7 + $0x60] sm:$0xf]
        %v9314 = vld [vmem:[%s7 + $0x64] sm:$0xf]
        %v9315 = vld [vmem:[%s7 + $0x68] sm:$0xf]
        %v9316 = vld [vmem:[%s7 + $0x6c] sm:$0xf]
        %v9317 = vld [vmem:[%s7 + $0x70] sm:$0xf]
        %v9318 = vld [vmem:[%s7 + $0x74] sm:$0xf]
        %v9319 = vld [vmem:[%s7 + $0x78] sm:$0xf]
        %v9320 = vld [vmem:[%s7 + $0x7c] sm:$0xf]
        %v9321 = vld [vmem:[%s7 + $0x80] sm:$0xf]
        %v9322 = vld [vmem:[%s7 + $0x84] sm:$0xf]
        %v9323 = vld [vmem:[%s7 + $0x88] sm:$0xf]
        %v9324 = vld [vmem:[%s7 + $0x8c] sm:$0xf]
        %v9325 = vld [vmem:[%s7 + $0x90] sm:$0xf]
        %v9326 = vld [vmem:[%s7 + $0x94] sm:$0xf]
        %v9327 = vld [vmem:[%s7 + $0x98] sm:$0xf]
        %v9328 = vld [vmem:[%s7 + $0x9c] sm:$0xf]
        %v9329 = vld [vmem:[%s7 + $0xa0] sm:$0xf]
        %v9330 = vld [vmem:[%s7 + $0xa4] sm:$0xf]
        %v9331 = vld [vmem:[%s7 + $0xa8] sm:$0xf]
        %v9332 = vld [vmem:[%s7 + $0xac] sm:$0xf]
        %v9333 = vld [vmem:[%s7 + $0xb0] sm:$0xf]
        %v9334 = vld [vmem:[%s7 + $0xb4] sm:$0xf]
        %v9335 = vld [vmem:[%s7 + $0xb8] sm:$0xf]
        %v9336 = vld [vmem:[%s7 + $0xbc] sm:$0xf]
        %v9337 = vld [vmem:[%s7 + $0xc0] sm:$0xf]
        %v9338 = vld [vmem:[%s7 + $0xc4] sm:$0xf]
        %v9339 = vld [vmem:[%s7 + $0xc8] sm:$0xf]
        %v9340 = vld [vmem:[%s7 + $0xcc] sm:$0xf]
        %v9341 = vld [vmem:[%s7 + $0xd0] sm:$0xf]
        %v9342 = vld [vmem:[%s7 + $0xd4] sm:$0xf]
        %v9343 = vld [vmem:[%s7 + $0xd8] sm:$0xf]
        %v9344 = vld [vmem:[%s7 + $0xdc] sm:$0xf]
        %v9345 = vld [vmem:[%s7 + $0xe0] sm:$0xf]
        %v9346 = vld [vmem:[%s7 + $0xe4] sm:$0xf]
        %v9347 = vld [vmem:[%s7 + $0xe8] sm:$0xf]
        %v9348 = vld [vmem:[%s7 + $0xec] sm:$0xf]
        %v9349 = vld [vmem:[%s7 + $0xf0] sm:$0xf]
        %v9350 = vld [vmem:[%s7 + $0xf4] sm:$0xf]
        %v9351 = vld [vmem:[%s7 + $0xf8] sm:$0xf]
        %v9352 = vld [vmem:[%s7 + $0xfc] sm:$0xf]
        %v9417 = vunpack.c.l.b16 %v9289
        %v9418 = vunpack.c.l.b16 %v9290
        %v9419 = vunpack.c.l.b16 %v9291
        %v9420 = vunpack.c.l.b16 %v9292
        %v9421 = vunpack.c.l.b16 %v9293
        %v9422 = vunpack.c.l.b16 %v9294
        %v9423 = vunpack.c.l.b16 %v9295
        %v9424 = vunpack.c.l.b16 %v9296
        %v9425 = vunpack.c.l.b16 %v9297
        %v9426 = vunpack.c.l.b16 %v9298
        %v9427 = vunpack.c.l.b16 %v9299
        %v9428 = vunpack.c.l.b16 %v9300
        %v9429 = vunpack.c.l.b16 %v9301
        %v9430 = vunpack.c.l.b16 %v9302
        %v9431 = vunpack.c.l.b16 %v9303
        %v9432 = vunpack.c.l.b16 %v9304
        %v9433 = vunpack.c.l.b16 %v9305
        %v9434 = vunpack.c.l.b16 %v9306
        %v9435 = vunpack.c.l.b16 %v9307
        %v9436 = vunpack.c.l.b16 %v9308
        %v9437 = vunpack.c.l.b16 %v9309
        %v9438 = vunpack.c.l.b16 %v9310
        %v9439 = vunpack.c.l.b16 %v9311
        %v9440 = vunpack.c.l.b16 %v9312
        %v9441 = vunpack.c.l.b16 %v9313
        %v9442 = vunpack.c.l.b16 %v9314
        %v9443 = vunpack.c.l.b16 %v9315
        %v9444 = vunpack.c.l.b16 %v9316
        %v9445 = vunpack.c.l.b16 %v9317
        %v9446 = vunpack.c.l.b16 %v9318
        %v9447 = vunpack.c.l.b16 %v9319
        %v9448 = vunpack.c.l.b16 %v9320
        %v9449 = vunpack.c.l.b16 %v9321
        %v9450 = vunpack.c.l.b16 %v9322
        %v9451 = vunpack.c.l.b16 %v9323
        %v9452 = vunpack.c.l.b16 %v9324
        %v9453 = vunpack.c.l.b16 %v9325
        %v9454 = vunpack.c.l.b16 %v9326
        %v9455 = vunpack.c.l.b16 %v9327
        %v9456 = vunpack.c.l.b16 %v9328
        %v9457 = vunpack.c.l.b16 %v9329
        %v9458 = vunpack.c.l.b16 %v9330
        %v9459 = vunpack.c.l.b16 %v9331
        %v9460 = vunpack.c.l.b16 %v9332
        %v9461 = vunpack.c.l.b16 %v9333
        %v9462 = vunpack.c.l.b16 %v9334
        %v9463 = vunpack.c.l.b16 %v9335
        %v9464 = vunpack.c.l.b16 %v9336
        %v9465 = vunpack.c.l.b16 %v9337
        %v9466 = vunpack.c.l.b16 %v9338
        %v9467 = vunpack.c.l.b16 %v9339
        %v9468 = vunpack.c.l.b16 %v9340
        %v9469 = vunpack.c.l.b16 %v9341
        %v9470 = vunpack.c.l.b16 %v9342
        %v9471 = vunpack.c.l.b16 %v9343
        %v9472 = vunpack.c.l.b16 %v9344
        %v9473 = vunpack.c.l.b16 %v9345
        %v9474 = vunpack.c.l.b16 %v9346
        %v9475 = vunpack.c.l.b16 %v9347
        %v9476 = vunpack.c.l.b16 %v9348
        %v9477 = vunpack.c.l.b16 %v9349
        %v9478 = vunpack.c.l.b16 %v9350
        %v9479 = vunpack.c.l.b16 %v9351
        %v9480 = vunpack.c.l.b16 %v9352
        %v9481 = vpack.c.b16 %v9418, %v9417
        %v9482 = vpack.c.b16 %v9420, %v9419
        %v9483 = vpack.c.b16 %v9422, %v9421
        %v9484 = vpack.c.b16 %v9424, %v9423
        %v9485 = vpack.c.b16 %v9426, %v9425
        %v9486 = vpack.c.b16 %v9428, %v9427
        %v9487 = vpack.c.b16 %v9430, %v9429
        %v9488 = vpack.c.b16 %v9432, %v9431
        %v9489 = vpack.c.b16 %v9434, %v9433
        %v9490 = vpack.c.b16 %v9436, %v9435
        %v9491 = vpack.c.b16 %v9438, %v9437
        %v9492 = vpack.c.b16 %v9440, %v9439
        %v9493 = vpack.c.b16 %v9442, %v9441
        %v9494 = vpack.c.b16 %v9444, %v9443
        %v9495 = vpack.c.b16 %v9446, %v9445
        %v9496 = vpack.c.b16 %v9448, %v9447
        %v9497 = vpack.c.b16 %v9450, %v9449
        %v9498 = vpack.c.b16 %v9452, %v9451
        %v9499 = vpack.c.b16 %v9454, %v9453
        %v9500 = vpack.c.b16 %v9456, %v9455
        %v9501 = vpack.c.b16 %v9458, %v9457
        %v9502 = vpack.c.b16 %v9460, %v9459
        %v9503 = vpack.c.b16 %v9462, %v9461
        %v9504 = vpack.c.b16 %v9464, %v9463
        %v9505 = vpack.c.b16 %v9466, %v9465
        %v9506 = vpack.c.b16 %v9468, %v9467
        %v9507 = vpack.c.b16 %v9470, %v9469
        %v9508 = vpack.c.b16 %v9472, %v9471
        %v9509 = vpack.c.b16 %v9474, %v9473
        %v9510 = vpack.c.b16 %v9476, %v9475
        %v9511 = vpack.c.b16 %v9478, %v9477
        %v9512 = vpack.c.b16 %v9480, %v9479
        %9545 = vmatprep.subr.bf16.mxu0 0
        %9546 = vmatpush1.bf16.msra.mxu0 %v9488
        %9547 = vmatprep.subr.bf16.mxu0 0
        %9548 = vmatpush1.bf16.msra.mxu0 %v9487
        %9549 = vmatprep.subr.bf16.mxu0 0
        %9550 = vmatpush1.bf16.msra.mxu0 %v9486
        %9551 = vmatprep.subr.bf16.mxu0 0
        %9552 = vmatpush1.bf16.msra.mxu0 %v9485
        %9553 = vmatprep.subr.bf16.mxu0 0
        %9554 = vmatpush1.bf16.msra.mxu0 %v9484
        %9555 = vmatprep.subr.bf16.mxu0 0
        %9556 = vmatpush1.bf16.msra.mxu0 %v9483
        %9557 = vmatprep.subr.bf16.mxu0 0
        %9558 = vmatpush1.bf16.msra.mxu0 %v9482
        %9559 = vmatprep.subr.bf16.mxu0 0
        %9560 = vmatpush1.bf16.msra.mxu0 %v9481
        %9561 = vmatprep.subr.bf16.mxu0 0
        %9562 = vmatpush2.bf16.msra.mxu0 %v9496
        %9563 = vmatprep.subr.bf16.mxu0 0
        %9564 = vmatpush2.bf16.msra.mxu0 %v9495
        %9565 = vmatprep.subr.bf16.mxu0 0
        %9566 = vmatpush2.bf16.msra.mxu0 %v9494
        %9567 = vmatprep.subr.bf16.mxu0 0
        %9568 = vmatpush2.bf16.msra.mxu0 %v9493
        %9569 = vmatprep.subr.bf16.mxu0 0
        %9570 = vmatpush2.bf16.msra.mxu0 %v9492
        %9571 = vmatprep.subr.bf16.mxu0 0
        %9572 = vmatpush2.bf16.msra.mxu0 %v9491
        %9573 = vmatprep.subr.bf16.mxu0 0
        %9574 = vmatpush2.bf16.msra.mxu0 %v9490
        %9575 = vmatprep.subr.bf16.mxu0 0
        %9576 = vmatpush2.bf16.msra.mxu0 %v9489
        %9577 = vmatprep.mubr.bf16.mxu0 %v9286
        %9578 = vmatmul.mubr.bf16.gmra.mxu0 %v9285
        %v9579 = vpop.f32.mrf.mxu0
        %v9580 = vadd.f32 0.0, %v9579
        %v9581 = vpop.f32.mrf.mxu0
        %v9582 = vpop.f32.mrf.mxu0
        %v9583 = vpop.f32.mrf.mxu0
        %9584 = vdwg.mxu0
        %9585 = vmatprep.subr.bf16.mxu0 0
        %9586 = vmatpush1.bf16.msra.mxu0 %v9504
        %9587 = vmatprep.subr.bf16.mxu0 0
        %9588 = vmatpush1.bf16.msra.mxu0 %v9503
        %9589 = vmatprep.subr.bf16.mxu0 0
        %9590 = vmatpush1.bf16.msra.mxu0 %v9502
        %9591 = vmatprep.subr.bf16.mxu0 0
        %9592 = vmatpush1.bf16.msra.mxu0 %v9501
        %9593 = vmatprep.subr.bf16.mxu0 0
        %9594 = vmatpush1.bf16.msra.mxu0 %v9500
        %9595 = vmatprep.subr.bf16.mxu0 0
        %9596 = vmatpush1.bf16.msra.mxu0 %v9499
        %9597 = vmatprep.subr.bf16.mxu0 0
        %9598 = vmatpush1.bf16.msra.mxu0 %v9498
        %9599 = vmatprep.subr.bf16.mxu0 0
        %9600 = vmatpush1.bf16.msra.mxu0 %v9497
        %9601 = vmatprep.subr.bf16.mxu0 0
        %9602 = vmatpush2.bf16.msra.mxu0 %v9512
        %9603 = vmatprep.subr.bf16.mxu0 0
        %9604 = vmatpush2.bf16.msra.mxu0 %v9511
        %9605 = vmatprep.subr.bf16.mxu0 0
        %9606 = vmatpush2.bf16.msra.mxu0 %v9510
        %9607 = vmatprep.subr.bf16.mxu0 0
        %9608 = vmatpush2.bf16.msra.mxu0 %v9509
        %9609 = vmatprep.subr.bf16.mxu0 0
        %9610 = vmatpush2.bf16.msra.mxu0 %v9508
        %9611 = vmatprep.subr.bf16.mxu0 0
        %9612 = vmatpush2.bf16.msra.mxu0 %v9507
        %9613 = vmatprep.subr.bf16.mxu0 0
        %9614 = vmatpush2.bf16.msra.mxu0 %v9506
        %9615 = vmatprep.subr.bf16.mxu0 0
        %9616 = vmatpush2.bf16.msra.mxu0 %v9505
        %9617 = vmatprep.mubr.bf16.mxu0 %v9288
        %9618 = vmatmul.mubr.bf16.gmra.mxu0 %v9287
        %v9619 = vpop.f32.mrf.mxu0
        %v9620 = vadd.f32 %v9580, %v9619
        %v9621 = vpop.f32.mrf.mxu0
        %v9622 = vpop.f32.mrf.mxu0
        %v9623 = vpop.f32.mrf.mxu0
        %9624 = vdwg.mxu0
        %v9625 = vmax.f32 %v9620, 0.0
        %v9626 = vpack.c.bf16 %v9625, %v9625
        %v9627 = vld [vmem:[#allocation13] sm:$0xf]
        %v9630 = vunpack.c.l.s4 1966171168
        %v9631 = vunpack.c.0.s8 %v9630
        %v9632 = vlaneseq
        %v9633 = vshrl.u32 %v9632, 7
        %v9634 = vsub.s32 %v9631, %v9633
        %v9635 = vrot.slane %v9627, %v9634
        %v9636 = vcombine.high %v9635, %v9635
        %v9638 = vunpack.c.l.s4 1966171168
        %v9639 = vunpack.c.0.s8 %v9638
        %v9640 = vlaneseq
        %v9641 = vshrl.u32 %v9640, 7
        %v9642 = vsub.s32 %v9639, %v9641
        %v9643 = vrot.slane %v9635, %v9642
        %v9645 = vunpack.c.l.s4 1966171168
        %v9646 = vunpack.c.0.s8 %v9645
        %v9647 = vlaneseq
        %v9648 = vshrl.u32 %v9647, 7
        %v9649 = vsub.s32 %v9646, %v9648
        %v9650 = vrot.slane %v9636, %v9649
        %v9651 = vcombine.high %v9643, %v9643
        %v9652 = vcombine.high %v9650, %v9650
        %vm9653 = vcmask 15360
        %v9655 = vsel %vm9653, %v9626, 0
        %vm9657 = vcmask 1040384
        %v9659 = vsel %vm9657, %v9643, 0
        %v9662 = vsel %vm9657, %v9650, 0
        %v9665 = vsel %vm9657, %v9651, 0
        %v9668 = vsel %vm9657, %v9652, 0
        %9670 = vmatprep.subr.bf16.mxu0 0
        %9671 = vmatpush1.bf16.msra.mxu0 0
        %9672 = vmatprep.subr.bf16.mxu0 0
        %9673 = vmatpush1.bf16.msra.mxu0 0
        %9674 = vmatprep.subr.bf16.mxu0 0
        %9675 = vmatpush1.bf16.msra.mxu0 0
        %9676 = vmatprep.subr.bf16.mxu0 0
        %9677 = vmatpush1.bf16.msra.mxu0 0
        %9678 = vmatprep.subr.bf16.mxu0 0
        %9679 = vmatpush1.bf16.msra.mxu0 0
        %9680 = vmatprep.subr.bf16.mxu0 0
        %9681 = vmatpush1.bf16.msra.mxu0 0
        %9682 = vmatprep.subr.bf16.mxu0 0
        %9683 = vmatpush1.bf16.msra.mxu0 0
        %9684 = vmatprep.subr.bf16.mxu0 %v9662
        %9685 = vmatpush1.bf16.msra.mxu0 %v9659
        %9686 = vmatprep.subr.bf16.mxu0 0
        %9687 = vmatpush2.bf16.msra.mxu0 0
        %9688 = vmatprep.subr.bf16.mxu0 0
        %9689 = vmatpush2.bf16.msra.mxu0 0
        %9690 = vmatprep.subr.bf16.mxu0 0
        %9691 = vmatpush2.bf16.msra.mxu0 0
        %9692 = vmatprep.subr.bf16.mxu0 0
        %9693 = vmatpush2.bf16.msra.mxu0 0
        %9694 = vmatprep.subr.bf16.mxu0 0
        %9695 = vmatpush2.bf16.msra.mxu0 0
        %9696 = vmatprep.subr.bf16.mxu0 0
        %9697 = vmatpush2.bf16.msra.mxu0 0
        %9698 = vmatprep.subr.bf16.mxu0 0
        %9699 = vmatpush2.bf16.msra.mxu0 0
        %9700 = vmatprep.subr.bf16.mxu0 0
        %9701 = vmatpush2.bf16.msra.mxu0 0
        %9702 = vmatprep.mubr.bf16.mxu0 0
        %9703 = vmatmul.mubr.bf16.gmra.mxu0 %v9655
        %v9704 = vpop.f32.mrf.mxu0
        %v9705 = vadd.f32 0.0, %v9704
        %v9706 = vpop.f32.mrf.mxu0
        %v9707 = vadd.f32 0.0, %v9706
        %v9708 = vpop.f32.mrf.mxu0
        %v9709 = vpop.f32.mrf.mxu0
        %9710 = vdwg.mxu0
        %9711 = vmatprep.subr.bf16.mxu0 0
        %9712 = vmatpush1.bf16.msra.mxu0 0
        %9713 = vmatprep.subr.bf16.mxu0 0
        %9714 = vmatpush1.bf16.msra.mxu0 0
        %9715 = vmatprep.subr.bf16.mxu0 0
        %9716 = vmatpush1.bf16.msra.mxu0 0
        %9717 = vmatprep.subr.bf16.mxu0 0
        %9718 = vmatpush1.bf16.msra.mxu0 0
        %9719 = vmatprep.subr.bf16.mxu0 0
        %9720 = vmatpush1.bf16.msra.mxu0 0
        %9721 = vmatprep.subr.bf16.mxu0 0
        %9722 = vmatpush1.bf16.msra.mxu0 0
        %9723 = vmatprep.subr.bf16.mxu0 0
        %9724 = vmatpush1.bf16.msra.mxu0 0
        %9725 = vmatprep.subr.bf16.mxu0 %v9668
        %9726 = vmatpush1.bf16.msra.mxu0 %v9665
        %9727 = vmatprep.subr.bf16.mxu0 0
        %9728 = vmatpush2.bf16.msra.mxu0 0
        %9729 = vmatprep.subr.bf16.mxu0 0
        %9730 = vmatpush2.bf16.msra.mxu0 0
        %9731 = vmatprep.subr.bf16.mxu0 0
        %9732 = vmatpush2.bf16.msra.mxu0 0
        %9733 = vmatprep.subr.bf16.mxu0 0
        %9734 = vmatpush2.bf16.msra.mxu0 0
        %9735 = vmatprep.subr.bf16.mxu0 0
        %9736 = vmatpush2.bf16.msra.mxu0 0
        %9737 = vmatprep.subr.bf16.mxu0 0
        %9738 = vmatpush2.bf16.msra.mxu0 0
        %9739 = vmatprep.subr.bf16.mxu0 0
        %9740 = vmatpush2.bf16.msra.mxu0 0
        %9741 = vmatprep.subr.bf16.mxu0 0
        %9742 = vmatpush2.bf16.msra.mxu0 0
        %9743 = vmatprep.mubr.bf16.mxu0 0
        %9744 = vmatmul.mubr.bf16.gmra.mxu0 %v9655
        %v9745 = vpop.f32.mrf.mxu0
        %v9746 = vadd.f32 0.0, %v9745
        %v9747 = vpop.f32.mrf.mxu0
        %v9748 = vadd.f32 0.0, %v9747
        %v9749 = vpop.f32.mrf.mxu0
        %v9750 = vpop.f32.mrf.mxu0
        %9751 = vdwg.mxu0
        %v9752 = vxor.u32 %v9705, 2147483648
        %v9753 = vxor.u32 %v9707, 2147483648
        %v9754 = vxor.u32 %v9746, 2147483648
        %v9755 = vxor.u32 %v9748, 2147483648
        %v9756 = vmul.f32 %v9752, 1.442695
        %v9757 = vpow.pop %v9756
        %v9758 = vmul.f32 %v9753, 1.442695
        %v9759 = vpow.pop %v9758
        %v9760 = vmul.f32 %v9754, 1.442695
        %v9761 = vpow.pop %v9760
        %v9762 = vmul.f32 %v9755, 1.442695
        %v9763 = vpow.pop %v9762
        %v9764 = vadd.f32 %v9757, 1.0
        %v9765 = vadd.f32 %v9759, 1.0
        %v9766 = vadd.f32 %v9761, 1.0
        %v9767 = vadd.f32 %v9763, 1.0
        %v9768 = vrcp.pop %v9764
        %v9769 = vmul.f32 1.0, %v9768
        %v9770 = vrcp.pop %v9765
        %v9771 = vmul.f32 1.0, %v9770
        %v9772 = vrcp.pop %v9766
        %v9773 = vmul.f32 1.0, %v9772
        %v9774 = vrcp.pop %v9767
        %v9775 = vmul.f32 1.0, %v9774
        %v9776 = vlaneseq
        %v9777 = vshrl.u32 %v9776, 7
        %v9778 = vsub.s32 0, %v9777
        %v9779 = vrot.slane %v9769, %v9778
        %v9780 = vlaneseq
        %v9781 = vshrl.u32 %v9780, 7
        %v9782 = vsub.s32 0, %v9781
        %v9783 = vrot.slane %v9771, %v9782
        %v9784 = vlaneseq
        %v9785 = vshrl.u32 %v9784, 7
        %v9786 = vsub.s32 0, %v9785
        %v9787 = vrot.slane %v9773, %v9786
        %v9788 = vlaneseq
        %v9789 = vshrl.u32 %v9788, 7
        %v9790 = vsub.s32 0, %v9789
        %v9791 = vrot.slane %v9775, %v9790
        %v9792 = vmul.f32 %v9131, %v9779
        %v9793 = vmul.f32 %v9132, %v9783
        %v9794 = vmul.f32 %v9133, %v9787
        %v9795 = vmul.f32 %v9134, %v9791
        %v9796 = vmul.f32 %v9135, %v9779
        %v9797 = vmul.f32 %v9136, %v9783
        %v9798 = vmul.f32 %v9137, %v9787
        %v9799 = vmul.f32 %v9138, %v9791
        %v9800 = vld [vmem:[%s443] sm:$0xff]
        %v9801 = vld [vmem:[%s443 + $0x8] sm:$0xff]
        %v9802 = vld [vmem:[%s443 + $0x10] sm:$0xff]
        %v9803 = vld [vmem:[%s443 + $0x18] sm:$0xff]
        %v9804 = vld [vmem:[%s443 + $0x20] sm:$0xff]
        %v9805 = vld [vmem:[%s443 + $0x28] sm:$0xff]
        %v9806 = vld [vmem:[%s443 + $0x30] sm:$0xff]
        %v9807 = vld [vmem:[%s443 + $0x38] sm:$0xff]
        %v9808 = vadd.f32 %v9792, %v9800
        %v9809 = vadd.f32 %v9793, %v9801
        %v9810 = vadd.f32 %v9794, %v9802
        %v9811 = vadd.f32 %v9795, %v9803
        %v9812 = vadd.f32 %v9796, %v9804
        %v9813 = vadd.f32 %v9797, %v9805
        %v9814 = vadd.f32 %v9798, %v9806
        %v9815 = vadd.f32 %v9799, %v9807
        %vm9816 = vcmp.gt.f32.partialorder %v9808, 0.0
        %vm9817 = vcmp.gt.f32.partialorder %v9809, 0.0
        %vm9818 = vcmp.gt.f32.partialorder %v9810, 0.0
        %vm9819 = vcmp.gt.f32.partialorder %v9811, 0.0
        %vm9820 = vcmp.gt.f32.partialorder %v9812, 0.0
        %vm9821 = vcmp.gt.f32.partialorder %v9813, 0.0
        %vm9822 = vcmp.gt.f32.partialorder %v9814, 0.0
        %vm9823 = vcmp.gt.f32.partialorder %v9815, 0.0
        %v9824 = vld [vmem:[#allocation11] sm:$0xf]
        %v9826 = vlaneseq
        %v9827 = vshrl.u32 %v9826, 7
        %v9828 = vsub.s32 0, %v9827
        %v9829 = vrot.slane %v9824, %v9828
        %v9830 = vlaneseq
        %v9831 = vshrl.u32 %v9830, 7
        %v9832 = vsub.s32 1, %v9831
        %v9833 = vrot.slane %v9824, %v9832
        %v9834 = vlaneseq
        %v9835 = vshrl.u32 %v9834, 7
        %v9836 = vsub.s32 2, %v9835
        %v9837 = vrot.slane %v9824, %v9836
        %v9838 = vlaneseq
        %v9839 = vshrl.u32 %v9838, 7
        %v9840 = vsub.s32 3, %v9839
        %v9841 = vrot.slane %v9824, %v9840
        %v9846 = vmul.f32 %v9829, %v9808
        %v9847 = vmul.f32 %v9833, %v9809
        %v9848 = vmul.f32 %v9837, %v9810
        %v9849 = vmul.f32 %v9841, %v9811
        %v9850 = vmul.f32 %v9829, %v9812
        %v9851 = vmul.f32 %v9833, %v9813
        %v9852 = vmul.f32 %v9837, %v9814
        %v9853 = vmul.f32 %v9841, %v9815
        %v9854 = vsel %vm9816, %v9808, %v9846
        %v9855 = vsel %vm9817, %v9809, %v9847
        %v9856 = vsel %vm9818, %v9810, %v9848
        %v9857 = vsel %vm9819, %v9811, %v9849
        %v9858 = vsel %vm9820, %v9812, %v9850
        %v9859 = vsel %vm9821, %v9813, %v9851
        %v9860 = vsel %vm9822, %v9814, %v9852
        %v9861 = vsel %vm9823, %v9815, %v9853
        %9862 = vst [vmem:[%s484] sm:$0xff] %v9854
        %9863 = vst [vmem:[%s484 + $0x8] sm:$0xff] %v9855
        %9864 = vst [vmem:[%s484 + $0x10] sm:$0xff] %v9856
        %9865 = vst [vmem:[%s484 + $0x18] sm:$0xff] %v9857
        %9866 = vst [vmem:[%s484 + $0x20] sm:$0xff] %v9858
        %9867 = vst [vmem:[%s484 + $0x28] sm:$0xff] %v9859
        %9868 = vst [vmem:[%s484 + $0x30] sm:$0xff] %v9860
        %9869 = vst [vmem:[%s484 + $0x38] sm:$0xff] %v9861
        %s9870 = sand.u32 %s259, 1
        %s9871 = scalar_lea.sflag [#allocation4], %s9870
        %s9872 = sand.u32 %s259, 1
        %s9873 = smul.addr %s9872, 64
        %s9874 = scalar_lea.vmem [#allocation16], %s9873
        // Predicated region
        $region93: #{tpu_custom_call.1} parent=59 // pred_check
          %p9875 = pneg %p269
        $region94: #{tpu_custom_call.1} parent=59 // pred_check_branch
          %9877 = sbr.rel (%p9875) target = $region96
        $region95: #{tpu_custom_call.1} parent=59 // pred_region
          %s9879 = ssub.s32 1024, 1024
          %9880 = vsyncadd %s9871, %s9879
          %s9881 = smul.addr %s31, 8
          %s9882 = smul.addr %s9881, 128
          %s9883 = scalar_lea.hbm %s10, %s9882
          %s9884 = sshll.u32 %s9874, 4
          %s9885 = int_to_ptr.vmem [resolvable:$true] %s9884
          %9890 = dma.vmem_to_hbm [thread:$0]  %s9885, 1024, %s9883, %s9871, 512, 512, 32
        $region96: #{tpu_custom_call.1} parent=59 // pred_fallthru
          _
      $region60: #{tpu_custom_call.1} parent=5 // pred_fallthru
        _
      %p9891 = scmp.le.s32.totalorder 2, %s26
      // Predicated region
      $region97: #{tpu_custom_call.1} parent=5 // pred_check
        %p9892 = pneg %p9891
      $region98: #{tpu_custom_call.1} parent=5 // pred_check_branch
        %9894 = sbr.rel (%p9892) target = $region100
      $region99: #{tpu_custom_call.1} parent=5 // pred_region
        %s9895 = ssub.s32 %s26, 2
        // Predicated region
        $region101: #{tpu_custom_call.1} parent=99 // pred_check
          %p9896 = pneg %p275
        $region102: #{tpu_custom_call.1} parent=99 // pred_check_branch
          %9898 = sbr.rel (%p9896) target = $region104
        $region103: #{tpu_custom_call.1} parent=99 // pred_region
          %s9899 = sand.u32 %s260, 1
          %s9900 = scalar_lea.sflag [#allocation4], %s9899
          %s9901 = sand.u32 %s260, 1
          %s9902 = smul.addr %s9901, 64
          %s9903 = scalar_lea.vmem [#allocation16], %s9902
          %9904 = dma.done %s9900, 1024
        $region104: #{tpu_custom_call.1} parent=99 // pred_fallthru
          _
      $region100: #{tpu_custom_call.1} parent=5 // pred_fallthru
        _
    $region6: #{tpu_custom_call.1} parent=1 // loop_footer
      %s30 = sadd.s32 1, %s26
    $region7: #{tpu_custom_call.1} parent=1 // loop_footer_branch
      %25 = sbr.rel target = $region3
    $region8: #{tpu_custom_call.1} parent=1 // loop_exit
      _
    %9905 = vsyncpa [#allocation3], 1
    %s9906 = scalar_lea.sflag [#allocation3], 1
    %9907 = vsyncpa %s9906, 1
    %9908 = vsyncpa [#allocation6], 1
    %9909 = vsyncpa [#allocation9], 1
    %9910 = vsyncpa [#allocation12], 1
    %9911 = vsyncpa [#allocation15], 1
    %s9912 = scalar_lea.sflag [#allocation15], 1
    %9913 = vsyncpa %s9912, 1
    %9914 = vsyncpa [#allocation4], 1
    %s9915 = scalar_lea.sflag [#allocation4], 1
    %9916 = vsyncpa %s9915, 1

</llo_original>
